<compile_context>
chip_gen: v6e
topology: v6e:2x2x1
jax: 0.10.0
libtpu: 0.0.40
codegen_flags: <defaults>
</compile_context>

<pallas_src>
import functools

import jax
import jax.numpy as jnp
from jax.experimental import pallas as pl
from jax.experimental.pallas import tpu as pltpu


def _round_up(x, m):
  return (x + m - 1) // m * m


def _decoder_kernel(
    seq_ref, lab_ref,
    objw_ref, wiseq_ref, wiobj_ref, bin_ref, wst_ref, bst_ref,
    whead_ref, bhead_ref,
    out_ref,
    h_sc, c_sc, obje_sc,
    *, chunk, total_steps, n_obj_cls, commit_col, compute_dtype):
  c_idx = pl.program_id(1)            # sequential time-chunk axis (carries state)
  Bp = h_sc.shape[0]                  # batch rows in this batch block
  Hp = h_sc.shape[1]                  # padded hidden size (multiple of 128)
  Cp = out_ref.shape[2]               # padded output slab width (multiple of 128)
  Vp = objw_ref.shape[0]              # padded obj-embedding vocab
  cdt = compute_dtype

  @pl.when(c_idx == 0)
  def _init():
    h_sc[...] = jnp.zeros_like(h_sc)
    c_sc[...] = jnp.zeros_like(c_sc)
    # previous_obj_embed = obj_embed.weight[0] expanded to the batch block
    obje_sc[...] = jnp.broadcast_to(
        objw_ref[0:1, :].astype(jnp.float32), obje_sc.shape)

  # Hoisted iotas (JAX does not CSE broadcast_in_dim; keep them out of the loop).
  col = jax.lax.broadcasted_iota(jnp.int32, (Bp, Cp), 1)
  vrow = jax.lax.broadcasted_iota(jnp.int32, (Bp, Vp), 1)

  for k in range(chunk):              # unrolled; k is static

    @pl.when(c_idx * chunk + k < total_steps)
    def _step(k=k):
      seq = seq_ref[k].astype(cdt)                        # [Bp, Din]

      # projected_input = Linear(cat(seq, prev_obj_embed, prev_att_embed));
      # the constant prev_att_embed term is pre-folded into bin_ref.
      pi = jnp.dot(seq, wiseq_ref[...], preferred_element_type=jnp.float32)
      pi = pi + jnp.dot(obje_sc[...].astype(cdt), wiobj_ref[...],
                        preferred_element_type=jnp.float32)
      pi = pi + bin_ref[...]
      ps = jnp.dot(h_sc[...].astype(cdt), wst_ref[...],
                   preferred_element_type=jnp.float32) + bst_ref[...]

      # Gate math in f32; all slices are 128-aligned because Hp % 128 == 0.
      ig = jax.nn.sigmoid(pi[:, 0 * Hp:1 * Hp] + ps[:, 0 * Hp:1 * Hp])
      fg = jax.nn.sigmoid(pi[:, 1 * Hp:2 * Hp] + ps[:, 1 * Hp:2 * Hp])
      mi = jnp.tanh(pi[:, 2 * Hp:3 * Hp] + ps[:, 2 * Hp:3 * Hp])
      og = jax.nn.sigmoid(pi[:, 3 * Hp:4 * Hp] + ps[:, 3 * Hp:4 * Hp])
      mem = ig * mi + fg * c_sc[...]
      out = og * jnp.tanh(mem)
      hg = jax.nn.sigmoid(pi[:, 4 * Hp:5 * Hp] + ps[:, 4 * Hp:5 * Hp])
      h_new = hg * out + (1.0 - hg) * pi[:, 5 * Hp:6 * Hp]

      # Fused object + attribute head, lane-padded to Cp (single matmul).
      heads = jnp.dot(h_new.astype(cdt), whead_ref[...],
                      preferred_element_type=jnp.float32) + bhead_ref[...]

      # nonzero_pred = pred_dist[:, 1:].max(1)[1] + 1   (first-occurrence argmax)
      valid = jnp.logical_and(col >= 1, col < n_obj_cls)
      masked = jnp.where(valid, heads, -jnp.inf)
      mx = jnp.max(masked, axis=1, keepdims=True)
      cand = jnp.where(masked == mx, col, Cp)
      nonzero_pred = jnp.min(cand, axis=1, keepdims=True)   # [Bp, 1] int32

      labels = lab_ref[k]                                   # [Bp, 1] int32
      labels_to_embed = jnp.where(labels == 0, nonzero_pred, labels)

      # previous_obj_embed = obj_embed(labels_to_embed + 1), via one-hot matmul.
      onehot = (vrow == (labels_to_embed + 1)).astype(cdt)
      obje_sc[...] = jnp.dot(onehot, objw_ref[...],
                             preferred_element_type=jnp.float32)

      h_sc[...] = h_new
      c_sc[...] = mem

      # Lane-dense output slab: [ pred | attd | commit | zero-pad ]  (Cp lanes).
      slab = jnp.where(col == commit_col,
                       labels_to_embed.astype(jnp.float32), heads)
      out_ref[k] = slab


def attribute_decoder_forward(seq_packed, lengths, labels_packed, params,
                              *, chunk=8, compute_dtype=jnp.float32,
                              batch_block=None):
  """Runs the decoder.  lengths is a python list of (non-increasing) ints."""
  f32 = jnp.float32
  obj_w = params["obj_embed_w"]     # [n_obj_cls + 1, E]
  att_w = params["att_embed_w"]     # [n_att_cls, E]
  w_in, b_in = params["w_in"], params["b_in"]      # [Din+2E, 6H], [1, 6H]
  w_st, b_st = params["w_st"], params["b_st"]      # [H, 5H],     [1, 5H]
  w_obj, b_obj = params["w_obj"], params["b_obj"]  # [H, C_obj],  [1, C_obj]
  w_att, b_att = params["w_att"], params["b_att"]  # [H, C_att],  [1, C_att]

  T = len(lengths)
  B = int(lengths[0])
  Din = seq_packed.shape[1]
  E = obj_w.shape[1]
  H = w_st.shape[0]
  C_obj = w_obj.shape[1]
  C_att = w_att.shape[1]
  V_obj = obj_w.shape[0]

  # ---- padded sizes -------------------------------------------------------
  Hp = _round_up(H, 128)                 # gate-aligned hidden
  Ep = _round_up(E, 128)                 # lane-dense embed
  Vp = _round_up(V_obj, 8)
  commit_col = C_obj + C_att
  Cp = _round_up(commit_col + 1, 128)    # packed output slab width
  K = max(1, min(chunk, T))              # timesteps per grid step
  n_chunks = -(-T // K)
  Tp = n_chunks * K
  Bp = _round_up(B, 8)
  if batch_block is None:
    batch_block = Bp
  BB = _round_up(min(batch_block, Bp), 8)
  n_bblk = -(-Bp // BB)
  Bp = n_bblk * BB

  # ---- host-side weight preprocessing -------------------------------------
  def pad_gate_cols(w, n_gates):
    # [..., n_gates*H] -> [..., n_gates*Hp], each gate block zero-padded to Hp.
    lead = w.shape[:-1]
    w = w.reshape(lead + (n_gates, H))
    w = jnp.pad(w, [(0, 0)] * len(lead) + [(0, 0), (0, Hp - H)])
    return w.reshape(lead + (n_gates * Hp,))

  w_in_g = pad_gate_cols(w_in.astype(f32), 6)                       # [Din+2E, 6Hp]
  w_in_seq = w_in_g[:Din]                                           # [Din, 6Hp]
  w_in_obj = jnp.pad(w_in_g[Din:Din + E], ((0, Ep - E), (0, 0)))    # [Ep, 6Hp]
  w_in_att = w_in_g[Din + E:Din + 2 * E]                            # [E, 6Hp]
  # previous_att_embed is att_embed.weight[0] at every step -> fold into bias.
  b_in_eff = pad_gate_cols(b_in.astype(f32), 6) + \
      att_w[0:1].astype(f32) @ w_in_att                             # [1, 6Hp]

  w_st_p = jnp.pad(pad_gate_cols(w_st.astype(f32), 5), ((0, Hp - H), (0, 0)))
  b_st_p = pad_gate_cols(b_st.astype(f32), 5)

  # Fused, lane-padded object+attribute head.
  w_head = jnp.zeros((Hp, Cp), f32)
  w_head = w_head.at[:H, :C_obj].set(w_obj.astype(f32))
  w_head = w_head.at[:H, C_obj:commit_col].set(w_att.astype(f32))
  b_head = jnp.zeros((1, Cp), f32)
  b_head = b_head.at[:, :C_obj].set(b_obj.astype(f32))
  b_head = b_head.at[:, C_obj:commit_col].set(b_att.astype(f32))

  obj_w_p = jnp.zeros((Vp, Ep), f32).at[:V_obj, :E].set(obj_w.astype(f32))

  # Matmul operands in compute dtype (bf16 on v6e/v7x); accumulation stays f32.
  cdt = compute_dtype
  w_in_seq = w_in_seq.astype(cdt)
  w_in_obj = w_in_obj.astype(cdt)
  w_st_p = w_st_p.astype(cdt)
  w_head = w_head.astype(cdt)
  obj_w_p = obj_w_p.astype(cdt)

  # ---- pad the packed (ragged) sequence / labels to time-major dense form --
  seq_pad = jnp.zeros((Tp, Bp, Din), f32)
  lab_pad = jnp.zeros((Tp, Bp, 1), jnp.int32)
  end = 0
  for t, l in enumerate(lengths):
    seq_pad = seq_pad.at[t, :l].set(seq_packed[end:end + l].astype(f32))
    lab_pad = lab_pad.at[t, :l, 0].set(
        labels_packed[end:end + l].astype(jnp.int32))
    end += l

  kernel = functools.partial(
      _decoder_kernel, chunk=K, total_steps=T, n_obj_cls=C_obj,
      commit_col=commit_col, compute_dtype=cdt)

  wfull = lambda b, c: (0, 0)          # constant -> DMA'd once, reused
  step = lambda b, c: (c, b, 0)

  grid_spec = pltpu.PrefetchScalarGridSpec(
      num_scalar_prefetch=0,
      grid=(n_bblk, n_chunks),         # (parallel batch blocks, sequential time)
      in_specs=[
          pl.BlockSpec((K, BB, Din), step),
          pl.BlockSpec((K, BB, 1), step),
          pl.BlockSpec((Vp, Ep), wfull),
          pl.BlockSpec((Din, 6 * Hp), wfull),
          pl.BlockSpec((Ep, 6 * Hp), wfull),
          pl.BlockSpec((1, 6 * Hp), wfull),
          pl.BlockSpec((Hp, 5 * Hp), wfull),
          pl.BlockSpec((1, 5 * Hp), wfull),
          pl.BlockSpec((Hp, Cp), wfull),
          pl.BlockSpec((1, Cp), wfull),
      ],
      out_specs=pl.BlockSpec((K, BB, Cp), step),
      scratch_shapes=[
          pltpu.VMEM((BB, Hp), jnp.float32),   # h
          pltpu.VMEM((BB, Hp), jnp.float32),   # c
          pltpu.VMEM((BB, Ep), jnp.float32),   # previous_obj_embed
      ],
  )

  out_pad = pl.pallas_call(
      kernel,
      out_shape=jax.ShapeDtypeStruct((Tp, Bp, Cp), jnp.float32),
      grid_spec=grid_spec,
      compiler_params=pltpu.CompilerParams(
          dimension_semantics=("parallel", "arbitrary"),
          vmem_limit_bytes=48 * 1024 * 1024),
  )(seq_pad, lab_pad, obj_w_p, w_in_seq, w_in_obj, b_in_eff,
    w_st_p, b_st_p, w_head, b_head)

  # ---- re-pack into the PackedSequence ordering (glue) ---------------------
  rows_d, rows_a, rows_c = [], [], []
  for t, l in enumerate(lengths):
    blk = out_pad[t, :l]
    rows_d.append(blk[:, :C_obj])
    rows_a.append(blk[:, C_obj:commit_col])
    rows_c.append(blk[:, commit_col].astype(jnp.int32))
  out_dists = jnp.concatenate(rows_d, 0)
  att_dists = jnp.concatenate(rows_a, 0)
  out_commitments = jnp.concatenate(rows_c, 0)
  return out_dists, out_commitments, att_dists


def reference_forward(seq_packed, lengths, labels_packed, params):
  """Pure-JAX re-implementation of the PyTorch forward (training path)."""
  obj_w, att_w = params["obj_embed_w"], params["att_embed_w"]
  w_in, b_in = params["w_in"], params["b_in"]
  w_st, b_st = params["w_st"], params["b_st"]
  w_obj, b_obj = params["w_obj"], params["b_obj"]
  w_att, b_att = params["w_att"], params["b_att"]
  H = w_st.shape[0]
  E = obj_w.shape[1]
  B0 = int(lengths[0])

  h = jnp.zeros((B0, H), jnp.float32)
  c = jnp.zeros((B0, H), jnp.float32)
  obje = jnp.broadcast_to(obj_w[0:1], (B0, E))
  atte = jnp.broadcast_to(att_w[0:1], (B0, E))

  out_d, att_d, commits = [], [], []
  end = 0
  for l in lengths:
    start, end = end, end + l
    h, c, obje, atte = h[:l], c[:l], obje[:l], atte[:l]
    x = jnp.concatenate([seq_packed[start:end], obje, atte], axis=1)
    pi = x @ w_in + b_in[0]
    ps = h @ w_st + b_st[0]
    ig = jax.nn.sigmoid(pi[:, 0 * H:1 * H] + ps[:, 0 * H:1 * H])
    fg = jax.nn.sigmoid(pi[:, 1 * H:2 * H] + ps[:, 1 * H:2 * H])
    mi = jnp.tanh(pi[:, 2 * H:3 * H] + ps[:, 2 * H:3 * H])
    og = jax.nn.sigmoid(pi[:, 3 * H:4 * H] + ps[:, 3 * H:4 * H])
    c = ig * mi + fg * c
    out = og * jnp.tanh(c)
    hg = jax.nn.sigmoid(pi[:, 4 * H:5 * H] + ps[:, 4 * H:5 * H])
    h = hg * out + (1 - hg) * pi[:, 5 * H:6 * H]
    pred = h @ w_obj + b_obj[0]
    attd = h @ w_att + b_att[0]
    out_d.append(pred)
    att_d.append(attd)
    lab = labels_packed[start:end]
    nz = jnp.argmax(pred[:, 1:], axis=1).astype(jnp.int32) + 1
    lab2 = jnp.where(lab == 0, nz, lab)
    commits.append(lab2)
    obje = obj_w[lab2 + 1]
  return (jnp.concatenate(out_d, 0), jnp.concatenate(commits, 0),
          jnp.concatenate(att_d, 0))


if __name__ == "__main__":
  # Small, module-consistent shapes.
  N_OBJ_CLS = 8      # len(obj_classes)  -> out_obj width, embed table has +1 row
  N_ATT_CLS = 6      # len(att_classes)
  EMBED_DIM = 16
  INPUTS_DIM = 32
  HIDDEN = 32
  LENGTHS = [4, 3, 3, 2, 1]           # PackedSequence batch_lengths (non-increasing)
  N_TOTAL = sum(LENGTHS)

  key = jax.random.PRNGKey(0)
  ks = jax.random.split(key, 12)

  params = {
      "obj_embed_w": jax.random.normal(ks[0], (N_OBJ_CLS + 1, EMBED_DIM)) * 0.1,
      "att_embed_w": jax.random.normal(ks[1], (N_ATT_CLS, EMBED_DIM)) * 0.1,
      "w_in": jax.random.normal(
          ks[2], (INPUTS_DIM + 2 * EMBED_DIM, 6 * HIDDEN)) * 0.1,
      "b_in": jnp.zeros((1, 6 * HIDDEN), jnp.float32),   # init_parameters: 0
      "w_st": jax.random.normal(ks[3], (HIDDEN, 5 * HIDDEN)) * 0.1,
      "b_st": jnp.zeros((1, 5 * HIDDEN), jnp.float32),   # init_parameters: 0
      "w_obj": jax.random.normal(ks[4], (HIDDEN, N_OBJ_CLS)) * 0.1,
      "b_obj": jax.random.normal(ks[5], (1, N_OBJ_CLS)) * 0.1,
      "w_att": jax.random.normal(ks[6], (HIDDEN, N_ATT_CLS)) * 0.1,
      "b_att": jax.random.normal(ks[7], (1, N_ATT_CLS)) * 0.1,
  }
  params = jax.tree_util.tree_map(lambda x: x.astype(jnp.float32), params)

  seq_packed = jax.random.normal(ks[8], (N_TOTAL, INPUTS_DIM), jnp.float32)
  labels_packed = jax.random.randint(ks[9], (N_TOTAL,), 0, N_OBJ_CLS,
                                     dtype=jnp.int32)

  # --- f32 path: bit-for-bit-level check against the pure-JAX reference ------
  out_dists, out_commit, att_dists = attribute_decoder_forward(
      seq_packed, LENGTHS, labels_packed, params, chunk=4)
  jax.block_until_ready((out_dists, out_commit, att_dists))

  ref_dists, ref_commit, ref_att = reference_forward(
      seq_packed, LENGTHS, labels_packed, params)

  assert out_dists.shape == (N_TOTAL, N_OBJ_CLS)
  assert att_dists.shape == (N_TOTAL, N_ATT_CLS)
  assert out_commit.shape == (N_TOTAL,)
  assert jnp.allclose(out_dists, ref_dists, rtol=1e-3, atol=1e-4)
  assert jnp.allclose(att_dists, ref_att, rtol=1e-3, atol=1e-4)
  assert jnp.array_equal(out_commit, ref_commit.astype(out_commit.dtype))

  # --- bf16 MXU path (v6e/v7x perf config): run + sanity check only ----------
  # (bf16 matmuls intentionally change numerics; the recurrent argmax feedback
  #  makes a strict comparison against the f32 reference meaningless.)
  bf_d, bf_c, bf_a = attribute_decoder_forward(
      seq_packed, LENGTHS, labels_packed, params, chunk=4,
      compute_dtype=jnp.bfloat16)
  jax.block_until_ready((bf_d, bf_c, bf_a))
  assert bf_d.shape == out_dists.shape and bf_a.shape == att_dists.shape
  assert bf_c.shape == out_commit.shape
  assert bool(jnp.all(jnp.isfinite(bf_d))) and bool(jnp.all(jnp.isfinite(bf_a)))

  print("KERNEL_OK")
</pallas_src>

<mosaic_0001>
module attributes {stable_mosaic.version = 11 : i64} {
  func.func @_decoder_kernel(%arg0: i32, %arg1: i32, %arg2: memref<4x8x32xf32, #tpu.memory_space<vmem>>, %arg3: memref<4x8x1xi32, #tpu.memory_space<vmem>>, %arg4: memref<16x128xf32, #tpu.memory_space<vmem>>, %arg5: memref<32x768xf32, #tpu.memory_space<vmem>>, %arg6: memref<128x768xf32, #tpu.memory_space<vmem>>, %arg7: memref<1x768xf32, #tpu.memory_space<vmem>>, %arg8: memref<128x640xf32, #tpu.memory_space<vmem>>, %arg9: memref<1x640xf32, #tpu.memory_space<vmem>>, %arg10: memref<128x128xf32, #tpu.memory_space<vmem>>, %arg11: memref<1x128xf32, #tpu.memory_space<vmem>>, %arg12: memref<4x8x128xf32, #tpu.memory_space<vmem>>, %arg13: memref<8x128xf32, #tpu.memory_space<vmem>>, %arg14: memref<8x128xf32, #tpu.memory_space<vmem>>, %arg15: memref<8x128xf32, #tpu.memory_space<vmem>>) attributes {dimension_semantics = [#tpu.dimension_semantics<parallel>, #tpu.dimension_semantics<arbitrary>], iteration_bounds = array<i64: 1, 2>, scalar_prefetch = 0 : i64, scratch_operands = 3 : i64, tpu.core_type = #tpu.core_type<tc>, window_params = [{transform_indices = @transform_0, window_bounds = array<i64: 4, 8, 32>}, {transform_indices = @transform_1, window_bounds = array<i64: 4, 8, 1>}, {pipeline_mode = #tpu.pipeline_mode<synchronous>, transform_indices = @transform_2, window_bounds = array<i64: 16, 128>}, {pipeline_mode = #tpu.pipeline_mode<synchronous>, transform_indices = @transform_3, window_bounds = array<i64: 32, 768>}, {pipeline_mode = #tpu.pipeline_mode<synchronous>, transform_indices = @transform_4, window_bounds = array<i64: 128, 768>}, {pipeline_mode = #tpu.pipeline_mode<synchronous>, transform_indices = @transform_5, window_bounds = array<i64: 1, 768>}, {pipeline_mode = #tpu.pipeline_mode<synchronous>, transform_indices = @transform_6, window_bounds = array<i64: 128, 640>}, {pipeline_mode = #tpu.pipeline_mode<synchronous>, transform_indices = @transform_7, window_bounds = array<i64: 1, 640>}, {pipeline_mode = #tpu.pipeline_mode<synchronous>, transform_indices = @transform_8, window_bounds = array<i64: 128, 128>}, {pipeline_mode = #tpu.pipeline_mode<synchronous>, transform_indices = @transform_9, window_bounds = array<i64: 1, 128>}, {transform_indices = @transform_10, window_bounds = array<i64: 4, 8, 128>}]} {
    %c0_i32 = arith.constant 0 : i32
    %0 = arith.cmpi eq, %arg1, %c0_i32 : i32
    %1 = arith.extui %0 : i1 to i32
    %c0_i32_0 = arith.constant 0 : i32
    %2 = arith.cmpi ne, %1, %c0_i32_0 : i32
    scf.if %2 {
      %cst = arith.constant 0.000000e+00 : f32
      %25 = vector.broadcast %cst : f32 to vector<8x128xf32>
      %c0 = arith.constant 0 : index
      %c0_12 = arith.constant 0 : index
      %26 = vector.load %arg13[%c0, %c0_12] : memref<8x128xf32, #tpu.memory_space<vmem>>, vector<8x128xf32>
      tpu.vector_store %arg13[%c0, %c0_12], %25 {strides = array<i32>} : memref<8x128xf32, #tpu.memory_space<vmem>>, vector<8x128xf32>,
      %cst_13 = arith.constant 0.000000e+00 : f32
      %27 = vector.broadcast %cst_13 : f32 to vector<8x128xf32>
      %c0_14 = arith.constant 0 : index
      %c0_15 = arith.constant 0 : index
      %28 = vector.load %arg14[%c0_14, %c0_15] : memref<8x128xf32, #tpu.memory_space<vmem>>, vector<8x128xf32>
      tpu.vector_store %arg14[%c0_14, %c0_15], %27 {strides = array<i32>} : memref<8x128xf32, #tpu.memory_space<vmem>>, vector<8x128xf32>,
      %c0_16 = arith.constant 0 : index
      %c0_17 = arith.constant 0 : index
      %29 = vector.load %arg4[%c0_16, %c0_17] : memref<16x128xf32, #tpu.memory_space<vmem>>, vector<1x128xf32>
      %30 = vector.shape_cast %29 : vector<1x128xf32> to vector<1x128xf32>
      %31 = vector.broadcast %30 : vector<1x128xf32> to vector<8x128xf32>
      %c0_18 = arith.constant 0 : index
      %c0_19 = arith.constant 0 : index
      %32 = vector.load %arg15[%c0_18, %c0_19] : memref<8x128xf32, #tpu.memory_space<vmem>>, vector<8x128xf32>
      tpu.vector_store %arg15[%c0_18, %c0_19], %31 {strides = array<i32>} : memref<8x128xf32, #tpu.memory_space<vmem>>, vector<8x128xf32>,
    } else {
    }
    %3 = tpu.iota {dimensions = array<i32: 1>} : vector<8x128xi32>
    %4 = tpu.iota {dimensions = array<i32: 1>} : vector<8x16xi32>
    %c4_i32 = arith.constant 4 : i32
    %5 = arith.muli %arg1, %c4_i32 : i32
    %c0_i32_1 = arith.constant 0 : i32
    %6 = arith.addi %5, %c0_i32_1 : i32
    %c5_i32 = arith.constant 5 : i32
    %7 = arith.cmpi slt, %6, %c5_i32 : i32
    %8 = arith.extui %7 : i1 to i32
    %c0_i32_2 = arith.constant 0 : i32
    %9 = arith.cmpi ne, %8, %c0_i32_2 : i32
    scf.if %9 {
      %c0 = arith.constant 0 : index
      %c0_12 = arith.constant 0 : index
      %c0_13 = arith.constant 0 : index
      %25 = vector.load %arg2[%c0, %c0_12, %c0_13] : memref<4x8x32xf32, #tpu.memory_space<vmem>>, vector<1x8x32xf32>
      %26 = vector.shape_cast %25 : vector<1x8x32xf32> to vector<8x32xf32>
      %c0_14 = arith.constant 0 : index
      %c0_15 = arith.constant 0 : index
      %27 = vector.load %arg5[%c0_14, %c0_15] : memref<32x768xf32, #tpu.memory_space<vmem>>, vector<32x768xf32>
      %cst = arith.constant dense<0.000000e+00> : vector<8x768xf32>
      %28 = tpu.matmul %26, %27, %cst {dimension_numbers = #tpu.dot_dimension_numbers<[1], [0], [0], [1], [0, 0, 1, 1], [], []>} : vector<8x32xf32>, vector<32x768xf32>, vector<8x768xf32> -> vector<8x768xf32>
      %c0_16 = arith.constant 0 : index
      %c0_17 = arith.constant 0 : index
      %29 = vector.load %arg15[%c0_16, %c0_17] : memref<8x128xf32, #tpu.memory_space<vmem>>, vector<8x128xf32>
      %c0_18 = arith.constant 0 : index
      %c0_19 = arith.constant 0 : index
      %30 = vector.load %arg6[%c0_18, %c0_19] : memref<128x768xf32, #tpu.memory_space<vmem>>, vector<128x768xf32>
      %cst_20 = arith.constant dense<0.000000e+00> : vector<8x768xf32>
      %31 = tpu.matmul %29, %30, %cst_20 {dimension_numbers = #tpu.dot_dimension_numbers<[1], [0], [0], [1], [0, 0, 1, 1], [], []>} : vector<8x128xf32>, vector<128x768xf32>, vector<8x768xf32> -> vector<8x768xf32>
      %32 = arith.addf %28, %31 : vector<8x768xf32>
      %c0_21 = arith.constant 0 : index
      %c0_22 = arith.constant 0 : index
      %33 = vector.load %arg7[%c0_21, %c0_22] : memref<1x768xf32, #tpu.memory_space<vmem>>, vector<1x768xf32>
      %34 = vector.broadcast %33 : vector<1x768xf32> to vector<8x768xf32>
      %35 = arith.addf %32, %34 : vector<8x768xf32>
      %c0_23 = arith.constant 0 : index
      %c0_24 = arith.constant 0 : index
      %36 = vector.load %arg13[%c0_23, %c0_24] : memref<8x128xf32, #tpu.memory_space<vmem>>, vector<8x128xf32>
      %c0_25 = arith.constant 0 : index
      %c0_26 = arith.constant 0 : index
      %37 = vector.load %arg8[%c0_25, %c0_26] : memref<128x640xf32, #tpu.memory_space<vmem>>, vector<128x640xf32>
      %cst_27 = arith.constant dense<0.000000e+00> : vector<8x640xf32>
      %38 = tpu.matmul %36, %37, %cst_27 {dimension_numbers = #tpu.dot_dimension_numbers<[1], [0], [0], [1], [0, 0, 1, 1], [], []>} : vector<8x128xf32>, vector<128x640xf32>, vector<8x640xf32> -> vector<8x640xf32>
      %c0_28 = arith.constant 0 : index
      %c0_29 = arith.constant 0 : index
      %39 = vector.load %arg9[%c0_28, %c0_29] : memref<1x640xf32, #tpu.memory_space<vmem>>, vector<1x640xf32>
      %40 = vector.broadcast %39 : vector<1x640xf32> to vector<8x640xf32>
      %41 = arith.addf %38, %40 : vector<8x640xf32>
      %42 = vector.extract_strided_slice %35 {offsets = [0, 0], sizes = [8, 128], strides = [1, 1]} : vector<8x768xf32> to vector<8x128xf32>
      %43 = vector.extract_strided_slice %41 {offsets = [0, 0], sizes = [8, 128], strides = [1, 1]} : vector<8x640xf32> to vector<8x128xf32>
      %44 = arith.addf %42, %43 : vector<8x128xf32>
      %45 = arith.negf %44 : vector<8x128xf32>
      %46 = math.exp %45 : vector<8x128xf32>
      %cst_30 = arith.constant 1.000000e+00 : f32
      %47 = vector.broadcast %cst_30 : f32 to vector<8x128xf32>
      %48 = arith.addf %47, %46 : vector<8x128xf32>
      %49 = arith.divf %47, %48 : vector<8x128xf32>
      %50 = vector.extract_strided_slice %35 {offsets = [0, 128], sizes = [8, 128], strides = [1, 1]} : vector<8x768xf32> to vector<8x128xf32>
      %51 = vector.extract_strided_slice %41 {offsets = [0, 128], sizes = [8, 128], strides = [1, 1]} : vector<8x640xf32> to vector<8x128xf32>
      %52 = arith.addf %50, %51 : vector<8x128xf32>
      %53 = arith.negf %52 : vector<8x128xf32>
      %54 = math.exp %53 : vector<8x128xf32>
      %cst_31 = arith.constant 1.000000e+00 : f32
      %55 = vector.broadcast %cst_31 : f32 to vector<8x128xf32>
      %56 = arith.addf %55, %54 : vector<8x128xf32>
      %57 = arith.divf %55, %56 : vector<8x128xf32>
      %58 = vector.extract_strided_slice %35 {offsets = [0, 256], sizes = [8, 128], strides = [1, 1]} : vector<8x768xf32> to vector<8x128xf32>
      %59 = vector.extract_strided_slice %41 {offsets = [0, 256], sizes = [8, 128], strides = [1, 1]} : vector<8x640xf32> to vector<8x128xf32>
      %60 = arith.addf %58, %59 : vector<8x128xf32>
      %61 = math.tanh %60 : vector<8x128xf32>
      %62 = vector.extract_strided_slice %35 {offsets = [0, 384], sizes = [8, 128], strides = [1, 1]} : vector<8x768xf32> to vector<8x128xf32>
      %63 = vector.extract_strided_slice %41 {offsets = [0, 384], sizes = [8, 128], strides = [1, 1]} : vector<8x640xf32> to vector<8x128xf32>
      %64 = arith.addf %62, %63 : vector<8x128xf32>
      %65 = arith.negf %64 : vector<8x128xf32>
      %66 = math.exp %65 : vector<8x128xf32>
      %cst_32 = arith.constant 1.000000e+00 : f32
      %67 = vector.broadcast %cst_32 : f32 to vector<8x128xf32>
      %68 = arith.addf %67, %66 : vector<8x128xf32>
      %69 = arith.divf %67, %68 : vector<8x128xf32>
      %70 = arith.mulf %49, %61 : vector<8x128xf32>
      %c0_33 = arith.constant 0 : index
      %c0_34 = arith.constant 0 : index
      %71 = vector.load %arg14[%c0_33, %c0_34] : memref<8x128xf32, #tpu.memory_space<vmem>>, vector<8x128xf32>
      %72 = arith.mulf %57, %71 : vector<8x128xf32>
      %73 = arith.addf %70, %72 : vector<8x128xf32>
      %74 = math.tanh %73 : vector<8x128xf32>
      %75 = arith.mulf %69, %74 : vector<8x128xf32>
      %76 = vector.extract_strided_slice %35 {offsets = [0, 512], sizes = [8, 128], strides = [1, 1]} : vector<8x768xf32> to vector<8x128xf32>
      %77 = vector.extract_strided_slice %41 {offsets = [0, 512], sizes = [8, 128], strides = [1, 1]} : vector<8x640xf32> to vector<8x128xf32>
      %78 = arith.addf %76, %77 : vector<8x128xf32>
      %79 = arith.negf %78 : vector<8x128xf32>
      %80 = math.exp %79 : vector<8x128xf32>
      %cst_35 = arith.constant 1.000000e+00 : f32
      %81 = vector.broadcast %cst_35 : f32 to vector<8x128xf32>
      %82 = arith.addf %81, %80 : vector<8x128xf32>
      %83 = arith.divf %81, %82 : vector<8x128xf32>
      %84 = arith.mulf %83, %75 : vector<8x128xf32>
      %cst_36 = arith.constant 1.000000e+00 : f32
      %85 = vector.broadcast %cst_36 : f32 to vector<8x128xf32>
      %86 = arith.subf %85, %83 : vector<8x128xf32>
      %87 = vector.extract_strided_slice %35 {offsets = [0, 640], sizes = [8, 128], strides = [1, 1]} : vector<8x768xf32> to vector<8x128xf32>
      %88 = arith.mulf %86, %87 : vector<8x128xf32>
      %89 = arith.addf %84, %88 : vector<8x128xf32>
      %c0_37 = arith.constant 0 : index
      %c0_38 = arith.constant 0 : index
      %90 = vector.load %arg10[%c0_37, %c0_38] : memref<128x128xf32, #tpu.memory_space<vmem>>, vector<128x128xf32>
      %cst_39 = arith.constant dense<0.000000e+00> : vector<8x128xf32>
      %91 = tpu.matmul %89, %90, %cst_39 {dimension_numbers = #tpu.dot_dimension_numbers<[1], [0], [0], [1], [0, 0, 1, 1], [], []>} : vector<8x128xf32>, vector<128x128xf32>, vector<8x128xf32> -> vector<8x128xf32>
      %c0_40 = arith.constant 0 : index
      %c0_41 = arith.constant 0 : index
      %92 = vector.load %arg11[%c0_40, %c0_41] : memref<1x128xf32, #tpu.memory_space<vmem>>, vector<1x128xf32>
      %93 = vector.broadcast %92 : vector<1x128xf32> to vector<8x128xf32>
      %94 = arith.addf %91, %93 : vector<8x128xf32>
      %c1_i32_42 = arith.constant 1 : i32
      %95 = vector.broadcast %c1_i32_42 : i32 to vector<8x128xi32>
      %96 = arith.cmpi sge, %3, %95 : vector<8x128xi32>
      %c8_i32 = arith.constant 8 : i32
      %97 = vector.broadcast %c8_i32 : i32 to vector<8x128xi32>
      %98 = arith.cmpi slt, %3, %97 : vector<8x128xi32>
      %99 = arith.andi %96, %98 : vector<8x128xi1>
      %cst_43 = arith.constant 0xFF800000 : f32
      %100 = vector.broadcast %cst_43 : f32 to vector<8x128xf32>
      %101 = arith.select %99, %94, %100 : vector<8x128xi1>, vector<8x128xf32>
      %cst_44 = arith.constant dense<0xFF800000> : vector<8xf32>
      %102 = vector.multi_reduction <maximumf>, %101, %cst_44 [1] : vector<8x128xf32> to vector<8xf32>
      %103 = vector.shape_cast %102 : vector<8xf32> to vector<8x1xf32>
      %104 = vector.broadcast %103 : vector<8x1xf32> to vector<8x128xf32>
      %105 = arith.cmpf oeq, %101, %104 : vector<8x128xf32>
      %c128_i32 = arith.constant 128 : i32
      %106 = vector.broadcast %c128_i32 : i32 to vector<8x128xi32>
      %107 = arith.select %105, %3, %106 : vector<8x128xi1>, vector<8x128xi32>
      %cst_45 = arith.constant dense<2147483647> : vector<8xi32>
      %108 = vector.multi_reduction <minsi>, %107, %cst_45 [1] : vector<8x128xi32> to vector<8xi32>
      %109 = vector.shape_cast %108 : vector<8xi32> to vector<8x1xi32>
      %c0_46 = arith.constant 0 : index
      %c0_47 = arith.constant 0 : index
      %c0_48 = arith.constant 0 : index
      %110 = vector.load %arg3[%c0_46, %c0_47, %c0_48] : memref<4x8x1xi32, #tpu.memory_space<vmem>>, vector<1x8x1xi32>
      %111 = vector.shape_cast %110 : vector<1x8x1xi32> to vector<8x1xi32>
      %c0_i32_49 = arith.constant 0 : i32
      %112 = vector.broadcast %c0_i32_49 : i32 to vector<8x1xi32>
      %113 = arith.cmpi eq, %111, %112 : vector<8x1xi32>
      %114 = arith.select %113, %109, %111 : vector<8x1xi1>, vector<8x1xi32>
      %c1_i32_50 = arith.constant 1 : i32
      %115 = vector.broadcast %c1_i32_50 : i32 to vector<8x1xi32>
      %116 = arith.addi %114, %115 : vector<8x1xi32>
      %117 = vector.broadcast %116 : vector<8x1xi32> to vector<8x16xi32>
      %118 = arith.cmpi eq, %4, %117 : vector<8x16xi32>
      %119 = arith.extui %118 : vector<8x16xi1> to vector<8x16xi32>
      %120 = arith.sitofp %119 : vector<8x16xi32> to vector<8x16xf32>
      %c0_51 = arith.constant 0 : index
      %c0_52 = arith.constant 0 : index
      %121 = vector.load %arg4[%c0_51, %c0_52] : memref<16x128xf32, #tpu.memory_space<vmem>>, vector<16x128xf32>
      %cst_53 = arith.constant dense<0.000000e+00> : vector<8x128xf32>
      %122 = tpu.matmul %120, %121, %cst_53 {dimension_numbers = #tpu.dot_dimension_numbers<[1], [0], [0], [1], [0, 0, 1, 1], [], []>} : vector<8x16xf32>, vector<16x128xf32>, vector<8x128xf32> -> vector<8x128xf32>
      %c0_54 = arith.constant 0 : index
      %c0_55 = arith.constant 0 : index
      %123 = vector.load %arg15[%c0_54, %c0_55] : memref<8x128xf32, #tpu.memory_space<vmem>>, vector<8x128xf32>
      tpu.vector_store %arg15[%c0_54, %c0_55], %122 {strides = array<i32>} : memref<8x128xf32, #tpu.memory_space<vmem>>, vector<8x128xf32>,
      %c0_56 = arith.constant 0 : index
      %c0_57 = arith.constant 0 : index
      %124 = vector.load %arg13[%c0_56, %c0_57] : memref<8x128xf32, #tpu.memory_space<vmem>>, vector<8x128xf32>
      tpu.vector_store %arg13[%c0_56, %c0_57], %89 {strides = array<i32>} : memref<8x128xf32, #tpu.memory_space<vmem>>, vector<8x128xf32>,
      %c0_58 = arith.constant 0 : index
      %c0_59 = arith.constant 0 : index
      %125 = vector.load %arg14[%c0_58, %c0_59] : memref<8x128xf32, #tpu.memory_space<vmem>>, vector<8x128xf32>
      tpu.vector_store %arg14[%c0_58, %c0_59], %73 {strides = array<i32>} : memref<8x128xf32, #tpu.memory_space<vmem>>, vector<8x128xf32>,
      %c14_i32 = arith.constant 14 : i32
      %126 = vector.broadcast %c14_i32 : i32 to vector<8x128xi32>
      %127 = arith.cmpi eq, %3, %126 : vector<8x128xi32>
      %128 = arith.sitofp %114 : vector<8x1xi32> to vector<8x1xf32>
      %129 = vector.shape_cast %128 : vector<8x1xf32> to vector<8x1xf32>
      %130 = vector.broadcast %129 : vector<8x1xf32> to vector<8x128xf32>
      %131 = arith.select %127, %130, %94 : vector<8x128xi1>, vector<8x128xf32>
      %c0_60 = arith.constant 0 : index
      %c0_61 = arith.constant 0 : index
      %c0_62 = arith.constant 0 : index
      %132 = vector.load %arg12[%c0_60, %c0_61, %c0_62] : memref<4x8x128xf32, #tpu.memory_space<vmem>>, vector<1x8x128xf32>
      %133 = vector.shape_cast %132 : vector<1x8x128xf32> to vector<8x128xf32>
      %134 = vector.shape_cast %131 : vector<8x128xf32> to vector<1x8x128xf32>
      tpu.vector_store %arg12[%c0_60, %c0_61, %c0_62], %134 {strides = array<i32>} : memref<4x8x128xf32, #tpu.memory_space<vmem>>, vector<1x8x128xf32>,
    } else {
    }
    %c4_i32_3 = arith.constant 4 : i32
    %10 = arith.muli %arg1, %c4_i32_3 : i32
    %c1_i32 = arith.constant 1 : i32
    %11 = arith.addi %10, %c1_i32 : i32
    %c5_i32_4 = arith.constant 5 : i32
    %12 = arith.cmpi slt, %11, %c5_i32_4 : i32
    %13 = arith.extui %12 : i1 to i32
    %c0_i32_5 = arith.constant 0 : i32
    %14 = arith.cmpi ne, %13, %c0_i32_5 : i32
    scf.if %14 {
      %c1 = arith.constant 1 : index
      %c0 = arith.constant 0 : index
      %c0_12 = arith.constant 0 : index
      %25 = vector.load %arg2[%c1, %c0, %c0_12] : memref<4x8x32xf32, #tpu.memory_space<vmem>>, vector<1x8x32xf32>
      %26 = vector.shape_cast %25 : vector<1x8x32xf32> to vector<8x32xf32>
      %c0_13 = arith.constant 0 : index
      %c0_14 = arith.constant 0 : index
      %27 = vector.load %arg5[%c0_13, %c0_14] : memref<32x768xf32, #tpu.memory_space<vmem>>, vector<32x768xf32>
      %cst = arith.constant dense<0.000000e+00> : vector<8x768xf32>
      %28 = tpu.matmul %26, %27, %cst {dimension_numbers = #tpu.dot_dimension_numbers<[1], [0], [0], [1], [0, 0, 1, 1], [], []>} : vector<8x32xf32>, vector<32x768xf32>, vector<8x768xf32> -> vector<8x768xf32>
      %c0_15 = arith.constant 0 : index
      %c0_16 = arith.constant 0 : index
      %29 = vector.load %arg15[%c0_15, %c0_16] : memref<8x128xf32, #tpu.memory_space<vmem>>, vector<8x128xf32>
      %c0_17 = arith.constant 0 : index
      %c0_18 = arith.constant 0 : index
      %30 = vector.load %arg6[%c0_17, %c0_18] : memref<128x768xf32, #tpu.memory_space<vmem>>, vector<128x768xf32>
      %cst_19 = arith.constant dense<0.000000e+00> : vector<8x768xf32>
      %31 = tpu.matmul %29, %30, %cst_19 {dimension_numbers = #tpu.dot_dimension_numbers<[1], [0], [0], [1], [0, 0, 1, 1], [], []>} : vector<8x128xf32>, vector<128x768xf32>, vector<8x768xf32> -> vector<8x768xf32>
      %32 = arith.addf %28, %31 : vector<8x768xf32>
      %c0_20 = arith.constant 0 : index
      %c0_21 = arith.constant 0 : index
      %33 = vector.load %arg7[%c0_20, %c0_21] : memref<1x768xf32, #tpu.memory_space<vmem>>, vector<1x768xf32>
      %34 = vector.broadcast %33 : vector<1x768xf32> to vector<8x768xf32>
      %35 = arith.addf %32, %34 : vector<8x768xf32>
      %c0_22 = arith.constant 0 : index
      %c0_23 = arith.constant 0 : index
      %36 = vector.load %arg13[%c0_22, %c0_23] : memref<8x128xf32, #tpu.memory_space<vmem>>, vector<8x128xf32>
      %c0_24 = arith.constant 0 : index
      %c0_25 = arith.constant 0 : index
      %37 = vector.load %arg8[%c0_24, %c0_25] : memref<128x640xf32, #tpu.memory_space<vmem>>, vector<128x640xf32>
      %cst_26 = arith.constant dense<0.000000e+00> : vector<8x640xf32>
      %38 = tpu.matmul %36, %37, %cst_26 {dimension_numbers = #tpu.dot_dimension_numbers<[1], [0], [0], [1], [0, 0, 1, 1], [], []>} : vector<8x128xf32>, vector<128x640xf32>, vector<8x640xf32> -> vector<8x640xf32>
      %c0_27 = arith.constant 0 : index
      %c0_28 = arith.constant 0 : index
      %39 = vector.load %arg9[%c0_27, %c0_28] : memref<1x640xf32, #tpu.memory_space<vmem>>, vector<1x640xf32>
      %40 = vector.broadcast %39 : vector<1x640xf32> to vector<8x640xf32>
      %41 = arith.addf %38, %40 : vector<8x640xf32>
      %42 = vector.extract_strided_slice %35 {offsets = [0, 0], sizes = [8, 128], strides = [1, 1]} : vector<8x768xf32> to vector<8x128xf32>
      %43 = vector.extract_strided_slice %41 {offsets = [0, 0], sizes = [8, 128], strides = [1, 1]} : vector<8x640xf32> to vector<8x128xf32>
      %44 = arith.addf %42, %43 : vector<8x128xf32>
      %45 = arith.negf %44 : vector<8x128xf32>
      %46 = math.exp %45 : vector<8x128xf32>
      %cst_29 = arith.constant 1.000000e+00 : f32
      %47 = vector.broadcast %cst_29 : f32 to vector<8x128xf32>
      %48 = arith.addf %47, %46 : vector<8x128xf32>
      %49 = arith.divf %47, %48 : vector<8x128xf32>
      %50 = vector.extract_strided_slice %35 {offsets = [0, 128], sizes = [8, 128], strides = [1, 1]} : vector<8x768xf32> to vector<8x128xf32>
      %51 = vector.extract_strided_slice %41 {offsets = [0, 128], sizes = [8, 128], strides = [1, 1]} : vector<8x640xf32> to vector<8x128xf32>
      %52 = arith.addf %50, %51 : vector<8x128xf32>
      %53 = arith.negf %52 : vector<8x128xf32>
      %54 = math.exp %53 : vector<8x128xf32>
      %cst_30 = arith.constant 1.000000e+00 : f32
      %55 = vector.broadcast %cst_30 : f32 to vector<8x128xf32>
      %56 = arith.addf %55, %54 : vector<8x128xf32>
      %57 = arith.divf %55, %56 : vector<8x128xf32>
      %58 = vector.extract_strided_slice %35 {offsets = [0, 256], sizes = [8, 128], strides = [1, 1]} : vector<8x768xf32> to vector<8x128xf32>
      %59 = vector.extract_strided_slice %41 {offsets = [0, 256], sizes = [8, 128], strides = [1, 1]} : vector<8x640xf32> to vector<8x128xf32>
      %60 = arith.addf %58, %59 : vector<8x128xf32>
      %61 = math.tanh %60 : vector<8x128xf32>
      %62 = vector.extract_strided_slice %35 {offsets = [0, 384], sizes = [8, 128], strides = [1, 1]} : vector<8x768xf32> to vector<8x128xf32>
      %63 = vector.extract_strided_slice %41 {offsets = [0, 384], sizes = [8, 128], strides = [1, 1]} : vector<8x640xf32> to vector<8x128xf32>
      %64 = arith.addf %62, %63 : vector<8x128xf32>
      %65 = arith.negf %64 : vector<8x128xf32>
      %66 = math.exp %65 : vector<8x128xf32>
      %cst_31 = arith.constant 1.000000e+00 : f32
      %67 = vector.broadcast %cst_31 : f32 to vector<8x128xf32>
      %68 = arith.addf %67, %66 : vector<8x128xf32>
      %69 = arith.divf %67, %68 : vector<8x128xf32>
      %70 = arith.mulf %49, %61 : vector<8x128xf32>
      %c0_32 = arith.constant 0 : index
      %c0_33 = arith.constant 0 : index
      %71 = vector.load %arg14[%c0_32, %c0_33] : memref<8x128xf32, #tpu.memory_space<vmem>>, vector<8x128xf32>
      %72 = arith.mulf %57, %71 : vector<8x128xf32>
      %73 = arith.addf %70, %72 : vector<8x128xf32>
      %74 = math.tanh %73 : vector<8x128xf32>
      %75 = arith.mulf %69, %74 : vector<8x128xf32>
      %76 = vector.extract_strided_slice %35 {offsets = [0, 512], sizes = [8, 128], strides = [1, 1]} : vector<8x768xf32> to vector<8x128xf32>
      %77 = vector.extract_strided_slice %41 {offsets = [0, 512], sizes = [8, 128], strides = [1, 1]} : vector<8x640xf32> to vector<8x128xf32>
      %78 = arith.addf %76, %77 : vector<8x128xf32>
      %79 = arith.negf %78 : vector<8x128xf32>
      %80 = math.exp %79 : vector<8x128xf32>
      %cst_34 = arith.constant 1.000000e+00 : f32
      %81 = vector.broadcast %cst_34 : f32 to vector<8x128xf32>
      %82 = arith.addf %81, %80 : vector<8x128xf32>
      %83 = arith.divf %81, %82 : vector<8x128xf32>
      %84 = arith.mulf %83, %75 : vector<8x128xf32>
      %cst_35 = arith.constant 1.000000e+00 : f32
      %85 = vector.broadcast %cst_35 : f32 to vector<8x128xf32>
      %86 = arith.subf %85, %83 : vector<8x128xf32>
      %87 = vector.extract_strided_slice %35 {offsets = [0, 640], sizes = [8, 128], strides = [1, 1]} : vector<8x768xf32> to vector<8x128xf32>
      %88 = arith.mulf %86, %87 : vector<8x128xf32>
      %89 = arith.addf %84, %88 : vector<8x128xf32>
      %c0_36 = arith.constant 0 : index
      %c0_37 = arith.constant 0 : index
      %90 = vector.load %arg10[%c0_36, %c0_37] : memref<128x128xf32, #tpu.memory_space<vmem>>, vector<128x128xf32>
      %cst_38 = arith.constant dense<0.000000e+00> : vector<8x128xf32>
      %91 = tpu.matmul %89, %90, %cst_38 {dimension_numbers = #tpu.dot_dimension_numbers<[1], [0], [0], [1], [0, 0, 1, 1], [], []>} : vector<8x128xf32>, vector<128x128xf32>, vector<8x128xf32> -> vector<8x128xf32>
      %c0_39 = arith.constant 0 : index
      %c0_40 = arith.constant 0 : index
      %92 = vector.load %arg11[%c0_39, %c0_40] : memref<1x128xf32, #tpu.memory_space<vmem>>, vector<1x128xf32>
      %93 = vector.broadcast %92 : vector<1x128xf32> to vector<8x128xf32>
      %94 = arith.addf %91, %93 : vector<8x128xf32>
      %c1_i32_41 = arith.constant 1 : i32
      %95 = vector.broadcast %c1_i32_41 : i32 to vector<8x128xi32>
      %96 = arith.cmpi sge, %3, %95 : vector<8x128xi32>
      %c8_i32 = arith.constant 8 : i32
      %97 = vector.broadcast %c8_i32 : i32 to vector<8x128xi32>
      %98 = arith.cmpi slt, %3, %97 : vector<8x128xi32>
      %99 = arith.andi %96, %98 : vector<8x128xi1>
      %cst_42 = arith.constant 0xFF800000 : f32
      %100 = vector.broadcast %cst_42 : f32 to vector<8x128xf32>
      %101 = arith.select %99, %94, %100 : vector<8x128xi1>, vector<8x128xf32>
      %cst_43 = arith.constant dense<0xFF800000> : vector<8xf32>
      %102 = vector.multi_reduction <maximumf>, %101, %cst_43 [1] : vector<8x128xf32> to vector<8xf32>
      %103 = vector.shape_cast %102 : vector<8xf32> to vector<8x1xf32>
      %104 = vector.broadcast %103 : vector<8x1xf32> to vector<8x128xf32>
      %105 = arith.cmpf oeq, %101, %104 : vector<8x128xf32>
      %c128_i32 = arith.constant 128 : i32
      %106 = vector.broadcast %c128_i32 : i32 to vector<8x128xi32>
      %107 = arith.select %105, %3, %106 : vector<8x128xi1>, vector<8x128xi32>
      %cst_44 = arith.constant dense<2147483647> : vector<8xi32>
      %108 = vector.multi_reduction <minsi>, %107, %cst_44 [1] : vector<8x128xi32> to vector<8xi32>
      %109 = vector.shape_cast %108 : vector<8xi32> to vector<8x1xi32>
      %c1_45 = arith.constant 1 : index
      %c0_46 = arith.constant 0 : index
      %c0_47 = arith.constant 0 : index
      %110 = vector.load %arg3[%c1_45, %c0_46, %c0_47] : memref<4x8x1xi32, #tpu.memory_space<vmem>>, vector<1x8x1xi32>
      %111 = vector.shape_cast %110 : vector<1x8x1xi32> to vector<8x1xi32>
      %c0_i32_48 = arith.constant 0 : i32
      %112 = vector.broadcast %c0_i32_48 : i32 to vector<8x1xi32>
      %113 = arith.cmpi eq, %111, %112 : vector<8x1xi32>
      %114 = arith.select %113, %109, %111 : vector<8x1xi1>, vector<8x1xi32>
      %c1_i32_49 = arith.constant 1 : i32
      %115 = vector.broadcast %c1_i32_49 : i32 to vector<8x1xi32>
      %116 = arith.addi %114, %115 : vector<8x1xi32>
      %117 = vector.broadcast %116 : vector<8x1xi32> to vector<8x16xi32>
      %118 = arith.cmpi eq, %4, %117 : vector<8x16xi32>
      %119 = arith.extui %118 : vector<8x16xi1> to vector<8x16xi32>
      %120 = arith.sitofp %119 : vector<8x16xi32> to vector<8x16xf32>
      %c0_50 = arith.constant 0 : index
      %c0_51 = arith.constant 0 : index
      %121 = vector.load %arg4[%c0_50, %c0_51] : memref<16x128xf32, #tpu.memory_space<vmem>>, vector<16x128xf32>
      %cst_52 = arith.constant dense<0.000000e+00> : vector<8x128xf32>
      %122 = tpu.matmul %120, %121, %cst_52 {dimension_numbers = #tpu.dot_dimension_numbers<[1], [0], [0], [1], [0, 0, 1, 1], [], []>} : vector<8x16xf32>, vector<16x128xf32>, vector<8x128xf32> -> vector<8x128xf32>
      %c0_53 = arith.constant 0 : index
      %c0_54 = arith.constant 0 : index
      %123 = vector.load %arg15[%c0_53, %c0_54] : memref<8x128xf32, #tpu.memory_space<vmem>>, vector<8x128xf32>
      tpu.vector_store %arg15[%c0_53, %c0_54], %122 {strides = array<i32>} : memref<8x128xf32, #tpu.memory_space<vmem>>, vector<8x128xf32>,
      %c0_55 = arith.constant 0 : index
      %c0_56 = arith.constant 0 : index
      %124 = vector.load %arg13[%c0_55, %c0_56] : memref<8x128xf32, #tpu.memory_space<vmem>>, vector<8x128xf32>
      tpu.vector_store %arg13[%c0_55, %c0_56], %89 {strides = array<i32>} : memref<8x128xf32, #tpu.memory_space<vmem>>, vector<8x128xf32>,
      %c0_57 = arith.constant 0 : index
      %c0_58 = arith.constant 0 : index
      %125 = vector.load %arg14[%c0_57, %c0_58] : memref<8x128xf32, #tpu.memory_space<vmem>>, vector<8x128xf32>
      tpu.vector_store %arg14[%c0_57, %c0_58], %73 {strides = array<i32>} : memref<8x128xf32, #tpu.memory_space<vmem>>, vector<8x128xf32>,
      %c14_i32 = arith.constant 14 : i32
      %126 = vector.broadcast %c14_i32 : i32 to vector<8x128xi32>
      %127 = arith.cmpi eq, %3, %126 : vector<8x128xi32>
      %128 = arith.sitofp %114 : vector<8x1xi32> to vector<8x1xf32>
      %129 = vector.shape_cast %128 : vector<8x1xf32> to vector<8x1xf32>
      %130 = vector.broadcast %129 : vector<8x1xf32> to vector<8x128xf32>
      %131 = arith.select %127, %130, %94 : vector<8x128xi1>, vector<8x128xf32>
      %c1_59 = arith.constant 1 : index
      %c0_60 = arith.constant 0 : index
      %c0_61 = arith.constant 0 : index
      %132 = vector.load %arg12[%c1_59, %c0_60, %c0_61] : memref<4x8x128xf32, #tpu.memory_space<vmem>>, vector<1x8x128xf32>
      %133 = vector.shape_cast %132 : vector<1x8x128xf32> to vector<8x128xf32>
      %134 = vector.shape_cast %131 : vector<8x128xf32> to vector<1x8x128xf32>
      tpu.vector_store %arg12[%c1_59, %c0_60, %c0_61], %134 {strides = array<i32>} : memref<4x8x128xf32, #tpu.memory_space<vmem>>, vector<1x8x128xf32>,
    } else {
    }
    %c4_i32_6 = arith.constant 4 : i32
    %15 = arith.muli %arg1, %c4_i32_6 : i32
    %c2_i32 = arith.constant 2 : i32
    %16 = arith.addi %15, %c2_i32 : i32
    %c5_i32_7 = arith.constant 5 : i32
    %17 = arith.cmpi slt, %16, %c5_i32_7 : i32
    %18 = arith.extui %17 : i1 to i32
    %c0_i32_8 = arith.constant 0 : i32
    %19 = arith.cmpi ne, %18, %c0_i32_8 : i32
    scf.if %19 {
      %c2 = arith.constant 2 : index
      %c0 = arith.constant 0 : index
      %c0_12 = arith.constant 0 : index
      %25 = vector.load %arg2[%c2, %c0, %c0_12] : memref<4x8x32xf32, #tpu.memory_space<vmem>>, vector<1x8x32xf32>
      %26 = vector.shape_cast %25 : vector<1x8x32xf32> to vector<8x32xf32>
      %c0_13 = arith.constant 0 : index
      %c0_14 = arith.constant 0 : index
      %27 = vector.load %arg5[%c0_13, %c0_14] : memref<32x768xf32, #tpu.memory_space<vmem>>, vector<32x768xf32>
      %cst = arith.constant dense<0.000000e+00> : vector<8x768xf32>
      %28 = tpu.matmul %26, %27, %cst {dimension_numbers = #tpu.dot_dimension_numbers<[1], [0], [0], [1], [0, 0, 1, 1], [], []>} : vector<8x32xf32>, vector<32x768xf32>, vector<8x768xf32> -> vector<8x768xf32>
      %c0_15 = arith.constant 0 : index
      %c0_16 = arith.constant 0 : index
      %29 = vector.load %arg15[%c0_15, %c0_16] : memref<8x128xf32, #tpu.memory_space<vmem>>, vector<8x128xf32>
      %c0_17 = arith.constant 0 : index
      %c0_18 = arith.constant 0 : index
      %30 = vector.load %arg6[%c0_17, %c0_18] : memref<128x768xf32, #tpu.memory_space<vmem>>, vector<128x768xf32>
      %cst_19 = arith.constant dense<0.000000e+00> : vector<8x768xf32>
      %31 = tpu.matmul %29, %30, %cst_19 {dimension_numbers = #tpu.dot_dimension_numbers<[1], [0], [0], [1], [0, 0, 1, 1], [], []>} : vector<8x128xf32>, vector<128x768xf32>, vector<8x768xf32> -> vector<8x768xf32>
      %32 = arith.addf %28, %31 : vector<8x768xf32>
      %c0_20 = arith.constant 0 : index
      %c0_21 = arith.constant 0 : index
      %33 = vector.load %arg7[%c0_20, %c0_21] : memref<1x768xf32, #tpu.memory_space<vmem>>, vector<1x768xf32>
      %34 = vector.broadcast %33 : vector<1x768xf32> to vector<8x768xf32>
      %35 = arith.addf %32, %34 : vector<8x768xf32>
      %c0_22 = arith.constant 0 : index
      %c0_23 = arith.constant 0 : index
      %36 = vector.load %arg13[%c0_22, %c0_23] : memref<8x128xf32, #tpu.memory_space<vmem>>, vector<8x128xf32>
      %c0_24 = arith.constant 0 : index
      %c0_25 = arith.constant 0 : index
      %37 = vector.load %arg8[%c0_24, %c0_25] : memref<128x640xf32, #tpu.memory_space<vmem>>, vector<128x640xf32>
      %cst_26 = arith.constant dense<0.000000e+00> : vector<8x640xf32>
      %38 = tpu.matmul %36, %37, %cst_26 {dimension_numbers = #tpu.dot_dimension_numbers<[1], [0], [0], [1], [0, 0, 1, 1], [], []>} : vector<8x128xf32>, vector<128x640xf32>, vector<8x640xf32> -> vector<8x640xf32>
      %c0_27 = arith.constant 0 : index
      %c0_28 = arith.constant 0 : index
      %39 = vector.load %arg9[%c0_27, %c0_28] : memref<1x640xf32, #tpu.memory_space<vmem>>, vector<1x640xf32>
      %40 = vector.broadcast %39 : vector<1x640xf32> to vector<8x640xf32>
      %41 = arith.addf %38, %40 : vector<8x640xf32>
      %42 = vector.extract_strided_slice %35 {offsets = [0, 0], sizes = [8, 128], strides = [1, 1]} : vector<8x768xf32> to vector<8x128xf32>
      %43 = vector.extract_strided_slice %41 {offsets = [0, 0], sizes = [8, 128], strides = [1, 1]} : vector<8x640xf32> to vector<8x128xf32>
      %44 = arith.addf %42, %43 : vector<8x128xf32>
      %45 = arith.negf %44 : vector<8x128xf32>
      %46 = math.exp %45 : vector<8x128xf32>
      %cst_29 = arith.constant 1.000000e+00 : f32
      %47 = vector.broadcast %cst_29 : f32 to vector<8x128xf32>
      %48 = arith.addf %47, %46 : vector<8x128xf32>
      %49 = arith.divf %47, %48 : vector<8x128xf32>
      %50 = vector.extract_strided_slice %35 {offsets = [0, 128], sizes = [8, 128], strides = [1, 1]} : vector<8x768xf32> to vector<8x128xf32>
      %51 = vector.extract_strided_slice %41 {offsets = [0, 128], sizes = [8, 128], strides = [1, 1]} : vector<8x640xf32> to vector<8x128xf32>
      %52 = arith.addf %50, %51 : vector<8x128xf32>
      %53 = arith.negf %52 : vector<8x128xf32>
      %54 = math.exp %53 : vector<8x128xf32>
      %cst_30 = arith.constant 1.000000e+00 : f32
      %55 = vector.broadcast %cst_30 : f32 to vector<8x128xf32>
      %56 = arith.addf %55, %54 : vector<8x128xf32>
      %57 = arith.divf %55, %56 : vector<8x128xf32>
      %58 = vector.extract_strided_slice %35 {offsets = [0, 256], sizes = [8, 128], strides = [1, 1]} : vector<8x768xf32> to vector<8x128xf32>
      %59 = vector.extract_strided_slice %41 {offsets = [0, 256], sizes = [8, 128], strides = [1, 1]} : vector<8x640xf32> to vector<8x128xf32>
      %60 = arith.addf %58, %59 : vector<8x128xf32>
      %61 = math.tanh %60 : vector<8x128xf32>
      %62 = vector.extract_strided_slice %35 {offsets = [0, 384], sizes = [8, 128], strides = [1, 1]} : vector<8x768xf32> to vector<8x128xf32>
      %63 = vector.extract_strided_slice %41 {offsets = [0, 384], sizes = [8, 128], strides = [1, 1]} : vector<8x640xf32> to vector<8x128xf32>
      %64 = arith.addf %62, %63 : vector<8x128xf32>
      %65 = arith.negf %64 : vector<8x128xf32>
      %66 = math.exp %65 : vector<8x128xf32>
      %cst_31 = arith.constant 1.000000e+00 : f32
      %67 = vector.broadcast %cst_31 : f32 to vector<8x128xf32>
      %68 = arith.addf %67, %66 : vector<8x128xf32>
      %69 = arith.divf %67, %68 : vector<8x128xf32>
      %70 = arith.mulf %49, %61 : vector<8x128xf32>
      %c0_32 = arith.constant 0 : index
      %c0_33 = arith.constant 0 : index
      %71 = vector.load %arg14[%c0_32, %c0_33] : memref<8x128xf32, #tpu.memory_space<vmem>>, vector<8x128xf32>
      %72 = arith.mulf %57, %71 : vector<8x128xf32>
      %73 = arith.addf %70, %72 : vector<8x128xf32>
      %74 = math.tanh %73 : vector<8x128xf32>
      %75 = arith.mulf %69, %74 : vector<8x128xf32>
      %76 = vector.extract_strided_slice %35 {offsets = [0, 512], sizes = [8, 128], strides = [1, 1]} : vector<8x768xf32> to vector<8x128xf32>
      %77 = vector.extract_strided_slice %41 {offsets = [0, 512], sizes = [8, 128], strides = [1, 1]} : vector<8x640xf32> to vector<8x128xf32>
      %78 = arith.addf %76, %77 : vector<8x128xf32>
      %79 = arith.negf %78 : vector<8x128xf32>
      %80 = math.exp %79 : vector<8x128xf32>
      %cst_34 = arith.constant 1.000000e+00 : f32
      %81 = vector.broadcast %cst_34 : f32 to vector<8x128xf32>
      %82 = arith.addf %81, %80 : vector<8x128xf32>
      %83 = arith.divf %81, %82 : vector<8x128xf32>
      %84 = arith.mulf %83, %75 : vector<8x128xf32>
      %cst_35 = arith.constant 1.000000e+00 : f32
      %85 = vector.broadcast %cst_35 : f32 to vector<8x128xf32>
      %86 = arith.subf %85, %83 : vector<8x128xf32>
      %87 = vector.extract_strided_slice %35 {offsets = [0, 640], sizes = [8, 128], strides = [1, 1]} : vector<8x768xf32> to vector<8x128xf32>
      %88 = arith.mulf %86, %87 : vector<8x128xf32>
      %89 = arith.addf %84, %88 : vector<8x128xf32>
      %c0_36 = arith.constant 0 : index
      %c0_37 = arith.constant 0 : index
      %90 = vector.load %arg10[%c0_36, %c0_37] : memref<128x128xf32, #tpu.memory_space<vmem>>, vector<128x128xf32>
      %cst_38 = arith.constant dense<0.000000e+00> : vector<8x128xf32>
      %91 = tpu.matmul %89, %90, %cst_38 {dimension_numbers = #tpu.dot_dimension_numbers<[1], [0], [0], [1], [0, 0, 1, 1], [], []>} : vector<8x128xf32>, vector<128x128xf32>, vector<8x128xf32> -> vector<8x128xf32>
      %c0_39 = arith.constant 0 : index
      %c0_40 = arith.constant 0 : index
      %92 = vector.load %arg11[%c0_39, %c0_40] : memref<1x128xf32, #tpu.memory_space<vmem>>, vector<1x128xf32>
      %93 = vector.broadcast %92 : vector<1x128xf32> to vector<8x128xf32>
      %94 = arith.addf %91, %93 : vector<8x128xf32>
      %c1_i32_41 = arith.constant 1 : i32
      %95 = vector.broadcast %c1_i32_41 : i32 to vector<8x128xi32>
      %96 = arith.cmpi sge, %3, %95 : vector<8x128xi32>
      %c8_i32 = arith.constant 8 : i32
      %97 = vector.broadcast %c8_i32 : i32 to vector<8x128xi32>
      %98 = arith.cmpi slt, %3, %97 : vector<8x128xi32>
      %99 = arith.andi %96, %98 : vector<8x128xi1>
      %cst_42 = arith.constant 0xFF800000 : f32
      %100 = vector.broadcast %cst_42 : f32 to vector<8x128xf32>
      %101 = arith.select %99, %94, %100 : vector<8x128xi1>, vector<8x128xf32>
      %cst_43 = arith.constant dense<0xFF800000> : vector<8xf32>
      %102 = vector.multi_reduction <maximumf>, %101, %cst_43 [1] : vector<8x128xf32> to vector<8xf32>
      %103 = vector.shape_cast %102 : vector<8xf32> to vector<8x1xf32>
      %104 = vector.broadcast %103 : vector<8x1xf32> to vector<8x128xf32>
      %105 = arith.cmpf oeq, %101, %104 : vector<8x128xf32>
      %c128_i32 = arith.constant 128 : i32
      %106 = vector.broadcast %c128_i32 : i32 to vector<8x128xi32>
      %107 = arith.select %105, %3, %106 : vector<8x128xi1>, vector<8x128xi32>
      %cst_44 = arith.constant dense<2147483647> : vector<8xi32>
      %108 = vector.multi_reduction <minsi>, %107, %cst_44 [1] : vector<8x128xi32> to vector<8xi32>
      %109 = vector.shape_cast %108 : vector<8xi32> to vector<8x1xi32>
      %c2_45 = arith.constant 2 : index
      %c0_46 = arith.constant 0 : index
      %c0_47 = arith.constant 0 : index
      %110 = vector.load %arg3[%c2_45, %c0_46, %c0_47] : memref<4x8x1xi32, #tpu.memory_space<vmem>>, vector<1x8x1xi32>
      %111 = vector.shape_cast %110 : vector<1x8x1xi32> to vector<8x1xi32>
      %c0_i32_48 = arith.constant 0 : i32
      %112 = vector.broadcast %c0_i32_48 : i32 to vector<8x1xi32>
      %113 = arith.cmpi eq, %111, %112 : vector<8x1xi32>
      %114 = arith.select %113, %109, %111 : vector<8x1xi1>, vector<8x1xi32>
      %c1_i32_49 = arith.constant 1 : i32
      %115 = vector.broadcast %c1_i32_49 : i32 to vector<8x1xi32>
      %116 = arith.addi %114, %115 : vector<8x1xi32>
      %117 = vector.broadcast %116 : vector<8x1xi32> to vector<8x16xi32>
      %118 = arith.cmpi eq, %4, %117 : vector<8x16xi32>
      %119 = arith.extui %118 : vector<8x16xi1> to vector<8x16xi32>
      %120 = arith.sitofp %119 : vector<8x16xi32> to vector<8x16xf32>
      %c0_50 = arith.constant 0 : index
      %c0_51 = arith.constant 0 : index
      %121 = vector.load %arg4[%c0_50, %c0_51] : memref<16x128xf32, #tpu.memory_space<vmem>>, vector<16x128xf32>
      %cst_52 = arith.constant dense<0.000000e+00> : vector<8x128xf32>
      %122 = tpu.matmul %120, %121, %cst_52 {dimension_numbers = #tpu.dot_dimension_numbers<[1], [0], [0], [1], [0, 0, 1, 1], [], []>} : vector<8x16xf32>, vector<16x128xf32>, vector<8x128xf32> -> vector<8x128xf32>
      %c0_53 = arith.constant 0 : index
      %c0_54 = arith.constant 0 : index
      %123 = vector.load %arg15[%c0_53, %c0_54] : memref<8x128xf32, #tpu.memory_space<vmem>>, vector<8x128xf32>
      tpu.vector_store %arg15[%c0_53, %c0_54], %122 {strides = array<i32>} : memref<8x128xf32, #tpu.memory_space<vmem>>, vector<8x128xf32>,
      %c0_55 = arith.constant 0 : index
      %c0_56 = arith.constant 0 : index
      %124 = vector.load %arg13[%c0_55, %c0_56] : memref<8x128xf32, #tpu.memory_space<vmem>>, vector<8x128xf32>
      tpu.vector_store %arg13[%c0_55, %c0_56], %89 {strides = array<i32>} : memref<8x128xf32, #tpu.memory_space<vmem>>, vector<8x128xf32>,
      %c0_57 = arith.constant 0 : index
      %c0_58 = arith.constant 0 : index
      %125 = vector.load %arg14[%c0_57, %c0_58] : memref<8x128xf32, #tpu.memory_space<vmem>>, vector<8x128xf32>
      tpu.vector_store %arg14[%c0_57, %c0_58], %73 {strides = array<i32>} : memref<8x128xf32, #tpu.memory_space<vmem>>, vector<8x128xf32>,
      %c14_i32 = arith.constant 14 : i32
      %126 = vector.broadcast %c14_i32 : i32 to vector<8x128xi32>
      %127 = arith.cmpi eq, %3, %126 : vector<8x128xi32>
      %128 = arith.sitofp %114 : vector<8x1xi32> to vector<8x1xf32>
      %129 = vector.shape_cast %128 : vector<8x1xf32> to vector<8x1xf32>
      %130 = vector.broadcast %129 : vector<8x1xf32> to vector<8x128xf32>
      %131 = arith.select %127, %130, %94 : vector<8x128xi1>, vector<8x128xf32>
      %c2_59 = arith.constant 2 : index
      %c0_60 = arith.constant 0 : index
      %c0_61 = arith.constant 0 : index
      %132 = vector.load %arg12[%c2_59, %c0_60, %c0_61] : memref<4x8x128xf32, #tpu.memory_space<vmem>>, vector<1x8x128xf32>
      %133 = vector.shape_cast %132 : vector<1x8x128xf32> to vector<8x128xf32>
      %134 = vector.shape_cast %131 : vector<8x128xf32> to vector<1x8x128xf32>
      tpu.vector_store %arg12[%c2_59, %c0_60, %c0_61], %134 {strides = array<i32>} : memref<4x8x128xf32, #tpu.memory_space<vmem>>, vector<1x8x128xf32>,
    } else {
    }
    %c4_i32_9 = arith.constant 4 : i32
    %20 = arith.muli %arg1, %c4_i32_9 : i32
    %c3_i32 = arith.constant 3 : i32
    %21 = arith.addi %20, %c3_i32 : i32
    %c5_i32_10 = arith.constant 5 : i32
    %22 = arith.cmpi slt, %21, %c5_i32_10 : i32
    %23 = arith.extui %22 : i1 to i32
    %c0_i32_11 = arith.constant 0 : i32
    %24 = arith.cmpi ne, %23, %c0_i32_11 : i32
    scf.if %24 {
      %c3 = arith.constant 3 : index
      %c0 = arith.constant 0 : index
      %c0_12 = arith.constant 0 : index
      %25 = vector.load %arg2[%c3, %c0, %c0_12] : memref<4x8x32xf32, #tpu.memory_space<vmem>>, vector<1x8x32xf32>
      %26 = vector.shape_cast %25 : vector<1x8x32xf32> to vector<8x32xf32>
      %c0_13 = arith.constant 0 : index
      %c0_14 = arith.constant 0 : index
      %27 = vector.load %arg5[%c0_13, %c0_14] : memref<32x768xf32, #tpu.memory_space<vmem>>, vector<32x768xf32>
      %cst = arith.constant dense<0.000000e+00> : vector<8x768xf32>
      %28 = tpu.matmul %26, %27, %cst {dimension_numbers = #tpu.dot_dimension_numbers<[1], [0], [0], [1], [0, 0, 1, 1], [], []>} : vector<8x32xf32>, vector<32x768xf32>, vector<8x768xf32> -> vector<8x768xf32>
      %c0_15 = arith.constant 0 : index
      %c0_16 = arith.constant 0 : index
      %29 = vector.load %arg15[%c0_15, %c0_16] : memref<8x128xf32, #tpu.memory_space<vmem>>, vector<8x128xf32>
      %c0_17 = arith.constant 0 : index
      %c0_18 = arith.constant 0 : index
      %30 = vector.load %arg6[%c0_17, %c0_18] : memref<128x768xf32, #tpu.memory_space<vmem>>, vector<128x768xf32>
      %cst_19 = arith.constant dense<0.000000e+00> : vector<8x768xf32>
      %31 = tpu.matmul %29, %30, %cst_19 {dimension_numbers = #tpu.dot_dimension_numbers<[1], [0], [0], [1], [0, 0, 1, 1], [], []>} : vector<8x128xf32>, vector<128x768xf32>, vector<8x768xf32> -> vector<8x768xf32>
      %32 = arith.addf %28, %31 : vector<8x768xf32>
      %c0_20 = arith.constant 0 : index
      %c0_21 = arith.constant 0 : index
      %33 = vector.load %arg7[%c0_20, %c0_21] : memref<1x768xf32, #tpu.memory_space<vmem>>, vector<1x768xf32>
      %34 = vector.broadcast %33 : vector<1x768xf32> to vector<8x768xf32>
      %35 = arith.addf %32, %34 : vector<8x768xf32>
      %c0_22 = arith.constant 0 : index
      %c0_23 = arith.constant 0 : index
      %36 = vector.load %arg13[%c0_22, %c0_23] : memref<8x128xf32, #tpu.memory_space<vmem>>, vector<8x128xf32>
      %c0_24 = arith.constant 0 : index
      %c0_25 = arith.constant 0 : index
      %37 = vector.load %arg8[%c0_24, %c0_25] : memref<128x640xf32, #tpu.memory_space<vmem>>, vector<128x640xf32>
      %cst_26 = arith.constant dense<0.000000e+00> : vector<8x640xf32>
      %38 = tpu.matmul %36, %37, %cst_26 {dimension_numbers = #tpu.dot_dimension_numbers<[1], [0], [0], [1], [0, 0, 1, 1], [], []>} : vector<8x128xf32>, vector<128x640xf32>, vector<8x640xf32> -> vector<8x640xf32>
      %c0_27 = arith.constant 0 : index
      %c0_28 = arith.constant 0 : index
      %39 = vector.load %arg9[%c0_27, %c0_28] : memref<1x640xf32, #tpu.memory_space<vmem>>, vector<1x640xf32>
      %40 = vector.broadcast %39 : vector<1x640xf32> to vector<8x640xf32>
      %41 = arith.addf %38, %40 : vector<8x640xf32>
      %42 = vector.extract_strided_slice %35 {offsets = [0, 0], sizes = [8, 128], strides = [1, 1]} : vector<8x768xf32> to vector<8x128xf32>
      %43 = vector.extract_strided_slice %41 {offsets = [0, 0], sizes = [8, 128], strides = [1, 1]} : vector<8x640xf32> to vector<8x128xf32>
      %44 = arith.addf %42, %43 : vector<8x128xf32>
      %45 = arith.negf %44 : vector<8x128xf32>
      %46 = math.exp %45 : vector<8x128xf32>
      %cst_29 = arith.constant 1.000000e+00 : f32
      %47 = vector.broadcast %cst_29 : f32 to vector<8x128xf32>
      %48 = arith.addf %47, %46 : vector<8x128xf32>
      %49 = arith.divf %47, %48 : vector<8x128xf32>
      %50 = vector.extract_strided_slice %35 {offsets = [0, 128], sizes = [8, 128], strides = [1, 1]} : vector<8x768xf32> to vector<8x128xf32>
      %51 = vector.extract_strided_slice %41 {offsets = [0, 128], sizes = [8, 128], strides = [1, 1]} : vector<8x640xf32> to vector<8x128xf32>
      %52 = arith.addf %50, %51 : vector<8x128xf32>
      %53 = arith.negf %52 : vector<8x128xf32>
      %54 = math.exp %53 : vector<8x128xf32>
      %cst_30 = arith.constant 1.000000e+00 : f32
      %55 = vector.broadcast %cst_30 : f32 to vector<8x128xf32>
      %56 = arith.addf %55, %54 : vector<8x128xf32>
      %57 = arith.divf %55, %56 : vector<8x128xf32>
      %58 = vector.extract_strided_slice %35 {offsets = [0, 256], sizes = [8, 128], strides = [1, 1]} : vector<8x768xf32> to vector<8x128xf32>
      %59 = vector.extract_strided_slice %41 {offsets = [0, 256], sizes = [8, 128], strides = [1, 1]} : vector<8x640xf32> to vector<8x128xf32>
      %60 = arith.addf %58, %59 : vector<8x128xf32>
      %61 = math.tanh %60 : vector<8x128xf32>
      %62 = vector.extract_strided_slice %35 {offsets = [0, 384], sizes = [8, 128], strides = [1, 1]} : vector<8x768xf32> to vector<8x128xf32>
      %63 = vector.extract_strided_slice %41 {offsets = [0, 384], sizes = [8, 128], strides = [1, 1]} : vector<8x640xf32> to vector<8x128xf32>
      %64 = arith.addf %62, %63 : vector<8x128xf32>
      %65 = arith.negf %64 : vector<8x128xf32>
      %66 = math.exp %65 : vector<8x128xf32>
      %cst_31 = arith.constant 1.000000e+00 : f32
      %67 = vector.broadcast %cst_31 : f32 to vector<8x128xf32>
      %68 = arith.addf %67, %66 : vector<8x128xf32>
      %69 = arith.divf %67, %68 : vector<8x128xf32>
      %70 = arith.mulf %49, %61 : vector<8x128xf32>
      %c0_32 = arith.constant 0 : index
      %c0_33 = arith.constant 0 : index
      %71 = vector.load %arg14[%c0_32, %c0_33] : memref<8x128xf32, #tpu.memory_space<vmem>>, vector<8x128xf32>
      %72 = arith.mulf %57, %71 : vector<8x128xf32>
      %73 = arith.addf %70, %72 : vector<8x128xf32>
      %74 = math.tanh %73 : vector<8x128xf32>
      %75 = arith.mulf %69, %74 : vector<8x128xf32>
      %76 = vector.extract_strided_slice %35 {offsets = [0, 512], sizes = [8, 128], strides = [1, 1]} : vector<8x768xf32> to vector<8x128xf32>
      %77 = vector.extract_strided_slice %41 {offsets = [0, 512], sizes = [8, 128], strides = [1, 1]} : vector<8x640xf32> to vector<8x128xf32>
      %78 = arith.addf %76, %77 : vector<8x128xf32>
      %79 = arith.negf %78 : vector<8x128xf32>
      %80 = math.exp %79 : vector<8x128xf32>
      %cst_34 = arith.constant 1.000000e+00 : f32
      %81 = vector.broadcast %cst_34 : f32 to vector<8x128xf32>
      %82 = arith.addf %81, %80 : vector<8x128xf32>
      %83 = arith.divf %81, %82 : vector<8x128xf32>
      %84 = arith.mulf %83, %75 : vector<8x128xf32>
      %cst_35 = arith.constant 1.000000e+00 : f32
      %85 = vector.broadcast %cst_35 : f32 to vector<8x128xf32>
      %86 = arith.subf %85, %83 : vector<8x128xf32>
      %87 = vector.extract_strided_slice %35 {offsets = [0, 640], sizes = [8, 128], strides = [1, 1]} : vector<8x768xf32> to vector<8x128xf32>
      %88 = arith.mulf %86, %87 : vector<8x128xf32>
      %89 = arith.addf %84, %88 : vector<8x128xf32>
      %c0_36 = arith.constant 0 : index
      %c0_37 = arith.constant 0 : index
      %90 = vector.load %arg10[%c0_36, %c0_37] : memref<128x128xf32, #tpu.memory_space<vmem>>, vector<128x128xf32>
      %cst_38 = arith.constant dense<0.000000e+00> : vector<8x128xf32>
      %91 = tpu.matmul %89, %90, %cst_38 {dimension_numbers = #tpu.dot_dimension_numbers<[1], [0], [0], [1], [0, 0, 1, 1], [], []>} : vector<8x128xf32>, vector<128x128xf32>, vector<8x128xf32> -> vector<8x128xf32>
      %c0_39 = arith.constant 0 : index
      %c0_40 = arith.constant 0 : index
      %92 = vector.load %arg11[%c0_39, %c0_40] : memref<1x128xf32, #tpu.memory_space<vmem>>, vector<1x128xf32>
      %93 = vector.broadcast %92 : vector<1x128xf32> to vector<8x128xf32>
      %94 = arith.addf %91, %93 : vector<8x128xf32>
      %c1_i32_41 = arith.constant 1 : i32
      %95 = vector.broadcast %c1_i32_41 : i32 to vector<8x128xi32>
      %96 = arith.cmpi sge, %3, %95 : vector<8x128xi32>
      %c8_i32 = arith.constant 8 : i32
      %97 = vector.broadcast %c8_i32 : i32 to vector<8x128xi32>
      %98 = arith.cmpi slt, %3, %97 : vector<8x128xi32>
      %99 = arith.andi %96, %98 : vector<8x128xi1>
      %cst_42 = arith.constant 0xFF800000 : f32
      %100 = vector.broadcast %cst_42 : f32 to vector<8x128xf32>
      %101 = arith.select %99, %94, %100 : vector<8x128xi1>, vector<8x128xf32>
      %cst_43 = arith.constant dense<0xFF800000> : vector<8xf32>
      %102 = vector.multi_reduction <maximumf>, %101, %cst_43 [1] : vector<8x128xf32> to vector<8xf32>
      %103 = vector.shape_cast %102 : vector<8xf32> to vector<8x1xf32>
      %104 = vector.broadcast %103 : vector<8x1xf32> to vector<8x128xf32>
      %105 = arith.cmpf oeq, %101, %104 : vector<8x128xf32>
      %c128_i32 = arith.constant 128 : i32
      %106 = vector.broadcast %c128_i32 : i32 to vector<8x128xi32>
      %107 = arith.select %105, %3, %106 : vector<8x128xi1>, vector<8x128xi32>
      %cst_44 = arith.constant dense<2147483647> : vector<8xi32>
      %108 = vector.multi_reduction <minsi>, %107, %cst_44 [1] : vector<8x128xi32> to vector<8xi32>
      %109 = vector.shape_cast %108 : vector<8xi32> to vector<8x1xi32>
      %c3_45 = arith.constant 3 : index
      %c0_46 = arith.constant 0 : index
      %c0_47 = arith.constant 0 : index
      %110 = vector.load %arg3[%c3_45, %c0_46, %c0_47] : memref<4x8x1xi32, #tpu.memory_space<vmem>>, vector<1x8x1xi32>
      %111 = vector.shape_cast %110 : vector<1x8x1xi32> to vector<8x1xi32>
      %c0_i32_48 = arith.constant 0 : i32
      %112 = vector.broadcast %c0_i32_48 : i32 to vector<8x1xi32>
      %113 = arith.cmpi eq, %111, %112 : vector<8x1xi32>
      %114 = arith.select %113, %109, %111 : vector<8x1xi1>, vector<8x1xi32>
      %c1_i32_49 = arith.constant 1 : i32
      %115 = vector.broadcast %c1_i32_49 : i32 to vector<8x1xi32>
      %116 = arith.addi %114, %115 : vector<8x1xi32>
      %117 = vector.broadcast %116 : vector<8x1xi32> to vector<8x16xi32>
      %118 = arith.cmpi eq, %4, %117 : vector<8x16xi32>
      %119 = arith.extui %118 : vector<8x16xi1> to vector<8x16xi32>
      %120 = arith.sitofp %119 : vector<8x16xi32> to vector<8x16xf32>
      %c0_50 = arith.constant 0 : index
      %c0_51 = arith.constant 0 : index
      %121 = vector.load %arg4[%c0_50, %c0_51] : memref<16x128xf32, #tpu.memory_space<vmem>>, vector<16x128xf32>
      %cst_52 = arith.constant dense<0.000000e+00> : vector<8x128xf32>
      %122 = tpu.matmul %120, %121, %cst_52 {dimension_numbers = #tpu.dot_dimension_numbers<[1], [0], [0], [1], [0, 0, 1, 1], [], []>} : vector<8x16xf32>, vector<16x128xf32>, vector<8x128xf32> -> vector<8x128xf32>
      %c0_53 = arith.constant 0 : index
      %c0_54 = arith.constant 0 : index
      %123 = vector.load %arg15[%c0_53, %c0_54] : memref<8x128xf32, #tpu.memory_space<vmem>>, vector<8x128xf32>
      tpu.vector_store %arg15[%c0_53, %c0_54], %122 {strides = array<i32>} : memref<8x128xf32, #tpu.memory_space<vmem>>, vector<8x128xf32>,
      %c0_55 = arith.constant 0 : index
      %c0_56 = arith.constant 0 : index
      %124 = vector.load %arg13[%c0_55, %c0_56] : memref<8x128xf32, #tpu.memory_space<vmem>>, vector<8x128xf32>
      tpu.vector_store %arg13[%c0_55, %c0_56], %89 {strides = array<i32>} : memref<8x128xf32, #tpu.memory_space<vmem>>, vector<8x128xf32>,
      %c0_57 = arith.constant 0 : index
      %c0_58 = arith.constant 0 : index
      %125 = vector.load %arg14[%c0_57, %c0_58] : memref<8x128xf32, #tpu.memory_space<vmem>>, vector<8x128xf32>
      tpu.vector_store %arg14[%c0_57, %c0_58], %73 {strides = array<i32>} : memref<8x128xf32, #tpu.memory_space<vmem>>, vector<8x128xf32>,
      %c14_i32 = arith.constant 14 : i32
      %126 = vector.broadcast %c14_i32 : i32 to vector<8x128xi32>
      %127 = arith.cmpi eq, %3, %126 : vector<8x128xi32>
      %128 = arith.sitofp %114 : vector<8x1xi32> to vector<8x1xf32>
      %129 = vector.shape_cast %128 : vector<8x1xf32> to vector<8x1xf32>
      %130 = vector.broadcast %129 : vector<8x1xf32> to vector<8x128xf32>
      %131 = arith.select %127, %130, %94 : vector<8x128xi1>, vector<8x128xf32>
      %c3_59 = arith.constant 3 : index
      %c0_60 = arith.constant 0 : index
      %c0_61 = arith.constant 0 : index
      %132 = vector.load %arg12[%c3_59, %c0_60, %c0_61] : memref<4x8x128xf32, #tpu.memory_space<vmem>>, vector<1x8x128xf32>
      %133 = vector.shape_cast %132 : vector<1x8x128xf32> to vector<8x128xf32>
      %134 = vector.shape_cast %131 : vector<8x128xf32> to vector<1x8x128xf32>
      tpu.vector_store %arg12[%c3_59, %c0_60, %c0_61], %134 {strides = array<i32>} : memref<4x8x128xf32, #tpu.memory_space<vmem>>, vector<1x8x128xf32>,
    } else {
    }
    return
  }
  func.func @transform_0(%arg0: i32, %arg1: i32) -> (i32, i32, i32) {
    %c0_i32 = arith.constant 0 : i32
    %c0_i32_0 = arith.constant 0 : i32
    return %arg1, %arg0, %c0_i32 : i32, i32, i32
  }
  func.func @transform_1(%arg0: i32, %arg1: i32) -> (i32, i32, i32) {
    %c0_i32 = arith.constant 0 : i32
    %c0_i32_0 = arith.constant 0 : i32
    return %arg1, %arg0, %c0_i32 : i32, i32, i32
  }
  func.func @transform_2(%arg0: i32, %arg1: i32) -> (i32, i32) {
    %c0_i32 = arith.constant 0 : i32
    %c0_i32_0 = arith.constant 0 : i32
    %c0_i32_1 = arith.constant 0 : i32
    return %c0_i32, %c0_i32_0 : i32, i32
  }
  func.func @transform_3(%arg0: i32, %arg1: i32) -> (i32, i32) {
    %c0_i32 = arith.constant 0 : i32
    %c0_i32_0 = arith.constant 0 : i32
    %c0_i32_1 = arith.constant 0 : i32
    return %c0_i32, %c0_i32_0 : i32, i32
  }
  func.func @transform_4(%arg0: i32, %arg1: i32) -> (i32, i32) {
    %c0_i32 = arith.constant 0 : i32
    %c0_i32_0 = arith.constant 0 : i32
    %c0_i32_1 = arith.constant 0 : i32
    return %c0_i32, %c0_i32_0 : i32, i32
  }
  func.func @transform_5(%arg0: i32, %arg1: i32) -> (i32, i32) {
    %c0_i32 = arith.constant 0 : i32
    %c0_i32_0 = arith.constant 0 : i32
    %c0_i32_1 = arith.constant 0 : i32
    return %c0_i32, %c0_i32_0 : i32, i32
  }
  func.func @transform_6(%arg0: i32, %arg1: i32) -> (i32, i32) {
    %c0_i32 = arith.constant 0 : i32
    %c0_i32_0 = arith.constant 0 : i32
    %c0_i32_1 = arith.constant 0 : i32
    return %c0_i32, %c0_i32_0 : i32, i32
  }
  func.func @transform_7(%arg0: i32, %arg1: i32) -> (i32, i32) {
    %c0_i32 = arith.constant 0 : i32
    %c0_i32_0 = arith.constant 0 : i32
    %c0_i32_1 = arith.constant 0 : i32
    return %c0_i32, %c0_i32_0 : i32, i32
  }
  func.func @transform_8(%arg0: i32, %arg1: i32) -> (i32, i32) {
    %c0_i32 = arith.constant 0 : i32
    %c0_i32_0 = arith.constant 0 : i32
    %c0_i32_1 = arith.constant 0 : i32
    return %c0_i32, %c0_i32_0 : i32, i32
  }
  func.func @transform_9(%arg0: i32, %arg1: i32) -> (i32, i32) {
    %c0_i32 = arith.constant 0 : i32
    %c0_i32_0 = arith.constant 0 : i32
    %c0_i32_1 = arith.constant 0 : i32
    return %c0_i32, %c0_i32_0 : i32, i32
  }
  func.func @transform_10(%arg0: i32, %arg1: i32) -> (i32, i32, i32) {
    %c0_i32 = arith.constant 0 : i32
    %c0_i32_0 = arith.constant 0 : i32
    return %arg1, %arg0, %c0_i32 : i32, i32, i32
  }
}

</mosaic_0001>

<llo_original>
// kernel: tpu_custom_call.1
$region0: #{tpu_custom_call.1}
  #allocation0 [shape = 'u32[]', space=smem, size = 0x4, offset = 0x4, fixed_abs, tag = 'smem constant byte address 0x4 - core index']
  #allocation1 [shape = 'u32[144,128]{1,0:T(1,128)}', space=vmem, size = 0x12000, scoped, tag = 'internal scratch']
  #allocation2 [shape = 'f32[8,128]{1,0:T(8,128)}', space=vmem, size = 0x1000, scoped, tag = 'scratch operand']
  #allocation3 [shape = 'f32[8,128]{1,0:T(8,128)}', space=vmem, size = 0x1000, scoped, tag = 'scratch operand']
  #allocation4 [shape = 'f32[8,128]{1,0:T(8,128)}', space=vmem, size = 0x1000, scoped, tag = 'scratch operand']
  %s0 = inlined_call_operand.vmem [shape: f32[8,8,32], index: 0, kind: input, shape index: {}]
  %s1 = inlined_call_operand.vmem [shape: s32[8,8,1], index: 1, kind: input, shape index: {}]
  %s2 = inlined_call_operand.hbm [shape: f32[16,128], index: 2, kind: input, shape index: {}]
  %s3 = inlined_call_operand.hbm [shape: f32[32,768], index: 3, kind: input, shape index: {}]
  %s4 = inlined_call_operand.hbm [shape: f32[128,768], index: 4, kind: input, shape index: {}]
  %s5 = inlined_call_operand.vmem [shape: f32[1,768], index: 5, kind: input, shape index: {}]
  %s6 = inlined_call_operand.hbm [shape: f32[128,640], index: 6, kind: input, shape index: {}]
  %s7 = inlined_call_operand.vmem [shape: f32[1,640], index: 7, kind: input, shape index: {}]
  %s8 = inlined_call_operand.hbm [shape: f32[128,128], index: 8, kind: input, shape index: {}]
  %s9 = inlined_call_operand.vmem [shape: f32[1,128], index: 9, kind: input, shape index: {}]
  %s10 = inlined_call_operand.hbm [shape: f32[8,8,128], index: 10, kind: output, shape index: {}]
  %s11 = sld [smem:[#allocation0]]
  $region113: #{tpu_custom_call.1} parent=0
    _
  %s13 = ssub.s32 1, %s11
  %s14 = scalar_select 0, %s13, %s11
  $region1: #{tpu_custom_call.1} parent=0
    #allocation5 [shape = 'u8[8192]{0}', space=vmem, size = 0x2000, scoped, tag = 'input window, operand 2, single buffered']
    #allocation6 [shape = 's32[2]{0}', space=sflag, size = 0x8, scoped, tag = 'scoped memory for tpu_custom_call.1']
    #allocation7 [shape = 's32[2]{0}', space=sflag, size = 0x8, scoped, tag = 'scoped memory for tpu_custom_call.1']
    #allocation8 [shape = 'u8[98304]{0}', space=vmem, size = 0x18000, scoped, tag = 'input window, operand 3, single buffered']
    #allocation9 [shape = 's32[1]{0}', space=sflag, size = 0x4, scoped, tag = 'scoped memory for tpu_custom_call.1']
    #allocation10 [shape = 'u8[393216]{0}', space=vmem, size = 0x60000, scoped, tag = 'input window, operand 4, single buffered']
    #allocation11 [shape = 'u8[327680]{0}', space=vmem, size = 0x50000, scoped, tag = 'input window, operand 6, single buffered']
    #allocation12 [shape = 's32[1]{0}', space=sflag, size = 0x4, scoped, tag = 'scoped memory for tpu_custom_call.1']
    #allocation13 [shape = 'u8[65536]{0}', space=vmem, size = 0x10000, scoped, tag = 'input window, operand 8, single buffered']
    #allocation14 [shape = 'u8[32768]{0}', space=vmem, size = 0x8000, scoped, tag = 'output window, operand 0']
    %15 = vsyncpa [#allocation6], 0
    %16 = vsyncpa [#allocation9], 0
    %17 = vsyncpa [#allocation12], 0
    %18 = vsyncpa [#allocation7], 0
    %s19 = scalar_lea.sflag [#allocation7], 1
    %20 = vsyncpa %s19, 0
    loop: start=0, step=1, limit=4
    $region2: #{tpu_custom_call.1} parent=1 // loop_pre_header
      _
    $region3: #{tpu_custom_call.1} parent=1 // loop_header
      %s22 = sphi 0, %s26
      %p23 = scmp.ge.s32.totalorder %s22, 4
      %s29 = sphi 0, %s41
      %s30 = sphi 0, %s37
      %s31 = sphi 0, %s29
      %s32 = sphi 0, %s30
      %s33 = sphi 0, %s31
      %s34 = sphi 0, %s32
      %s46 = sphi 0, %s48
      %s49 = sphi 0, %s46
      %s50 = sphi 0, %s49
      %s66 = sphi 0, %s50
      %s74 = sphi 0, %s76
      %s77 = sphi 0, %s74
      %s78 = sphi 0, %s77
      %s94 = sphi 0, %s78
      %s98 = sphi 0, %s98
      %s100 = sphi 0, %s98
      %s101 = sphi 0, %s100
      %s115 = sphi 0, %s101
      %s119 = sphi 0, %s119
      %s121 = sphi 0, %s119
      %s122 = sphi 0, %s121
      %s136 = sphi 0, %s122
      %s140 = sphi 0, %s140
      %s142 = sphi 0, %s140
      %s143 = sphi 0, %s142
      %s157 = sphi 0, %s143
      %s161 = sphi 0, %s161
      %s163 = sphi 0, %s161
      %s164 = sphi 0, %s163
      %s178 = sphi 0, %s164
      %s182 = sphi 0, %s182
      %s184 = sphi 0, %s182
      %s185 = sphi 0, %s184
      %s199 = sphi 0, %s185
      %s203 = sphi 0, %s203
      %s205 = sphi 0, %s203
      %s206 = sphi 0, %s205
      %s220 = sphi 0, %s206
      %s224 = sphi 0, %s224
      %s226 = sphi 0, %s224
      %s227 = sphi 0, %s226
      %s241 = sphi 0, %s227
      %s245 = sphi 0, %s245
      %s247 = sphi 0, %s245
      %s248 = sphi 0, %s247
      %s262 = sphi 0, %s248
      %s270 = sphi 0, %s272
      %s273 = sphi 0, %s270
      %s274 = sphi 0, %s273
      %s290 = sphi 0, %s274
    $region4: #{tpu_custom_call.1} parent=1 // loop_header_branch
      %25 = sbr.rel (%p23) target = $region8
    $region5: #{tpu_custom_call.1} parent=1 // loop_body
      %s27 = ssub.s32 %s22, 1
      %s28 = ssub.s32 %s22, 2
      %s35 = sadd.s32 1, %s30
      %p36 = scmp.ge.s32.totalorder %s35, 2
      %s37 = scalar_select %p36, 0, %s35
      %s38 = sadd.s32 1, %s29
      %s39 = scalar_select %p36, %s38, %s29
      %p40 = scmp.ge.s32.totalorder %s39, 1
      %s41 = scalar_select %p40, 0, %s39
      %s42 = ssub.s32 %s30, %s37
      %s43 = ssub.s32 %s29, %s41
      %s44 = sor.u32 %s42, %s43
      %p45 = scmp.eq.s32.totalorder %s44, 0
      %s47 = sadd.s32 %s46, 1
      %s48 = scalar_select %p45, %s46, %s47
      %p51 = pneg %p45
      %p52 = scmp.eq.s32.totalorder %s22, 1
      %p53 = por %p51, %p52
      %p54 = scmp.ne.s32.totalorder %s46, %s49
      %p55 = scmp.eq.s32.totalorder %s22, 0
      %p56 = por %p54, %p55
      %p57 = scmp.ne.s32.totalorder %s46, %s49
      %p58 = scmp.eq.s32.totalorder %s27, 1
      %p59 = por %p57, %p58
      %p60 = scmp.ne.s32.totalorder %s49, %s50
      %p61 = scmp.eq.s32.totalorder %s27, 0
      %p62 = por %p60, %p61
      %p63 = scmp.ne.s32.totalorder %s49, %s50
      %p64 = scmp.eq.s32.totalorder %s28, 1
      %p65 = por %p63, %p64
      %p67 = scmp.ne.s32.totalorder %s50, %s66
      %p68 = scmp.eq.s32.totalorder %s28, 0
      %p69 = por %p67, %p68
      %s70 = ssub.s32 %s30, %s37
      %s71 = ssub.s32 %s29, %s41
      %s72 = sor.u32 %s70, %s71
      %p73 = scmp.eq.s32.totalorder %s72, 0
      %s75 = sadd.s32 %s74, 1
      %s76 = scalar_select %p73, %s74, %s75
      %p79 = pneg %p73
      %p80 = scmp.eq.s32.totalorder %s22, 1
      %p81 = por %p79, %p80
      %p82 = scmp.ne.s32.totalorder %s74, %s77
      %p83 = scmp.eq.s32.totalorder %s22, 0
      %p84 = por %p82, %p83
      %p85 = scmp.ne.s32.totalorder %s74, %s77
      %p86 = scmp.eq.s32.totalorder %s27, 1
      %p87 = por %p85, %p86
      %p88 = scmp.ne.s32.totalorder %s77, %s78
      %p89 = scmp.eq.s32.totalorder %s27, 0
      %p90 = por %p88, %p89
      %p91 = scmp.ne.s32.totalorder %s77, %s78
      %p92 = scmp.eq.s32.totalorder %s28, 1
      %p93 = por %p91, %p92
      %p95 = scmp.ne.s32.totalorder %s78, %s94
      %p96 = scmp.eq.s32.totalorder %s28, 0
      %p97 = por %p95, %p96
      %s99 = sadd.s32 %s98, 1
      %p102 = scmp.eq.s32.totalorder %s22, 1
      %p103 = scmp.ne.s32.totalorder %s98, %s100
      %p104 = scmp.eq.s32.totalorder %s22, 0
      %p105 = por %p103, %p104
      %p106 = scmp.ne.s32.totalorder %s98, %s100
      %p107 = scmp.eq.s32.totalorder %s27, 1
      %p108 = por %p106, %p107
      %p109 = scmp.ne.s32.totalorder %s100, %s101
      %p110 = scmp.eq.s32.totalorder %s27, 0
      %p111 = por %p109, %p110
      %p112 = scmp.ne.s32.totalorder %s100, %s101
      %p113 = scmp.eq.s32.totalorder %s28, 1
      %p114 = por %p112, %p113
      %p116 = scmp.ne.s32.totalorder %s101, %s115
      %p117 = scmp.eq.s32.totalorder %s28, 0
      %p118 = por %p116, %p117
      %s120 = sadd.s32 %s119, 1
      %p123 = scmp.eq.s32.totalorder %s22, 1
      %p124 = scmp.ne.s32.totalorder %s119, %s121
      %p125 = scmp.eq.s32.totalorder %s22, 0
      %p126 = por %p124, %p125
      %p127 = scmp.ne.s32.totalorder %s119, %s121
      %p128 = scmp.eq.s32.totalorder %s27, 1
      %p129 = por %p127, %p128
      %p130 = scmp.ne.s32.totalorder %s121, %s122
      %p131 = scmp.eq.s32.totalorder %s27, 0
      %p132 = por %p130, %p131
      %p133 = scmp.ne.s32.totalorder %s121, %s122
      %p134 = scmp.eq.s32.totalorder %s28, 1
      %p135 = por %p133, %p134
      %p137 = scmp.ne.s32.totalorder %s122, %s136
      %p138 = scmp.eq.s32.totalorder %s28, 0
      %p139 = por %p137, %p138
      %s141 = sadd.s32 %s140, 1
      %p144 = scmp.eq.s32.totalorder %s22, 1
      %p145 = scmp.ne.s32.totalorder %s140, %s142
      %p146 = scmp.eq.s32.totalorder %s22, 0
      %p147 = por %p145, %p146
      %p148 = scmp.ne.s32.totalorder %s140, %s142
      %p149 = scmp.eq.s32.totalorder %s27, 1
      %p150 = por %p148, %p149
      %p151 = scmp.ne.s32.totalorder %s142, %s143
      %p152 = scmp.eq.s32.totalorder %s27, 0
      %p153 = por %p151, %p152
      %p154 = scmp.ne.s32.totalorder %s142, %s143
      %p155 = scmp.eq.s32.totalorder %s28, 1
      %p156 = por %p154, %p155
      %p158 = scmp.ne.s32.totalorder %s143, %s157
      %p159 = scmp.eq.s32.totalorder %s28, 0
      %p160 = por %p158, %p159
      %s162 = sadd.s32 %s161, 1
      %p165 = scmp.eq.s32.totalorder %s22, 1
      %p166 = scmp.ne.s32.totalorder %s161, %s163
      %p167 = scmp.eq.s32.totalorder %s22, 0
      %p168 = por %p166, %p167
      %p169 = scmp.ne.s32.totalorder %s161, %s163
      %p170 = scmp.eq.s32.totalorder %s27, 1
      %p171 = por %p169, %p170
      %p172 = scmp.ne.s32.totalorder %s163, %s164
      %p173 = scmp.eq.s32.totalorder %s27, 0
      %p174 = por %p172, %p173
      %p175 = scmp.ne.s32.totalorder %s163, %s164
      %p176 = scmp.eq.s32.totalorder %s28, 1
      %p177 = por %p175, %p176
      %p179 = scmp.ne.s32.totalorder %s164, %s178
      %p180 = scmp.eq.s32.totalorder %s28, 0
      %p181 = por %p179, %p180
      %s183 = sadd.s32 %s182, 1
      %p186 = scmp.eq.s32.totalorder %s22, 1
      %p187 = scmp.ne.s32.totalorder %s182, %s184
      %p188 = scmp.eq.s32.totalorder %s22, 0
      %p189 = por %p187, %p188
      %p190 = scmp.ne.s32.totalorder %s182, %s184
      %p191 = scmp.eq.s32.totalorder %s27, 1
      %p192 = por %p190, %p191
      %p193 = scmp.ne.s32.totalorder %s184, %s185
      %p194 = scmp.eq.s32.totalorder %s27, 0
      %p195 = por %p193, %p194
      %p196 = scmp.ne.s32.totalorder %s184, %s185
      %p197 = scmp.eq.s32.totalorder %s28, 1
      %p198 = por %p196, %p197
      %p200 = scmp.ne.s32.totalorder %s185, %s199
      %p201 = scmp.eq.s32.totalorder %s28, 0
      %p202 = por %p200, %p201
      %s204 = sadd.s32 %s203, 1
      %p207 = scmp.eq.s32.totalorder %s22, 1
      %p208 = scmp.ne.s32.totalorder %s203, %s205
      %p209 = scmp.eq.s32.totalorder %s22, 0
      %p210 = por %p208, %p209
      %p211 = scmp.ne.s32.totalorder %s203, %s205
      %p212 = scmp.eq.s32.totalorder %s27, 1
      %p213 = por %p211, %p212
      %p214 = scmp.ne.s32.totalorder %s205, %s206
      %p215 = scmp.eq.s32.totalorder %s27, 0
      %p216 = por %p214, %p215
      %p217 = scmp.ne.s32.totalorder %s205, %s206
      %p218 = scmp.eq.s32.totalorder %s28, 1
      %p219 = por %p217, %p218
      %p221 = scmp.ne.s32.totalorder %s206, %s220
      %p222 = scmp.eq.s32.totalorder %s28, 0
      %p223 = por %p221, %p222
      %s225 = sadd.s32 %s224, 1
      %p228 = scmp.eq.s32.totalorder %s22, 1
      %p229 = scmp.ne.s32.totalorder %s224, %s226
      %p230 = scmp.eq.s32.totalorder %s22, 0
      %p231 = por %p229, %p230
      %p232 = scmp.ne.s32.totalorder %s224, %s226
      %p233 = scmp.eq.s32.totalorder %s27, 1
      %p234 = por %p232, %p233
      %p235 = scmp.ne.s32.totalorder %s226, %s227
      %p236 = scmp.eq.s32.totalorder %s27, 0
      %p237 = por %p235, %p236
      %p238 = scmp.ne.s32.totalorder %s226, %s227
      %p239 = scmp.eq.s32.totalorder %s28, 1
      %p240 = por %p238, %p239
      %p242 = scmp.ne.s32.totalorder %s227, %s241
      %p243 = scmp.eq.s32.totalorder %s28, 0
      %p244 = por %p242, %p243
      %s246 = sadd.s32 %s245, 1
      %p249 = scmp.eq.s32.totalorder %s22, 1
      %p250 = scmp.ne.s32.totalorder %s245, %s247
      %p251 = scmp.eq.s32.totalorder %s22, 0
      %p252 = por %p250, %p251
      %p253 = scmp.ne.s32.totalorder %s245, %s247
      %p254 = scmp.eq.s32.totalorder %s27, 1
      %p255 = por %p253, %p254
      %p256 = scmp.ne.s32.totalorder %s247, %s248
      %p257 = scmp.eq.s32.totalorder %s27, 0
      %p258 = por %p256, %p257
      %p259 = scmp.ne.s32.totalorder %s247, %s248
      %p260 = scmp.eq.s32.totalorder %s28, 1
      %p261 = por %p259, %p260
      %p263 = scmp.ne.s32.totalorder %s248, %s262
      %p264 = scmp.eq.s32.totalorder %s28, 0
      %p265 = por %p263, %p264
      %s266 = ssub.s32 %s30, %s37
      %s267 = ssub.s32 %s29, %s41
      %s268 = sor.u32 %s266, %s267
      %p269 = scmp.eq.s32.totalorder %s268, 0
      %s271 = sadd.s32 %s270, 1
      %s272 = scalar_select %p269, %s270, %s271
      %p275 = pneg %p269
      %p276 = scmp.eq.s32.totalorder %s22, 1
      %p277 = por %p275, %p276
      %p278 = scmp.ne.s32.totalorder %s270, %s273
      %p279 = scmp.eq.s32.totalorder %s22, 0
      %p280 = por %p278, %p279
      %p281 = scmp.ne.s32.totalorder %s270, %s273
      %p282 = scmp.eq.s32.totalorder %s27, 1
      %p283 = por %p281, %p282
      %p284 = scmp.ne.s32.totalorder %s273, %s274
      %p285 = scmp.eq.s32.totalorder %s27, 0
      %p286 = por %p284, %p285
      %p287 = scmp.ne.s32.totalorder %s273, %s274
      %p288 = scmp.eq.s32.totalorder %s28, 1
      %p289 = por %p287, %p288
      %p291 = scmp.ne.s32.totalorder %s274, %s290
      %p292 = scmp.eq.s32.totalorder %s28, 0
      %p293 = por %p291, %p292
      %p294 = scmp.le.s32.totalorder 1, %s22
      %p295 = scmp.lt.s32.totalorder %s22, 3
      %p296 = pnand %p294, %p295
      %p297 = pneg %p296
      // Predicated region
      $region9: #{tpu_custom_call.1} parent=5 // pred_check
        _
      $region10: #{tpu_custom_call.1} parent=5 // pred_check_branch
        %299 = sbr.rel (%p296) target = $region12
      $region11: #{tpu_custom_call.1} parent=5 // pred_region
        %s300 = ssub.s32 %s22, 1
        // Predicated region
        $region13: #{tpu_custom_call.1} parent=11 // pred_check
          %p301 = pneg %p111
        $region14: #{tpu_custom_call.1} parent=11 // pred_check_branch
          %303 = sbr.rel (%p301) target = $region16
        $region15: #{tpu_custom_call.1} parent=11 // pred_region
          %s305 = ssub.s32 256, 256
          %306 = vsyncadd [#allocation6], %s305
          %s307 = sshll.u32 [#allocation5], 4
          %s308 = int_to_ptr.vmem [resolvable:$true] %s307
          %313 = dma.hbm_to_vmem [thread:$0]  %s2, 256, %s308, [#allocation6], 128, 128, 8
        $region16: #{tpu_custom_call.1} parent=11 // pred_fallthru
          _
        // Predicated region
        $region17: #{tpu_custom_call.1} parent=11 // pred_check
          %p314 = pneg %p132
        $region18: #{tpu_custom_call.1} parent=11 // pred_check_branch
          %316 = sbr.rel (%p314) target = $region20
        $region19: #{tpu_custom_call.1} parent=11 // pred_region
          %s318 = ssub.s32 3072, 3072
          %319 = vsyncadd [#allocation9], %s318
          %s320 = sshll.u32 [#allocation8], 4
          %s321 = int_to_ptr.vmem [resolvable:$true] %s320
          %326 = dma.hbm_to_vmem [thread:$0]  %s3, 3072, %s321, [#allocation9], 768, 768, 48
        $region20: #{tpu_custom_call.1} parent=11 // pred_fallthru
          _
        // Predicated region
        $region21: #{tpu_custom_call.1} parent=11 // pred_check
          %p327 = pneg %p153
        $region22: #{tpu_custom_call.1} parent=11 // pred_check_branch
          %329 = sbr.rel (%p327) target = $region24
        $region23: #{tpu_custom_call.1} parent=11 // pred_region
          %s331 = ssub.s32 12288, 12288
          %332 = vsyncadd [#allocation9], %s331
          %s333 = sshll.u32 [#allocation10], 4
          %s334 = int_to_ptr.vmem [resolvable:$true] %s333
          %339 = dma.hbm_to_vmem [thread:$0]  %s4, 12288, %s334, [#allocation9], 768, 768, 48
        $region24: #{tpu_custom_call.1} parent=11 // pred_fallthru
          _
        // Predicated region
        $region25: #{tpu_custom_call.1} parent=11 // pred_check
          %p340 = pneg %p174
        $region26: #{tpu_custom_call.1} parent=11 // pred_check_branch
          %342 = sbr.rel (%p340) target = $region28
        $region27: #{tpu_custom_call.1} parent=11 // pred_region
          _
        $region28: #{tpu_custom_call.1} parent=11 // pred_fallthru
          _
        // Predicated region
        $region29: #{tpu_custom_call.1} parent=11 // pred_check
          %p343 = pneg %p195
        $region30: #{tpu_custom_call.1} parent=11 // pred_check_branch
          %345 = sbr.rel (%p343) target = $region32
        $region31: #{tpu_custom_call.1} parent=11 // pred_region
          %s347 = ssub.s32 10240, 10240
          %348 = vsyncadd [#allocation12], %s347
          %s349 = sshll.u32 [#allocation11], 4
          %s350 = int_to_ptr.vmem [resolvable:$true] %s349
          %355 = dma.hbm_to_vmem [thread:$0]  %s6, 10240, %s350, [#allocation12], 640, 640, 40
        $region32: #{tpu_custom_call.1} parent=11 // pred_fallthru
          _
        // Predicated region
        $region33: #{tpu_custom_call.1} parent=11 // pred_check
          %p356 = pneg %p216
        $region34: #{tpu_custom_call.1} parent=11 // pred_check_branch
          %358 = sbr.rel (%p356) target = $region36
        $region35: #{tpu_custom_call.1} parent=11 // pred_region
          _
        $region36: #{tpu_custom_call.1} parent=11 // pred_fallthru
          _
        // Predicated region
        $region37: #{tpu_custom_call.1} parent=11 // pred_check
          %p359 = pneg %p237
        $region38: #{tpu_custom_call.1} parent=11 // pred_check_branch
          %361 = sbr.rel (%p359) target = $region40
        $region39: #{tpu_custom_call.1} parent=11 // pred_region
          %s363 = ssub.s32 2048, 2048
          %364 = vsyncadd [#allocation12], %s363
          %s365 = sshll.u32 [#allocation13], 4
          %s366 = int_to_ptr.vmem [resolvable:$true] %s365
          %371 = dma.hbm_to_vmem [thread:$0]  %s8, 2048, %s366, [#allocation12], 128, 128, 8
        $region40: #{tpu_custom_call.1} parent=11 // pred_fallthru
          _
        // Predicated region
        $region41: #{tpu_custom_call.1} parent=11 // pred_check
          %p372 = pneg %p258
        $region42: #{tpu_custom_call.1} parent=11 // pred_check_branch
          %374 = sbr.rel (%p372) target = $region44
        $region43: #{tpu_custom_call.1} parent=11 // pred_region
          _
        $region44: #{tpu_custom_call.1} parent=11 // pred_fallthru
          _
      $region12: #{tpu_custom_call.1} parent=5 // pred_fallthru
        _
      %p375 = scmp.lt.s32.totalorder %s22, 2
      // Predicated region
      $region45: #{tpu_custom_call.1} parent=5 // pred_check
        %p376 = pneg %p375
      $region46: #{tpu_custom_call.1} parent=5 // pred_check_branch
        %378 = sbr.rel (%p376) target = $region48
      $region47: #{tpu_custom_call.1} parent=5 // pred_region
        // Predicated region
        $region49: #{tpu_custom_call.1} parent=47 // pred_check
          %p379 = pneg %p56
        $region50: #{tpu_custom_call.1} parent=47 // pred_check_branch
          %381 = sbr.rel (%p379) target = $region52
        $region51: #{tpu_custom_call.1} parent=47 // pred_region
          %s382 = smul.u32 4, %s30
          %p383 = scmp.lt.s32.totalorder %s382, 7
          %s384 = scalar_select %p383, %s382, 7
          %p385 = scmp.lt.s32.totalorder %s29, 0
          %s386 = scalar_select %p385, %s29, 0
          %s387 = sadd.s32 %s386, %s384
          %s388 = smul.addr %s387, 8
          %s389 = scalar_lea.vmem %s0, %s388
          %s390 = smul.u32 4, %s30
        $region52: #{tpu_custom_call.1} parent=47 // pred_fallthru
          _
        // Predicated region
        $region53: #{tpu_custom_call.1} parent=47 // pred_check
          %p391 = pneg %p84
        $region54: #{tpu_custom_call.1} parent=47 // pred_check_branch
          %393 = sbr.rel (%p391) target = $region56
        $region55: #{tpu_custom_call.1} parent=47 // pred_region
          %s394 = smul.u32 4, %s30
          %p395 = scmp.lt.s32.totalorder %s394, 7
          %s396 = scalar_select %p395, %s394, 7
          %p397 = scmp.lt.s32.totalorder %s29, 0
          %s398 = scalar_select %p397, %s29, 0
          %s399 = sadd.s32 %s398, %s396
          %s400 = smul.addr %s399, 8
          %s401 = scalar_lea.vmem %s1, %s400
          %s402 = smul.u32 4, %s30
        $region56: #{tpu_custom_call.1} parent=47 // pred_fallthru
          _
      $region48: #{tpu_custom_call.1} parent=5 // pred_fallthru
        _
      %p403 = scmp.le.s32.totalorder 1, %s22
      %p404 = scmp.lt.s32.totalorder %s22, 3
      %p405 = pnand %p403, %p404
      %p406 = pneg %p405
      // Predicated region
      $region57: #{tpu_custom_call.1} parent=5 // pred_check
        _
      $region58: #{tpu_custom_call.1} parent=5 // pred_check_branch
        %408 = sbr.rel (%p405) target = $region60
      $region59: #{tpu_custom_call.1} parent=5 // pred_region
        %s409 = ssub.s32 %s22, 1
        // Predicated region
        $region61: #{tpu_custom_call.1} parent=59 // pred_check
          %p410 = pneg %p111
        $region62: #{tpu_custom_call.1} parent=59 // pred_check_branch
          %412 = sbr.rel (%p410) target = $region64
        $region63: #{tpu_custom_call.1} parent=59 // pred_region
          %413 = dma.done [#allocation6], 256
        $region64: #{tpu_custom_call.1} parent=59 // pred_fallthru
          _
        // Predicated region
        $region65: #{tpu_custom_call.1} parent=59 // pred_check
          %p414 = pneg %p132
        $region66: #{tpu_custom_call.1} parent=59 // pred_check_branch
          %416 = sbr.rel (%p414) target = $region68
        $region67: #{tpu_custom_call.1} parent=59 // pred_region
          %417 = dma.done [#allocation9], 3072
        $region68: #{tpu_custom_call.1} parent=59 // pred_fallthru
          _
        // Predicated region
        $region69: #{tpu_custom_call.1} parent=59 // pred_check
          %p418 = pneg %p153
        $region70: #{tpu_custom_call.1} parent=59 // pred_check_branch
          %420 = sbr.rel (%p418) target = $region72
        $region71: #{tpu_custom_call.1} parent=59 // pred_region
          %421 = dma.done [#allocation9], 12288
        $region72: #{tpu_custom_call.1} parent=59 // pred_fallthru
          _
        // Predicated region
        $region73: #{tpu_custom_call.1} parent=59 // pred_check
          %p422 = pneg %p195
        $region74: #{tpu_custom_call.1} parent=59 // pred_check_branch
          %424 = sbr.rel (%p422) target = $region76
        $region75: #{tpu_custom_call.1} parent=59 // pred_region
          %425 = dma.done [#allocation12], 10240
        $region76: #{tpu_custom_call.1} parent=59 // pred_fallthru
          _
        // Predicated region
        $region77: #{tpu_custom_call.1} parent=59 // pred_check
          %p426 = pneg %p237
        $region78: #{tpu_custom_call.1} parent=59 // pred_check_branch
          %428 = sbr.rel (%p426) target = $region80
        $region79: #{tpu_custom_call.1} parent=59 // pred_region
          %429 = dma.done [#allocation12], 2048
        $region80: #{tpu_custom_call.1} parent=59 // pred_fallthru
          _
        %s430 = smul.u32 4, %s32
        %p431 = scmp.lt.s32.totalorder %s430, 7
        %s432 = scalar_select %p431, %s430, 7
        %p433 = scmp.lt.s32.totalorder %s31, 0
        %s434 = scalar_select %p433, %s31, 0
        %s435 = sadd.s32 %s434, %s432
        %s436 = smul.addr %s435, 8
        %s437 = scalar_lea.vmem %s0, %s436
        %p438 = pneg %p62
        %p439 = pneg %p59
        %s440 = smul.u32 4, %s32
        %p441 = scmp.lt.s32.totalorder %s440, 7
        %s442 = scalar_select %p441, %s440, 7
        %p443 = scmp.lt.s32.totalorder %s31, 0
        %s444 = scalar_select %p443, %s31, 0
        %s445 = sadd.s32 %s444, %s442
        %s446 = smul.addr %s445, 8
        %s447 = scalar_lea.vmem %s1, %s446
        %p448 = pneg %p90
        %p449 = pneg %p87
        %p450 = pneg %p111
        %p451 = pneg %p108
        %p452 = pneg %p132
        %p453 = pneg %p129
        %p454 = pneg %p153
        %p455 = pneg %p150
        %p456 = pneg %p174
        %p457 = pneg %p171
        %p458 = pneg %p195
        %p459 = pneg %p192
        %p460 = pneg %p216
        %p461 = pneg %p213
        %p462 = pneg %p237
        %p463 = pneg %p234
        %p464 = pneg %p258
        %p465 = pneg %p255
        %p466 = pneg %p286
        %p467 = pneg %p283
        %s468 = sand.u32 %s273, 1
        %s469 = scalar_lea.sflag [#allocation7], %s468
        %s470 = sand.u32 %s273, 1
        %s471 = smul.addr %s470, 32
        %s472 = scalar_lea.vmem [#allocation14], %s471
        %s473 = smul.u32 4, %s32
        %p474 = scmp.lt.s32.totalorder %s473, 7
        %s475 = scalar_select %p474, %s473, 7
        %p476 = scmp.lt.s32.totalorder %s31, 0
        %s477 = scalar_select %p476, %s31, 0
        %s478 = sadd.s32 %s477, %s475
        %s479 = smul.addr %s478, 8
        %s480 = scalar_lea.vmem %s0, %s479
        %s481 = smul.u32 4, %s32
        %s482 = smul.u32 4, %s32
        %p483 = scmp.lt.s32.totalorder %s482, 7
        %s484 = scalar_select %p483, %s482, 7
        %p485 = scmp.lt.s32.totalorder %s31, 0
        %s486 = scalar_select %p485, %s31, 0
        %s487 = sadd.s32 %s486, %s484
        %s488 = smul.addr %s487, 8
        %s489 = scalar_lea.vmem %s1, %s488
        %s490 = smul.u32 4, %s32
        %s491 = smul.u32 4, %s32
        %p492 = scmp.eq.s32.totalorder %s32, 0
        // Predicated region
        $region81: #{tpu_custom_call.1} parent=59 // pred_check
          %p493 = pneg %p492
        $region82: #{tpu_custom_call.1} parent=59 // pred_check_branch
          %495 = sbr.rel (%p493) target = $region84
        $region83: #{tpu_custom_call.1} parent=59 // pred_region
          %496 = vst [vmem:[#allocation2] sm:$0xff] 0.0
          %497 = vst [vmem:[#allocation3] sm:$0xff] 0.0
          %v498 = vld [vmem:[#allocation5] sm:$0x1]
          %v499 = vlaneseq
          %v500 = vshrl.u32 %v499, 7
          %v501 = vsub.s32 0, %v500
          %v502 = vrot.slane %v498, %v501
          %503 = vst [vmem:[#allocation4] sm:$0xff] %v502
        $region84: #{tpu_custom_call.1} parent=59 // pred_fallthru
          _
        %v504 = vlaneseq
        %v505 = vand.u32 %v504, 127
        %s506 = smul.u32 %s32, 4
        %p507 = scmp.lt.s32.totalorder %s506, 5
        // Predicated region
        $region85: #{tpu_custom_call.1} parent=59 // pred_check
          %p508 = pneg %p507
        $region86: #{tpu_custom_call.1} parent=59 // pred_check_branch
          %510 = sbr.rel (%p508) target = $region88
        $region87: #{tpu_custom_call.1} parent=59 // pred_region
          %v511 = vld [vmem:[%s480] sm:$0xff]
          %v512 = vld [vmem:[#allocation8] sm:$0xff]
          %v513 = vld [vmem:[#allocation8 + $0x8] sm:$0xff]
          %v514 = vld [vmem:[#allocation8 + $0x10] sm:$0xff]
          %v515 = vld [vmem:[#allocation8 + $0x18] sm:$0xff]
          %v516 = vld [vmem:[#allocation8 + $0x20] sm:$0xff]
          %v517 = vld [vmem:[#allocation8 + $0x28] sm:$0xff]
          %v518 = vld [vmem:[#allocation8 + $0x30] sm:$0xff]
          %v519 = vld [vmem:[#allocation8 + $0x38] sm:$0xff]
          %v520 = vld [vmem:[#allocation8 + $0x40] sm:$0xff]
          %v521 = vld [vmem:[#allocation8 + $0x48] sm:$0xff]
          %v522 = vld [vmem:[#allocation8 + $0x50] sm:$0xff]
          %v523 = vld [vmem:[#allocation8 + $0x58] sm:$0xff]
          %v524 = vld [vmem:[#allocation8 + $0x60] sm:$0xff]
          %v525 = vld [vmem:[#allocation8 + $0x68] sm:$0xff]
          %v526 = vld [vmem:[#allocation8 + $0x70] sm:$0xff]
          %v527 = vld [vmem:[#allocation8 + $0x78] sm:$0xff]
          %v528 = vld [vmem:[#allocation8 + $0x80] sm:$0xff]
          %v529 = vld [vmem:[#allocation8 + $0x88] sm:$0xff]
          %v530 = vld [vmem:[#allocation8 + $0x90] sm:$0xff]
          %v531 = vld [vmem:[#allocation8 + $0x98] sm:$0xff]
          %v532 = vld [vmem:[#allocation8 + $0xa0] sm:$0xff]
          %v533 = vld [vmem:[#allocation8 + $0xa8] sm:$0xff]
          %v534 = vld [vmem:[#allocation8 + $0xb0] sm:$0xff]
          %v535 = vld [vmem:[#allocation8 + $0xb8] sm:$0xff]
          %v536 = vld [vmem:[#allocation4] sm:$0xff]
          %v537 = vld [vmem:[#allocation10] sm:$0xff]
          %v538 = vld [vmem:[#allocation10 + $0x8] sm:$0xff]
          %v539 = vld [vmem:[#allocation10 + $0x10] sm:$0xff]
          %v540 = vld [vmem:[#allocation10 + $0x18] sm:$0xff]
          %v541 = vld [vmem:[#allocation10 + $0x20] sm:$0xff]
          %v542 = vld [vmem:[#allocation10 + $0x28] sm:$0xff]
          %v543 = vld [vmem:[#allocation10 + $0x30] sm:$0xff]
          %v544 = vld [vmem:[#allocation10 + $0x38] sm:$0xff]
          %v545 = vld [vmem:[#allocation10 + $0x40] sm:$0xff]
          %v546 = vld [vmem:[#allocation10 + $0x48] sm:$0xff]
          %v547 = vld [vmem:[#allocation10 + $0x50] sm:$0xff]
          %v548 = vld [vmem:[#allocation10 + $0x58] sm:$0xff]
          %v549 = vld [vmem:[#allocation10 + $0x60] sm:$0xff]
          %v550 = vld [vmem:[#allocation10 + $0x68] sm:$0xff]
          %v551 = vld [vmem:[#allocation10 + $0x70] sm:$0xff]
          %v552 = vld [vmem:[#allocation10 + $0x78] sm:$0xff]
          %v553 = vld [vmem:[#allocation10 + $0x80] sm:$0xff]
          %v554 = vld [vmem:[#allocation10 + $0x88] sm:$0xff]
          %v555 = vld [vmem:[#allocation10 + $0x90] sm:$0xff]
          %v556 = vld [vmem:[#allocation10 + $0x98] sm:$0xff]
          %v557 = vld [vmem:[#allocation10 + $0xa0] sm:$0xff]
          %v558 = vld [vmem:[#allocation10 + $0xa8] sm:$0xff]
          %v559 = vld [vmem:[#allocation10 + $0xb0] sm:$0xff]
          %v560 = vld [vmem:[#allocation10 + $0xb8] sm:$0xff]
          %v561 = vld [vmem:[#allocation10 + $0xc0] sm:$0xff]
          %v562 = vld [vmem:[#allocation10 + $0xc8] sm:$0xff]
          %v563 = vld [vmem:[#allocation10 + $0xd0] sm:$0xff]
          %v564 = vld [vmem:[#allocation10 + $0xd8] sm:$0xff]
          %v565 = vld [vmem:[#allocation10 + $0xe0] sm:$0xff]
          %v566 = vld [vmem:[#allocation10 + $0xe8] sm:$0xff]
          %v567 = vld [vmem:[#allocation10 + $0xf0] sm:$0xff]
          %v568 = vld [vmem:[#allocation10 + $0xf8] sm:$0xff]
          %v569 = vld [vmem:[#allocation10 + $0x100] sm:$0xff]
          %v570 = vld [vmem:[#allocation10 + $0x108] sm:$0xff]
          %v571 = vld [vmem:[#allocation10 + $0x110] sm:$0xff]
          %v572 = vld [vmem:[#allocation10 + $0x118] sm:$0xff]
          %v573 = vld [vmem:[#allocation10 + $0x120] sm:$0xff]
          %v574 = vld [vmem:[#allocation10 + $0x128] sm:$0xff]
          %v575 = vld [vmem:[#allocation10 + $0x130] sm:$0xff]
          %v576 = vld [vmem:[#allocation10 + $0x138] sm:$0xff]
          %v577 = vld [vmem:[#allocation10 + $0x140] sm:$0xff]
          %v578 = vld [vmem:[#allocation10 + $0x148] sm:$0xff]
          %v579 = vld [vmem:[#allocation10 + $0x150] sm:$0xff]
          %v580 = vld [vmem:[#allocation10 + $0x158] sm:$0xff]
          %v581 = vld [vmem:[#allocation10 + $0x160] sm:$0xff]
          %v582 = vld [vmem:[#allocation10 + $0x168] sm:$0xff]
          %v583 = vld [vmem:[#allocation10 + $0x170] sm:$0xff]
          %v584 = vld [vmem:[#allocation10 + $0x178] sm:$0xff]
          %v585 = vld [vmem:[#allocation10 + $0x180] sm:$0xff]
          %v586 = vld [vmem:[#allocation10 + $0x188] sm:$0xff]
          %v587 = vld [vmem:[#allocation10 + $0x190] sm:$0xff]
          %v588 = vld [vmem:[#allocation10 + $0x198] sm:$0xff]
          %v589 = vld [vmem:[#allocation10 + $0x1a0] sm:$0xff]
          %v590 = vld [vmem:[#allocation10 + $0x1a8] sm:$0xff]
          %v591 = vld [vmem:[#allocation10 + $0x1b0] sm:$0xff]
          %v592 = vld [vmem:[#allocation10 + $0x1b8] sm:$0xff]
          %v593 = vld [vmem:[#allocation10 + $0x1c0] sm:$0xff]
          %v594 = vld [vmem:[#allocation10 + $0x1c8] sm:$0xff]
          %v595 = vld [vmem:[#allocation10 + $0x1d0] sm:$0xff]
          %v596 = vld [vmem:[#allocation10 + $0x1d8] sm:$0xff]
          %v597 = vld [vmem:[#allocation10 + $0x1e0] sm:$0xff]
          %v598 = vld [vmem:[#allocation10 + $0x1e8] sm:$0xff]
          %v599 = vld [vmem:[#allocation10 + $0x1f0] sm:$0xff]
          %v600 = vld [vmem:[#allocation10 + $0x1f8] sm:$0xff]
          %v601 = vld [vmem:[#allocation10 + $0x200] sm:$0xff]
          %v602 = vld [vmem:[#allocation10 + $0x208] sm:$0xff]
          %v603 = vld [vmem:[#allocation10 + $0x210] sm:$0xff]
          %v604 = vld [vmem:[#allocation10 + $0x218] sm:$0xff]
          %v605 = vld [vmem:[#allocation10 + $0x220] sm:$0xff]
          %v606 = vld [vmem:[#allocation10 + $0x228] sm:$0xff]
          %v607 = vld [vmem:[#allocation10 + $0x230] sm:$0xff]
          %v608 = vld [vmem:[#allocation10 + $0x238] sm:$0xff]
          %v609 = vld [vmem:[#allocation10 + $0x240] sm:$0xff]
          %v610 = vld [vmem:[#allocation10 + $0x248] sm:$0xff]
          %v611 = vld [vmem:[#allocation10 + $0x250] sm:$0xff]
          %v612 = vld [vmem:[#allocation10 + $0x258] sm:$0xff]
          %v613 = vld [vmem:[#allocation10 + $0x260] sm:$0xff]
          %v614 = vld [vmem:[#allocation10 + $0x268] sm:$0xff]
          %v615 = vld [vmem:[#allocation10 + $0x270] sm:$0xff]
          %v616 = vld [vmem:[#allocation10 + $0x278] sm:$0xff]
          %v617 = vld [vmem:[#allocation10 + $0x280] sm:$0xff]
          %v618 = vld [vmem:[#allocation10 + $0x288] sm:$0xff]
          %v619 = vld [vmem:[#allocation10 + $0x290] sm:$0xff]
          %v620 = vld [vmem:[#allocation10 + $0x298] sm:$0xff]
          %v621 = vld [vmem:[#allocation10 + $0x2a0] sm:$0xff]
          %v622 = vld [vmem:[#allocation10 + $0x2a8] sm:$0xff]
          %v623 = vld [vmem:[#allocation10 + $0x2b0] sm:$0xff]
          %v624 = vld [vmem:[#allocation10 + $0x2b8] sm:$0xff]
          %v625 = vld [vmem:[#allocation10 + $0x2c0] sm:$0xff]
          %v626 = vld [vmem:[#allocation10 + $0x2c8] sm:$0xff]
          %v627 = vld [vmem:[#allocation10 + $0x2d0] sm:$0xff]
          %v628 = vld [vmem:[#allocation10 + $0x2d8] sm:$0xff]
          %v629 = vld [vmem:[#allocation10 + $0x2e0] sm:$0xff]
          %v630 = vld [vmem:[#allocation10 + $0x2e8] sm:$0xff]
          %v631 = vld [vmem:[#allocation10 + $0x2f0] sm:$0xff]
          %v632 = vld [vmem:[#allocation10 + $0x2f8] sm:$0xff]
          %633 = vmatprep.subr.mxu0 %v628
          %634 = vmatpush1.msra.mxu0 %v627
          %635 = vmatprep.subr.mxu0 %v622
          %636 = vmatpush1.msra.mxu0 %v621
          %637 = vmatprep.subr.mxu0 %v616
          %638 = vmatpush1.msra.mxu0 %v615
          %639 = vmatprep.subr.mxu0 %v610
          %640 = vmatpush1.msra.mxu0 %v609
          %641 = vmatprep.subr.mxu0 %v604
          %642 = vmatpush1.msra.mxu0 %v603
          %643 = vmatprep.subr.mxu0 %v598
          %644 = vmatpush1.msra.mxu0 %v597
          %645 = vmatprep.subr.mxu0 %v592
          %646 = vmatpush1.msra.mxu0 %v591
          %647 = vmatprep.subr.mxu0 %v586
          %648 = vmatpush1.msra.mxu0 %v585
          %649 = vmatprep.subr.mxu0 %v580
          %650 = vmatpush1.msra.mxu0 %v579
          %651 = vmatprep.subr.mxu0 %v574
          %652 = vmatpush1.msra.mxu0 %v573
          %653 = vmatprep.subr.mxu0 %v568
          %654 = vmatpush1.msra.mxu0 %v567
          %655 = vmatprep.subr.mxu0 %v562
          %656 = vmatpush1.msra.mxu0 %v561
          %657 = vmatprep.subr.mxu0 %v556
          %658 = vmatpush1.msra.mxu0 %v555
          %659 = vmatprep.subr.mxu0 %v550
          %660 = vmatpush1.msra.mxu0 %v549
          %661 = vmatprep.subr.mxu0 %v544
          %662 = vmatpush1.msra.mxu0 %v543
          %663 = vmatprep.subr.mxu0 %v538
          %664 = vmatpush1.msra.mxu0 %v537
          %665 = vmatprep.subr.mxu0 0.0
          %666 = vmatpush2.msra.mxu0 0.0
          %667 = vmatprep.subr.mxu0 0.0
          %668 = vmatpush2.msra.mxu0 0.0
          %669 = vmatprep.subr.mxu0 0.0
          %670 = vmatpush2.msra.mxu0 0.0
          %671 = vmatprep.subr.mxu0 0.0
          %672 = vmatpush2.msra.mxu0 0.0
          %673 = vmatprep.subr.mxu0 0.0
          %674 = vmatpush2.msra.mxu0 0.0
          %675 = vmatprep.subr.mxu0 0.0
          %676 = vmatpush2.msra.mxu0 0.0
          %677 = vmatprep.subr.mxu0 0.0
          %678 = vmatpush2.msra.mxu0 0.0
          %679 = vmatprep.subr.mxu0 0.0
          %680 = vmatpush2.msra.mxu0 0.0
          %681 = vmatprep.subr.mxu0 0.0
          %682 = vmatpush2.msra.mxu0 0.0
          %683 = vmatprep.subr.mxu0 0.0
          %684 = vmatpush2.msra.mxu0 0.0
          %685 = vmatprep.subr.mxu0 0.0
          %686 = vmatpush2.msra.mxu0 0.0
          %687 = vmatprep.subr.mxu0 0.0
          %688 = vmatpush2.msra.mxu0 0.0
          %689 = vmatprep.subr.mxu0 0.0
          %690 = vmatpush2.msra.mxu0 0.0
          %691 = vmatprep.subr.mxu0 0.0
          %692 = vmatpush2.msra.mxu0 0.0
          %693 = vmatprep.subr.mxu0 0.0
          %694 = vmatpush2.msra.mxu0 0.0
          %695 = vmatprep.subr.mxu0 0.0
          %696 = vmatpush2.msra.mxu0 0.0
          %697 = vmatprep.mubr.f32.mxu0 0.0
          %698 = vmatmul.mubr.f32.gmra.mxu0 %v536
          %v699 = vpop.f32.mrf.mxu0
          %v700 = vadd.f32 0.0, %v699
          %v701 = vpop.f32.mrf.mxu0
          %v702 = vadd.f32 0.0, %v701
          %703 = vdwg.mxu0
          %704 = vmatprep.subr.mxu0 %v630
          %705 = vmatpush1.msra.mxu0 %v629
          %706 = vmatprep.subr.mxu0 %v624
          %707 = vmatpush1.msra.mxu0 %v623
          %708 = vmatprep.subr.mxu0 %v618
          %709 = vmatpush1.msra.mxu0 %v617
          %710 = vmatprep.subr.mxu0 %v612
          %711 = vmatpush1.msra.mxu0 %v611
          %712 = vmatprep.subr.mxu0 %v606
          %713 = vmatpush1.msra.mxu0 %v605
          %714 = vmatprep.subr.mxu0 %v600
          %715 = vmatpush1.msra.mxu0 %v599
          %716 = vmatprep.subr.mxu0 %v594
          %717 = vmatpush1.msra.mxu0 %v593
          %718 = vmatprep.subr.mxu0 %v588
          %719 = vmatpush1.msra.mxu0 %v587
          %720 = vmatprep.subr.mxu0 %v582
          %721 = vmatpush1.msra.mxu0 %v581
          %722 = vmatprep.subr.mxu0 %v576
          %723 = vmatpush1.msra.mxu0 %v575
          %724 = vmatprep.subr.mxu0 %v570
          %725 = vmatpush1.msra.mxu0 %v569
          %726 = vmatprep.subr.mxu0 %v564
          %727 = vmatpush1.msra.mxu0 %v563
          %728 = vmatprep.subr.mxu0 %v558
          %729 = vmatpush1.msra.mxu0 %v557
          %730 = vmatprep.subr.mxu0 %v552
          %731 = vmatpush1.msra.mxu0 %v551
          %732 = vmatprep.subr.mxu0 %v546
          %733 = vmatpush1.msra.mxu0 %v545
          %734 = vmatprep.subr.mxu0 %v540
          %735 = vmatpush1.msra.mxu0 %v539
          %736 = vmatprep.subr.mxu0 0.0
          %737 = vmatpush2.msra.mxu0 0.0
          %738 = vmatprep.subr.mxu0 0.0
          %739 = vmatpush2.msra.mxu0 0.0
          %740 = vmatprep.subr.mxu0 0.0
          %741 = vmatpush2.msra.mxu0 0.0
          %742 = vmatprep.subr.mxu0 0.0
          %743 = vmatpush2.msra.mxu0 0.0
          %744 = vmatprep.subr.mxu0 0.0
          %745 = vmatpush2.msra.mxu0 0.0
          %746 = vmatprep.subr.mxu0 0.0
          %747 = vmatpush2.msra.mxu0 0.0
          %748 = vmatprep.subr.mxu0 0.0
          %749 = vmatpush2.msra.mxu0 0.0
          %750 = vmatprep.subr.mxu0 0.0
          %751 = vmatpush2.msra.mxu0 0.0
          %752 = vmatprep.subr.mxu0 0.0
          %753 = vmatpush2.msra.mxu0 0.0
          %754 = vmatprep.subr.mxu0 0.0
          %755 = vmatpush2.msra.mxu0 0.0
          %756 = vmatprep.subr.mxu0 0.0
          %757 = vmatpush2.msra.mxu0 0.0
          %758 = vmatprep.subr.mxu0 0.0
          %759 = vmatpush2.msra.mxu0 0.0
          %760 = vmatprep.subr.mxu0 0.0
          %761 = vmatpush2.msra.mxu0 0.0
          %762 = vmatprep.subr.mxu0 0.0
          %763 = vmatpush2.msra.mxu0 0.0
          %764 = vmatprep.subr.mxu0 0.0
          %765 = vmatpush2.msra.mxu0 0.0
          %766 = vmatprep.subr.mxu0 0.0
          %767 = vmatpush2.msra.mxu0 0.0
          %768 = vmatprep.mubr.f32.mxu0 0.0
          %769 = vmatmul.mubr.f32.gmra.mxu0 %v536
          %v770 = vpop.f32.mrf.mxu0
          %v771 = vadd.f32 0.0, %v770
          %v772 = vpop.f32.mrf.mxu0
          %v773 = vadd.f32 0.0, %v772
          %774 = vdwg.mxu0
          %775 = vmatprep.subr.mxu0 %v632
          %776 = vmatpush1.msra.mxu0 %v631
          %777 = vmatprep.subr.mxu0 %v626
          %778 = vmatpush1.msra.mxu0 %v625
          %779 = vmatprep.subr.mxu0 %v620
          %780 = vmatpush1.msra.mxu0 %v619
          %781 = vmatprep.subr.mxu0 %v614
          %782 = vmatpush1.msra.mxu0 %v613
          %783 = vmatprep.subr.mxu0 %v608
          %784 = vmatpush1.msra.mxu0 %v607
          %785 = vmatprep.subr.mxu0 %v602
          %786 = vmatpush1.msra.mxu0 %v601
          %787 = vmatprep.subr.mxu0 %v596
          %788 = vmatpush1.msra.mxu0 %v595
          %789 = vmatprep.subr.mxu0 %v590
          %790 = vmatpush1.msra.mxu0 %v589
          %791 = vmatprep.subr.mxu0 %v584
          %792 = vmatpush1.msra.mxu0 %v583
          %793 = vmatprep.subr.mxu0 %v578
          %794 = vmatpush1.msra.mxu0 %v577
          %795 = vmatprep.subr.mxu0 %v572
          %796 = vmatpush1.msra.mxu0 %v571
          %797 = vmatprep.subr.mxu0 %v566
          %798 = vmatpush1.msra.mxu0 %v565
          %799 = vmatprep.subr.mxu0 %v560
          %800 = vmatpush1.msra.mxu0 %v559
          %801 = vmatprep.subr.mxu0 %v554
          %802 = vmatpush1.msra.mxu0 %v553
          %803 = vmatprep.subr.mxu0 %v548
          %804 = vmatpush1.msra.mxu0 %v547
          %805 = vmatprep.subr.mxu0 %v542
          %806 = vmatpush1.msra.mxu0 %v541
          %807 = vmatprep.subr.mxu0 0.0
          %808 = vmatpush2.msra.mxu0 0.0
          %809 = vmatprep.subr.mxu0 0.0
          %810 = vmatpush2.msra.mxu0 0.0
          %811 = vmatprep.subr.mxu0 0.0
          %812 = vmatpush2.msra.mxu0 0.0
          %813 = vmatprep.subr.mxu0 0.0
          %814 = vmatpush2.msra.mxu0 0.0
          %815 = vmatprep.subr.mxu0 0.0
          %816 = vmatpush2.msra.mxu0 0.0
          %817 = vmatprep.subr.mxu0 0.0
          %818 = vmatpush2.msra.mxu0 0.0
          %819 = vmatprep.subr.mxu0 0.0
          %820 = vmatpush2.msra.mxu0 0.0
          %821 = vmatprep.subr.mxu0 0.0
          %822 = vmatpush2.msra.mxu0 0.0
          %823 = vmatprep.subr.mxu0 0.0
          %824 = vmatpush2.msra.mxu0 0.0
          %825 = vmatprep.subr.mxu0 0.0
          %826 = vmatpush2.msra.mxu0 0.0
          %827 = vmatprep.subr.mxu0 0.0
          %828 = vmatpush2.msra.mxu0 0.0
          %829 = vmatprep.subr.mxu0 0.0
          %830 = vmatpush2.msra.mxu0 0.0
          %831 = vmatprep.subr.mxu0 0.0
          %832 = vmatpush2.msra.mxu0 0.0
          %833 = vmatprep.subr.mxu0 0.0
          %834 = vmatpush2.msra.mxu0 0.0
          %835 = vmatprep.subr.mxu0 0.0
          %836 = vmatpush2.msra.mxu0 0.0
          %837 = vmatprep.subr.mxu0 0.0
          %838 = vmatpush2.msra.mxu0 0.0
          %839 = vmatprep.mubr.f32.mxu0 0.0
          %840 = vmatmul.mubr.f32.gmra.mxu0 %v536
          %v841 = vpop.f32.mrf.mxu0
          %v842 = vadd.f32 0.0, %v841
          %v843 = vpop.f32.mrf.mxu0
          %v844 = vadd.f32 0.0, %v843
          %845 = vdwg.mxu0
          %vm846 = vcmask 261120
          %v848 = vsel %vm846, %v511, 0
          %850 = vmatprep.subr.mxu0 0.0
          %851 = vmatpush1.msra.mxu0 0.0
          %852 = vmatprep.subr.mxu0 0.0
          %853 = vmatpush1.msra.mxu0 0.0
          %854 = vmatprep.subr.mxu0 0.0
          %855 = vmatpush1.msra.mxu0 0.0
          %856 = vmatprep.subr.mxu0 0.0
          %857 = vmatpush1.msra.mxu0 0.0
          %858 = vmatprep.subr.mxu0 0.0
          %859 = vmatpush1.msra.mxu0 0.0
          %860 = vmatprep.subr.mxu0 0.0
          %861 = vmatpush1.msra.mxu0 0.0
          %862 = vmatprep.subr.mxu0 0.0
          %863 = vmatpush1.msra.mxu0 0.0
          %864 = vmatprep.subr.mxu0 0.0
          %865 = vmatpush1.msra.mxu0 0.0
          %866 = vmatprep.subr.mxu0 0.0
          %867 = vmatpush1.msra.mxu0 0.0
          %868 = vmatprep.subr.mxu0 0.0
          %869 = vmatpush1.msra.mxu0 0.0
          %870 = vmatprep.subr.mxu0 0.0
          %871 = vmatpush1.msra.mxu0 0.0
          %872 = vmatprep.subr.mxu0 0.0
          %873 = vmatpush1.msra.mxu0 0.0
          %874 = vmatprep.subr.mxu0 %v531
          %875 = vmatpush1.msra.mxu0 %v530
          %876 = vmatprep.subr.mxu0 %v525
          %877 = vmatpush1.msra.mxu0 %v524
          %878 = vmatprep.subr.mxu0 %v519
          %879 = vmatpush1.msra.mxu0 %v518
          %880 = vmatprep.subr.mxu0 %v513
          %881 = vmatpush1.msra.mxu0 %v512
          %882 = vmatprep.subr.mxu0 0.0
          %883 = vmatpush2.msra.mxu0 0.0
          %884 = vmatprep.subr.mxu0 0.0
          %885 = vmatpush2.msra.mxu0 0.0
          %886 = vmatprep.subr.mxu0 0.0
          %887 = vmatpush2.msra.mxu0 0.0
          %888 = vmatprep.subr.mxu0 0.0
          %889 = vmatpush2.msra.mxu0 0.0
          %890 = vmatprep.subr.mxu0 0.0
          %891 = vmatpush2.msra.mxu0 0.0
          %892 = vmatprep.subr.mxu0 0.0
          %893 = vmatpush2.msra.mxu0 0.0
          %894 = vmatprep.subr.mxu0 0.0
          %895 = vmatpush2.msra.mxu0 0.0
          %896 = vmatprep.subr.mxu0 0.0
          %897 = vmatpush2.msra.mxu0 0.0
          %898 = vmatprep.subr.mxu0 0.0
          %899 = vmatpush2.msra.mxu0 0.0
          %900 = vmatprep.subr.mxu0 0.0
          %901 = vmatpush2.msra.mxu0 0.0
          %902 = vmatprep.subr.mxu0 0.0
          %903 = vmatpush2.msra.mxu0 0.0
          %904 = vmatprep.subr.mxu0 0.0
          %905 = vmatpush2.msra.mxu0 0.0
          %906 = vmatprep.subr.mxu0 0.0
          %907 = vmatpush2.msra.mxu0 0.0
          %908 = vmatprep.subr.mxu0 0.0
          %909 = vmatpush2.msra.mxu0 0.0
          %910 = vmatprep.subr.mxu0 0.0
          %911 = vmatpush2.msra.mxu0 0.0
          %912 = vmatprep.subr.mxu0 0.0
          %913 = vmatpush2.msra.mxu0 0.0
          %914 = vmatprep.mubr.f32.mxu0 0.0
          %915 = vmatmul.mubr.f32.gmra.mxu0 %v848
          %v916 = vpop.f32.mrf.mxu0
          %v917 = vadd.f32 %v700, %v916
          %v918 = vpop.f32.mrf.mxu0
          %v919 = vadd.f32 %v702, %v918
          %920 = vdwg.mxu0
          %921 = vmatprep.subr.mxu0 0.0
          %922 = vmatpush1.msra.mxu0 0.0
          %923 = vmatprep.subr.mxu0 0.0
          %924 = vmatpush1.msra.mxu0 0.0
          %925 = vmatprep.subr.mxu0 0.0
          %926 = vmatpush1.msra.mxu0 0.0
          %927 = vmatprep.subr.mxu0 0.0
          %928 = vmatpush1.msra.mxu0 0.0
          %929 = vmatprep.subr.mxu0 0.0
          %930 = vmatpush1.msra.mxu0 0.0
          %931 = vmatprep.subr.mxu0 0.0
          %932 = vmatpush1.msra.mxu0 0.0
          %933 = vmatprep.subr.mxu0 0.0
          %934 = vmatpush1.msra.mxu0 0.0
          %935 = vmatprep.subr.mxu0 0.0
          %936 = vmatpush1.msra.mxu0 0.0
          %937 = vmatprep.subr.mxu0 0.0
          %938 = vmatpush1.msra.mxu0 0.0
          %939 = vmatprep.subr.mxu0 0.0
          %940 = vmatpush1.msra.mxu0 0.0
          %941 = vmatprep.subr.mxu0 0.0
          %942 = vmatpush1.msra.mxu0 0.0
          %943 = vmatprep.subr.mxu0 0.0
          %944 = vmatpush1.msra.mxu0 0.0
          %945 = vmatprep.subr.mxu0 %v533
          %946 = vmatpush1.msra.mxu0 %v532
          %947 = vmatprep.subr.mxu0 %v527
          %948 = vmatpush1.msra.mxu0 %v526
          %949 = vmatprep.subr.mxu0 %v521
          %950 = vmatpush1.msra.mxu0 %v520
          %951 = vmatprep.subr.mxu0 %v515
          %952 = vmatpush1.msra.mxu0 %v514
          %953 = vmatprep.subr.mxu0 0.0
          %954 = vmatpush2.msra.mxu0 0.0
          %955 = vmatprep.subr.mxu0 0.0
          %956 = vmatpush2.msra.mxu0 0.0
          %957 = vmatprep.subr.mxu0 0.0
          %958 = vmatpush2.msra.mxu0 0.0
          %959 = vmatprep.subr.mxu0 0.0
          %960 = vmatpush2.msra.mxu0 0.0
          %961 = vmatprep.subr.mxu0 0.0
          %962 = vmatpush2.msra.mxu0 0.0
          %963 = vmatprep.subr.mxu0 0.0
          %964 = vmatpush2.msra.mxu0 0.0
          %965 = vmatprep.subr.mxu0 0.0
          %966 = vmatpush2.msra.mxu0 0.0
          %967 = vmatprep.subr.mxu0 0.0
          %968 = vmatpush2.msra.mxu0 0.0
          %969 = vmatprep.subr.mxu0 0.0
          %970 = vmatpush2.msra.mxu0 0.0
          %971 = vmatprep.subr.mxu0 0.0
          %972 = vmatpush2.msra.mxu0 0.0
          %973 = vmatprep.subr.mxu0 0.0
          %974 = vmatpush2.msra.mxu0 0.0
          %975 = vmatprep.subr.mxu0 0.0
          %976 = vmatpush2.msra.mxu0 0.0
          %977 = vmatprep.subr.mxu0 0.0
          %978 = vmatpush2.msra.mxu0 0.0
          %979 = vmatprep.subr.mxu0 0.0
          %980 = vmatpush2.msra.mxu0 0.0
          %981 = vmatprep.subr.mxu0 0.0
          %982 = vmatpush2.msra.mxu0 0.0
          %983 = vmatprep.subr.mxu0 0.0
          %984 = vmatpush2.msra.mxu0 0.0
          %985 = vmatprep.mubr.f32.mxu0 0.0
          %986 = vmatmul.mubr.f32.gmra.mxu0 %v848
          %v987 = vpop.f32.mrf.mxu0
          %v988 = vadd.f32 %v771, %v987
          %v989 = vpop.f32.mrf.mxu0
          %v990 = vadd.f32 %v773, %v989
          %991 = vdwg.mxu0
          %992 = vmatprep.subr.mxu0 0.0
          %993 = vmatpush1.msra.mxu0 0.0
          %994 = vmatprep.subr.mxu0 0.0
          %995 = vmatpush1.msra.mxu0 0.0
          %996 = vmatprep.subr.mxu0 0.0
          %997 = vmatpush1.msra.mxu0 0.0
          %998 = vmatprep.subr.mxu0 0.0
          %999 = vmatpush1.msra.mxu0 0.0
          %1000 = vmatprep.subr.mxu0 0.0
          %1001 = vmatpush1.msra.mxu0 0.0
          %1002 = vmatprep.subr.mxu0 0.0
          %1003 = vmatpush1.msra.mxu0 0.0
          %1004 = vmatprep.subr.mxu0 0.0
          %1005 = vmatpush1.msra.mxu0 0.0
          %1006 = vmatprep.subr.mxu0 0.0
          %1007 = vmatpush1.msra.mxu0 0.0
          %1008 = vmatprep.subr.mxu0 0.0
          %1009 = vmatpush1.msra.mxu0 0.0
          %1010 = vmatprep.subr.mxu0 0.0
          %1011 = vmatpush1.msra.mxu0 0.0
          %1012 = vmatprep.subr.mxu0 0.0
          %1013 = vmatpush1.msra.mxu0 0.0
          %1014 = vmatprep.subr.mxu0 0.0
          %1015 = vmatpush1.msra.mxu0 0.0
          %1016 = vmatprep.subr.mxu0 %v535
          %1017 = vmatpush1.msra.mxu0 %v534
          %1018 = vmatprep.subr.mxu0 %v529
          %1019 = vmatpush1.msra.mxu0 %v528
          %1020 = vmatprep.subr.mxu0 %v523
          %1021 = vmatpush1.msra.mxu0 %v522
          %1022 = vmatprep.subr.mxu0 %v517
          %1023 = vmatpush1.msra.mxu0 %v516
          %1024 = vmatprep.subr.mxu0 0.0
          %1025 = vmatpush2.msra.mxu0 0.0
          %1026 = vmatprep.subr.mxu0 0.0
          %1027 = vmatpush2.msra.mxu0 0.0
          %1028 = vmatprep.subr.mxu0 0.0
          %1029 = vmatpush2.msra.mxu0 0.0
          %1030 = vmatprep.subr.mxu0 0.0
          %1031 = vmatpush2.msra.mxu0 0.0
          %1032 = vmatprep.subr.mxu0 0.0
          %1033 = vmatpush2.msra.mxu0 0.0
          %1034 = vmatprep.subr.mxu0 0.0
          %1035 = vmatpush2.msra.mxu0 0.0
          %1036 = vmatprep.subr.mxu0 0.0
          %1037 = vmatpush2.msra.mxu0 0.0
          %1038 = vmatprep.subr.mxu0 0.0
          %1039 = vmatpush2.msra.mxu0 0.0
          %1040 = vmatprep.subr.mxu0 0.0
          %1041 = vmatpush2.msra.mxu0 0.0
          %1042 = vmatprep.subr.mxu0 0.0
          %1043 = vmatpush2.msra.mxu0 0.0
          %1044 = vmatprep.subr.mxu0 0.0
          %1045 = vmatpush2.msra.mxu0 0.0
          %1046 = vmatprep.subr.mxu0 0.0
          %1047 = vmatpush2.msra.mxu0 0.0
          %1048 = vmatprep.subr.mxu0 0.0
          %1049 = vmatpush2.msra.mxu0 0.0
          %1050 = vmatprep.subr.mxu0 0.0
          %1051 = vmatpush2.msra.mxu0 0.0
          %1052 = vmatprep.subr.mxu0 0.0
          %1053 = vmatpush2.msra.mxu0 0.0
          %1054 = vmatprep.subr.mxu0 0.0
          %1055 = vmatpush2.msra.mxu0 0.0
          %1056 = vmatprep.mubr.f32.mxu0 0.0
          %1057 = vmatmul.mubr.f32.gmra.mxu0 %v848
          %v1058 = vpop.f32.mrf.mxu0
          %v1059 = vadd.f32 %v842, %v1058
          %v1060 = vpop.f32.mrf.mxu0
          %v1061 = vadd.f32 %v844, %v1060
          %1062 = vdwg.mxu0
          %v1063 = vld [vmem:[%s5] sm:$0x3f]
          %v1065 = vlaneseq
          %v1066 = vshrl.u32 %v1065, 7
          %v1067 = vsub.s32 0, %v1066
          %v1068 = vrot.slane %v1063, %v1067
          %v1069 = vlaneseq
          %v1070 = vshrl.u32 %v1069, 7
          %v1071 = vsub.s32 1, %v1070
          %v1072 = vrot.slane %v1063, %v1071
          %v1073 = vlaneseq
          %v1074 = vshrl.u32 %v1073, 7
          %v1075 = vsub.s32 2, %v1074
          %v1076 = vrot.slane %v1063, %v1075
          %v1077 = vlaneseq
          %v1078 = vshrl.u32 %v1077, 7
          %v1079 = vsub.s32 3, %v1078
          %v1080 = vrot.slane %v1063, %v1079
          %v1081 = vlaneseq
          %v1082 = vshrl.u32 %v1081, 7
          %v1083 = vsub.s32 4, %v1082
          %v1084 = vrot.slane %v1063, %v1083
          %v1085 = vlaneseq
          %v1086 = vshrl.u32 %v1085, 7
          %v1087 = vsub.s32 5, %v1086
          %v1088 = vrot.slane %v1063, %v1087
          %v1095 = vadd.f32 %v917, %v1068
          %v1096 = vadd.f32 %v919, %v1072
          %v1097 = vadd.f32 %v988, %v1076
          %v1098 = vadd.f32 %v990, %v1080
          %v1099 = vadd.f32 %v1059, %v1084
          %v1100 = vadd.f32 %v1061, %v1088
          %v1101 = vld [vmem:[#allocation2] sm:$0xff]
          %v1102 = vld [vmem:[#allocation11] sm:$0xff]
          %v1103 = vld [vmem:[#allocation11 + $0x8] sm:$0xff]
          %v1104 = vld [vmem:[#allocation11 + $0x10] sm:$0xff]
          %v1105 = vld [vmem:[#allocation11 + $0x18] sm:$0xff]
          %v1106 = vld [vmem:[#allocation11 + $0x20] sm:$0xff]
          %v1107 = vld [vmem:[#allocation11 + $0x28] sm:$0xff]
          %v1108 = vld [vmem:[#allocation11 + $0x30] sm:$0xff]
          %v1109 = vld [vmem:[#allocation11 + $0x38] sm:$0xff]
          %v1110 = vld [vmem:[#allocation11 + $0x40] sm:$0xff]
          %v1111 = vld [vmem:[#allocation11 + $0x48] sm:$0xff]
          %v1112 = vld [vmem:[#allocation11 + $0x50] sm:$0xff]
          %v1113 = vld [vmem:[#allocation11 + $0x58] sm:$0xff]
          %v1114 = vld [vmem:[#allocation11 + $0x60] sm:$0xff]
          %v1115 = vld [vmem:[#allocation11 + $0x68] sm:$0xff]
          %v1116 = vld [vmem:[#allocation11 + $0x70] sm:$0xff]
          %v1117 = vld [vmem:[#allocation11 + $0x78] sm:$0xff]
          %v1118 = vld [vmem:[#allocation11 + $0x80] sm:$0xff]
          %v1119 = vld [vmem:[#allocation11 + $0x88] sm:$0xff]
          %v1120 = vld [vmem:[#allocation11 + $0x90] sm:$0xff]
          %v1121 = vld [vmem:[#allocation11 + $0x98] sm:$0xff]
          %v1122 = vld [vmem:[#allocation11 + $0xa0] sm:$0xff]
          %v1123 = vld [vmem:[#allocation11 + $0xa8] sm:$0xff]
          %v1124 = vld [vmem:[#allocation11 + $0xb0] sm:$0xff]
          %v1125 = vld [vmem:[#allocation11 + $0xb8] sm:$0xff]
          %v1126 = vld [vmem:[#allocation11 + $0xc0] sm:$0xff]
          %v1127 = vld [vmem:[#allocation11 + $0xc8] sm:$0xff]
          %v1128 = vld [vmem:[#allocation11 + $0xd0] sm:$0xff]
          %v1129 = vld [vmem:[#allocation11 + $0xd8] sm:$0xff]
          %v1130 = vld [vmem:[#allocation11 + $0xe0] sm:$0xff]
          %v1131 = vld [vmem:[#allocation11 + $0xe8] sm:$0xff]
          %v1132 = vld [vmem:[#allocation11 + $0xf0] sm:$0xff]
          %v1133 = vld [vmem:[#allocation11 + $0xf8] sm:$0xff]
          %v1134 = vld [vmem:[#allocation11 + $0x100] sm:$0xff]
          %v1135 = vld [vmem:[#allocation11 + $0x108] sm:$0xff]
          %v1136 = vld [vmem:[#allocation11 + $0x110] sm:$0xff]
          %v1137 = vld [vmem:[#allocation11 + $0x118] sm:$0xff]
          %v1138 = vld [vmem:[#allocation11 + $0x120] sm:$0xff]
          %v1139 = vld [vmem:[#allocation11 + $0x128] sm:$0xff]
          %v1140 = vld [vmem:[#allocation11 + $0x130] sm:$0xff]
          %v1141 = vld [vmem:[#allocation11 + $0x138] sm:$0xff]
          %v1142 = vld [vmem:[#allocation11 + $0x140] sm:$0xff]
          %v1143 = vld [vmem:[#allocation11 + $0x148] sm:$0xff]
          %v1144 = vld [vmem:[#allocation11 + $0x150] sm:$0xff]
          %v1145 = vld [vmem:[#allocation11 + $0x158] sm:$0xff]
          %v1146 = vld [vmem:[#allocation11 + $0x160] sm:$0xff]
          %v1147 = vld [vmem:[#allocation11 + $0x168] sm:$0xff]
          %v1148 = vld [vmem:[#allocation11 + $0x170] sm:$0xff]
          %v1149 = vld [vmem:[#allocation11 + $0x178] sm:$0xff]
          %v1150 = vld [vmem:[#allocation11 + $0x180] sm:$0xff]
          %v1151 = vld [vmem:[#allocation11 + $0x188] sm:$0xff]
          %v1152 = vld [vmem:[#allocation11 + $0x190] sm:$0xff]
          %v1153 = vld [vmem:[#allocation11 + $0x198] sm:$0xff]
          %v1154 = vld [vmem:[#allocation11 + $0x1a0] sm:$0xff]
          %v1155 = vld [vmem:[#allocation11 + $0x1a8] sm:$0xff]
          %v1156 = vld [vmem:[#allocation11 + $0x1b0] sm:$0xff]
          %v1157 = vld [vmem:[#allocation11 + $0x1b8] sm:$0xff]
          %v1158 = vld [vmem:[#allocation11 + $0x1c0] sm:$0xff]
          %v1159 = vld [vmem:[#allocation11 + $0x1c8] sm:$0xff]
          %v1160 = vld [vmem:[#allocation11 + $0x1d0] sm:$0xff]
          %v1161 = vld [vmem:[#allocation11 + $0x1d8] sm:$0xff]
          %v1162 = vld [vmem:[#allocation11 + $0x1e0] sm:$0xff]
          %v1163 = vld [vmem:[#allocation11 + $0x1e8] sm:$0xff]
          %v1164 = vld [vmem:[#allocation11 + $0x1f0] sm:$0xff]
          %v1165 = vld [vmem:[#allocation11 + $0x1f8] sm:$0xff]
          %v1166 = vld [vmem:[#allocation11 + $0x200] sm:$0xff]
          %v1167 = vld [vmem:[#allocation11 + $0x208] sm:$0xff]
          %v1168 = vld [vmem:[#allocation11 + $0x210] sm:$0xff]
          %v1169 = vld [vmem:[#allocation11 + $0x218] sm:$0xff]
          %v1170 = vld [vmem:[#allocation11 + $0x220] sm:$0xff]
          %v1171 = vld [vmem:[#allocation11 + $0x228] sm:$0xff]
          %v1172 = vld [vmem:[#allocation11 + $0x230] sm:$0xff]
          %v1173 = vld [vmem:[#allocation11 + $0x238] sm:$0xff]
          %v1174 = vld [vmem:[#allocation11 + $0x240] sm:$0xff]
          %v1175 = vld [vmem:[#allocation11 + $0x248] sm:$0xff]
          %v1176 = vld [vmem:[#allocation11 + $0x250] sm:$0xff]
          %v1177 = vld [vmem:[#allocation11 + $0x258] sm:$0xff]
          %v1178 = vld [vmem:[#allocation11 + $0x260] sm:$0xff]
          %v1179 = vld [vmem:[#allocation11 + $0x268] sm:$0xff]
          %v1180 = vld [vmem:[#allocation11 + $0x270] sm:$0xff]
          %v1181 = vld [vmem:[#allocation11 + $0x278] sm:$0xff]
          %v1182 = vld [vmem:[%s7] sm:$0x1f]
          %v1184 = vlaneseq
          %v1185 = vshrl.u32 %v1184, 7
          %v1186 = vsub.s32 0, %v1185
          %v1187 = vrot.slane %v1182, %v1186
          %v1188 = vlaneseq
          %v1189 = vshrl.u32 %v1188, 7
          %v1190 = vsub.s32 1, %v1189
          %v1191 = vrot.slane %v1182, %v1190
          %v1192 = vlaneseq
          %v1193 = vshrl.u32 %v1192, 7
          %v1194 = vsub.s32 2, %v1193
          %v1195 = vrot.slane %v1182, %v1194
          %v1196 = vlaneseq
          %v1197 = vshrl.u32 %v1196, 7
          %v1198 = vsub.s32 3, %v1197
          %v1199 = vrot.slane %v1182, %v1198
          %v1200 = vlaneseq
          %v1201 = vshrl.u32 %v1200, 7
          %v1202 = vsub.s32 4, %v1201
          %v1203 = vrot.slane %v1182, %v1202
          %1209 = vmatprep.subr.mxu0 %v1178
          %1210 = vmatpush1.msra.mxu0 %v1177
          %1211 = vmatprep.subr.mxu0 %v1173
          %1212 = vmatpush1.msra.mxu0 %v1172
          %1213 = vmatprep.subr.mxu0 %v1168
          %1214 = vmatpush1.msra.mxu0 %v1167
          %1215 = vmatprep.subr.mxu0 %v1163
          %1216 = vmatpush1.msra.mxu0 %v1162
          %1217 = vmatprep.subr.mxu0 %v1158
          %1218 = vmatpush1.msra.mxu0 %v1157
          %1219 = vmatprep.subr.mxu0 %v1153
          %1220 = vmatpush1.msra.mxu0 %v1152
          %1221 = vmatprep.subr.mxu0 %v1148
          %1222 = vmatpush1.msra.mxu0 %v1147
          %1223 = vmatprep.subr.mxu0 %v1143
          %1224 = vmatpush1.msra.mxu0 %v1142
          %1225 = vmatprep.subr.mxu0 %v1138
          %1226 = vmatpush1.msra.mxu0 %v1137
          %1227 = vmatprep.subr.mxu0 %v1133
          %1228 = vmatpush1.msra.mxu0 %v1132
          %1229 = vmatprep.subr.mxu0 %v1128
          %1230 = vmatpush1.msra.mxu0 %v1127
          %1231 = vmatprep.subr.mxu0 %v1123
          %1232 = vmatpush1.msra.mxu0 %v1122
          %1233 = vmatprep.subr.mxu0 %v1118
          %1234 = vmatpush1.msra.mxu0 %v1117
          %1235 = vmatprep.subr.mxu0 %v1113
          %1236 = vmatpush1.msra.mxu0 %v1112
          %1237 = vmatprep.subr.mxu0 %v1108
          %1238 = vmatpush1.msra.mxu0 %v1107
          %1239 = vmatprep.subr.mxu0 %v1103
          %1240 = vmatpush1.msra.mxu0 %v1102
          %1241 = vmatprep.subr.mxu0 0.0
          %1242 = vmatpush2.msra.mxu0 0.0
          %1243 = vmatprep.subr.mxu0 0.0
          %1244 = vmatpush2.msra.mxu0 0.0
          %1245 = vmatprep.subr.mxu0 0.0
          %1246 = vmatpush2.msra.mxu0 0.0
          %1247 = vmatprep.subr.mxu0 0.0
          %1248 = vmatpush2.msra.mxu0 0.0
          %1249 = vmatprep.subr.mxu0 0.0
          %1250 = vmatpush2.msra.mxu0 0.0
          %1251 = vmatprep.subr.mxu0 0.0
          %1252 = vmatpush2.msra.mxu0 0.0
          %1253 = vmatprep.subr.mxu0 0.0
          %1254 = vmatpush2.msra.mxu0 0.0
          %1255 = vmatprep.subr.mxu0 0.0
          %1256 = vmatpush2.msra.mxu0 0.0
          %1257 = vmatprep.subr.mxu0 0.0
          %1258 = vmatpush2.msra.mxu0 0.0
          %1259 = vmatprep.subr.mxu0 0.0
          %1260 = vmatpush2.msra.mxu0 0.0
          %1261 = vmatprep.subr.mxu0 0.0
          %1262 = vmatpush2.msra.mxu0 0.0
          %1263 = vmatprep.subr.mxu0 0.0
          %1264 = vmatpush2.msra.mxu0 0.0
          %1265 = vmatprep.subr.mxu0 0.0
          %1266 = vmatpush2.msra.mxu0 0.0
          %1267 = vmatprep.subr.mxu0 0.0
          %1268 = vmatpush2.msra.mxu0 0.0
          %1269 = vmatprep.subr.mxu0 0.0
          %1270 = vmatpush2.msra.mxu0 0.0
          %1271 = vmatprep.subr.mxu0 0.0
          %1272 = vmatpush2.msra.mxu0 0.0
          %1273 = vmatprep.mubr.f32.mxu0 0.0
          %1274 = vmatmul.mubr.f32.gmra.mxu0 %v1101
          %v1275 = vpop.f32.mrf.mxu0
          %v1276 = vadd.f32 %v1187, %v1275
          %v1277 = vpop.f32.mrf.mxu0
          %v1278 = vadd.f32 %v1191, %v1277
          %1279 = vdwg.mxu0
          %1280 = vmatprep.subr.mxu0 %v1180
          %1281 = vmatpush1.msra.mxu0 %v1179
          %1282 = vmatprep.subr.mxu0 %v1175
          %1283 = vmatpush1.msra.mxu0 %v1174
          %1284 = vmatprep.subr.mxu0 %v1170
          %1285 = vmatpush1.msra.mxu0 %v1169
          %1286 = vmatprep.subr.mxu0 %v1165
          %1287 = vmatpush1.msra.mxu0 %v1164
          %1288 = vmatprep.subr.mxu0 %v1160
          %1289 = vmatpush1.msra.mxu0 %v1159
          %1290 = vmatprep.subr.mxu0 %v1155
          %1291 = vmatpush1.msra.mxu0 %v1154
          %1292 = vmatprep.subr.mxu0 %v1150
          %1293 = vmatpush1.msra.mxu0 %v1149
          %1294 = vmatprep.subr.mxu0 %v1145
          %1295 = vmatpush1.msra.mxu0 %v1144
          %1296 = vmatprep.subr.mxu0 %v1140
          %1297 = vmatpush1.msra.mxu0 %v1139
          %1298 = vmatprep.subr.mxu0 %v1135
          %1299 = vmatpush1.msra.mxu0 %v1134
          %1300 = vmatprep.subr.mxu0 %v1130
          %1301 = vmatpush1.msra.mxu0 %v1129
          %1302 = vmatprep.subr.mxu0 %v1125
          %1303 = vmatpush1.msra.mxu0 %v1124
          %1304 = vmatprep.subr.mxu0 %v1120
          %1305 = vmatpush1.msra.mxu0 %v1119
          %1306 = vmatprep.subr.mxu0 %v1115
          %1307 = vmatpush1.msra.mxu0 %v1114
          %1308 = vmatprep.subr.mxu0 %v1110
          %1309 = vmatpush1.msra.mxu0 %v1109
          %1310 = vmatprep.subr.mxu0 %v1105
          %1311 = vmatpush1.msra.mxu0 %v1104
          %1312 = vmatprep.subr.mxu0 0.0
          %1313 = vmatpush2.msra.mxu0 0.0
          %1314 = vmatprep.subr.mxu0 0.0
          %1315 = vmatpush2.msra.mxu0 0.0
          %1316 = vmatprep.subr.mxu0 0.0
          %1317 = vmatpush2.msra.mxu0 0.0
          %1318 = vmatprep.subr.mxu0 0.0
          %1319 = vmatpush2.msra.mxu0 0.0
          %1320 = vmatprep.subr.mxu0 0.0
          %1321 = vmatpush2.msra.mxu0 0.0
          %1322 = vmatprep.subr.mxu0 0.0
          %1323 = vmatpush2.msra.mxu0 0.0
          %1324 = vmatprep.subr.mxu0 0.0
          %1325 = vmatpush2.msra.mxu0 0.0
          %1326 = vmatprep.subr.mxu0 0.0
          %1327 = vmatpush2.msra.mxu0 0.0
          %1328 = vmatprep.subr.mxu0 0.0
          %1329 = vmatpush2.msra.mxu0 0.0
          %1330 = vmatprep.subr.mxu0 0.0
          %1331 = vmatpush2.msra.mxu0 0.0
          %1332 = vmatprep.subr.mxu0 0.0
          %1333 = vmatpush2.msra.mxu0 0.0
          %1334 = vmatprep.subr.mxu0 0.0
          %1335 = vmatpush2.msra.mxu0 0.0
          %1336 = vmatprep.subr.mxu0 0.0
          %1337 = vmatpush2.msra.mxu0 0.0
          %1338 = vmatprep.subr.mxu0 0.0
          %1339 = vmatpush2.msra.mxu0 0.0
          %1340 = vmatprep.subr.mxu0 0.0
          %1341 = vmatpush2.msra.mxu0 0.0
          %1342 = vmatprep.subr.mxu0 0.0
          %1343 = vmatpush2.msra.mxu0 0.0
          %1344 = vmatprep.mubr.f32.mxu0 0.0
          %1345 = vmatmul.mubr.f32.gmra.mxu0 %v1101
          %v1346 = vpop.f32.mrf.mxu0
          %v1347 = vadd.f32 %v1195, %v1346
          %v1348 = vpop.f32.mrf.mxu0
          %v1349 = vadd.f32 %v1199, %v1348
          %1350 = vdwg.mxu0
          %1351 = vmatprep.subr.mxu0 0.0
          %1352 = vmatpush1.msra.mxu0 %v1181
          %1353 = vmatprep.subr.mxu0 0.0
          %1354 = vmatpush1.msra.mxu0 %v1176
          %1355 = vmatprep.subr.mxu0 0.0
          %1356 = vmatpush1.msra.mxu0 %v1171
          %1357 = vmatprep.subr.mxu0 0.0
          %1358 = vmatpush1.msra.mxu0 %v1166
          %1359 = vmatprep.subr.mxu0 0.0
          %1360 = vmatpush1.msra.mxu0 %v1161
          %1361 = vmatprep.subr.mxu0 0.0
          %1362 = vmatpush1.msra.mxu0 %v1156
          %1363 = vmatprep.subr.mxu0 0.0
          %1364 = vmatpush1.msra.mxu0 %v1151
          %1365 = vmatprep.subr.mxu0 0.0
          %1366 = vmatpush1.msra.mxu0 %v1146
          %1367 = vmatprep.subr.mxu0 0.0
          %1368 = vmatpush1.msra.mxu0 %v1141
          %1369 = vmatprep.subr.mxu0 0.0
          %1370 = vmatpush1.msra.mxu0 %v1136
          %1371 = vmatprep.subr.mxu0 0.0
          %1372 = vmatpush1.msra.mxu0 %v1131
          %1373 = vmatprep.subr.mxu0 0.0
          %1374 = vmatpush1.msra.mxu0 %v1126
          %1375 = vmatprep.subr.mxu0 0.0
          %1376 = vmatpush1.msra.mxu0 %v1121
          %1377 = vmatprep.subr.mxu0 0.0
          %1378 = vmatpush1.msra.mxu0 %v1116
          %1379 = vmatprep.subr.mxu0 0.0
          %1380 = vmatpush1.msra.mxu0 %v1111
          %1381 = vmatprep.subr.mxu0 0.0
          %1382 = vmatpush1.msra.mxu0 %v1106
          %1383 = vmatprep.subr.mxu0 0.0
          %1384 = vmatpush2.msra.mxu0 0.0
          %1385 = vmatprep.subr.mxu0 0.0
          %1386 = vmatpush2.msra.mxu0 0.0
          %1387 = vmatprep.subr.mxu0 0.0
          %1388 = vmatpush2.msra.mxu0 0.0
          %1389 = vmatprep.subr.mxu0 0.0
          %1390 = vmatpush2.msra.mxu0 0.0
          %1391 = vmatprep.subr.mxu0 0.0
          %1392 = vmatpush2.msra.mxu0 0.0
          %1393 = vmatprep.subr.mxu0 0.0
          %1394 = vmatpush2.msra.mxu0 0.0
          %1395 = vmatprep.subr.mxu0 0.0
          %1396 = vmatpush2.msra.mxu0 0.0
          %1397 = vmatprep.subr.mxu0 0.0
          %1398 = vmatpush2.msra.mxu0 0.0
          %1399 = vmatprep.subr.mxu0 0.0
          %1400 = vmatpush2.msra.mxu0 0.0
          %1401 = vmatprep.subr.mxu0 0.0
          %1402 = vmatpush2.msra.mxu0 0.0
          %1403 = vmatprep.subr.mxu0 0.0
          %1404 = vmatpush2.msra.mxu0 0.0
          %1405 = vmatprep.subr.mxu0 0.0
          %1406 = vmatpush2.msra.mxu0 0.0
          %1407 = vmatprep.subr.mxu0 0.0
          %1408 = vmatpush2.msra.mxu0 0.0
          %1409 = vmatprep.subr.mxu0 0.0
          %1410 = vmatpush2.msra.mxu0 0.0
          %1411 = vmatprep.subr.mxu0 0.0
          %1412 = vmatpush2.msra.mxu0 0.0
          %1413 = vmatprep.subr.mxu0 0.0
          %1414 = vmatpush2.msra.mxu0 0.0
          %1415 = vmatprep.mubr.f32.mxu0 0.0
          %1416 = vmatmul.mubr.f32.gmra.mxu0 %v1101
          %v1417 = vpop.f32.mrf.mxu0
          %v1418 = vadd.f32 %v1203, %v1417
          %v1419 = vpop.f32.mrf.mxu0
          %1420 = vdwg.mxu0
          %v1421 = vadd.f32 %v1095, %v1276
          %v1422 = vxor.u32 %v1421, 2147483648
          %v1423 = vmul.f32 %v1422, 1.442695
          %v1424 = vpow.pop %v1423
          %v1425 = vadd.f32 %v1424, 1.0
          %v1426 = vrcp.pop %v1425
          %v1427 = vmul.f32 1.0, %v1426
          %v1428 = vadd.f32 %v1096, %v1278
          %v1429 = vxor.u32 %v1428, 2147483648
          %v1430 = vmul.f32 %v1429, 1.442695
          %v1431 = vpow.pop %v1430
          %v1432 = vadd.f32 %v1431, 1.0
          %v1433 = vrcp.pop %v1432
          %v1434 = vmul.f32 1.0, %v1433
          %v1435 = vadd.f32 %v1097, %v1347
          %v1436 = vtanh.pop %v1435
          %v1437 = vadd.f32 %v1098, %v1349
          %v1438 = vxor.u32 %v1437, 2147483648
          %v1439 = vmul.f32 %v1438, 1.442695
          %v1440 = vpow.pop %v1439
          %v1441 = vadd.f32 %v1440, 1.0
          %v1442 = vrcp.pop %v1441
          %v1443 = vmul.f32 1.0, %v1442
          %v1444 = vmul.f32 %v1427, %v1436
          %v1445 = vld [vmem:[#allocation3] sm:$0xff]
          %v1446 = vmul.f32 %v1434, %v1445
          %v1447 = vadd.f32 %v1444, %v1446
          %v1448 = vtanh.pop %v1447
          %v1449 = vmul.f32 %v1443, %v1448
          %v1450 = vadd.f32 %v1099, %v1418
          %v1451 = vxor.u32 %v1450, 2147483648
          %v1452 = vmul.f32 %v1451, 1.442695
          %v1453 = vpow.pop %v1452
          %v1454 = vadd.f32 %v1453, 1.0
          %v1455 = vrcp.pop %v1454
          %v1456 = vmul.f32 1.0, %v1455
          %v1457 = vmul.f32 %v1456, %v1449
          %v1458 = vsub.f32 1.0, %v1456
          %v1459 = vmul.f32 %v1458, %v1100
          %v1460 = vadd.f32 %v1457, %v1459
          %v1461 = vld [vmem:[#allocation13] sm:$0xff]
          %v1462 = vld [vmem:[#allocation13 + $0x8] sm:$0xff]
          %v1463 = vld [vmem:[#allocation13 + $0x10] sm:$0xff]
          %v1464 = vld [vmem:[#allocation13 + $0x18] sm:$0xff]
          %v1465 = vld [vmem:[#allocation13 + $0x20] sm:$0xff]
          %v1466 = vld [vmem:[#allocation13 + $0x28] sm:$0xff]
          %v1467 = vld [vmem:[#allocation13 + $0x30] sm:$0xff]
          %v1468 = vld [vmem:[#allocation13 + $0x38] sm:$0xff]
          %v1469 = vld [vmem:[#allocation13 + $0x40] sm:$0xff]
          %v1470 = vld [vmem:[#allocation13 + $0x48] sm:$0xff]
          %v1471 = vld [vmem:[#allocation13 + $0x50] sm:$0xff]
          %v1472 = vld [vmem:[#allocation13 + $0x58] sm:$0xff]
          %v1473 = vld [vmem:[#allocation13 + $0x60] sm:$0xff]
          %v1474 = vld [vmem:[#allocation13 + $0x68] sm:$0xff]
          %v1475 = vld [vmem:[#allocation13 + $0x70] sm:$0xff]
          %v1476 = vld [vmem:[#allocation13 + $0x78] sm:$0xff]
          %v1477 = vld [vmem:[%s9] sm:$0x1]
          %v1479 = vlaneseq
          %v1480 = vshrl.u32 %v1479, 7
          %v1481 = vsub.s32 0, %v1480
          %v1482 = vrot.slane %v1477, %v1481
          %1484 = vmatprep.subr.mxu0 0.0
          %1485 = vmatpush1.msra.mxu0 %v1476
          %1486 = vmatprep.subr.mxu0 0.0
          %1487 = vmatpush1.msra.mxu0 %v1475
          %1488 = vmatprep.subr.mxu0 0.0
          %1489 = vmatpush1.msra.mxu0 %v1474
          %1490 = vmatprep.subr.mxu0 0.0
          %1491 = vmatpush1.msra.mxu0 %v1473
          %1492 = vmatprep.subr.mxu0 0.0
          %1493 = vmatpush1.msra.mxu0 %v1472
          %1494 = vmatprep.subr.mxu0 0.0
          %1495 = vmatpush1.msra.mxu0 %v1471
          %1496 = vmatprep.subr.mxu0 0.0
          %1497 = vmatpush1.msra.mxu0 %v1470
          %1498 = vmatprep.subr.mxu0 0.0
          %1499 = vmatpush1.msra.mxu0 %v1469
          %1500 = vmatprep.subr.mxu0 0.0
          %1501 = vmatpush1.msra.mxu0 %v1468
          %1502 = vmatprep.subr.mxu0 0.0
          %1503 = vmatpush1.msra.mxu0 %v1467
          %1504 = vmatprep.subr.mxu0 0.0
          %1505 = vmatpush1.msra.mxu0 %v1466
          %1506 = vmatprep.subr.mxu0 0.0
          %1507 = vmatpush1.msra.mxu0 %v1465
          %1508 = vmatprep.subr.mxu0 0.0
          %1509 = vmatpush1.msra.mxu0 %v1464
          %1510 = vmatprep.subr.mxu0 0.0
          %1511 = vmatpush1.msra.mxu0 %v1463
          %1512 = vmatprep.subr.mxu0 0.0
          %1513 = vmatpush1.msra.mxu0 %v1462
          %1514 = vmatprep.subr.mxu0 0.0
          %1515 = vmatpush1.msra.mxu0 %v1461
          %1516 = vmatprep.subr.mxu0 0.0
          %1517 = vmatpush2.msra.mxu0 0.0
          %1518 = vmatprep.subr.mxu0 0.0
          %1519 = vmatpush2.msra.mxu0 0.0
          %1520 = vmatprep.subr.mxu0 0.0
          %1521 = vmatpush2.msra.mxu0 0.0
          %1522 = vmatprep.subr.mxu0 0.0
          %1523 = vmatpush2.msra.mxu0 0.0
          %1524 = vmatprep.subr.mxu0 0.0
          %1525 = vmatpush2.msra.mxu0 0.0
          %1526 = vmatprep.subr.mxu0 0.0
          %1527 = vmatpush2.msra.mxu0 0.0
          %1528 = vmatprep.subr.mxu0 0.0
          %1529 = vmatpush2.msra.mxu0 0.0
          %1530 = vmatprep.subr.mxu0 0.0
          %1531 = vmatpush2.msra.mxu0 0.0
          %1532 = vmatprep.subr.mxu0 0.0
          %1533 = vmatpush2.msra.mxu0 0.0
          %1534 = vmatprep.subr.mxu0 0.0
          %1535 = vmatpush2.msra.mxu0 0.0
          %1536 = vmatprep.subr.mxu0 0.0
          %1537 = vmatpush2.msra.mxu0 0.0
          %1538 = vmatprep.subr.mxu0 0.0
          %1539 = vmatpush2.msra.mxu0 0.0
          %1540 = vmatprep.subr.mxu0 0.0
          %1541 = vmatpush2.msra.mxu0 0.0
          %1542 = vmatprep.subr.mxu0 0.0
          %1543 = vmatpush2.msra.mxu0 0.0
          %1544 = vmatprep.subr.mxu0 0.0
          %1545 = vmatpush2.msra.mxu0 0.0
          %1546 = vmatprep.subr.mxu0 0.0
          %1547 = vmatpush2.msra.mxu0 0.0
          %1548 = vmatprep.mubr.f32.mxu0 0.0
          %1549 = vmatmul.mubr.f32.gmra.mxu0 %v1460
          %v1550 = vpop.f32.mrf.mxu0
          %v1551 = vadd.f32 %v1482, %v1550
          %v1552 = vpop.f32.mrf.mxu0
          %1553 = vdwg.mxu0
          %vm1554 = vcmp.ge.s32.totalorder %v505, 1
          %vm1555 = vcmp.lt.s32.totalorder %v505, 8
          %vm1556 = vmand %vm1554, %vm1555
          %v1557 = vsel %vm1556, %v1551, -inf
          %1558 = vmax.xlane.f32.xlu0 %v1557
          %v1559 = vpop.xlane.xlu0 %1558
          %vm1560 = vcmp.eq.f32.partialorder %v1557, %v1559
          %v1561 = vsel %vm1560, %v505, 128
          %v1562 = vand.u32 %v1561, 65535
          %v1563 = vshra.s32 %v1561, 16
          %v1564 = vcvt.s32.f32 %v1562
          %v1565 = vcvt.s32.f32 %v1563
          %1566 = vmin.xlane.f32.xlu0 %v1565
          %v1567 = vpop.xlane.xlu0 %1566
          %vm1568 = vcmp.eq.f32.partialorder %v1565, %v1567
          %v1569 = vsel %vm1568, %v1564, inf
          %1570 = vmin.xlane.f32.xlu0 %v1569
          %v1571 = vpop.xlane.xlu0 %1570
          %v1572 = vcvt.f32.s32 %v1571
          %v1573 = vcvt.f32.s32 %v1567
          %v1574 = vshll.u32 %v1573, 16
          %v1575 = vadd.s32 %v1574, %v1572
          %v1576 = vld [vmem:[%s489] sm:$0xff]
          %vm1577 = vcmp.eq.s32.totalorder %v1576, 0
          %v1578 = vsel %vm1577, %v1575, %v1576
          %v1579 = vadd.s32 %v1578, 1
          %1580 = vset.pattern.permute.xlu0 0
          %1581 = vperm.xlu0 %1580, %v1579
          %v1582 = vpop.permute.xlu0 %1581
          %vm1583 = vcmp.eq.s32.totalorder %v505, %v1582
          %v1584 = vsel %vm1583, 1, 0
          %v1585 = vcvt.s32.f32 %v1584
          %v1586 = vld [vmem:[#allocation5] sm:$0xff]
          %v1587 = vld [vmem:[#allocation5 + $0x8] sm:$0xff]
          %vm1588 = vcmask 130048
          %v1590 = vsel %vm1588, %v1585, 0
          %1592 = vmatprep.subr.mxu0 0.0
          %1593 = vmatpush1.msra.mxu0 0.0
          %1594 = vmatprep.subr.mxu0 0.0
          %1595 = vmatpush1.msra.mxu0 0.0
          %1596 = vmatprep.subr.mxu0 0.0
          %1597 = vmatpush1.msra.mxu0 0.0
          %1598 = vmatprep.subr.mxu0 0.0
          %1599 = vmatpush1.msra.mxu0 0.0
          %1600 = vmatprep.subr.mxu0 0.0
          %1601 = vmatpush1.msra.mxu0 0.0
          %1602 = vmatprep.subr.mxu0 0.0
          %1603 = vmatpush1.msra.mxu0 0.0
          %1604 = vmatprep.subr.mxu0 0.0
          %1605 = vmatpush1.msra.mxu0 0.0
          %1606 = vmatprep.subr.mxu0 0.0
          %1607 = vmatpush1.msra.mxu0 0.0
          %1608 = vmatprep.subr.mxu0 0.0
          %1609 = vmatpush1.msra.mxu0 0.0
          %1610 = vmatprep.subr.mxu0 0.0
          %1611 = vmatpush1.msra.mxu0 0.0
          %1612 = vmatprep.subr.mxu0 0.0
          %1613 = vmatpush1.msra.mxu0 0.0
          %1614 = vmatprep.subr.mxu0 0.0
          %1615 = vmatpush1.msra.mxu0 0.0
          %1616 = vmatprep.subr.mxu0 0.0
          %1617 = vmatpush1.msra.mxu0 0.0
          %1618 = vmatprep.subr.mxu0 0.0
          %1619 = vmatpush1.msra.mxu0 0.0
          %1620 = vmatprep.subr.mxu0 0.0
          %1621 = vmatpush1.msra.mxu0 %v1587
          %1622 = vmatprep.subr.mxu0 0.0
          %1623 = vmatpush1.msra.mxu0 %v1586
          %1624 = vmatprep.subr.mxu0 0.0
          %1625 = vmatpush2.msra.mxu0 0.0
          %1626 = vmatprep.subr.mxu0 0.0
          %1627 = vmatpush2.msra.mxu0 0.0
          %1628 = vmatprep.subr.mxu0 0.0
          %1629 = vmatpush2.msra.mxu0 0.0
          %1630 = vmatprep.subr.mxu0 0.0
          %1631 = vmatpush2.msra.mxu0 0.0
          %1632 = vmatprep.subr.mxu0 0.0
          %1633 = vmatpush2.msra.mxu0 0.0
          %1634 = vmatprep.subr.mxu0 0.0
          %1635 = vmatpush2.msra.mxu0 0.0
          %1636 = vmatprep.subr.mxu0 0.0
          %1637 = vmatpush2.msra.mxu0 0.0
          %1638 = vmatprep.subr.mxu0 0.0
          %1639 = vmatpush2.msra.mxu0 0.0
          %1640 = vmatprep.subr.mxu0 0.0
          %1641 = vmatpush2.msra.mxu0 0.0
          %1642 = vmatprep.subr.mxu0 0.0
          %1643 = vmatpush2.msra.mxu0 0.0
          %1644 = vmatprep.subr.mxu0 0.0
          %1645 = vmatpush2.msra.mxu0 0.0
          %1646 = vmatprep.subr.mxu0 0.0
          %1647 = vmatpush2.msra.mxu0 0.0
          %1648 = vmatprep.subr.mxu0 0.0
          %1649 = vmatpush2.msra.mxu0 0.0
          %1650 = vmatprep.subr.mxu0 0.0
          %1651 = vmatpush2.msra.mxu0 0.0
          %1652 = vmatprep.subr.mxu0 0.0
          %1653 = vmatpush2.msra.mxu0 0.0
          %1654 = vmatprep.subr.mxu0 0.0
          %1655 = vmatpush2.msra.mxu0 0.0
          %1656 = vmatprep.mubr.f32.mxu0 0.0
          %1657 = vmatmul.mubr.f32.gmra.mxu0 %v1590
          %v1658 = vpop.f32.mrf.mxu0
          %v1659 = vadd.f32 0.0, %v1658
          %v1660 = vpop.f32.mrf.mxu0
          %1661 = vdwg.mxu0
          %1662 = vst [vmem:[#allocation4] sm:$0xff] %v1659
          %1663 = vst [vmem:[#allocation2] sm:$0xff] %v1460
          %1664 = vst [vmem:[#allocation3] sm:$0xff] %v1447
          %vm1665 = vcmp.eq.s32.totalorder %v505, 14
          %v1666 = vcvt.s32.f32 %v1578
          %1668 = vset.pattern.permute.xlu0 0
          %1669 = vperm.xlu0 %1668, %v1666
          %v1670 = vpop.permute.xlu0 %1669
          %v1672 = vsel %vm1665, %v1670, %v1551
          %1673 = vst [vmem:[%s472] sm:$0xff] %v1672
        $region88: #{tpu_custom_call.1} parent=59 // pred_fallthru
          _
        %s1674 = sadd.s32 %s506, 1
        %p1675 = scmp.lt.s32.totalorder %s1674, 5
        // Predicated region
        $region89: #{tpu_custom_call.1} parent=59 // pred_check
          %p1676 = pneg %p1675
        $region90: #{tpu_custom_call.1} parent=59 // pred_check_branch
          %1678 = sbr.rel (%p1676) target = $region92
        $region91: #{tpu_custom_call.1} parent=59 // pred_region
          %s1679 = scalar_lea.vmem %s480, 8
          %v1680 = vld [vmem:[%s1679] sm:$0xff]
          %v1681 = vld [vmem:[#allocation8] sm:$0xff]
          %v1682 = vld [vmem:[#allocation8 + $0x8] sm:$0xff]
          %v1683 = vld [vmem:[#allocation8 + $0x10] sm:$0xff]
          %v1684 = vld [vmem:[#allocation8 + $0x18] sm:$0xff]
          %v1685 = vld [vmem:[#allocation8 + $0x20] sm:$0xff]
          %v1686 = vld [vmem:[#allocation8 + $0x28] sm:$0xff]
          %v1687 = vld [vmem:[#allocation8 + $0x30] sm:$0xff]
          %v1688 = vld [vmem:[#allocation8 + $0x38] sm:$0xff]
          %v1689 = vld [vmem:[#allocation8 + $0x40] sm:$0xff]
          %v1690 = vld [vmem:[#allocation8 + $0x48] sm:$0xff]
          %v1691 = vld [vmem:[#allocation8 + $0x50] sm:$0xff]
          %v1692 = vld [vmem:[#allocation8 + $0x58] sm:$0xff]
          %v1693 = vld [vmem:[#allocation8 + $0x60] sm:$0xff]
          %v1694 = vld [vmem:[#allocation8 + $0x68] sm:$0xff]
          %v1695 = vld [vmem:[#allocation8 + $0x70] sm:$0xff]
          %v1696 = vld [vmem:[#allocation8 + $0x78] sm:$0xff]
          %v1697 = vld [vmem:[#allocation8 + $0x80] sm:$0xff]
          %v1698 = vld [vmem:[#allocation8 + $0x88] sm:$0xff]
          %v1699 = vld [vmem:[#allocation8 + $0x90] sm:$0xff]
          %v1700 = vld [vmem:[#allocation8 + $0x98] sm:$0xff]
          %v1701 = vld [vmem:[#allocation8 + $0xa0] sm:$0xff]
          %v1702 = vld [vmem:[#allocation8 + $0xa8] sm:$0xff]
          %v1703 = vld [vmem:[#allocation8 + $0xb0] sm:$0xff]
          %v1704 = vld [vmem:[#allocation8 + $0xb8] sm:$0xff]
          %v1705 = vld [vmem:[#allocation4] sm:$0xff]
          %v1706 = vld [vmem:[#allocation10] sm:$0xff]
          %v1707 = vld [vmem:[#allocation10 + $0x8] sm:$0xff]
          %v1708 = vld [vmem:[#allocation10 + $0x10] sm:$0xff]
          %v1709 = vld [vmem:[#allocation10 + $0x18] sm:$0xff]
          %v1710 = vld [vmem:[#allocation10 + $0x20] sm:$0xff]
          %v1711 = vld [vmem:[#allocation10 + $0x28] sm:$0xff]
          %v1712 = vld [vmem:[#allocation10 + $0x30] sm:$0xff]
          %v1713 = vld [vmem:[#allocation10 + $0x38] sm:$0xff]
          %v1714 = vld [vmem:[#allocation10 + $0x40] sm:$0xff]
          %v1715 = vld [vmem:[#allocation10 + $0x48] sm:$0xff]
          %v1716 = vld [vmem:[#allocation10 + $0x50] sm:$0xff]
          %v1717 = vld [vmem:[#allocation10 + $0x58] sm:$0xff]
          %v1718 = vld [vmem:[#allocation10 + $0x60] sm:$0xff]
          %v1719 = vld [vmem:[#allocation10 + $0x68] sm:$0xff]
          %v1720 = vld [vmem:[#allocation10 + $0x70] sm:$0xff]
          %v1721 = vld [vmem:[#allocation10 + $0x78] sm:$0xff]
          %v1722 = vld [vmem:[#allocation10 + $0x80] sm:$0xff]
          %v1723 = vld [vmem:[#allocation10 + $0x88] sm:$0xff]
          %v1724 = vld [vmem:[#allocation10 + $0x90] sm:$0xff]
          %v1725 = vld [vmem:[#allocation10 + $0x98] sm:$0xff]
          %v1726 = vld [vmem:[#allocation10 + $0xa0] sm:$0xff]
          %v1727 = vld [vmem:[#allocation10 + $0xa8] sm:$0xff]
          %v1728 = vld [vmem:[#allocation10 + $0xb0] sm:$0xff]
          %v1729 = vld [vmem:[#allocation10 + $0xb8] sm:$0xff]
          %v1730 = vld [vmem:[#allocation10 + $0xc0] sm:$0xff]
          %v1731 = vld [vmem:[#allocation10 + $0xc8] sm:$0xff]
          %v1732 = vld [vmem:[#allocation10 + $0xd0] sm:$0xff]
          %v1733 = vld [vmem:[#allocation10 + $0xd8] sm:$0xff]
          %v1734 = vld [vmem:[#allocation10 + $0xe0] sm:$0xff]
          %v1735 = vld [vmem:[#allocation10 + $0xe8] sm:$0xff]
          %v1736 = vld [vmem:[#allocation10 + $0xf0] sm:$0xff]
          %v1737 = vld [vmem:[#allocation10 + $0xf8] sm:$0xff]
          %v1738 = vld [vmem:[#allocation10 + $0x100] sm:$0xff]
          %v1739 = vld [vmem:[#allocation10 + $0x108] sm:$0xff]
          %v1740 = vld [vmem:[#allocation10 + $0x110] sm:$0xff]
          %v1741 = vld [vmem:[#allocation10 + $0x118] sm:$0xff]
          %v1742 = vld [vmem:[#allocation10 + $0x120] sm:$0xff]
          %v1743 = vld [vmem:[#allocation10 + $0x128] sm:$0xff]
          %v1744 = vld [vmem:[#allocation10 + $0x130] sm:$0xff]
          %v1745 = vld [vmem:[#allocation10 + $0x138] sm:$0xff]
          %v1746 = vld [vmem:[#allocation10 + $0x140] sm:$0xff]
          %v1747 = vld [vmem:[#allocation10 + $0x148] sm:$0xff]
          %v1748 = vld [vmem:[#allocation10 + $0x150] sm:$0xff]
          %v1749 = vld [vmem:[#allocation10 + $0x158] sm:$0xff]
          %v1750 = vld [vmem:[#allocation10 + $0x160] sm:$0xff]
          %v1751 = vld [vmem:[#allocation10 + $0x168] sm:$0xff]
          %v1752 = vld [vmem:[#allocation10 + $0x170] sm:$0xff]
          %v1753 = vld [vmem:[#allocation10 + $0x178] sm:$0xff]
          %v1754 = vld [vmem:[#allocation10 + $0x180] sm:$0xff]
          %v1755 = vld [vmem:[#allocation10 + $0x188] sm:$0xff]
          %v1756 = vld [vmem:[#allocation10 + $0x190] sm:$0xff]
          %v1757 = vld [vmem:[#allocation10 + $0x198] sm:$0xff]
          %v1758 = vld [vmem:[#allocation10 + $0x1a0] sm:$0xff]
          %v1759 = vld [vmem:[#allocation10 + $0x1a8] sm:$0xff]
          %v1760 = vld [vmem:[#allocation10 + $0x1b0] sm:$0xff]
          %v1761 = vld [vmem:[#allocation10 + $0x1b8] sm:$0xff]
          %v1762 = vld [vmem:[#allocation10 + $0x1c0] sm:$0xff]
          %v1763 = vld [vmem:[#allocation10 + $0x1c8] sm:$0xff]
          %v1764 = vld [vmem:[#allocation10 + $0x1d0] sm:$0xff]
          %v1765 = vld [vmem:[#allocation10 + $0x1d8] sm:$0xff]
          %v1766 = vld [vmem:[#allocation10 + $0x1e0] sm:$0xff]
          %v1767 = vld [vmem:[#allocation10 + $0x1e8] sm:$0xff]
          %v1768 = vld [vmem:[#allocation10 + $0x1f0] sm:$0xff]
          %v1769 = vld [vmem:[#allocation10 + $0x1f8] sm:$0xff]
          %v1770 = vld [vmem:[#allocation10 + $0x200] sm:$0xff]
          %v1771 = vld [vmem:[#allocation10 + $0x208] sm:$0xff]
          %v1772 = vld [vmem:[#allocation10 + $0x210] sm:$0xff]
          %v1773 = vld [vmem:[#allocation10 + $0x218] sm:$0xff]
          %v1774 = vld [vmem:[#allocation10 + $0x220] sm:$0xff]
          %v1775 = vld [vmem:[#allocation10 + $0x228] sm:$0xff]
          %v1776 = vld [vmem:[#allocation10 + $0x230] sm:$0xff]
          %v1777 = vld [vmem:[#allocation10 + $0x238] sm:$0xff]
          %v1778 = vld [vmem:[#allocation10 + $0x240] sm:$0xff]
          %v1779 = vld [vmem:[#allocation10 + $0x248] sm:$0xff]
          %v1780 = vld [vmem:[#allocation10 + $0x250] sm:$0xff]
          %v1781 = vld [vmem:[#allocation10 + $0x258] sm:$0xff]
          %v1782 = vld [vmem:[#allocation10 + $0x260] sm:$0xff]
          %v1783 = vld [vmem:[#allocation10 + $0x268] sm:$0xff]
          %v1784 = vld [vmem:[#allocation10 + $0x270] sm:$0xff]
          %v1785 = vld [vmem:[#allocation10 + $0x278] sm:$0xff]
          %v1786 = vld [vmem:[#allocation10 + $0x280] sm:$0xff]
          %v1787 = vld [vmem:[#allocation10 + $0x288] sm:$0xff]
          %v1788 = vld [vmem:[#allocation10 + $0x290] sm:$0xff]
          %v1789 = vld [vmem:[#allocation10 + $0x298] sm:$0xff]
          %v1790 = vld [vmem:[#allocation10 + $0x2a0] sm:$0xff]
          %v1791 = vld [vmem:[#allocation10 + $0x2a8] sm:$0xff]
          %v1792 = vld [vmem:[#allocation10 + $0x2b0] sm:$0xff]
          %v1793 = vld [vmem:[#allocation10 + $0x2b8] sm:$0xff]
          %v1794 = vld [vmem:[#allocation10 + $0x2c0] sm:$0xff]
          %v1795 = vld [vmem:[#allocation10 + $0x2c8] sm:$0xff]
          %v1796 = vld [vmem:[#allocation10 + $0x2d0] sm:$0xff]
          %v1797 = vld [vmem:[#allocation10 + $0x2d8] sm:$0xff]
          %v1798 = vld [vmem:[#allocation10 + $0x2e0] sm:$0xff]
          %v1799 = vld [vmem:[#allocation10 + $0x2e8] sm:$0xff]
          %v1800 = vld [vmem:[#allocation10 + $0x2f0] sm:$0xff]
          %v1801 = vld [vmem:[#allocation10 + $0x2f8] sm:$0xff]
          %1802 = vmatprep.subr.mxu0 %v1797
          %1803 = vmatpush1.msra.mxu0 %v1796
          %1804 = vmatprep.subr.mxu0 %v1791
          %1805 = vmatpush1.msra.mxu0 %v1790
          %1806 = vmatprep.subr.mxu0 %v1785
          %1807 = vmatpush1.msra.mxu0 %v1784
          %1808 = vmatprep.subr.mxu0 %v1779
          %1809 = vmatpush1.msra.mxu0 %v1778
          %1810 = vmatprep.subr.mxu0 %v1773
          %1811 = vmatpush1.msra.mxu0 %v1772
          %1812 = vmatprep.subr.mxu0 %v1767
          %1813 = vmatpush1.msra.mxu0 %v1766
          %1814 = vmatprep.subr.mxu0 %v1761
          %1815 = vmatpush1.msra.mxu0 %v1760
          %1816 = vmatprep.subr.mxu0 %v1755
          %1817 = vmatpush1.msra.mxu0 %v1754
          %1818 = vmatprep.subr.mxu0 %v1749
          %1819 = vmatpush1.msra.mxu0 %v1748
          %1820 = vmatprep.subr.mxu0 %v1743
          %1821 = vmatpush1.msra.mxu0 %v1742
          %1822 = vmatprep.subr.mxu0 %v1737
          %1823 = vmatpush1.msra.mxu0 %v1736
          %1824 = vmatprep.subr.mxu0 %v1731
          %1825 = vmatpush1.msra.mxu0 %v1730
          %1826 = vmatprep.subr.mxu0 %v1725
          %1827 = vmatpush1.msra.mxu0 %v1724
          %1828 = vmatprep.subr.mxu0 %v1719
          %1829 = vmatpush1.msra.mxu0 %v1718
          %1830 = vmatprep.subr.mxu0 %v1713
          %1831 = vmatpush1.msra.mxu0 %v1712
          %1832 = vmatprep.subr.mxu0 %v1707
          %1833 = vmatpush1.msra.mxu0 %v1706
          %1834 = vmatprep.subr.mxu0 0.0
          %1835 = vmatpush2.msra.mxu0 0.0
          %1836 = vmatprep.subr.mxu0 0.0
          %1837 = vmatpush2.msra.mxu0 0.0
          %1838 = vmatprep.subr.mxu0 0.0
          %1839 = vmatpush2.msra.mxu0 0.0
          %1840 = vmatprep.subr.mxu0 0.0
          %1841 = vmatpush2.msra.mxu0 0.0
          %1842 = vmatprep.subr.mxu0 0.0
          %1843 = vmatpush2.msra.mxu0 0.0
          %1844 = vmatprep.subr.mxu0 0.0
          %1845 = vmatpush2.msra.mxu0 0.0
          %1846 = vmatprep.subr.mxu0 0.0
          %1847 = vmatpush2.msra.mxu0 0.0
          %1848 = vmatprep.subr.mxu0 0.0
          %1849 = vmatpush2.msra.mxu0 0.0
          %1850 = vmatprep.subr.mxu0 0.0
          %1851 = vmatpush2.msra.mxu0 0.0
          %1852 = vmatprep.subr.mxu0 0.0
          %1853 = vmatpush2.msra.mxu0 0.0
          %1854 = vmatprep.subr.mxu0 0.0
          %1855 = vmatpush2.msra.mxu0 0.0
          %1856 = vmatprep.subr.mxu0 0.0
          %1857 = vmatpush2.msra.mxu0 0.0
          %1858 = vmatprep.subr.mxu0 0.0
          %1859 = vmatpush2.msra.mxu0 0.0
          %1860 = vmatprep.subr.mxu0 0.0
          %1861 = vmatpush2.msra.mxu0 0.0
          %1862 = vmatprep.subr.mxu0 0.0
          %1863 = vmatpush2.msra.mxu0 0.0
          %1864 = vmatprep.subr.mxu0 0.0
          %1865 = vmatpush2.msra.mxu0 0.0
          %1866 = vmatprep.mubr.f32.mxu0 0.0
          %1867 = vmatmul.mubr.f32.gmra.mxu0 %v1705
          %v1868 = vpop.f32.mrf.mxu0
          %v1869 = vadd.f32 0.0, %v1868
          %v1870 = vpop.f32.mrf.mxu0
          %v1871 = vadd.f32 0.0, %v1870
          %1872 = vdwg.mxu0
          %1873 = vmatprep.subr.mxu0 %v1799
          %1874 = vmatpush1.msra.mxu0 %v1798
          %1875 = vmatprep.subr.mxu0 %v1793
          %1876 = vmatpush1.msra.mxu0 %v1792
          %1877 = vmatprep.subr.mxu0 %v1787
          %1878 = vmatpush1.msra.mxu0 %v1786
          %1879 = vmatprep.subr.mxu0 %v1781
          %1880 = vmatpush1.msra.mxu0 %v1780
          %1881 = vmatprep.subr.mxu0 %v1775
          %1882 = vmatpush1.msra.mxu0 %v1774
          %1883 = vmatprep.subr.mxu0 %v1769
          %1884 = vmatpush1.msra.mxu0 %v1768
          %1885 = vmatprep.subr.mxu0 %v1763
          %1886 = vmatpush1.msra.mxu0 %v1762
          %1887 = vmatprep.subr.mxu0 %v1757
          %1888 = vmatpush1.msra.mxu0 %v1756
          %1889 = vmatprep.subr.mxu0 %v1751
          %1890 = vmatpush1.msra.mxu0 %v1750
          %1891 = vmatprep.subr.mxu0 %v1745
          %1892 = vmatpush1.msra.mxu0 %v1744
          %1893 = vmatprep.subr.mxu0 %v1739
          %1894 = vmatpush1.msra.mxu0 %v1738
          %1895 = vmatprep.subr.mxu0 %v1733
          %1896 = vmatpush1.msra.mxu0 %v1732
          %1897 = vmatprep.subr.mxu0 %v1727
          %1898 = vmatpush1.msra.mxu0 %v1726
          %1899 = vmatprep.subr.mxu0 %v1721
          %1900 = vmatpush1.msra.mxu0 %v1720
          %1901 = vmatprep.subr.mxu0 %v1715
          %1902 = vmatpush1.msra.mxu0 %v1714
          %1903 = vmatprep.subr.mxu0 %v1709
          %1904 = vmatpush1.msra.mxu0 %v1708
          %1905 = vmatprep.subr.mxu0 0.0
          %1906 = vmatpush2.msra.mxu0 0.0
          %1907 = vmatprep.subr.mxu0 0.0
          %1908 = vmatpush2.msra.mxu0 0.0
          %1909 = vmatprep.subr.mxu0 0.0
          %1910 = vmatpush2.msra.mxu0 0.0
          %1911 = vmatprep.subr.mxu0 0.0
          %1912 = vmatpush2.msra.mxu0 0.0
          %1913 = vmatprep.subr.mxu0 0.0
          %1914 = vmatpush2.msra.mxu0 0.0
          %1915 = vmatprep.subr.mxu0 0.0
          %1916 = vmatpush2.msra.mxu0 0.0
          %1917 = vmatprep.subr.mxu0 0.0
          %1918 = vmatpush2.msra.mxu0 0.0
          %1919 = vmatprep.subr.mxu0 0.0
          %1920 = vmatpush2.msra.mxu0 0.0
          %1921 = vmatprep.subr.mxu0 0.0
          %1922 = vmatpush2.msra.mxu0 0.0
          %1923 = vmatprep.subr.mxu0 0.0
          %1924 = vmatpush2.msra.mxu0 0.0
          %1925 = vmatprep.subr.mxu0 0.0
          %1926 = vmatpush2.msra.mxu0 0.0
          %1927 = vmatprep.subr.mxu0 0.0
          %1928 = vmatpush2.msra.mxu0 0.0
          %1929 = vmatprep.subr.mxu0 0.0
          %1930 = vmatpush2.msra.mxu0 0.0
          %1931 = vmatprep.subr.mxu0 0.0
          %1932 = vmatpush2.msra.mxu0 0.0
          %1933 = vmatprep.subr.mxu0 0.0
          %1934 = vmatpush2.msra.mxu0 0.0
          %1935 = vmatprep.subr.mxu0 0.0
          %1936 = vmatpush2.msra.mxu0 0.0
          %1937 = vmatprep.mubr.f32.mxu0 0.0
          %1938 = vmatmul.mubr.f32.gmra.mxu0 %v1705
          %v1939 = vpop.f32.mrf.mxu0
          %v1940 = vadd.f32 0.0, %v1939
          %v1941 = vpop.f32.mrf.mxu0
          %v1942 = vadd.f32 0.0, %v1941
          %1943 = vdwg.mxu0
          %1944 = vmatprep.subr.mxu0 %v1801
          %1945 = vmatpush1.msra.mxu0 %v1800
          %1946 = vmatprep.subr.mxu0 %v1795
          %1947 = vmatpush1.msra.mxu0 %v1794
          %1948 = vmatprep.subr.mxu0 %v1789
          %1949 = vmatpush1.msra.mxu0 %v1788
          %1950 = vmatprep.subr.mxu0 %v1783
          %1951 = vmatpush1.msra.mxu0 %v1782
          %1952 = vmatprep.subr.mxu0 %v1777
          %1953 = vmatpush1.msra.mxu0 %v1776
          %1954 = vmatprep.subr.mxu0 %v1771
          %1955 = vmatpush1.msra.mxu0 %v1770
          %1956 = vmatprep.subr.mxu0 %v1765
          %1957 = vmatpush1.msra.mxu0 %v1764
          %1958 = vmatprep.subr.mxu0 %v1759
          %1959 = vmatpush1.msra.mxu0 %v1758
          %1960 = vmatprep.subr.mxu0 %v1753
          %1961 = vmatpush1.msra.mxu0 %v1752
          %1962 = vmatprep.subr.mxu0 %v1747
          %1963 = vmatpush1.msra.mxu0 %v1746
          %1964 = vmatprep.subr.mxu0 %v1741
          %1965 = vmatpush1.msra.mxu0 %v1740
          %1966 = vmatprep.subr.mxu0 %v1735
          %1967 = vmatpush1.msra.mxu0 %v1734
          %1968 = vmatprep.subr.mxu0 %v1729
          %1969 = vmatpush1.msra.mxu0 %v1728
          %1970 = vmatprep.subr.mxu0 %v1723
          %1971 = vmatpush1.msra.mxu0 %v1722
          %1972 = vmatprep.subr.mxu0 %v1717
          %1973 = vmatpush1.msra.mxu0 %v1716
          %1974 = vmatprep.subr.mxu0 %v1711
          %1975 = vmatpush1.msra.mxu0 %v1710
          %1976 = vmatprep.subr.mxu0 0.0
          %1977 = vmatpush2.msra.mxu0 0.0
          %1978 = vmatprep.subr.mxu0 0.0
          %1979 = vmatpush2.msra.mxu0 0.0
          %1980 = vmatprep.subr.mxu0 0.0
          %1981 = vmatpush2.msra.mxu0 0.0
          %1982 = vmatprep.subr.mxu0 0.0
          %1983 = vmatpush2.msra.mxu0 0.0
          %1984 = vmatprep.subr.mxu0 0.0
          %1985 = vmatpush2.msra.mxu0 0.0
          %1986 = vmatprep.subr.mxu0 0.0
          %1987 = vmatpush2.msra.mxu0 0.0
          %1988 = vmatprep.subr.mxu0 0.0
          %1989 = vmatpush2.msra.mxu0 0.0
          %1990 = vmatprep.subr.mxu0 0.0
          %1991 = vmatpush2.msra.mxu0 0.0
          %1992 = vmatprep.subr.mxu0 0.0
          %1993 = vmatpush2.msra.mxu0 0.0
          %1994 = vmatprep.subr.mxu0 0.0
          %1995 = vmatpush2.msra.mxu0 0.0
          %1996 = vmatprep.subr.mxu0 0.0
          %1997 = vmatpush2.msra.mxu0 0.0
          %1998 = vmatprep.subr.mxu0 0.0
          %1999 = vmatpush2.msra.mxu0 0.0
          %2000 = vmatprep.subr.mxu0 0.0
          %2001 = vmatpush2.msra.mxu0 0.0
          %2002 = vmatprep.subr.mxu0 0.0
          %2003 = vmatpush2.msra.mxu0 0.0
          %2004 = vmatprep.subr.mxu0 0.0
          %2005 = vmatpush2.msra.mxu0 0.0
          %2006 = vmatprep.subr.mxu0 0.0
          %2007 = vmatpush2.msra.mxu0 0.0
          %2008 = vmatprep.mubr.f32.mxu0 0.0
          %2009 = vmatmul.mubr.f32.gmra.mxu0 %v1705
          %v2010 = vpop.f32.mrf.mxu0
          %v2011 = vadd.f32 0.0, %v2010
          %v2012 = vpop.f32.mrf.mxu0
          %v2013 = vadd.f32 0.0, %v2012
          %2014 = vdwg.mxu0
          %vm2015 = vcmask 261120
          %v2017 = vsel %vm2015, %v1680, 0
          %2019 = vmatprep.subr.mxu0 0.0
          %2020 = vmatpush1.msra.mxu0 0.0
          %2021 = vmatprep.subr.mxu0 0.0
          %2022 = vmatpush1.msra.mxu0 0.0
          %2023 = vmatprep.subr.mxu0 0.0
          %2024 = vmatpush1.msra.mxu0 0.0
          %2025 = vmatprep.subr.mxu0 0.0
          %2026 = vmatpush1.msra.mxu0 0.0
          %2027 = vmatprep.subr.mxu0 0.0
          %2028 = vmatpush1.msra.mxu0 0.0
          %2029 = vmatprep.subr.mxu0 0.0
          %2030 = vmatpush1.msra.mxu0 0.0
          %2031 = vmatprep.subr.mxu0 0.0
          %2032 = vmatpush1.msra.mxu0 0.0
          %2033 = vmatprep.subr.mxu0 0.0
          %2034 = vmatpush1.msra.mxu0 0.0
          %2035 = vmatprep.subr.mxu0 0.0
          %2036 = vmatpush1.msra.mxu0 0.0
          %2037 = vmatprep.subr.mxu0 0.0
          %2038 = vmatpush1.msra.mxu0 0.0
          %2039 = vmatprep.subr.mxu0 0.0
          %2040 = vmatpush1.msra.mxu0 0.0
          %2041 = vmatprep.subr.mxu0 0.0
          %2042 = vmatpush1.msra.mxu0 0.0
          %2043 = vmatprep.subr.mxu0 %v1700
          %2044 = vmatpush1.msra.mxu0 %v1699
          %2045 = vmatprep.subr.mxu0 %v1694
          %2046 = vmatpush1.msra.mxu0 %v1693
          %2047 = vmatprep.subr.mxu0 %v1688
          %2048 = vmatpush1.msra.mxu0 %v1687
          %2049 = vmatprep.subr.mxu0 %v1682
          %2050 = vmatpush1.msra.mxu0 %v1681
          %2051 = vmatprep.subr.mxu0 0.0
          %2052 = vmatpush2.msra.mxu0 0.0
          %2053 = vmatprep.subr.mxu0 0.0
          %2054 = vmatpush2.msra.mxu0 0.0
          %2055 = vmatprep.subr.mxu0 0.0
          %2056 = vmatpush2.msra.mxu0 0.0
          %2057 = vmatprep.subr.mxu0 0.0
          %2058 = vmatpush2.msra.mxu0 0.0
          %2059 = vmatprep.subr.mxu0 0.0
          %2060 = vmatpush2.msra.mxu0 0.0
          %2061 = vmatprep.subr.mxu0 0.0
          %2062 = vmatpush2.msra.mxu0 0.0
          %2063 = vmatprep.subr.mxu0 0.0
          %2064 = vmatpush2.msra.mxu0 0.0
          %2065 = vmatprep.subr.mxu0 0.0
          %2066 = vmatpush2.msra.mxu0 0.0
          %2067 = vmatprep.subr.mxu0 0.0
          %2068 = vmatpush2.msra.mxu0 0.0
          %2069 = vmatprep.subr.mxu0 0.0
          %2070 = vmatpush2.msra.mxu0 0.0
          %2071 = vmatprep.subr.mxu0 0.0
          %2072 = vmatpush2.msra.mxu0 0.0
          %2073 = vmatprep.subr.mxu0 0.0
          %2074 = vmatpush2.msra.mxu0 0.0
          %2075 = vmatprep.subr.mxu0 0.0
          %2076 = vmatpush2.msra.mxu0 0.0
          %2077 = vmatprep.subr.mxu0 0.0
          %2078 = vmatpush2.msra.mxu0 0.0
          %2079 = vmatprep.subr.mxu0 0.0
          %2080 = vmatpush2.msra.mxu0 0.0
          %2081 = vmatprep.subr.mxu0 0.0
          %2082 = vmatpush2.msra.mxu0 0.0
          %2083 = vmatprep.mubr.f32.mxu0 0.0
          %2084 = vmatmul.mubr.f32.gmra.mxu0 %v2017
          %v2085 = vpop.f32.mrf.mxu0
          %v2086 = vadd.f32 %v1869, %v2085
          %v2087 = vpop.f32.mrf.mxu0
          %v2088 = vadd.f32 %v1871, %v2087
          %2089 = vdwg.mxu0
          %2090 = vmatprep.subr.mxu0 0.0
          %2091 = vmatpush1.msra.mxu0 0.0
          %2092 = vmatprep.subr.mxu0 0.0
          %2093 = vmatpush1.msra.mxu0 0.0
          %2094 = vmatprep.subr.mxu0 0.0
          %2095 = vmatpush1.msra.mxu0 0.0
          %2096 = vmatprep.subr.mxu0 0.0
          %2097 = vmatpush1.msra.mxu0 0.0
          %2098 = vmatprep.subr.mxu0 0.0
          %2099 = vmatpush1.msra.mxu0 0.0
          %2100 = vmatprep.subr.mxu0 0.0
          %2101 = vmatpush1.msra.mxu0 0.0
          %2102 = vmatprep.subr.mxu0 0.0
          %2103 = vmatpush1.msra.mxu0 0.0
          %2104 = vmatprep.subr.mxu0 0.0
          %2105 = vmatpush1.msra.mxu0 0.0
          %2106 = vmatprep.subr.mxu0 0.0
          %2107 = vmatpush1.msra.mxu0 0.0
          %2108 = vmatprep.subr.mxu0 0.0
          %2109 = vmatpush1.msra.mxu0 0.0
          %2110 = vmatprep.subr.mxu0 0.0
          %2111 = vmatpush1.msra.mxu0 0.0
          %2112 = vmatprep.subr.mxu0 0.0
          %2113 = vmatpush1.msra.mxu0 0.0
          %2114 = vmatprep.subr.mxu0 %v1702
          %2115 = vmatpush1.msra.mxu0 %v1701
          %2116 = vmatprep.subr.mxu0 %v1696
          %2117 = vmatpush1.msra.mxu0 %v1695
          %2118 = vmatprep.subr.mxu0 %v1690
          %2119 = vmatpush1.msra.mxu0 %v1689
          %2120 = vmatprep.subr.mxu0 %v1684
          %2121 = vmatpush1.msra.mxu0 %v1683
          %2122 = vmatprep.subr.mxu0 0.0
          %2123 = vmatpush2.msra.mxu0 0.0
          %2124 = vmatprep.subr.mxu0 0.0
          %2125 = vmatpush2.msra.mxu0 0.0
          %2126 = vmatprep.subr.mxu0 0.0
          %2127 = vmatpush2.msra.mxu0 0.0
          %2128 = vmatprep.subr.mxu0 0.0
          %2129 = vmatpush2.msra.mxu0 0.0
          %2130 = vmatprep.subr.mxu0 0.0
          %2131 = vmatpush2.msra.mxu0 0.0
          %2132 = vmatprep.subr.mxu0 0.0
          %2133 = vmatpush2.msra.mxu0 0.0
          %2134 = vmatprep.subr.mxu0 0.0
          %2135 = vmatpush2.msra.mxu0 0.0
          %2136 = vmatprep.subr.mxu0 0.0
          %2137 = vmatpush2.msra.mxu0 0.0
          %2138 = vmatprep.subr.mxu0 0.0
          %2139 = vmatpush2.msra.mxu0 0.0
          %2140 = vmatprep.subr.mxu0 0.0
          %2141 = vmatpush2.msra.mxu0 0.0
          %2142 = vmatprep.subr.mxu0 0.0
          %2143 = vmatpush2.msra.mxu0 0.0
          %2144 = vmatprep.subr.mxu0 0.0
          %2145 = vmatpush2.msra.mxu0 0.0
          %2146 = vmatprep.subr.mxu0 0.0
          %2147 = vmatpush2.msra.mxu0 0.0
          %2148 = vmatprep.subr.mxu0 0.0
          %2149 = vmatpush2.msra.mxu0 0.0
          %2150 = vmatprep.subr.mxu0 0.0
          %2151 = vmatpush2.msra.mxu0 0.0
          %2152 = vmatprep.subr.mxu0 0.0
          %2153 = vmatpush2.msra.mxu0 0.0
          %2154 = vmatprep.mubr.f32.mxu0 0.0
          %2155 = vmatmul.mubr.f32.gmra.mxu0 %v2017
          %v2156 = vpop.f32.mrf.mxu0
          %v2157 = vadd.f32 %v1940, %v2156
          %v2158 = vpop.f32.mrf.mxu0
          %v2159 = vadd.f32 %v1942, %v2158
          %2160 = vdwg.mxu0
          %2161 = vmatprep.subr.mxu0 0.0
          %2162 = vmatpush1.msra.mxu0 0.0
          %2163 = vmatprep.subr.mxu0 0.0
          %2164 = vmatpush1.msra.mxu0 0.0
          %2165 = vmatprep.subr.mxu0 0.0
          %2166 = vmatpush1.msra.mxu0 0.0
          %2167 = vmatprep.subr.mxu0 0.0
          %2168 = vmatpush1.msra.mxu0 0.0
          %2169 = vmatprep.subr.mxu0 0.0
          %2170 = vmatpush1.msra.mxu0 0.0
          %2171 = vmatprep.subr.mxu0 0.0
          %2172 = vmatpush1.msra.mxu0 0.0
          %2173 = vmatprep.subr.mxu0 0.0
          %2174 = vmatpush1.msra.mxu0 0.0
          %2175 = vmatprep.subr.mxu0 0.0
          %2176 = vmatpush1.msra.mxu0 0.0
          %2177 = vmatprep.subr.mxu0 0.0
          %2178 = vmatpush1.msra.mxu0 0.0
          %2179 = vmatprep.subr.mxu0 0.0
          %2180 = vmatpush1.msra.mxu0 0.0
          %2181 = vmatprep.subr.mxu0 0.0
          %2182 = vmatpush1.msra.mxu0 0.0
          %2183 = vmatprep.subr.mxu0 0.0
          %2184 = vmatpush1.msra.mxu0 0.0
          %2185 = vmatprep.subr.mxu0 %v1704
          %2186 = vmatpush1.msra.mxu0 %v1703
          %2187 = vmatprep.subr.mxu0 %v1698
          %2188 = vmatpush1.msra.mxu0 %v1697
          %2189 = vmatprep.subr.mxu0 %v1692
          %2190 = vmatpush1.msra.mxu0 %v1691
          %2191 = vmatprep.subr.mxu0 %v1686
          %2192 = vmatpush1.msra.mxu0 %v1685
          %2193 = vmatprep.subr.mxu0 0.0
          %2194 = vmatpush2.msra.mxu0 0.0
          %2195 = vmatprep.subr.mxu0 0.0
          %2196 = vmatpush2.msra.mxu0 0.0
          %2197 = vmatprep.subr.mxu0 0.0
          %2198 = vmatpush2.msra.mxu0 0.0
          %2199 = vmatprep.subr.mxu0 0.0
          %2200 = vmatpush2.msra.mxu0 0.0
          %2201 = vmatprep.subr.mxu0 0.0
          %2202 = vmatpush2.msra.mxu0 0.0
          %2203 = vmatprep.subr.mxu0 0.0
          %2204 = vmatpush2.msra.mxu0 0.0
          %2205 = vmatprep.subr.mxu0 0.0
          %2206 = vmatpush2.msra.mxu0 0.0
          %2207 = vmatprep.subr.mxu0 0.0
          %2208 = vmatpush2.msra.mxu0 0.0
          %2209 = vmatprep.subr.mxu0 0.0
          %2210 = vmatpush2.msra.mxu0 0.0
          %2211 = vmatprep.subr.mxu0 0.0
          %2212 = vmatpush2.msra.mxu0 0.0
          %2213 = vmatprep.subr.mxu0 0.0
          %2214 = vmatpush2.msra.mxu0 0.0
          %2215 = vmatprep.subr.mxu0 0.0
          %2216 = vmatpush2.msra.mxu0 0.0
          %2217 = vmatprep.subr.mxu0 0.0
          %2218 = vmatpush2.msra.mxu0 0.0
          %2219 = vmatprep.subr.mxu0 0.0
          %2220 = vmatpush2.msra.mxu0 0.0
          %2221 = vmatprep.subr.mxu0 0.0
          %2222 = vmatpush2.msra.mxu0 0.0
          %2223 = vmatprep.subr.mxu0 0.0
          %2224 = vmatpush2.msra.mxu0 0.0
          %2225 = vmatprep.mubr.f32.mxu0 0.0
          %2226 = vmatmul.mubr.f32.gmra.mxu0 %v2017
          %v2227 = vpop.f32.mrf.mxu0
          %v2228 = vadd.f32 %v2011, %v2227
          %v2229 = vpop.f32.mrf.mxu0
          %v2230 = vadd.f32 %v2013, %v2229
          %2231 = vdwg.mxu0
          %v2232 = vld [vmem:[%s5] sm:$0x3f]
          %v2234 = vlaneseq
          %v2235 = vshrl.u32 %v2234, 7
          %v2236 = vsub.s32 0, %v2235
          %v2237 = vrot.slane %v2232, %v2236
          %v2238 = vlaneseq
          %v2239 = vshrl.u32 %v2238, 7
          %v2240 = vsub.s32 1, %v2239
          %v2241 = vrot.slane %v2232, %v2240
          %v2242 = vlaneseq
          %v2243 = vshrl.u32 %v2242, 7
          %v2244 = vsub.s32 2, %v2243
          %v2245 = vrot.slane %v2232, %v2244
          %v2246 = vlaneseq
          %v2247 = vshrl.u32 %v2246, 7
          %v2248 = vsub.s32 3, %v2247
          %v2249 = vrot.slane %v2232, %v2248
          %v2250 = vlaneseq
          %v2251 = vshrl.u32 %v2250, 7
          %v2252 = vsub.s32 4, %v2251
          %v2253 = vrot.slane %v2232, %v2252
          %v2254 = vlaneseq
          %v2255 = vshrl.u32 %v2254, 7
          %v2256 = vsub.s32 5, %v2255
          %v2257 = vrot.slane %v2232, %v2256
          %v2264 = vadd.f32 %v2086, %v2237
          %v2265 = vadd.f32 %v2088, %v2241
          %v2266 = vadd.f32 %v2157, %v2245
          %v2267 = vadd.f32 %v2159, %v2249
          %v2268 = vadd.f32 %v2228, %v2253
          %v2269 = vadd.f32 %v2230, %v2257
          %v2270 = vld [vmem:[#allocation2] sm:$0xff]
          %v2271 = vld [vmem:[#allocation11] sm:$0xff]
          %v2272 = vld [vmem:[#allocation11 + $0x8] sm:$0xff]
          %v2273 = vld [vmem:[#allocation11 + $0x10] sm:$0xff]
          %v2274 = vld [vmem:[#allocation11 + $0x18] sm:$0xff]
          %v2275 = vld [vmem:[#allocation11 + $0x20] sm:$0xff]
          %v2276 = vld [vmem:[#allocation11 + $0x28] sm:$0xff]
          %v2277 = vld [vmem:[#allocation11 + $0x30] sm:$0xff]
          %v2278 = vld [vmem:[#allocation11 + $0x38] sm:$0xff]
          %v2279 = vld [vmem:[#allocation11 + $0x40] sm:$0xff]
          %v2280 = vld [vmem:[#allocation11 + $0x48] sm:$0xff]
          %v2281 = vld [vmem:[#allocation11 + $0x50] sm:$0xff]
          %v2282 = vld [vmem:[#allocation11 + $0x58] sm:$0xff]
          %v2283 = vld [vmem:[#allocation11 + $0x60] sm:$0xff]
          %v2284 = vld [vmem:[#allocation11 + $0x68] sm:$0xff]
          %v2285 = vld [vmem:[#allocation11 + $0x70] sm:$0xff]
          %v2286 = vld [vmem:[#allocation11 + $0x78] sm:$0xff]
          %v2287 = vld [vmem:[#allocation11 + $0x80] sm:$0xff]
          %v2288 = vld [vmem:[#allocation11 + $0x88] sm:$0xff]
          %v2289 = vld [vmem:[#allocation11 + $0x90] sm:$0xff]
          %v2290 = vld [vmem:[#allocation11 + $0x98] sm:$0xff]
          %v2291 = vld [vmem:[#allocation11 + $0xa0] sm:$0xff]
          %v2292 = vld [vmem:[#allocation11 + $0xa8] sm:$0xff]
          %v2293 = vld [vmem:[#allocation11 + $0xb0] sm:$0xff]
          %v2294 = vld [vmem:[#allocation11 + $0xb8] sm:$0xff]
          %v2295 = vld [vmem:[#allocation11 + $0xc0] sm:$0xff]
          %v2296 = vld [vmem:[#allocation11 + $0xc8] sm:$0xff]
          %v2297 = vld [vmem:[#allocation11 + $0xd0] sm:$0xff]
          %v2298 = vld [vmem:[#allocation11 + $0xd8] sm:$0xff]
          %v2299 = vld [vmem:[#allocation11 + $0xe0] sm:$0xff]
          %v2300 = vld [vmem:[#allocation11 + $0xe8] sm:$0xff]
          %v2301 = vld [vmem:[#allocation11 + $0xf0] sm:$0xff]
          %v2302 = vld [vmem:[#allocation11 + $0xf8] sm:$0xff]
          %v2303 = vld [vmem:[#allocation11 + $0x100] sm:$0xff]
          %v2304 = vld [vmem:[#allocation11 + $0x108] sm:$0xff]
          %v2305 = vld [vmem:[#allocation11 + $0x110] sm:$0xff]
          %v2306 = vld [vmem:[#allocation11 + $0x118] sm:$0xff]
          %v2307 = vld [vmem:[#allocation11 + $0x120] sm:$0xff]
          %v2308 = vld [vmem:[#allocation11 + $0x128] sm:$0xff]
          %v2309 = vld [vmem:[#allocation11 + $0x130] sm:$0xff]
          %v2310 = vld [vmem:[#allocation11 + $0x138] sm:$0xff]
          %v2311 = vld [vmem:[#allocation11 + $0x140] sm:$0xff]
          %v2312 = vld [vmem:[#allocation11 + $0x148] sm:$0xff]
          %v2313 = vld [vmem:[#allocation11 + $0x150] sm:$0xff]
          %v2314 = vld [vmem:[#allocation11 + $0x158] sm:$0xff]
          %v2315 = vld [vmem:[#allocation11 + $0x160] sm:$0xff]
          %v2316 = vld [vmem:[#allocation11 + $0x168] sm:$0xff]
          %v2317 = vld [vmem:[#allocation11 + $0x170] sm:$0xff]
          %v2318 = vld [vmem:[#allocation11 + $0x178] sm:$0xff]
          %v2319 = vld [vmem:[#allocation11 + $0x180] sm:$0xff]
          %v2320 = vld [vmem:[#allocation11 + $0x188] sm:$0xff]
          %v2321 = vld [vmem:[#allocation11 + $0x190] sm:$0xff]
          %v2322 = vld [vmem:[#allocation11 + $0x198] sm:$0xff]
          %v2323 = vld [vmem:[#allocation11 + $0x1a0] sm:$0xff]
          %v2324 = vld [vmem:[#allocation11 + $0x1a8] sm:$0xff]
          %v2325 = vld [vmem:[#allocation11 + $0x1b0] sm:$0xff]
          %v2326 = vld [vmem:[#allocation11 + $0x1b8] sm:$0xff]
          %v2327 = vld [vmem:[#allocation11 + $0x1c0] sm:$0xff]
          %v2328 = vld [vmem:[#allocation11 + $0x1c8] sm:$0xff]
          %v2329 = vld [vmem:[#allocation11 + $0x1d0] sm:$0xff]
          %v2330 = vld [vmem:[#allocation11 + $0x1d8] sm:$0xff]
          %v2331 = vld [vmem:[#allocation11 + $0x1e0] sm:$0xff]
          %v2332 = vld [vmem:[#allocation11 + $0x1e8] sm:$0xff]
          %v2333 = vld [vmem:[#allocation11 + $0x1f0] sm:$0xff]
          %v2334 = vld [vmem:[#allocation11 + $0x1f8] sm:$0xff]
          %v2335 = vld [vmem:[#allocation11 + $0x200] sm:$0xff]
          %v2336 = vld [vmem:[#allocation11 + $0x208] sm:$0xff]
          %v2337 = vld [vmem:[#allocation11 + $0x210] sm:$0xff]
          %v2338 = vld [vmem:[#allocation11 + $0x218] sm:$0xff]
          %v2339 = vld [vmem:[#allocation11 + $0x220] sm:$0xff]
          %v2340 = vld [vmem:[#allocation11 + $0x228] sm:$0xff]
          %v2341 = vld [vmem:[#allocation11 + $0x230] sm:$0xff]
          %v2342 = vld [vmem:[#allocation11 + $0x238] sm:$0xff]
          %v2343 = vld [vmem:[#allocation11 + $0x240] sm:$0xff]
          %v2344 = vld [vmem:[#allocation11 + $0x248] sm:$0xff]
          %v2345 = vld [vmem:[#allocation11 + $0x250] sm:$0xff]
          %v2346 = vld [vmem:[#allocation11 + $0x258] sm:$0xff]
          %v2347 = vld [vmem:[#allocation11 + $0x260] sm:$0xff]
          %v2348 = vld [vmem:[#allocation11 + $0x268] sm:$0xff]
          %v2349 = vld [vmem:[#allocation11 + $0x270] sm:$0xff]
          %v2350 = vld [vmem:[#allocation11 + $0x278] sm:$0xff]
          %v2351 = vld [vmem:[%s7] sm:$0x1f]
          %v2353 = vlaneseq
          %v2354 = vshrl.u32 %v2353, 7
          %v2355 = vsub.s32 0, %v2354
          %v2356 = vrot.slane %v2351, %v2355
          %v2357 = vlaneseq
          %v2358 = vshrl.u32 %v2357, 7
          %v2359 = vsub.s32 1, %v2358
          %v2360 = vrot.slane %v2351, %v2359
          %v2361 = vlaneseq
          %v2362 = vshrl.u32 %v2361, 7
          %v2363 = vsub.s32 2, %v2362
          %v2364 = vrot.slane %v2351, %v2363
          %v2365 = vlaneseq
          %v2366 = vshrl.u32 %v2365, 7
          %v2367 = vsub.s32 3, %v2366
          %v2368 = vrot.slane %v2351, %v2367
          %v2369 = vlaneseq
          %v2370 = vshrl.u32 %v2369, 7
          %v2371 = vsub.s32 4, %v2370
          %v2372 = vrot.slane %v2351, %v2371
          %2378 = vmatprep.subr.mxu0 %v2347
          %2379 = vmatpush1.msra.mxu0 %v2346
          %2380 = vmatprep.subr.mxu0 %v2342
          %2381 = vmatpush1.msra.mxu0 %v2341
          %2382 = vmatprep.subr.mxu0 %v2337
          %2383 = vmatpush1.msra.mxu0 %v2336
          %2384 = vmatprep.subr.mxu0 %v2332
          %2385 = vmatpush1.msra.mxu0 %v2331
          %2386 = vmatprep.subr.mxu0 %v2327
          %2387 = vmatpush1.msra.mxu0 %v2326
          %2388 = vmatprep.subr.mxu0 %v2322
          %2389 = vmatpush1.msra.mxu0 %v2321
          %2390 = vmatprep.subr.mxu0 %v2317
          %2391 = vmatpush1.msra.mxu0 %v2316
          %2392 = vmatprep.subr.mxu0 %v2312
          %2393 = vmatpush1.msra.mxu0 %v2311
          %2394 = vmatprep.subr.mxu0 %v2307
          %2395 = vmatpush1.msra.mxu0 %v2306
          %2396 = vmatprep.subr.mxu0 %v2302
          %2397 = vmatpush1.msra.mxu0 %v2301
          %2398 = vmatprep.subr.mxu0 %v2297
          %2399 = vmatpush1.msra.mxu0 %v2296
          %2400 = vmatprep.subr.mxu0 %v2292
          %2401 = vmatpush1.msra.mxu0 %v2291
          %2402 = vmatprep.subr.mxu0 %v2287
          %2403 = vmatpush1.msra.mxu0 %v2286
          %2404 = vmatprep.subr.mxu0 %v2282
          %2405 = vmatpush1.msra.mxu0 %v2281
          %2406 = vmatprep.subr.mxu0 %v2277
          %2407 = vmatpush1.msra.mxu0 %v2276
          %2408 = vmatprep.subr.mxu0 %v2272
          %2409 = vmatpush1.msra.mxu0 %v2271
          %2410 = vmatprep.subr.mxu0 0.0
          %2411 = vmatpush2.msra.mxu0 0.0
          %2412 = vmatprep.subr.mxu0 0.0
          %2413 = vmatpush2.msra.mxu0 0.0
          %2414 = vmatprep.subr.mxu0 0.0
          %2415 = vmatpush2.msra.mxu0 0.0
          %2416 = vmatprep.subr.mxu0 0.0
          %2417 = vmatpush2.msra.mxu0 0.0
          %2418 = vmatprep.subr.mxu0 0.0
          %2419 = vmatpush2.msra.mxu0 0.0
          %2420 = vmatprep.subr.mxu0 0.0
          %2421 = vmatpush2.msra.mxu0 0.0
          %2422 = vmatprep.subr.mxu0 0.0
          %2423 = vmatpush2.msra.mxu0 0.0
          %2424 = vmatprep.subr.mxu0 0.0
          %2425 = vmatpush2.msra.mxu0 0.0
          %2426 = vmatprep.subr.mxu0 0.0
          %2427 = vmatpush2.msra.mxu0 0.0
          %2428 = vmatprep.subr.mxu0 0.0
          %2429 = vmatpush2.msra.mxu0 0.0
          %2430 = vmatprep.subr.mxu0 0.0
          %2431 = vmatpush2.msra.mxu0 0.0
          %2432 = vmatprep.subr.mxu0 0.0
          %2433 = vmatpush2.msra.mxu0 0.0
          %2434 = vmatprep.subr.mxu0 0.0
          %2435 = vmatpush2.msra.mxu0 0.0
          %2436 = vmatprep.subr.mxu0 0.0
          %2437 = vmatpush2.msra.mxu0 0.0
          %2438 = vmatprep.subr.mxu0 0.0
          %2439 = vmatpush2.msra.mxu0 0.0
          %2440 = vmatprep.subr.mxu0 0.0
          %2441 = vmatpush2.msra.mxu0 0.0
          %2442 = vmatprep.mubr.f32.mxu0 0.0
          %2443 = vmatmul.mubr.f32.gmra.mxu0 %v2270
          %v2444 = vpop.f32.mrf.mxu0
          %v2445 = vadd.f32 %v2356, %v2444
          %v2446 = vpop.f32.mrf.mxu0
          %v2447 = vadd.f32 %v2360, %v2446
          %2448 = vdwg.mxu0
          %2449 = vmatprep.subr.mxu0 %v2349
          %2450 = vmatpush1.msra.mxu0 %v2348
          %2451 = vmatprep.subr.mxu0 %v2344
          %2452 = vmatpush1.msra.mxu0 %v2343
          %2453 = vmatprep.subr.mxu0 %v2339
          %2454 = vmatpush1.msra.mxu0 %v2338
          %2455 = vmatprep.subr.mxu0 %v2334
          %2456 = vmatpush1.msra.mxu0 %v2333
          %2457 = vmatprep.subr.mxu0 %v2329
          %2458 = vmatpush1.msra.mxu0 %v2328
          %2459 = vmatprep.subr.mxu0 %v2324
          %2460 = vmatpush1.msra.mxu0 %v2323
          %2461 = vmatprep.subr.mxu0 %v2319
          %2462 = vmatpush1.msra.mxu0 %v2318
          %2463 = vmatprep.subr.mxu0 %v2314
          %2464 = vmatpush1.msra.mxu0 %v2313
          %2465 = vmatprep.subr.mxu0 %v2309
          %2466 = vmatpush1.msra.mxu0 %v2308
          %2467 = vmatprep.subr.mxu0 %v2304
          %2468 = vmatpush1.msra.mxu0 %v2303
          %2469 = vmatprep.subr.mxu0 %v2299
          %2470 = vmatpush1.msra.mxu0 %v2298
          %2471 = vmatprep.subr.mxu0 %v2294
          %2472 = vmatpush1.msra.mxu0 %v2293
          %2473 = vmatprep.subr.mxu0 %v2289
          %2474 = vmatpush1.msra.mxu0 %v2288
          %2475 = vmatprep.subr.mxu0 %v2284
          %2476 = vmatpush1.msra.mxu0 %v2283
          %2477 = vmatprep.subr.mxu0 %v2279
          %2478 = vmatpush1.msra.mxu0 %v2278
          %2479 = vmatprep.subr.mxu0 %v2274
          %2480 = vmatpush1.msra.mxu0 %v2273
          %2481 = vmatprep.subr.mxu0 0.0
          %2482 = vmatpush2.msra.mxu0 0.0
          %2483 = vmatprep.subr.mxu0 0.0
          %2484 = vmatpush2.msra.mxu0 0.0
          %2485 = vmatprep.subr.mxu0 0.0
          %2486 = vmatpush2.msra.mxu0 0.0
          %2487 = vmatprep.subr.mxu0 0.0
          %2488 = vmatpush2.msra.mxu0 0.0
          %2489 = vmatprep.subr.mxu0 0.0
          %2490 = vmatpush2.msra.mxu0 0.0
          %2491 = vmatprep.subr.mxu0 0.0
          %2492 = vmatpush2.msra.mxu0 0.0
          %2493 = vmatprep.subr.mxu0 0.0
          %2494 = vmatpush2.msra.mxu0 0.0
          %2495 = vmatprep.subr.mxu0 0.0
          %2496 = vmatpush2.msra.mxu0 0.0
          %2497 = vmatprep.subr.mxu0 0.0
          %2498 = vmatpush2.msra.mxu0 0.0
          %2499 = vmatprep.subr.mxu0 0.0
          %2500 = vmatpush2.msra.mxu0 0.0
          %2501 = vmatprep.subr.mxu0 0.0
          %2502 = vmatpush2.msra.mxu0 0.0
          %2503 = vmatprep.subr.mxu0 0.0
          %2504 = vmatpush2.msra.mxu0 0.0
          %2505 = vmatprep.subr.mxu0 0.0
          %2506 = vmatpush2.msra.mxu0 0.0
          %2507 = vmatprep.subr.mxu0 0.0
          %2508 = vmatpush2.msra.mxu0 0.0
          %2509 = vmatprep.subr.mxu0 0.0
          %2510 = vmatpush2.msra.mxu0 0.0
          %2511 = vmatprep.subr.mxu0 0.0
          %2512 = vmatpush2.msra.mxu0 0.0
          %2513 = vmatprep.mubr.f32.mxu0 0.0
          %2514 = vmatmul.mubr.f32.gmra.mxu0 %v2270
          %v2515 = vpop.f32.mrf.mxu0
          %v2516 = vadd.f32 %v2364, %v2515
          %v2517 = vpop.f32.mrf.mxu0
          %v2518 = vadd.f32 %v2368, %v2517
          %2519 = vdwg.mxu0
          %2520 = vmatprep.subr.mxu0 0.0
          %2521 = vmatpush1.msra.mxu0 %v2350
          %2522 = vmatprep.subr.mxu0 0.0
          %2523 = vmatpush1.msra.mxu0 %v2345
          %2524 = vmatprep.subr.mxu0 0.0
          %2525 = vmatpush1.msra.mxu0 %v2340
          %2526 = vmatprep.subr.mxu0 0.0
          %2527 = vmatpush1.msra.mxu0 %v2335
          %2528 = vmatprep.subr.mxu0 0.0
          %2529 = vmatpush1.msra.mxu0 %v2330
          %2530 = vmatprep.subr.mxu0 0.0
          %2531 = vmatpush1.msra.mxu0 %v2325
          %2532 = vmatprep.subr.mxu0 0.0
          %2533 = vmatpush1.msra.mxu0 %v2320
          %2534 = vmatprep.subr.mxu0 0.0
          %2535 = vmatpush1.msra.mxu0 %v2315
          %2536 = vmatprep.subr.mxu0 0.0
          %2537 = vmatpush1.msra.mxu0 %v2310
          %2538 = vmatprep.subr.mxu0 0.0
          %2539 = vmatpush1.msra.mxu0 %v2305
          %2540 = vmatprep.subr.mxu0 0.0
          %2541 = vmatpush1.msra.mxu0 %v2300
          %2542 = vmatprep.subr.mxu0 0.0
          %2543 = vmatpush1.msra.mxu0 %v2295
          %2544 = vmatprep.subr.mxu0 0.0
          %2545 = vmatpush1.msra.mxu0 %v2290
          %2546 = vmatprep.subr.mxu0 0.0
          %2547 = vmatpush1.msra.mxu0 %v2285
          %2548 = vmatprep.subr.mxu0 0.0
          %2549 = vmatpush1.msra.mxu0 %v2280
          %2550 = vmatprep.subr.mxu0 0.0
          %2551 = vmatpush1.msra.mxu0 %v2275
          %2552 = vmatprep.subr.mxu0 0.0
          %2553 = vmatpush2.msra.mxu0 0.0
          %2554 = vmatprep.subr.mxu0 0.0
          %2555 = vmatpush2.msra.mxu0 0.0
          %2556 = vmatprep.subr.mxu0 0.0
          %2557 = vmatpush2.msra.mxu0 0.0
          %2558 = vmatprep.subr.mxu0 0.0
          %2559 = vmatpush2.msra.mxu0 0.0
          %2560 = vmatprep.subr.mxu0 0.0
          %2561 = vmatpush2.msra.mxu0 0.0
          %2562 = vmatprep.subr.mxu0 0.0
          %2563 = vmatpush2.msra.mxu0 0.0
          %2564 = vmatprep.subr.mxu0 0.0
          %2565 = vmatpush2.msra.mxu0 0.0
          %2566 = vmatprep.subr.mxu0 0.0
          %2567 = vmatpush2.msra.mxu0 0.0
          %2568 = vmatprep.subr.mxu0 0.0
          %2569 = vmatpush2.msra.mxu0 0.0
          %2570 = vmatprep.subr.mxu0 0.0
          %2571 = vmatpush2.msra.mxu0 0.0
          %2572 = vmatprep.subr.mxu0 0.0
          %2573 = vmatpush2.msra.mxu0 0.0
          %2574 = vmatprep.subr.mxu0 0.0
          %2575 = vmatpush2.msra.mxu0 0.0
          %2576 = vmatprep.subr.mxu0 0.0
          %2577 = vmatpush2.msra.mxu0 0.0
          %2578 = vmatprep.subr.mxu0 0.0
          %2579 = vmatpush2.msra.mxu0 0.0
          %2580 = vmatprep.subr.mxu0 0.0
          %2581 = vmatpush2.msra.mxu0 0.0
          %2582 = vmatprep.subr.mxu0 0.0
          %2583 = vmatpush2.msra.mxu0 0.0
          %2584 = vmatprep.mubr.f32.mxu0 0.0
          %2585 = vmatmul.mubr.f32.gmra.mxu0 %v2270
          %v2586 = vpop.f32.mrf.mxu0
          %v2587 = vadd.f32 %v2372, %v2586
          %v2588 = vpop.f32.mrf.mxu0
          %2589 = vdwg.mxu0
          %v2590 = vadd.f32 %v2264, %v2445
          %v2591 = vxor.u32 %v2590, 2147483648
          %v2592 = vmul.f32 %v2591, 1.442695
          %v2593 = vpow.pop %v2592
          %v2594 = vadd.f32 %v2593, 1.0
          %v2595 = vrcp.pop %v2594
          %v2596 = vmul.f32 1.0, %v2595
          %v2597 = vadd.f32 %v2265, %v2447
          %v2598 = vxor.u32 %v2597, 2147483648
          %v2599 = vmul.f32 %v2598, 1.442695
          %v2600 = vpow.pop %v2599
          %v2601 = vadd.f32 %v2600, 1.0
          %v2602 = vrcp.pop %v2601
          %v2603 = vmul.f32 1.0, %v2602
          %v2604 = vadd.f32 %v2266, %v2516
          %v2605 = vtanh.pop %v2604
          %v2606 = vadd.f32 %v2267, %v2518
          %v2607 = vxor.u32 %v2606, 2147483648
          %v2608 = vmul.f32 %v2607, 1.442695
          %v2609 = vpow.pop %v2608
          %v2610 = vadd.f32 %v2609, 1.0
          %v2611 = vrcp.pop %v2610
          %v2612 = vmul.f32 1.0, %v2611
          %v2613 = vmul.f32 %v2596, %v2605
          %v2614 = vld [vmem:[#allocation3] sm:$0xff]
          %v2615 = vmul.f32 %v2603, %v2614
          %v2616 = vadd.f32 %v2613, %v2615
          %v2617 = vtanh.pop %v2616
          %v2618 = vmul.f32 %v2612, %v2617
          %v2619 = vadd.f32 %v2268, %v2587
          %v2620 = vxor.u32 %v2619, 2147483648
          %v2621 = vmul.f32 %v2620, 1.442695
          %v2622 = vpow.pop %v2621
          %v2623 = vadd.f32 %v2622, 1.0
          %v2624 = vrcp.pop %v2623
          %v2625 = vmul.f32 1.0, %v2624
          %v2626 = vmul.f32 %v2625, %v2618
          %v2627 = vsub.f32 1.0, %v2625
          %v2628 = vmul.f32 %v2627, %v2269
          %v2629 = vadd.f32 %v2626, %v2628
          %v2630 = vld [vmem:[#allocation13] sm:$0xff]
          %v2631 = vld [vmem:[#allocation13 + $0x8] sm:$0xff]
          %v2632 = vld [vmem:[#allocation13 + $0x10] sm:$0xff]
          %v2633 = vld [vmem:[#allocation13 + $0x18] sm:$0xff]
          %v2634 = vld [vmem:[#allocation13 + $0x20] sm:$0xff]
          %v2635 = vld [vmem:[#allocation13 + $0x28] sm:$0xff]
          %v2636 = vld [vmem:[#allocation13 + $0x30] sm:$0xff]
          %v2637 = vld [vmem:[#allocation13 + $0x38] sm:$0xff]
          %v2638 = vld [vmem:[#allocation13 + $0x40] sm:$0xff]
          %v2639 = vld [vmem:[#allocation13 + $0x48] sm:$0xff]
          %v2640 = vld [vmem:[#allocation13 + $0x50] sm:$0xff]
          %v2641 = vld [vmem:[#allocation13 + $0x58] sm:$0xff]
          %v2642 = vld [vmem:[#allocation13 + $0x60] sm:$0xff]
          %v2643 = vld [vmem:[#allocation13 + $0x68] sm:$0xff]
          %v2644 = vld [vmem:[#allocation13 + $0x70] sm:$0xff]
          %v2645 = vld [vmem:[#allocation13 + $0x78] sm:$0xff]
          %v2646 = vld [vmem:[%s9] sm:$0x1]
          %v2648 = vlaneseq
          %v2649 = vshrl.u32 %v2648, 7
          %v2650 = vsub.s32 0, %v2649
          %v2651 = vrot.slane %v2646, %v2650
          %2653 = vmatprep.subr.mxu0 0.0
          %2654 = vmatpush1.msra.mxu0 %v2645
          %2655 = vmatprep.subr.mxu0 0.0
          %2656 = vmatpush1.msra.mxu0 %v2644
          %2657 = vmatprep.subr.mxu0 0.0
          %2658 = vmatpush1.msra.mxu0 %v2643
          %2659 = vmatprep.subr.mxu0 0.0
          %2660 = vmatpush1.msra.mxu0 %v2642
          %2661 = vmatprep.subr.mxu0 0.0
          %2662 = vmatpush1.msra.mxu0 %v2641
          %2663 = vmatprep.subr.mxu0 0.0
          %2664 = vmatpush1.msra.mxu0 %v2640
          %2665 = vmatprep.subr.mxu0 0.0
          %2666 = vmatpush1.msra.mxu0 %v2639
          %2667 = vmatprep.subr.mxu0 0.0
          %2668 = vmatpush1.msra.mxu0 %v2638
          %2669 = vmatprep.subr.mxu0 0.0
          %2670 = vmatpush1.msra.mxu0 %v2637
          %2671 = vmatprep.subr.mxu0 0.0
          %2672 = vmatpush1.msra.mxu0 %v2636
          %2673 = vmatprep.subr.mxu0 0.0
          %2674 = vmatpush1.msra.mxu0 %v2635
          %2675 = vmatprep.subr.mxu0 0.0
          %2676 = vmatpush1.msra.mxu0 %v2634
          %2677 = vmatprep.subr.mxu0 0.0
          %2678 = vmatpush1.msra.mxu0 %v2633
          %2679 = vmatprep.subr.mxu0 0.0
          %2680 = vmatpush1.msra.mxu0 %v2632
          %2681 = vmatprep.subr.mxu0 0.0
          %2682 = vmatpush1.msra.mxu0 %v2631
          %2683 = vmatprep.subr.mxu0 0.0
          %2684 = vmatpush1.msra.mxu0 %v2630
          %2685 = vmatprep.subr.mxu0 0.0
          %2686 = vmatpush2.msra.mxu0 0.0
          %2687 = vmatprep.subr.mxu0 0.0
          %2688 = vmatpush2.msra.mxu0 0.0
          %2689 = vmatprep.subr.mxu0 0.0
          %2690 = vmatpush2.msra.mxu0 0.0
          %2691 = vmatprep.subr.mxu0 0.0
          %2692 = vmatpush2.msra.mxu0 0.0
          %2693 = vmatprep.subr.mxu0 0.0
          %2694 = vmatpush2.msra.mxu0 0.0
          %2695 = vmatprep.subr.mxu0 0.0
          %2696 = vmatpush2.msra.mxu0 0.0
          %2697 = vmatprep.subr.mxu0 0.0
          %2698 = vmatpush2.msra.mxu0 0.0
          %2699 = vmatprep.subr.mxu0 0.0
          %2700 = vmatpush2.msra.mxu0 0.0
          %2701 = vmatprep.subr.mxu0 0.0
          %2702 = vmatpush2.msra.mxu0 0.0
          %2703 = vmatprep.subr.mxu0 0.0
          %2704 = vmatpush2.msra.mxu0 0.0
          %2705 = vmatprep.subr.mxu0 0.0
          %2706 = vmatpush2.msra.mxu0 0.0
          %2707 = vmatprep.subr.mxu0 0.0
          %2708 = vmatpush2.msra.mxu0 0.0
          %2709 = vmatprep.subr.mxu0 0.0
          %2710 = vmatpush2.msra.mxu0 0.0
          %2711 = vmatprep.subr.mxu0 0.0
          %2712 = vmatpush2.msra.mxu0 0.0
          %2713 = vmatprep.subr.mxu0 0.0
          %2714 = vmatpush2.msra.mxu0 0.0
          %2715 = vmatprep.subr.mxu0 0.0
          %2716 = vmatpush2.msra.mxu0 0.0
          %2717 = vmatprep.mubr.f32.mxu0 0.0
          %2718 = vmatmul.mubr.f32.gmra.mxu0 %v2629
          %v2719 = vpop.f32.mrf.mxu0
          %v2720 = vadd.f32 %v2651, %v2719
          %v2721 = vpop.f32.mrf.mxu0
          %2722 = vdwg.mxu0
          %vm2723 = vcmp.ge.s32.totalorder %v505, 1
          %vm2724 = vcmp.lt.s32.totalorder %v505, 8
          %vm2725 = vmand %vm2723, %vm2724
          %v2726 = vsel %vm2725, %v2720, -inf
          %2727 = vmax.xlane.f32.xlu0 %v2726
          %v2728 = vpop.xlane.xlu0 %2727
          %vm2729 = vcmp.eq.f32.partialorder %v2726, %v2728
          %v2730 = vsel %vm2729, %v505, 128
          %v2731 = vand.u32 %v2730, 65535
          %v2732 = vshra.s32 %v2730, 16
          %v2733 = vcvt.s32.f32 %v2731
          %v2734 = vcvt.s32.f32 %v2732
          %2735 = vmin.xlane.f32.xlu0 %v2734
          %v2736 = vpop.xlane.xlu0 %2735
          %vm2737 = vcmp.eq.f32.partialorder %v2734, %v2736
          %v2738 = vsel %vm2737, %v2733, inf
          %2739 = vmin.xlane.f32.xlu0 %v2738
          %v2740 = vpop.xlane.xlu0 %2739
          %v2741 = vcvt.f32.s32 %v2740
          %v2742 = vcvt.f32.s32 %v2736
          %v2743 = vshll.u32 %v2742, 16
          %v2744 = vadd.s32 %v2743, %v2741
          %s2745 = scalar_lea.vmem %s489, 8
          %v2746 = vld [vmem:[%s2745] sm:$0xff]
          %vm2747 = vcmp.eq.s32.totalorder %v2746, 0
          %v2748 = vsel %vm2747, %v2744, %v2746
          %v2749 = vadd.s32 %v2748, 1
          %2750 = vset.pattern.permute.xlu0 0
          %2751 = vperm.xlu0 %2750, %v2749
          %v2752 = vpop.permute.xlu0 %2751
          %vm2753 = vcmp.eq.s32.totalorder %v505, %v2752
          %v2754 = vsel %vm2753, 1, 0
          %v2755 = vcvt.s32.f32 %v2754
          %v2756 = vld [vmem:[#allocation5] sm:$0xff]
          %v2757 = vld [vmem:[#allocation5 + $0x8] sm:$0xff]
          %vm2758 = vcmask 130048
          %v2760 = vsel %vm2758, %v2755, 0
          %2762 = vmatprep.subr.mxu0 0.0
          %2763 = vmatpush1.msra.mxu0 0.0
          %2764 = vmatprep.subr.mxu0 0.0
          %2765 = vmatpush1.msra.mxu0 0.0
          %2766 = vmatprep.subr.mxu0 0.0
          %2767 = vmatpush1.msra.mxu0 0.0
          %2768 = vmatprep.subr.mxu0 0.0
          %2769 = vmatpush1.msra.mxu0 0.0
          %2770 = vmatprep.subr.mxu0 0.0
          %2771 = vmatpush1.msra.mxu0 0.0
          %2772 = vmatprep.subr.mxu0 0.0
          %2773 = vmatpush1.msra.mxu0 0.0
          %2774 = vmatprep.subr.mxu0 0.0
          %2775 = vmatpush1.msra.mxu0 0.0
          %2776 = vmatprep.subr.mxu0 0.0
          %2777 = vmatpush1.msra.mxu0 0.0
          %2778 = vmatprep.subr.mxu0 0.0
          %2779 = vmatpush1.msra.mxu0 0.0
          %2780 = vmatprep.subr.mxu0 0.0
          %2781 = vmatpush1.msra.mxu0 0.0
          %2782 = vmatprep.subr.mxu0 0.0
          %2783 = vmatpush1.msra.mxu0 0.0
          %2784 = vmatprep.subr.mxu0 0.0
          %2785 = vmatpush1.msra.mxu0 0.0
          %2786 = vmatprep.subr.mxu0 0.0
          %2787 = vmatpush1.msra.mxu0 0.0
          %2788 = vmatprep.subr.mxu0 0.0
          %2789 = vmatpush1.msra.mxu0 0.0
          %2790 = vmatprep.subr.mxu0 0.0
          %2791 = vmatpush1.msra.mxu0 %v2757
          %2792 = vmatprep.subr.mxu0 0.0
          %2793 = vmatpush1.msra.mxu0 %v2756
          %2794 = vmatprep.subr.mxu0 0.0
          %2795 = vmatpush2.msra.mxu0 0.0
          %2796 = vmatprep.subr.mxu0 0.0
          %2797 = vmatpush2.msra.mxu0 0.0
          %2798 = vmatprep.subr.mxu0 0.0
          %2799 = vmatpush2.msra.mxu0 0.0
          %2800 = vmatprep.subr.mxu0 0.0
          %2801 = vmatpush2.msra.mxu0 0.0
          %2802 = vmatprep.subr.mxu0 0.0
          %2803 = vmatpush2.msra.mxu0 0.0
          %2804 = vmatprep.subr.mxu0 0.0
          %2805 = vmatpush2.msra.mxu0 0.0
          %2806 = vmatprep.subr.mxu0 0.0
          %2807 = vmatpush2.msra.mxu0 0.0
          %2808 = vmatprep.subr.mxu0 0.0
          %2809 = vmatpush2.msra.mxu0 0.0
          %2810 = vmatprep.subr.mxu0 0.0
          %2811 = vmatpush2.msra.mxu0 0.0
          %2812 = vmatprep.subr.mxu0 0.0
          %2813 = vmatpush2.msra.mxu0 0.0
          %2814 = vmatprep.subr.mxu0 0.0
          %2815 = vmatpush2.msra.mxu0 0.0
          %2816 = vmatprep.subr.mxu0 0.0
          %2817 = vmatpush2.msra.mxu0 0.0
          %2818 = vmatprep.subr.mxu0 0.0
          %2819 = vmatpush2.msra.mxu0 0.0
          %2820 = vmatprep.subr.mxu0 0.0
          %2821 = vmatpush2.msra.mxu0 0.0
          %2822 = vmatprep.subr.mxu0 0.0
          %2823 = vmatpush2.msra.mxu0 0.0
          %2824 = vmatprep.subr.mxu0 0.0
          %2825 = vmatpush2.msra.mxu0 0.0
          %2826 = vmatprep.mubr.f32.mxu0 0.0
          %2827 = vmatmul.mubr.f32.gmra.mxu0 %v2760
          %v2828 = vpop.f32.mrf.mxu0
          %v2829 = vadd.f32 0.0, %v2828
          %v2830 = vpop.f32.mrf.mxu0
          %2831 = vdwg.mxu0
          %2832 = vst [vmem:[#allocation4] sm:$0xff] %v2829
          %2833 = vst [vmem:[#allocation2] sm:$0xff] %v2629
          %2834 = vst [vmem:[#allocation3] sm:$0xff] %v2616
          %vm2835 = vcmp.eq.s32.totalorder %v505, 14
          %v2836 = vcvt.s32.f32 %v2748
          %2838 = vset.pattern.permute.xlu0 0
          %2839 = vperm.xlu0 %2838, %v2836
          %v2840 = vpop.permute.xlu0 %2839
          %v2842 = vsel %vm2835, %v2840, %v2720
          %s2843 = scalar_lea.vmem %s472, 8 [#allocation14]
          %2844 = vst [vmem:[%s2843] sm:$0xff] %v2842
        $region92: #{tpu_custom_call.1} parent=59 // pred_fallthru
          _
        %s2845 = sadd.s32 %s506, 2
        %p2846 = scmp.lt.s32.totalorder %s2845, 5
        // Predicated region
        $region93: #{tpu_custom_call.1} parent=59 // pred_check
          %p2847 = pneg %p2846
        $region94: #{tpu_custom_call.1} parent=59 // pred_check_branch
          %2849 = sbr.rel (%p2847) target = $region96
        $region95: #{tpu_custom_call.1} parent=59 // pred_region
          %s2850 = scalar_lea.vmem %s480, 16
          %v2851 = vld [vmem:[%s2850] sm:$0xff]
          %v2852 = vld [vmem:[#allocation8] sm:$0xff]
          %v2853 = vld [vmem:[#allocation8 + $0x8] sm:$0xff]
          %v2854 = vld [vmem:[#allocation8 + $0x10] sm:$0xff]
          %v2855 = vld [vmem:[#allocation8 + $0x18] sm:$0xff]
          %v2856 = vld [vmem:[#allocation8 + $0x20] sm:$0xff]
          %v2857 = vld [vmem:[#allocation8 + $0x28] sm:$0xff]
          %v2858 = vld [vmem:[#allocation8 + $0x30] sm:$0xff]
          %v2859 = vld [vmem:[#allocation8 + $0x38] sm:$0xff]
          %v2860 = vld [vmem:[#allocation8 + $0x40] sm:$0xff]
          %v2861 = vld [vmem:[#allocation8 + $0x48] sm:$0xff]
          %v2862 = vld [vmem:[#allocation8 + $0x50] sm:$0xff]
          %v2863 = vld [vmem:[#allocation8 + $0x58] sm:$0xff]
          %v2864 = vld [vmem:[#allocation8 + $0x60] sm:$0xff]
          %v2865 = vld [vmem:[#allocation8 + $0x68] sm:$0xff]
          %v2866 = vld [vmem:[#allocation8 + $0x70] sm:$0xff]
          %v2867 = vld [vmem:[#allocation8 + $0x78] sm:$0xff]
          %v2868 = vld [vmem:[#allocation8 + $0x80] sm:$0xff]
          %v2869 = vld [vmem:[#allocation8 + $0x88] sm:$0xff]
          %v2870 = vld [vmem:[#allocation8 + $0x90] sm:$0xff]
          %v2871 = vld [vmem:[#allocation8 + $0x98] sm:$0xff]
          %v2872 = vld [vmem:[#allocation8 + $0xa0] sm:$0xff]
          %v2873 = vld [vmem:[#allocation8 + $0xa8] sm:$0xff]
          %v2874 = vld [vmem:[#allocation8 + $0xb0] sm:$0xff]
          %v2875 = vld [vmem:[#allocation8 + $0xb8] sm:$0xff]
          %v2876 = vld [vmem:[#allocation4] sm:$0xff]
          %v2877 = vld [vmem:[#allocation10] sm:$0xff]
          %v2878 = vld [vmem:[#allocation10 + $0x8] sm:$0xff]
          %v2879 = vld [vmem:[#allocation10 + $0x10] sm:$0xff]
          %v2880 = vld [vmem:[#allocation10 + $0x18] sm:$0xff]
          %v2881 = vld [vmem:[#allocation10 + $0x20] sm:$0xff]
          %v2882 = vld [vmem:[#allocation10 + $0x28] sm:$0xff]
          %v2883 = vld [vmem:[#allocation10 + $0x30] sm:$0xff]
          %v2884 = vld [vmem:[#allocation10 + $0x38] sm:$0xff]
          %v2885 = vld [vmem:[#allocation10 + $0x40] sm:$0xff]
          %v2886 = vld [vmem:[#allocation10 + $0x48] sm:$0xff]
          %v2887 = vld [vmem:[#allocation10 + $0x50] sm:$0xff]
          %v2888 = vld [vmem:[#allocation10 + $0x58] sm:$0xff]
          %v2889 = vld [vmem:[#allocation10 + $0x60] sm:$0xff]
          %v2890 = vld [vmem:[#allocation10 + $0x68] sm:$0xff]
          %v2891 = vld [vmem:[#allocation10 + $0x70] sm:$0xff]
          %v2892 = vld [vmem:[#allocation10 + $0x78] sm:$0xff]
          %v2893 = vld [vmem:[#allocation10 + $0x80] sm:$0xff]
          %v2894 = vld [vmem:[#allocation10 + $0x88] sm:$0xff]
          %v2895 = vld [vmem:[#allocation10 + $0x90] sm:$0xff]
          %v2896 = vld [vmem:[#allocation10 + $0x98] sm:$0xff]
          %v2897 = vld [vmem:[#allocation10 + $0xa0] sm:$0xff]
          %v2898 = vld [vmem:[#allocation10 + $0xa8] sm:$0xff]
          %v2899 = vld [vmem:[#allocation10 + $0xb0] sm:$0xff]
          %v2900 = vld [vmem:[#allocation10 + $0xb8] sm:$0xff]
          %v2901 = vld [vmem:[#allocation10 + $0xc0] sm:$0xff]
          %v2902 = vld [vmem:[#allocation10 + $0xc8] sm:$0xff]
          %v2903 = vld [vmem:[#allocation10 + $0xd0] sm:$0xff]
          %v2904 = vld [vmem:[#allocation10 + $0xd8] sm:$0xff]
          %v2905 = vld [vmem:[#allocation10 + $0xe0] sm:$0xff]
          %v2906 = vld [vmem:[#allocation10 + $0xe8] sm:$0xff]
          %v2907 = vld [vmem:[#allocation10 + $0xf0] sm:$0xff]
          %v2908 = vld [vmem:[#allocation10 + $0xf8] sm:$0xff]
          %v2909 = vld [vmem:[#allocation10 + $0x100] sm:$0xff]
          %v2910 = vld [vmem:[#allocation10 + $0x108] sm:$0xff]
          %v2911 = vld [vmem:[#allocation10 + $0x110] sm:$0xff]
          %v2912 = vld [vmem:[#allocation10 + $0x118] sm:$0xff]
          %v2913 = vld [vmem:[#allocation10 + $0x120] sm:$0xff]
          %v2914 = vld [vmem:[#allocation10 + $0x128] sm:$0xff]
          %v2915 = vld [vmem:[#allocation10 + $0x130] sm:$0xff]
          %v2916 = vld [vmem:[#allocation10 + $0x138] sm:$0xff]
          %v2917 = vld [vmem:[#allocation10 + $0x140] sm:$0xff]
          %v2918 = vld [vmem:[#allocation10 + $0x148] sm:$0xff]
          %v2919 = vld [vmem:[#allocation10 + $0x150] sm:$0xff]
          %v2920 = vld [vmem:[#allocation10 + $0x158] sm:$0xff]
          %v2921 = vld [vmem:[#allocation10 + $0x160] sm:$0xff]
          %v2922 = vld [vmem:[#allocation10 + $0x168] sm:$0xff]
          %v2923 = vld [vmem:[#allocation10 + $0x170] sm:$0xff]
          %v2924 = vld [vmem:[#allocation10 + $0x178] sm:$0xff]
          %v2925 = vld [vmem:[#allocation10 + $0x180] sm:$0xff]
          %v2926 = vld [vmem:[#allocation10 + $0x188] sm:$0xff]
          %v2927 = vld [vmem:[#allocation10 + $0x190] sm:$0xff]
          %v2928 = vld [vmem:[#allocation10 + $0x198] sm:$0xff]
          %v2929 = vld [vmem:[#allocation10 + $0x1a0] sm:$0xff]
          %v2930 = vld [vmem:[#allocation10 + $0x1a8] sm:$0xff]
          %v2931 = vld [vmem:[#allocation10 + $0x1b0] sm:$0xff]
          %v2932 = vld [vmem:[#allocation10 + $0x1b8] sm:$0xff]
          %v2933 = vld [vmem:[#allocation10 + $0x1c0] sm:$0xff]
          %v2934 = vld [vmem:[#allocation10 + $0x1c8] sm:$0xff]
          %v2935 = vld [vmem:[#allocation10 + $0x1d0] sm:$0xff]
          %v2936 = vld [vmem:[#allocation10 + $0x1d8] sm:$0xff]
          %v2937 = vld [vmem:[#allocation10 + $0x1e0] sm:$0xff]
          %v2938 = vld [vmem:[#allocation10 + $0x1e8] sm:$0xff]
          %v2939 = vld [vmem:[#allocation10 + $0x1f0] sm:$0xff]
          %v2940 = vld [vmem:[#allocation10 + $0x1f8] sm:$0xff]
          %v2941 = vld [vmem:[#allocation10 + $0x200] sm:$0xff]
          %v2942 = vld [vmem:[#allocation10 + $0x208] sm:$0xff]
          %v2943 = vld [vmem:[#allocation10 + $0x210] sm:$0xff]
          %v2944 = vld [vmem:[#allocation10 + $0x218] sm:$0xff]
          %v2945 = vld [vmem:[#allocation10 + $0x220] sm:$0xff]
          %v2946 = vld [vmem:[#allocation10 + $0x228] sm:$0xff]
          %v2947 = vld [vmem:[#allocation10 + $0x230] sm:$0xff]
          %v2948 = vld [vmem:[#allocation10 + $0x238] sm:$0xff]
          %v2949 = vld [vmem:[#allocation10 + $0x240] sm:$0xff]
          %v2950 = vld [vmem:[#allocation10 + $0x248] sm:$0xff]
          %v2951 = vld [vmem:[#allocation10 + $0x250] sm:$0xff]
          %v2952 = vld [vmem:[#allocation10 + $0x258] sm:$0xff]
          %v2953 = vld [vmem:[#allocation10 + $0x260] sm:$0xff]
          %v2954 = vld [vmem:[#allocation10 + $0x268] sm:$0xff]
          %v2955 = vld [vmem:[#allocation10 + $0x270] sm:$0xff]
          %v2956 = vld [vmem:[#allocation10 + $0x278] sm:$0xff]
          %v2957 = vld [vmem:[#allocation10 + $0x280] sm:$0xff]
          %v2958 = vld [vmem:[#allocation10 + $0x288] sm:$0xff]
          %v2959 = vld [vmem:[#allocation10 + $0x290] sm:$0xff]
          %v2960 = vld [vmem:[#allocation10 + $0x298] sm:$0xff]
          %v2961 = vld [vmem:[#allocation10 + $0x2a0] sm:$0xff]
          %v2962 = vld [vmem:[#allocation10 + $0x2a8] sm:$0xff]
          %v2963 = vld [vmem:[#allocation10 + $0x2b0] sm:$0xff]
          %v2964 = vld [vmem:[#allocation10 + $0x2b8] sm:$0xff]
          %v2965 = vld [vmem:[#allocation10 + $0x2c0] sm:$0xff]
          %v2966 = vld [vmem:[#allocation10 + $0x2c8] sm:$0xff]
          %v2967 = vld [vmem:[#allocation10 + $0x2d0] sm:$0xff]
          %v2968 = vld [vmem:[#allocation10 + $0x2d8] sm:$0xff]
          %v2969 = vld [vmem:[#allocation10 + $0x2e0] sm:$0xff]
          %v2970 = vld [vmem:[#allocation10 + $0x2e8] sm:$0xff]
          %v2971 = vld [vmem:[#allocation10 + $0x2f0] sm:$0xff]
          %v2972 = vld [vmem:[#allocation10 + $0x2f8] sm:$0xff]
          %2973 = vmatprep.subr.mxu0 %v2968
          %2974 = vmatpush1.msra.mxu0 %v2967
          %2975 = vmatprep.subr.mxu0 %v2962
          %2976 = vmatpush1.msra.mxu0 %v2961
          %2977 = vmatprep.subr.mxu0 %v2956
          %2978 = vmatpush1.msra.mxu0 %v2955
          %2979 = vmatprep.subr.mxu0 %v2950
          %2980 = vmatpush1.msra.mxu0 %v2949
          %2981 = vmatprep.subr.mxu0 %v2944
          %2982 = vmatpush1.msra.mxu0 %v2943
          %2983 = vmatprep.subr.mxu0 %v2938
          %2984 = vmatpush1.msra.mxu0 %v2937
          %2985 = vmatprep.subr.mxu0 %v2932
          %2986 = vmatpush1.msra.mxu0 %v2931
          %2987 = vmatprep.subr.mxu0 %v2926
          %2988 = vmatpush1.msra.mxu0 %v2925
          %2989 = vmatprep.subr.mxu0 %v2920
          %2990 = vmatpush1.msra.mxu0 %v2919
          %2991 = vmatprep.subr.mxu0 %v2914
          %2992 = vmatpush1.msra.mxu0 %v2913
          %2993 = vmatprep.subr.mxu0 %v2908
          %2994 = vmatpush1.msra.mxu0 %v2907
          %2995 = vmatprep.subr.mxu0 %v2902
          %2996 = vmatpush1.msra.mxu0 %v2901
          %2997 = vmatprep.subr.mxu0 %v2896
          %2998 = vmatpush1.msra.mxu0 %v2895
          %2999 = vmatprep.subr.mxu0 %v2890
          %3000 = vmatpush1.msra.mxu0 %v2889
          %3001 = vmatprep.subr.mxu0 %v2884
          %3002 = vmatpush1.msra.mxu0 %v2883
          %3003 = vmatprep.subr.mxu0 %v2878
          %3004 = vmatpush1.msra.mxu0 %v2877
          %3005 = vmatprep.subr.mxu0 0.0
          %3006 = vmatpush2.msra.mxu0 0.0
          %3007 = vmatprep.subr.mxu0 0.0
          %3008 = vmatpush2.msra.mxu0 0.0
          %3009 = vmatprep.subr.mxu0 0.0
          %3010 = vmatpush2.msra.mxu0 0.0
          %3011 = vmatprep.subr.mxu0 0.0
          %3012 = vmatpush2.msra.mxu0 0.0
          %3013 = vmatprep.subr.mxu0 0.0
          %3014 = vmatpush2.msra.mxu0 0.0
          %3015 = vmatprep.subr.mxu0 0.0
          %3016 = vmatpush2.msra.mxu0 0.0
          %3017 = vmatprep.subr.mxu0 0.0
          %3018 = vmatpush2.msra.mxu0 0.0
          %3019 = vmatprep.subr.mxu0 0.0
          %3020 = vmatpush2.msra.mxu0 0.0
          %3021 = vmatprep.subr.mxu0 0.0
          %3022 = vmatpush2.msra.mxu0 0.0
          %3023 = vmatprep.subr.mxu0 0.0
          %3024 = vmatpush2.msra.mxu0 0.0
          %3025 = vmatprep.subr.mxu0 0.0
          %3026 = vmatpush2.msra.mxu0 0.0
          %3027 = vmatprep.subr.mxu0 0.0
          %3028 = vmatpush2.msra.mxu0 0.0
          %3029 = vmatprep.subr.mxu0 0.0
          %3030 = vmatpush2.msra.mxu0 0.0
          %3031 = vmatprep.subr.mxu0 0.0
          %3032 = vmatpush2.msra.mxu0 0.0
          %3033 = vmatprep.subr.mxu0 0.0
          %3034 = vmatpush2.msra.mxu0 0.0
          %3035 = vmatprep.subr.mxu0 0.0
          %3036 = vmatpush2.msra.mxu0 0.0
          %3037 = vmatprep.mubr.f32.mxu0 0.0
          %3038 = vmatmul.mubr.f32.gmra.mxu0 %v2876
          %v3039 = vpop.f32.mrf.mxu0
          %v3040 = vadd.f32 0.0, %v3039
          %v3041 = vpop.f32.mrf.mxu0
          %v3042 = vadd.f32 0.0, %v3041
          %3043 = vdwg.mxu0
          %3044 = vmatprep.subr.mxu0 %v2970
          %3045 = vmatpush1.msra.mxu0 %v2969
          %3046 = vmatprep.subr.mxu0 %v2964
          %3047 = vmatpush1.msra.mxu0 %v2963
          %3048 = vmatprep.subr.mxu0 %v2958
          %3049 = vmatpush1.msra.mxu0 %v2957
          %3050 = vmatprep.subr.mxu0 %v2952
          %3051 = vmatpush1.msra.mxu0 %v2951
          %3052 = vmatprep.subr.mxu0 %v2946
          %3053 = vmatpush1.msra.mxu0 %v2945
          %3054 = vmatprep.subr.mxu0 %v2940
          %3055 = vmatpush1.msra.mxu0 %v2939
          %3056 = vmatprep.subr.mxu0 %v2934
          %3057 = vmatpush1.msra.mxu0 %v2933
          %3058 = vmatprep.subr.mxu0 %v2928
          %3059 = vmatpush1.msra.mxu0 %v2927
          %3060 = vmatprep.subr.mxu0 %v2922
          %3061 = vmatpush1.msra.mxu0 %v2921
          %3062 = vmatprep.subr.mxu0 %v2916
          %3063 = vmatpush1.msra.mxu0 %v2915
          %3064 = vmatprep.subr.mxu0 %v2910
          %3065 = vmatpush1.msra.mxu0 %v2909
          %3066 = vmatprep.subr.mxu0 %v2904
          %3067 = vmatpush1.msra.mxu0 %v2903
          %3068 = vmatprep.subr.mxu0 %v2898
          %3069 = vmatpush1.msra.mxu0 %v2897
          %3070 = vmatprep.subr.mxu0 %v2892
          %3071 = vmatpush1.msra.mxu0 %v2891
          %3072 = vmatprep.subr.mxu0 %v2886
          %3073 = vmatpush1.msra.mxu0 %v2885
          %3074 = vmatprep.subr.mxu0 %v2880
          %3075 = vmatpush1.msra.mxu0 %v2879
          %3076 = vmatprep.subr.mxu0 0.0
          %3077 = vmatpush2.msra.mxu0 0.0
          %3078 = vmatprep.subr.mxu0 0.0
          %3079 = vmatpush2.msra.mxu0 0.0
          %3080 = vmatprep.subr.mxu0 0.0
          %3081 = vmatpush2.msra.mxu0 0.0
          %3082 = vmatprep.subr.mxu0 0.0
          %3083 = vmatpush2.msra.mxu0 0.0
          %3084 = vmatprep.subr.mxu0 0.0
          %3085 = vmatpush2.msra.mxu0 0.0
          %3086 = vmatprep.subr.mxu0 0.0
          %3087 = vmatpush2.msra.mxu0 0.0
          %3088 = vmatprep.subr.mxu0 0.0
          %3089 = vmatpush2.msra.mxu0 0.0
          %3090 = vmatprep.subr.mxu0 0.0
          %3091 = vmatpush2.msra.mxu0 0.0
          %3092 = vmatprep.subr.mxu0 0.0
          %3093 = vmatpush2.msra.mxu0 0.0
          %3094 = vmatprep.subr.mxu0 0.0
          %3095 = vmatpush2.msra.mxu0 0.0
          %3096 = vmatprep.subr.mxu0 0.0
          %3097 = vmatpush2.msra.mxu0 0.0
          %3098 = vmatprep.subr.mxu0 0.0
          %3099 = vmatpush2.msra.mxu0 0.0
          %3100 = vmatprep.subr.mxu0 0.0
          %3101 = vmatpush2.msra.mxu0 0.0
          %3102 = vmatprep.subr.mxu0 0.0
          %3103 = vmatpush2.msra.mxu0 0.0
          %3104 = vmatprep.subr.mxu0 0.0
          %3105 = vmatpush2.msra.mxu0 0.0
          %3106 = vmatprep.subr.mxu0 0.0
          %3107 = vmatpush2.msra.mxu0 0.0
          %3108 = vmatprep.mubr.f32.mxu0 0.0
          %3109 = vmatmul.mubr.f32.gmra.mxu0 %v2876
          %v3110 = vpop.f32.mrf.mxu0
          %v3111 = vadd.f32 0.0, %v3110
          %v3112 = vpop.f32.mrf.mxu0
          %v3113 = vadd.f32 0.0, %v3112
          %3114 = vdwg.mxu0
          %3115 = vmatprep.subr.mxu0 %v2972
          %3116 = vmatpush1.msra.mxu0 %v2971
          %3117 = vmatprep.subr.mxu0 %v2966
          %3118 = vmatpush1.msra.mxu0 %v2965
          %3119 = vmatprep.subr.mxu0 %v2960
          %3120 = vmatpush1.msra.mxu0 %v2959
          %3121 = vmatprep.subr.mxu0 %v2954
          %3122 = vmatpush1.msra.mxu0 %v2953
          %3123 = vmatprep.subr.mxu0 %v2948
          %3124 = vmatpush1.msra.mxu0 %v2947
          %3125 = vmatprep.subr.mxu0 %v2942
          %3126 = vmatpush1.msra.mxu0 %v2941
          %3127 = vmatprep.subr.mxu0 %v2936
          %3128 = vmatpush1.msra.mxu0 %v2935
          %3129 = vmatprep.subr.mxu0 %v2930
          %3130 = vmatpush1.msra.mxu0 %v2929
          %3131 = vmatprep.subr.mxu0 %v2924
          %3132 = vmatpush1.msra.mxu0 %v2923
          %3133 = vmatprep.subr.mxu0 %v2918
          %3134 = vmatpush1.msra.mxu0 %v2917
          %3135 = vmatprep.subr.mxu0 %v2912
          %3136 = vmatpush1.msra.mxu0 %v2911
          %3137 = vmatprep.subr.mxu0 %v2906
          %3138 = vmatpush1.msra.mxu0 %v2905
          %3139 = vmatprep.subr.mxu0 %v2900
          %3140 = vmatpush1.msra.mxu0 %v2899
          %3141 = vmatprep.subr.mxu0 %v2894
          %3142 = vmatpush1.msra.mxu0 %v2893
          %3143 = vmatprep.subr.mxu0 %v2888
          %3144 = vmatpush1.msra.mxu0 %v2887
          %3145 = vmatprep.subr.mxu0 %v2882
          %3146 = vmatpush1.msra.mxu0 %v2881
          %3147 = vmatprep.subr.mxu0 0.0
          %3148 = vmatpush2.msra.mxu0 0.0
          %3149 = vmatprep.subr.mxu0 0.0
          %3150 = vmatpush2.msra.mxu0 0.0
          %3151 = vmatprep.subr.mxu0 0.0
          %3152 = vmatpush2.msra.mxu0 0.0
          %3153 = vmatprep.subr.mxu0 0.0
          %3154 = vmatpush2.msra.mxu0 0.0
          %3155 = vmatprep.subr.mxu0 0.0
          %3156 = vmatpush2.msra.mxu0 0.0
          %3157 = vmatprep.subr.mxu0 0.0
          %3158 = vmatpush2.msra.mxu0 0.0
          %3159 = vmatprep.subr.mxu0 0.0
          %3160 = vmatpush2.msra.mxu0 0.0
          %3161 = vmatprep.subr.mxu0 0.0
          %3162 = vmatpush2.msra.mxu0 0.0
          %3163 = vmatprep.subr.mxu0 0.0
          %3164 = vmatpush2.msra.mxu0 0.0
          %3165 = vmatprep.subr.mxu0 0.0
          %3166 = vmatpush2.msra.mxu0 0.0
          %3167 = vmatprep.subr.mxu0 0.0
          %3168 = vmatpush2.msra.mxu0 0.0
          %3169 = vmatprep.subr.mxu0 0.0
          %3170 = vmatpush2.msra.mxu0 0.0
          %3171 = vmatprep.subr.mxu0 0.0
          %3172 = vmatpush2.msra.mxu0 0.0
          %3173 = vmatprep.subr.mxu0 0.0
          %3174 = vmatpush2.msra.mxu0 0.0
          %3175 = vmatprep.subr.mxu0 0.0
          %3176 = vmatpush2.msra.mxu0 0.0
          %3177 = vmatprep.subr.mxu0 0.0
          %3178 = vmatpush2.msra.mxu0 0.0
          %3179 = vmatprep.mubr.f32.mxu0 0.0
          %3180 = vmatmul.mubr.f32.gmra.mxu0 %v2876
          %v3181 = vpop.f32.mrf.mxu0
          %v3182 = vadd.f32 0.0, %v3181
          %v3183 = vpop.f32.mrf.mxu0
          %v3184 = vadd.f32 0.0, %v3183
          %3185 = vdwg.mxu0
          %vm3186 = vcmask 261120
          %v3188 = vsel %vm3186, %v2851, 0
          %3190 = vmatprep.subr.mxu0 0.0
          %3191 = vmatpush1.msra.mxu0 0.0
          %3192 = vmatprep.subr.mxu0 0.0
          %3193 = vmatpush1.msra.mxu0 0.0
          %3194 = vmatprep.subr.mxu0 0.0
          %3195 = vmatpush1.msra.mxu0 0.0
          %3196 = vmatprep.subr.mxu0 0.0
          %3197 = vmatpush1.msra.mxu0 0.0
          %3198 = vmatprep.subr.mxu0 0.0
          %3199 = vmatpush1.msra.mxu0 0.0
          %3200 = vmatprep.subr.mxu0 0.0
          %3201 = vmatpush1.msra.mxu0 0.0
          %3202 = vmatprep.subr.mxu0 0.0
          %3203 = vmatpush1.msra.mxu0 0.0
          %3204 = vmatprep.subr.mxu0 0.0
          %3205 = vmatpush1.msra.mxu0 0.0
          %3206 = vmatprep.subr.mxu0 0.0
          %3207 = vmatpush1.msra.mxu0 0.0
          %3208 = vmatprep.subr.mxu0 0.0
          %3209 = vmatpush1.msra.mxu0 0.0
          %3210 = vmatprep.subr.mxu0 0.0
          %3211 = vmatpush1.msra.mxu0 0.0
          %3212 = vmatprep.subr.mxu0 0.0
          %3213 = vmatpush1.msra.mxu0 0.0
          %3214 = vmatprep.subr.mxu0 %v2871
          %3215 = vmatpush1.msra.mxu0 %v2870
          %3216 = vmatprep.subr.mxu0 %v2865
          %3217 = vmatpush1.msra.mxu0 %v2864
          %3218 = vmatprep.subr.mxu0 %v2859
          %3219 = vmatpush1.msra.mxu0 %v2858
          %3220 = vmatprep.subr.mxu0 %v2853
          %3221 = vmatpush1.msra.mxu0 %v2852
          %3222 = vmatprep.subr.mxu0 0.0
          %3223 = vmatpush2.msra.mxu0 0.0
          %3224 = vmatprep.subr.mxu0 0.0
          %3225 = vmatpush2.msra.mxu0 0.0
          %3226 = vmatprep.subr.mxu0 0.0
          %3227 = vmatpush2.msra.mxu0 0.0
          %3228 = vmatprep.subr.mxu0 0.0
          %3229 = vmatpush2.msra.mxu0 0.0
          %3230 = vmatprep.subr.mxu0 0.0
          %3231 = vmatpush2.msra.mxu0 0.0
          %3232 = vmatprep.subr.mxu0 0.0
          %3233 = vmatpush2.msra.mxu0 0.0
          %3234 = vmatprep.subr.mxu0 0.0
          %3235 = vmatpush2.msra.mxu0 0.0
          %3236 = vmatprep.subr.mxu0 0.0
          %3237 = vmatpush2.msra.mxu0 0.0
          %3238 = vmatprep.subr.mxu0 0.0
          %3239 = vmatpush2.msra.mxu0 0.0
          %3240 = vmatprep.subr.mxu0 0.0
          %3241 = vmatpush2.msra.mxu0 0.0
          %3242 = vmatprep.subr.mxu0 0.0
          %3243 = vmatpush2.msra.mxu0 0.0
          %3244 = vmatprep.subr.mxu0 0.0
          %3245 = vmatpush2.msra.mxu0 0.0
          %3246 = vmatprep.subr.mxu0 0.0
          %3247 = vmatpush2.msra.mxu0 0.0
          %3248 = vmatprep.subr.mxu0 0.0
          %3249 = vmatpush2.msra.mxu0 0.0
          %3250 = vmatprep.subr.mxu0 0.0
          %3251 = vmatpush2.msra.mxu0 0.0
          %3252 = vmatprep.subr.mxu0 0.0
          %3253 = vmatpush2.msra.mxu0 0.0
          %3254 = vmatprep.mubr.f32.mxu0 0.0
          %3255 = vmatmul.mubr.f32.gmra.mxu0 %v3188
          %v3256 = vpop.f32.mrf.mxu0
          %v3257 = vadd.f32 %v3040, %v3256
          %v3258 = vpop.f32.mrf.mxu0
          %v3259 = vadd.f32 %v3042, %v3258
          %3260 = vdwg.mxu0
          %3261 = vmatprep.subr.mxu0 0.0
          %3262 = vmatpush1.msra.mxu0 0.0
          %3263 = vmatprep.subr.mxu0 0.0
          %3264 = vmatpush1.msra.mxu0 0.0
          %3265 = vmatprep.subr.mxu0 0.0
          %3266 = vmatpush1.msra.mxu0 0.0
          %3267 = vmatprep.subr.mxu0 0.0
          %3268 = vmatpush1.msra.mxu0 0.0
          %3269 = vmatprep.subr.mxu0 0.0
          %3270 = vmatpush1.msra.mxu0 0.0
          %3271 = vmatprep.subr.mxu0 0.0
          %3272 = vmatpush1.msra.mxu0 0.0
          %3273 = vmatprep.subr.mxu0 0.0
          %3274 = vmatpush1.msra.mxu0 0.0
          %3275 = vmatprep.subr.mxu0 0.0
          %3276 = vmatpush1.msra.mxu0 0.0
          %3277 = vmatprep.subr.mxu0 0.0
          %3278 = vmatpush1.msra.mxu0 0.0
          %3279 = vmatprep.subr.mxu0 0.0
          %3280 = vmatpush1.msra.mxu0 0.0
          %3281 = vmatprep.subr.mxu0 0.0
          %3282 = vmatpush1.msra.mxu0 0.0
          %3283 = vmatprep.subr.mxu0 0.0
          %3284 = vmatpush1.msra.mxu0 0.0
          %3285 = vmatprep.subr.mxu0 %v2873
          %3286 = vmatpush1.msra.mxu0 %v2872
          %3287 = vmatprep.subr.mxu0 %v2867
          %3288 = vmatpush1.msra.mxu0 %v2866
          %3289 = vmatprep.subr.mxu0 %v2861
          %3290 = vmatpush1.msra.mxu0 %v2860
          %3291 = vmatprep.subr.mxu0 %v2855
          %3292 = vmatpush1.msra.mxu0 %v2854
          %3293 = vmatprep.subr.mxu0 0.0
          %3294 = vmatpush2.msra.mxu0 0.0
          %3295 = vmatprep.subr.mxu0 0.0
          %3296 = vmatpush2.msra.mxu0 0.0
          %3297 = vmatprep.subr.mxu0 0.0
          %3298 = vmatpush2.msra.mxu0 0.0
          %3299 = vmatprep.subr.mxu0 0.0
          %3300 = vmatpush2.msra.mxu0 0.0
          %3301 = vmatprep.subr.mxu0 0.0
          %3302 = vmatpush2.msra.mxu0 0.0
          %3303 = vmatprep.subr.mxu0 0.0
          %3304 = vmatpush2.msra.mxu0 0.0
          %3305 = vmatprep.subr.mxu0 0.0
          %3306 = vmatpush2.msra.mxu0 0.0
          %3307 = vmatprep.subr.mxu0 0.0
          %3308 = vmatpush2.msra.mxu0 0.0
          %3309 = vmatprep.subr.mxu0 0.0
          %3310 = vmatpush2.msra.mxu0 0.0
          %3311 = vmatprep.subr.mxu0 0.0
          %3312 = vmatpush2.msra.mxu0 0.0
          %3313 = vmatprep.subr.mxu0 0.0
          %3314 = vmatpush2.msra.mxu0 0.0
          %3315 = vmatprep.subr.mxu0 0.0
          %3316 = vmatpush2.msra.mxu0 0.0
          %3317 = vmatprep.subr.mxu0 0.0
          %3318 = vmatpush2.msra.mxu0 0.0
          %3319 = vmatprep.subr.mxu0 0.0
          %3320 = vmatpush2.msra.mxu0 0.0
          %3321 = vmatprep.subr.mxu0 0.0
          %3322 = vmatpush2.msra.mxu0 0.0
          %3323 = vmatprep.subr.mxu0 0.0
          %3324 = vmatpush2.msra.mxu0 0.0
          %3325 = vmatprep.mubr.f32.mxu0 0.0
          %3326 = vmatmul.mubr.f32.gmra.mxu0 %v3188
          %v3327 = vpop.f32.mrf.mxu0
          %v3328 = vadd.f32 %v3111, %v3327
          %v3329 = vpop.f32.mrf.mxu0
          %v3330 = vadd.f32 %v3113, %v3329
          %3331 = vdwg.mxu0
          %3332 = vmatprep.subr.mxu0 0.0
          %3333 = vmatpush1.msra.mxu0 0.0
          %3334 = vmatprep.subr.mxu0 0.0
          %3335 = vmatpush1.msra.mxu0 0.0
          %3336 = vmatprep.subr.mxu0 0.0
          %3337 = vmatpush1.msra.mxu0 0.0
          %3338 = vmatprep.subr.mxu0 0.0
          %3339 = vmatpush1.msra.mxu0 0.0
          %3340 = vmatprep.subr.mxu0 0.0
          %3341 = vmatpush1.msra.mxu0 0.0
          %3342 = vmatprep.subr.mxu0 0.0
          %3343 = vmatpush1.msra.mxu0 0.0
          %3344 = vmatprep.subr.mxu0 0.0
          %3345 = vmatpush1.msra.mxu0 0.0
          %3346 = vmatprep.subr.mxu0 0.0
          %3347 = vmatpush1.msra.mxu0 0.0
          %3348 = vmatprep.subr.mxu0 0.0
          %3349 = vmatpush1.msra.mxu0 0.0
          %3350 = vmatprep.subr.mxu0 0.0
          %3351 = vmatpush1.msra.mxu0 0.0
          %3352 = vmatprep.subr.mxu0 0.0
          %3353 = vmatpush1.msra.mxu0 0.0
          %3354 = vmatprep.subr.mxu0 0.0
          %3355 = vmatpush1.msra.mxu0 0.0
          %3356 = vmatprep.subr.mxu0 %v2875
          %3357 = vmatpush1.msra.mxu0 %v2874
          %3358 = vmatprep.subr.mxu0 %v2869
          %3359 = vmatpush1.msra.mxu0 %v2868
          %3360 = vmatprep.subr.mxu0 %v2863
          %3361 = vmatpush1.msra.mxu0 %v2862
          %3362 = vmatprep.subr.mxu0 %v2857
          %3363 = vmatpush1.msra.mxu0 %v2856
          %3364 = vmatprep.subr.mxu0 0.0
          %3365 = vmatpush2.msra.mxu0 0.0
          %3366 = vmatprep.subr.mxu0 0.0
          %3367 = vmatpush2.msra.mxu0 0.0
          %3368 = vmatprep.subr.mxu0 0.0
          %3369 = vmatpush2.msra.mxu0 0.0
          %3370 = vmatprep.subr.mxu0 0.0
          %3371 = vmatpush2.msra.mxu0 0.0
          %3372 = vmatprep.subr.mxu0 0.0
          %3373 = vmatpush2.msra.mxu0 0.0
          %3374 = vmatprep.subr.mxu0 0.0
          %3375 = vmatpush2.msra.mxu0 0.0
          %3376 = vmatprep.subr.mxu0 0.0
          %3377 = vmatpush2.msra.mxu0 0.0
          %3378 = vmatprep.subr.mxu0 0.0
          %3379 = vmatpush2.msra.mxu0 0.0
          %3380 = vmatprep.subr.mxu0 0.0
          %3381 = vmatpush2.msra.mxu0 0.0
          %3382 = vmatprep.subr.mxu0 0.0
          %3383 = vmatpush2.msra.mxu0 0.0
          %3384 = vmatprep.subr.mxu0 0.0
          %3385 = vmatpush2.msra.mxu0 0.0
          %3386 = vmatprep.subr.mxu0 0.0
          %3387 = vmatpush2.msra.mxu0 0.0
          %3388 = vmatprep.subr.mxu0 0.0
          %3389 = vmatpush2.msra.mxu0 0.0
          %3390 = vmatprep.subr.mxu0 0.0
          %3391 = vmatpush2.msra.mxu0 0.0
          %3392 = vmatprep.subr.mxu0 0.0
          %3393 = vmatpush2.msra.mxu0 0.0
          %3394 = vmatprep.subr.mxu0 0.0
          %3395 = vmatpush2.msra.mxu0 0.0
          %3396 = vmatprep.mubr.f32.mxu0 0.0
          %3397 = vmatmul.mubr.f32.gmra.mxu0 %v3188
          %v3398 = vpop.f32.mrf.mxu0
          %v3399 = vadd.f32 %v3182, %v3398
          %v3400 = vpop.f32.mrf.mxu0
          %v3401 = vadd.f32 %v3184, %v3400
          %3402 = vdwg.mxu0
          %v3403 = vld [vmem:[%s5] sm:$0x3f]
          %v3405 = vlaneseq
          %v3406 = vshrl.u32 %v3405, 7
          %v3407 = vsub.s32 0, %v3406
          %v3408 = vrot.slane %v3403, %v3407
          %v3409 = vlaneseq
          %v3410 = vshrl.u32 %v3409, 7
          %v3411 = vsub.s32 1, %v3410
          %v3412 = vrot.slane %v3403, %v3411
          %v3413 = vlaneseq
          %v3414 = vshrl.u32 %v3413, 7
          %v3415 = vsub.s32 2, %v3414
          %v3416 = vrot.slane %v3403, %v3415
          %v3417 = vlaneseq
          %v3418 = vshrl.u32 %v3417, 7
          %v3419 = vsub.s32 3, %v3418
          %v3420 = vrot.slane %v3403, %v3419
          %v3421 = vlaneseq
          %v3422 = vshrl.u32 %v3421, 7
          %v3423 = vsub.s32 4, %v3422
          %v3424 = vrot.slane %v3403, %v3423
          %v3425 = vlaneseq
          %v3426 = vshrl.u32 %v3425, 7
          %v3427 = vsub.s32 5, %v3426
          %v3428 = vrot.slane %v3403, %v3427
          %v3435 = vadd.f32 %v3257, %v3408
          %v3436 = vadd.f32 %v3259, %v3412
          %v3437 = vadd.f32 %v3328, %v3416
          %v3438 = vadd.f32 %v3330, %v3420
          %v3439 = vadd.f32 %v3399, %v3424
          %v3440 = vadd.f32 %v3401, %v3428
          %v3441 = vld [vmem:[#allocation2] sm:$0xff]
          %v3442 = vld [vmem:[#allocation11] sm:$0xff]
          %v3443 = vld [vmem:[#allocation11 + $0x8] sm:$0xff]
          %v3444 = vld [vmem:[#allocation11 + $0x10] sm:$0xff]
          %v3445 = vld [vmem:[#allocation11 + $0x18] sm:$0xff]
          %v3446 = vld [vmem:[#allocation11 + $0x20] sm:$0xff]
          %v3447 = vld [vmem:[#allocation11 + $0x28] sm:$0xff]
          %v3448 = vld [vmem:[#allocation11 + $0x30] sm:$0xff]
          %v3449 = vld [vmem:[#allocation11 + $0x38] sm:$0xff]
          %v3450 = vld [vmem:[#allocation11 + $0x40] sm:$0xff]
          %v3451 = vld [vmem:[#allocation11 + $0x48] sm:$0xff]
          %v3452 = vld [vmem:[#allocation11 + $0x50] sm:$0xff]
          %v3453 = vld [vmem:[#allocation11 + $0x58] sm:$0xff]
          %v3454 = vld [vmem:[#allocation11 + $0x60] sm:$0xff]
          %v3455 = vld [vmem:[#allocation11 + $0x68] sm:$0xff]
          %v3456 = vld [vmem:[#allocation11 + $0x70] sm:$0xff]
          %v3457 = vld [vmem:[#allocation11 + $0x78] sm:$0xff]
          %v3458 = vld [vmem:[#allocation11 + $0x80] sm:$0xff]
          %v3459 = vld [vmem:[#allocation11 + $0x88] sm:$0xff]
          %v3460 = vld [vmem:[#allocation11 + $0x90] sm:$0xff]
          %v3461 = vld [vmem:[#allocation11 + $0x98] sm:$0xff]
          %v3462 = vld [vmem:[#allocation11 + $0xa0] sm:$0xff]
          %v3463 = vld [vmem:[#allocation11 + $0xa8] sm:$0xff]
          %v3464 = vld [vmem:[#allocation11 + $0xb0] sm:$0xff]
          %v3465 = vld [vmem:[#allocation11 + $0xb8] sm:$0xff]
          %v3466 = vld [vmem:[#allocation11 + $0xc0] sm:$0xff]
          %v3467 = vld [vmem:[#allocation11 + $0xc8] sm:$0xff]
          %v3468 = vld [vmem:[#allocation11 + $0xd0] sm:$0xff]
          %v3469 = vld [vmem:[#allocation11 + $0xd8] sm:$0xff]
          %v3470 = vld [vmem:[#allocation11 + $0xe0] sm:$0xff]
          %v3471 = vld [vmem:[#allocation11 + $0xe8] sm:$0xff]
          %v3472 = vld [vmem:[#allocation11 + $0xf0] sm:$0xff]
          %v3473 = vld [vmem:[#allocation11 + $0xf8] sm:$0xff]
          %v3474 = vld [vmem:[#allocation11 + $0x100] sm:$0xff]
          %v3475 = vld [vmem:[#allocation11 + $0x108] sm:$0xff]
          %v3476 = vld [vmem:[#allocation11 + $0x110] sm:$0xff]
          %v3477 = vld [vmem:[#allocation11 + $0x118] sm:$0xff]
          %v3478 = vld [vmem:[#allocation11 + $0x120] sm:$0xff]
          %v3479 = vld [vmem:[#allocation11 + $0x128] sm:$0xff]
          %v3480 = vld [vmem:[#allocation11 + $0x130] sm:$0xff]
          %v3481 = vld [vmem:[#allocation11 + $0x138] sm:$0xff]
          %v3482 = vld [vmem:[#allocation11 + $0x140] sm:$0xff]
          %v3483 = vld [vmem:[#allocation11 + $0x148] sm:$0xff]
          %v3484 = vld [vmem:[#allocation11 + $0x150] sm:$0xff]
          %v3485 = vld [vmem:[#allocation11 + $0x158] sm:$0xff]
          %v3486 = vld [vmem:[#allocation11 + $0x160] sm:$0xff]
          %v3487 = vld [vmem:[#allocation11 + $0x168] sm:$0xff]
          %v3488 = vld [vmem:[#allocation11 + $0x170] sm:$0xff]
          %v3489 = vld [vmem:[#allocation11 + $0x178] sm:$0xff]
          %v3490 = vld [vmem:[#allocation11 + $0x180] sm:$0xff]
          %v3491 = vld [vmem:[#allocation11 + $0x188] sm:$0xff]
          %v3492 = vld [vmem:[#allocation11 + $0x190] sm:$0xff]
          %v3493 = vld [vmem:[#allocation11 + $0x198] sm:$0xff]
          %v3494 = vld [vmem:[#allocation11 + $0x1a0] sm:$0xff]
          %v3495 = vld [vmem:[#allocation11 + $0x1a8] sm:$0xff]
          %v3496 = vld [vmem:[#allocation11 + $0x1b0] sm:$0xff]
          %v3497 = vld [vmem:[#allocation11 + $0x1b8] sm:$0xff]
          %v3498 = vld [vmem:[#allocation11 + $0x1c0] sm:$0xff]
          %v3499 = vld [vmem:[#allocation11 + $0x1c8] sm:$0xff]
          %v3500 = vld [vmem:[#allocation11 + $0x1d0] sm:$0xff]
          %v3501 = vld [vmem:[#allocation11 + $0x1d8] sm:$0xff]
          %v3502 = vld [vmem:[#allocation11 + $0x1e0] sm:$0xff]
          %v3503 = vld [vmem:[#allocation11 + $0x1e8] sm:$0xff]
          %v3504 = vld [vmem:[#allocation11 + $0x1f0] sm:$0xff]
          %v3505 = vld [vmem:[#allocation11 + $0x1f8] sm:$0xff]
          %v3506 = vld [vmem:[#allocation11 + $0x200] sm:$0xff]
          %v3507 = vld [vmem:[#allocation11 + $0x208] sm:$0xff]
          %v3508 = vld [vmem:[#allocation11 + $0x210] sm:$0xff]
          %v3509 = vld [vmem:[#allocation11 + $0x218] sm:$0xff]
          %v3510 = vld [vmem:[#allocation11 + $0x220] sm:$0xff]
          %v3511 = vld [vmem:[#allocation11 + $0x228] sm:$0xff]
          %v3512 = vld [vmem:[#allocation11 + $0x230] sm:$0xff]
          %v3513 = vld [vmem:[#allocation11 + $0x238] sm:$0xff]
          %v3514 = vld [vmem:[#allocation11 + $0x240] sm:$0xff]
          %v3515 = vld [vmem:[#allocation11 + $0x248] sm:$0xff]
          %v3516 = vld [vmem:[#allocation11 + $0x250] sm:$0xff]
          %v3517 = vld [vmem:[#allocation11 + $0x258] sm:$0xff]
          %v3518 = vld [vmem:[#allocation11 + $0x260] sm:$0xff]
          %v3519 = vld [vmem:[#allocation11 + $0x268] sm:$0xff]
          %v3520 = vld [vmem:[#allocation11 + $0x270] sm:$0xff]
          %v3521 = vld [vmem:[#allocation11 + $0x278] sm:$0xff]
          %v3522 = vld [vmem:[%s7] sm:$0x1f]
          %v3524 = vlaneseq
          %v3525 = vshrl.u32 %v3524, 7
          %v3526 = vsub.s32 0, %v3525
          %v3527 = vrot.slane %v3522, %v3526
          %v3528 = vlaneseq
          %v3529 = vshrl.u32 %v3528, 7
          %v3530 = vsub.s32 1, %v3529
          %v3531 = vrot.slane %v3522, %v3530
          %v3532 = vlaneseq
          %v3533 = vshrl.u32 %v3532, 7
          %v3534 = vsub.s32 2, %v3533
          %v3535 = vrot.slane %v3522, %v3534
          %v3536 = vlaneseq
          %v3537 = vshrl.u32 %v3536, 7
          %v3538 = vsub.s32 3, %v3537
          %v3539 = vrot.slane %v3522, %v3538
          %v3540 = vlaneseq
          %v3541 = vshrl.u32 %v3540, 7
          %v3542 = vsub.s32 4, %v3541
          %v3543 = vrot.slane %v3522, %v3542
          %3549 = vmatprep.subr.mxu0 %v3518
          %3550 = vmatpush1.msra.mxu0 %v3517
          %3551 = vmatprep.subr.mxu0 %v3513
          %3552 = vmatpush1.msra.mxu0 %v3512
          %3553 = vmatprep.subr.mxu0 %v3508
          %3554 = vmatpush1.msra.mxu0 %v3507
          %3555 = vmatprep.subr.mxu0 %v3503
          %3556 = vmatpush1.msra.mxu0 %v3502
          %3557 = vmatprep.subr.mxu0 %v3498
          %3558 = vmatpush1.msra.mxu0 %v3497
          %3559 = vmatprep.subr.mxu0 %v3493
          %3560 = vmatpush1.msra.mxu0 %v3492
          %3561 = vmatprep.subr.mxu0 %v3488
          %3562 = vmatpush1.msra.mxu0 %v3487
          %3563 = vmatprep.subr.mxu0 %v3483
          %3564 = vmatpush1.msra.mxu0 %v3482
          %3565 = vmatprep.subr.mxu0 %v3478
          %3566 = vmatpush1.msra.mxu0 %v3477
          %3567 = vmatprep.subr.mxu0 %v3473
          %3568 = vmatpush1.msra.mxu0 %v3472
          %3569 = vmatprep.subr.mxu0 %v3468
          %3570 = vmatpush1.msra.mxu0 %v3467
          %3571 = vmatprep.subr.mxu0 %v3463
          %3572 = vmatpush1.msra.mxu0 %v3462
          %3573 = vmatprep.subr.mxu0 %v3458
          %3574 = vmatpush1.msra.mxu0 %v3457
          %3575 = vmatprep.subr.mxu0 %v3453
          %3576 = vmatpush1.msra.mxu0 %v3452
          %3577 = vmatprep.subr.mxu0 %v3448
          %3578 = vmatpush1.msra.mxu0 %v3447
          %3579 = vmatprep.subr.mxu0 %v3443
          %3580 = vmatpush1.msra.mxu0 %v3442
          %3581 = vmatprep.subr.mxu0 0.0
          %3582 = vmatpush2.msra.mxu0 0.0
          %3583 = vmatprep.subr.mxu0 0.0
          %3584 = vmatpush2.msra.mxu0 0.0
          %3585 = vmatprep.subr.mxu0 0.0
          %3586 = vmatpush2.msra.mxu0 0.0
          %3587 = vmatprep.subr.mxu0 0.0
          %3588 = vmatpush2.msra.mxu0 0.0
          %3589 = vmatprep.subr.mxu0 0.0
          %3590 = vmatpush2.msra.mxu0 0.0
          %3591 = vmatprep.subr.mxu0 0.0
          %3592 = vmatpush2.msra.mxu0 0.0
          %3593 = vmatprep.subr.mxu0 0.0
          %3594 = vmatpush2.msra.mxu0 0.0
          %3595 = vmatprep.subr.mxu0 0.0
          %3596 = vmatpush2.msra.mxu0 0.0
          %3597 = vmatprep.subr.mxu0 0.0
          %3598 = vmatpush2.msra.mxu0 0.0
          %3599 = vmatprep.subr.mxu0 0.0
          %3600 = vmatpush2.msra.mxu0 0.0
          %3601 = vmatprep.subr.mxu0 0.0
          %3602 = vmatpush2.msra.mxu0 0.0
          %3603 = vmatprep.subr.mxu0 0.0
          %3604 = vmatpush2.msra.mxu0 0.0
          %3605 = vmatprep.subr.mxu0 0.0
          %3606 = vmatpush2.msra.mxu0 0.0
          %3607 = vmatprep.subr.mxu0 0.0
          %3608 = vmatpush2.msra.mxu0 0.0
          %3609 = vmatprep.subr.mxu0 0.0
          %3610 = vmatpush2.msra.mxu0 0.0
          %3611 = vmatprep.subr.mxu0 0.0
          %3612 = vmatpush2.msra.mxu0 0.0
          %3613 = vmatprep.mubr.f32.mxu0 0.0
          %3614 = vmatmul.mubr.f32.gmra.mxu0 %v3441
          %v3615 = vpop.f32.mrf.mxu0
          %v3616 = vadd.f32 %v3527, %v3615
          %v3617 = vpop.f32.mrf.mxu0
          %v3618 = vadd.f32 %v3531, %v3617
          %3619 = vdwg.mxu0
          %3620 = vmatprep.subr.mxu0 %v3520
          %3621 = vmatpush1.msra.mxu0 %v3519
          %3622 = vmatprep.subr.mxu0 %v3515
          %3623 = vmatpush1.msra.mxu0 %v3514
          %3624 = vmatprep.subr.mxu0 %v3510
          %3625 = vmatpush1.msra.mxu0 %v3509
          %3626 = vmatprep.subr.mxu0 %v3505
          %3627 = vmatpush1.msra.mxu0 %v3504
          %3628 = vmatprep.subr.mxu0 %v3500
          %3629 = vmatpush1.msra.mxu0 %v3499
          %3630 = vmatprep.subr.mxu0 %v3495
          %3631 = vmatpush1.msra.mxu0 %v3494
          %3632 = vmatprep.subr.mxu0 %v3490
          %3633 = vmatpush1.msra.mxu0 %v3489
          %3634 = vmatprep.subr.mxu0 %v3485
          %3635 = vmatpush1.msra.mxu0 %v3484
          %3636 = vmatprep.subr.mxu0 %v3480
          %3637 = vmatpush1.msra.mxu0 %v3479
          %3638 = vmatprep.subr.mxu0 %v3475
          %3639 = vmatpush1.msra.mxu0 %v3474
          %3640 = vmatprep.subr.mxu0 %v3470
          %3641 = vmatpush1.msra.mxu0 %v3469
          %3642 = vmatprep.subr.mxu0 %v3465
          %3643 = vmatpush1.msra.mxu0 %v3464
          %3644 = vmatprep.subr.mxu0 %v3460
          %3645 = vmatpush1.msra.mxu0 %v3459
          %3646 = vmatprep.subr.mxu0 %v3455
          %3647 = vmatpush1.msra.mxu0 %v3454
          %3648 = vmatprep.subr.mxu0 %v3450
          %3649 = vmatpush1.msra.mxu0 %v3449
          %3650 = vmatprep.subr.mxu0 %v3445
          %3651 = vmatpush1.msra.mxu0 %v3444
          %3652 = vmatprep.subr.mxu0 0.0
          %3653 = vmatpush2.msra.mxu0 0.0
          %3654 = vmatprep.subr.mxu0 0.0
          %3655 = vmatpush2.msra.mxu0 0.0
          %3656 = vmatprep.subr.mxu0 0.0
          %3657 = vmatpush2.msra.mxu0 0.0
          %3658 = vmatprep.subr.mxu0 0.0
          %3659 = vmatpush2.msra.mxu0 0.0
          %3660 = vmatprep.subr.mxu0 0.0
          %3661 = vmatpush2.msra.mxu0 0.0
          %3662 = vmatprep.subr.mxu0 0.0
          %3663 = vmatpush2.msra.mxu0 0.0
          %3664 = vmatprep.subr.mxu0 0.0
          %3665 = vmatpush2.msra.mxu0 0.0
          %3666 = vmatprep.subr.mxu0 0.0
          %3667 = vmatpush2.msra.mxu0 0.0
          %3668 = vmatprep.subr.mxu0 0.0
          %3669 = vmatpush2.msra.mxu0 0.0
          %3670 = vmatprep.subr.mxu0 0.0
          %3671 = vmatpush2.msra.mxu0 0.0
          %3672 = vmatprep.subr.mxu0 0.0
          %3673 = vmatpush2.msra.mxu0 0.0
          %3674 = vmatprep.subr.mxu0 0.0
          %3675 = vmatpush2.msra.mxu0 0.0
          %3676 = vmatprep.subr.mxu0 0.0
          %3677 = vmatpush2.msra.mxu0 0.0
          %3678 = vmatprep.subr.mxu0 0.0
          %3679 = vmatpush2.msra.mxu0 0.0
          %3680 = vmatprep.subr.mxu0 0.0
          %3681 = vmatpush2.msra.mxu0 0.0
          %3682 = vmatprep.subr.mxu0 0.0
          %3683 = vmatpush2.msra.mxu0 0.0
          %3684 = vmatprep.mubr.f32.mxu0 0.0
          %3685 = vmatmul.mubr.f32.gmra.mxu0 %v3441
          %v3686 = vpop.f32.mrf.mxu0
          %v3687 = vadd.f32 %v3535, %v3686
          %v3688 = vpop.f32.mrf.mxu0
          %v3689 = vadd.f32 %v3539, %v3688
          %3690 = vdwg.mxu0
          %3691 = vmatprep.subr.mxu0 0.0
          %3692 = vmatpush1.msra.mxu0 %v3521
          %3693 = vmatprep.subr.mxu0 0.0
          %3694 = vmatpush1.msra.mxu0 %v3516
          %3695 = vmatprep.subr.mxu0 0.0
          %3696 = vmatpush1.msra.mxu0 %v3511
          %3697 = vmatprep.subr.mxu0 0.0
          %3698 = vmatpush1.msra.mxu0 %v3506
          %3699 = vmatprep.subr.mxu0 0.0
          %3700 = vmatpush1.msra.mxu0 %v3501
          %3701 = vmatprep.subr.mxu0 0.0
          %3702 = vmatpush1.msra.mxu0 %v3496
          %3703 = vmatprep.subr.mxu0 0.0
          %3704 = vmatpush1.msra.mxu0 %v3491
          %3705 = vmatprep.subr.mxu0 0.0
          %3706 = vmatpush1.msra.mxu0 %v3486
          %3707 = vmatprep.subr.mxu0 0.0
          %3708 = vmatpush1.msra.mxu0 %v3481
          %3709 = vmatprep.subr.mxu0 0.0
          %3710 = vmatpush1.msra.mxu0 %v3476
          %3711 = vmatprep.subr.mxu0 0.0
          %3712 = vmatpush1.msra.mxu0 %v3471
          %3713 = vmatprep.subr.mxu0 0.0
          %3714 = vmatpush1.msra.mxu0 %v3466
          %3715 = vmatprep.subr.mxu0 0.0
          %3716 = vmatpush1.msra.mxu0 %v3461
          %3717 = vmatprep.subr.mxu0 0.0
          %3718 = vmatpush1.msra.mxu0 %v3456
          %3719 = vmatprep.subr.mxu0 0.0
          %3720 = vmatpush1.msra.mxu0 %v3451
          %3721 = vmatprep.subr.mxu0 0.0
          %3722 = vmatpush1.msra.mxu0 %v3446
          %3723 = vmatprep.subr.mxu0 0.0
          %3724 = vmatpush2.msra.mxu0 0.0
          %3725 = vmatprep.subr.mxu0 0.0
          %3726 = vmatpush2.msra.mxu0 0.0
          %3727 = vmatprep.subr.mxu0 0.0
          %3728 = vmatpush2.msra.mxu0 0.0
          %3729 = vmatprep.subr.mxu0 0.0
          %3730 = vmatpush2.msra.mxu0 0.0
          %3731 = vmatprep.subr.mxu0 0.0
          %3732 = vmatpush2.msra.mxu0 0.0
          %3733 = vmatprep.subr.mxu0 0.0
          %3734 = vmatpush2.msra.mxu0 0.0
          %3735 = vmatprep.subr.mxu0 0.0
          %3736 = vmatpush2.msra.mxu0 0.0
          %3737 = vmatprep.subr.mxu0 0.0
          %3738 = vmatpush2.msra.mxu0 0.0
          %3739 = vmatprep.subr.mxu0 0.0
          %3740 = vmatpush2.msra.mxu0 0.0
          %3741 = vmatprep.subr.mxu0 0.0
          %3742 = vmatpush2.msra.mxu0 0.0
          %3743 = vmatprep.subr.mxu0 0.0
          %3744 = vmatpush2.msra.mxu0 0.0
          %3745 = vmatprep.subr.mxu0 0.0
          %3746 = vmatpush2.msra.mxu0 0.0
          %3747 = vmatprep.subr.mxu0 0.0
          %3748 = vmatpush2.msra.mxu0 0.0
          %3749 = vmatprep.subr.mxu0 0.0
          %3750 = vmatpush2.msra.mxu0 0.0
          %3751 = vmatprep.subr.mxu0 0.0
          %3752 = vmatpush2.msra.mxu0 0.0
          %3753 = vmatprep.subr.mxu0 0.0
          %3754 = vmatpush2.msra.mxu0 0.0
          %3755 = vmatprep.mubr.f32.mxu0 0.0
          %3756 = vmatmul.mubr.f32.gmra.mxu0 %v3441
          %v3757 = vpop.f32.mrf.mxu0
          %v3758 = vadd.f32 %v3543, %v3757
          %v3759 = vpop.f32.mrf.mxu0
          %3760 = vdwg.mxu0
          %v3761 = vadd.f32 %v3435, %v3616
          %v3762 = vxor.u32 %v3761, 2147483648
          %v3763 = vmul.f32 %v3762, 1.442695
          %v3764 = vpow.pop %v3763
          %v3765 = vadd.f32 %v3764, 1.0
          %v3766 = vrcp.pop %v3765
          %v3767 = vmul.f32 1.0, %v3766
          %v3768 = vadd.f32 %v3436, %v3618
          %v3769 = vxor.u32 %v3768, 2147483648
          %v3770 = vmul.f32 %v3769, 1.442695
          %v3771 = vpow.pop %v3770
          %v3772 = vadd.f32 %v3771, 1.0
          %v3773 = vrcp.pop %v3772
          %v3774 = vmul.f32 1.0, %v3773
          %v3775 = vadd.f32 %v3437, %v3687
          %v3776 = vtanh.pop %v3775
          %v3777 = vadd.f32 %v3438, %v3689
          %v3778 = vxor.u32 %v3777, 2147483648
          %v3779 = vmul.f32 %v3778, 1.442695
          %v3780 = vpow.pop %v3779
          %v3781 = vadd.f32 %v3780, 1.0
          %v3782 = vrcp.pop %v3781
          %v3783 = vmul.f32 1.0, %v3782
          %v3784 = vmul.f32 %v3767, %v3776
          %v3785 = vld [vmem:[#allocation3] sm:$0xff]
          %v3786 = vmul.f32 %v3774, %v3785
          %v3787 = vadd.f32 %v3784, %v3786
          %v3788 = vtanh.pop %v3787
          %v3789 = vmul.f32 %v3783, %v3788
          %v3790 = vadd.f32 %v3439, %v3758
          %v3791 = vxor.u32 %v3790, 2147483648
          %v3792 = vmul.f32 %v3791, 1.442695
          %v3793 = vpow.pop %v3792
          %v3794 = vadd.f32 %v3793, 1.0
          %v3795 = vrcp.pop %v3794
          %v3796 = vmul.f32 1.0, %v3795
          %v3797 = vmul.f32 %v3796, %v3789
          %v3798 = vsub.f32 1.0, %v3796
          %v3799 = vmul.f32 %v3798, %v3440
          %v3800 = vadd.f32 %v3797, %v3799
          %v3801 = vld [vmem:[#allocation13] sm:$0xff]
          %v3802 = vld [vmem:[#allocation13 + $0x8] sm:$0xff]
          %v3803 = vld [vmem:[#allocation13 + $0x10] sm:$0xff]
          %v3804 = vld [vmem:[#allocation13 + $0x18] sm:$0xff]
          %v3805 = vld [vmem:[#allocation13 + $0x20] sm:$0xff]
          %v3806 = vld [vmem:[#allocation13 + $0x28] sm:$0xff]
          %v3807 = vld [vmem:[#allocation13 + $0x30] sm:$0xff]
          %v3808 = vld [vmem:[#allocation13 + $0x38] sm:$0xff]
          %v3809 = vld [vmem:[#allocation13 + $0x40] sm:$0xff]
          %v3810 = vld [vmem:[#allocation13 + $0x48] sm:$0xff]
          %v3811 = vld [vmem:[#allocation13 + $0x50] sm:$0xff]
          %v3812 = vld [vmem:[#allocation13 + $0x58] sm:$0xff]
          %v3813 = vld [vmem:[#allocation13 + $0x60] sm:$0xff]
          %v3814 = vld [vmem:[#allocation13 + $0x68] sm:$0xff]
          %v3815 = vld [vmem:[#allocation13 + $0x70] sm:$0xff]
          %v3816 = vld [vmem:[#allocation13 + $0x78] sm:$0xff]
          %v3817 = vld [vmem:[%s9] sm:$0x1]
          %v3819 = vlaneseq
          %v3820 = vshrl.u32 %v3819, 7
          %v3821 = vsub.s32 0, %v3820
          %v3822 = vrot.slane %v3817, %v3821
          %3824 = vmatprep.subr.mxu0 0.0
          %3825 = vmatpush1.msra.mxu0 %v3816
          %3826 = vmatprep.subr.mxu0 0.0
          %3827 = vmatpush1.msra.mxu0 %v3815
          %3828 = vmatprep.subr.mxu0 0.0
          %3829 = vmatpush1.msra.mxu0 %v3814
          %3830 = vmatprep.subr.mxu0 0.0
          %3831 = vmatpush1.msra.mxu0 %v3813
          %3832 = vmatprep.subr.mxu0 0.0
          %3833 = vmatpush1.msra.mxu0 %v3812
          %3834 = vmatprep.subr.mxu0 0.0
          %3835 = vmatpush1.msra.mxu0 %v3811
          %3836 = vmatprep.subr.mxu0 0.0
          %3837 = vmatpush1.msra.mxu0 %v3810
          %3838 = vmatprep.subr.mxu0 0.0
          %3839 = vmatpush1.msra.mxu0 %v3809
          %3840 = vmatprep.subr.mxu0 0.0
          %3841 = vmatpush1.msra.mxu0 %v3808
          %3842 = vmatprep.subr.mxu0 0.0
          %3843 = vmatpush1.msra.mxu0 %v3807
          %3844 = vmatprep.subr.mxu0 0.0
          %3845 = vmatpush1.msra.mxu0 %v3806
          %3846 = vmatprep.subr.mxu0 0.0
          %3847 = vmatpush1.msra.mxu0 %v3805
          %3848 = vmatprep.subr.mxu0 0.0
          %3849 = vmatpush1.msra.mxu0 %v3804
          %3850 = vmatprep.subr.mxu0 0.0
          %3851 = vmatpush1.msra.mxu0 %v3803
          %3852 = vmatprep.subr.mxu0 0.0
          %3853 = vmatpush1.msra.mxu0 %v3802
          %3854 = vmatprep.subr.mxu0 0.0
          %3855 = vmatpush1.msra.mxu0 %v3801
          %3856 = vmatprep.subr.mxu0 0.0
          %3857 = vmatpush2.msra.mxu0 0.0
          %3858 = vmatprep.subr.mxu0 0.0
          %3859 = vmatpush2.msra.mxu0 0.0
          %3860 = vmatprep.subr.mxu0 0.0
          %3861 = vmatpush2.msra.mxu0 0.0
          %3862 = vmatprep.subr.mxu0 0.0
          %3863 = vmatpush2.msra.mxu0 0.0
          %3864 = vmatprep.subr.mxu0 0.0
          %3865 = vmatpush2.msra.mxu0 0.0
          %3866 = vmatprep.subr.mxu0 0.0
          %3867 = vmatpush2.msra.mxu0 0.0
          %3868 = vmatprep.subr.mxu0 0.0
          %3869 = vmatpush2.msra.mxu0 0.0
          %3870 = vmatprep.subr.mxu0 0.0
          %3871 = vmatpush2.msra.mxu0 0.0
          %3872 = vmatprep.subr.mxu0 0.0
          %3873 = vmatpush2.msra.mxu0 0.0
          %3874 = vmatprep.subr.mxu0 0.0
          %3875 = vmatpush2.msra.mxu0 0.0
          %3876 = vmatprep.subr.mxu0 0.0
          %3877 = vmatpush2.msra.mxu0 0.0
          %3878 = vmatprep.subr.mxu0 0.0
          %3879 = vmatpush2.msra.mxu0 0.0
          %3880 = vmatprep.subr.mxu0 0.0
          %3881 = vmatpush2.msra.mxu0 0.0
          %3882 = vmatprep.subr.mxu0 0.0
          %3883 = vmatpush2.msra.mxu0 0.0
          %3884 = vmatprep.subr.mxu0 0.0
          %3885 = vmatpush2.msra.mxu0 0.0
          %3886 = vmatprep.subr.mxu0 0.0
          %3887 = vmatpush2.msra.mxu0 0.0
          %3888 = vmatprep.mubr.f32.mxu0 0.0
          %3889 = vmatmul.mubr.f32.gmra.mxu0 %v3800
          %v3890 = vpop.f32.mrf.mxu0
          %v3891 = vadd.f32 %v3822, %v3890
          %v3892 = vpop.f32.mrf.mxu0
          %3893 = vdwg.mxu0
          %vm3894 = vcmp.ge.s32.totalorder %v505, 1
          %vm3895 = vcmp.lt.s32.totalorder %v505, 8
          %vm3896 = vmand %vm3894, %vm3895
          %v3897 = vsel %vm3896, %v3891, -inf
          %3898 = vmax.xlane.f32.xlu0 %v3897
          %v3899 = vpop.xlane.xlu0 %3898
          %vm3900 = vcmp.eq.f32.partialorder %v3897, %v3899
          %v3901 = vsel %vm3900, %v505, 128
          %v3902 = vand.u32 %v3901, 65535
          %v3903 = vshra.s32 %v3901, 16
          %v3904 = vcvt.s32.f32 %v3902
          %v3905 = vcvt.s32.f32 %v3903
          %3906 = vmin.xlane.f32.xlu0 %v3905
          %v3907 = vpop.xlane.xlu0 %3906
          %vm3908 = vcmp.eq.f32.partialorder %v3905, %v3907
          %v3909 = vsel %vm3908, %v3904, inf
          %3910 = vmin.xlane.f32.xlu0 %v3909
          %v3911 = vpop.xlane.xlu0 %3910
          %v3912 = vcvt.f32.s32 %v3911
          %v3913 = vcvt.f32.s32 %v3907
          %v3914 = vshll.u32 %v3913, 16
          %v3915 = vadd.s32 %v3914, %v3912
          %s3916 = scalar_lea.vmem %s489, 16
          %v3917 = vld [vmem:[%s3916] sm:$0xff]
          %vm3918 = vcmp.eq.s32.totalorder %v3917, 0
          %v3919 = vsel %vm3918, %v3915, %v3917
          %v3920 = vadd.s32 %v3919, 1
          %3921 = vset.pattern.permute.xlu0 0
          %3922 = vperm.xlu0 %3921, %v3920
          %v3923 = vpop.permute.xlu0 %3922
          %vm3924 = vcmp.eq.s32.totalorder %v505, %v3923
          %v3925 = vsel %vm3924, 1, 0
          %v3926 = vcvt.s32.f32 %v3925
          %v3927 = vld [vmem:[#allocation5] sm:$0xff]
          %v3928 = vld [vmem:[#allocation5 + $0x8] sm:$0xff]
          %vm3929 = vcmask 130048
          %v3931 = vsel %vm3929, %v3926, 0
          %3933 = vmatprep.subr.mxu0 0.0
          %3934 = vmatpush1.msra.mxu0 0.0
          %3935 = vmatprep.subr.mxu0 0.0
          %3936 = vmatpush1.msra.mxu0 0.0
          %3937 = vmatprep.subr.mxu0 0.0
          %3938 = vmatpush1.msra.mxu0 0.0
          %3939 = vmatprep.subr.mxu0 0.0
          %3940 = vmatpush1.msra.mxu0 0.0
          %3941 = vmatprep.subr.mxu0 0.0
          %3942 = vmatpush1.msra.mxu0 0.0
          %3943 = vmatprep.subr.mxu0 0.0
          %3944 = vmatpush1.msra.mxu0 0.0
          %3945 = vmatprep.subr.mxu0 0.0
          %3946 = vmatpush1.msra.mxu0 0.0
          %3947 = vmatprep.subr.mxu0 0.0
          %3948 = vmatpush1.msra.mxu0 0.0
          %3949 = vmatprep.subr.mxu0 0.0
          %3950 = vmatpush1.msra.mxu0 0.0
          %3951 = vmatprep.subr.mxu0 0.0
          %3952 = vmatpush1.msra.mxu0 0.0
          %3953 = vmatprep.subr.mxu0 0.0
          %3954 = vmatpush1.msra.mxu0 0.0
          %3955 = vmatprep.subr.mxu0 0.0
          %3956 = vmatpush1.msra.mxu0 0.0
          %3957 = vmatprep.subr.mxu0 0.0
          %3958 = vmatpush1.msra.mxu0 0.0
          %3959 = vmatprep.subr.mxu0 0.0
          %3960 = vmatpush1.msra.mxu0 0.0
          %3961 = vmatprep.subr.mxu0 0.0
          %3962 = vmatpush1.msra.mxu0 %v3928
          %3963 = vmatprep.subr.mxu0 0.0
          %3964 = vmatpush1.msra.mxu0 %v3927
          %3965 = vmatprep.subr.mxu0 0.0
          %3966 = vmatpush2.msra.mxu0 0.0
          %3967 = vmatprep.subr.mxu0 0.0
          %3968 = vmatpush2.msra.mxu0 0.0
          %3969 = vmatprep.subr.mxu0 0.0
          %3970 = vmatpush2.msra.mxu0 0.0
          %3971 = vmatprep.subr.mxu0 0.0
          %3972 = vmatpush2.msra.mxu0 0.0
          %3973 = vmatprep.subr.mxu0 0.0
          %3974 = vmatpush2.msra.mxu0 0.0
          %3975 = vmatprep.subr.mxu0 0.0
          %3976 = vmatpush2.msra.mxu0 0.0
          %3977 = vmatprep.subr.mxu0 0.0
          %3978 = vmatpush2.msra.mxu0 0.0
          %3979 = vmatprep.subr.mxu0 0.0
          %3980 = vmatpush2.msra.mxu0 0.0
          %3981 = vmatprep.subr.mxu0 0.0
          %3982 = vmatpush2.msra.mxu0 0.0
          %3983 = vmatprep.subr.mxu0 0.0
          %3984 = vmatpush2.msra.mxu0 0.0
          %3985 = vmatprep.subr.mxu0 0.0
          %3986 = vmatpush2.msra.mxu0 0.0
          %3987 = vmatprep.subr.mxu0 0.0
          %3988 = vmatpush2.msra.mxu0 0.0
          %3989 = vmatprep.subr.mxu0 0.0
          %3990 = vmatpush2.msra.mxu0 0.0
          %3991 = vmatprep.subr.mxu0 0.0
          %3992 = vmatpush2.msra.mxu0 0.0
          %3993 = vmatprep.subr.mxu0 0.0
          %3994 = vmatpush2.msra.mxu0 0.0
          %3995 = vmatprep.subr.mxu0 0.0
          %3996 = vmatpush2.msra.mxu0 0.0
          %3997 = vmatprep.mubr.f32.mxu0 0.0
          %3998 = vmatmul.mubr.f32.gmra.mxu0 %v3931
          %v3999 = vpop.f32.mrf.mxu0
          %v4000 = vadd.f32 0.0, %v3999
          %v4001 = vpop.f32.mrf.mxu0
          %4002 = vdwg.mxu0
          %4003 = vst [vmem:[#allocation4] sm:$0xff] %v4000
          %4004 = vst [vmem:[#allocation2] sm:$0xff] %v3800
          %4005 = vst [vmem:[#allocation3] sm:$0xff] %v3787
          %vm4006 = vcmp.eq.s32.totalorder %v505, 14
          %v4007 = vcvt.s32.f32 %v3919
          %4009 = vset.pattern.permute.xlu0 0
          %4010 = vperm.xlu0 %4009, %v4007
          %v4011 = vpop.permute.xlu0 %4010
          %v4013 = vsel %vm4006, %v4011, %v3891
          %s4014 = scalar_lea.vmem %s472, 16 [#allocation14]
          %4015 = vst [vmem:[%s4014] sm:$0xff] %v4013
        $region96: #{tpu_custom_call.1} parent=59 // pred_fallthru
          _
        %s4016 = sadd.s32 %s506, 3
        %p4017 = scmp.lt.s32.totalorder %s4016, 5
        // Predicated region
        $region97: #{tpu_custom_call.1} parent=59 // pred_check
          %p4018 = pneg %p4017
        $region98: #{tpu_custom_call.1} parent=59 // pred_check_branch
          %4020 = sbr.rel (%p4018) target = $region100
        $region99: #{tpu_custom_call.1} parent=59 // pred_region
          %s4021 = scalar_lea.vmem %s480, 24
          %v4022 = vld [vmem:[%s4021] sm:$0xff]
          %v4023 = vld [vmem:[#allocation8] sm:$0xff]
          %v4024 = vld [vmem:[#allocation8 + $0x8] sm:$0xff]
          %v4025 = vld [vmem:[#allocation8 + $0x10] sm:$0xff]
          %v4026 = vld [vmem:[#allocation8 + $0x18] sm:$0xff]
          %v4027 = vld [vmem:[#allocation8 + $0x20] sm:$0xff]
          %v4028 = vld [vmem:[#allocation8 + $0x28] sm:$0xff]
          %v4029 = vld [vmem:[#allocation8 + $0x30] sm:$0xff]
          %v4030 = vld [vmem:[#allocation8 + $0x38] sm:$0xff]
          %v4031 = vld [vmem:[#allocation8 + $0x40] sm:$0xff]
          %v4032 = vld [vmem:[#allocation8 + $0x48] sm:$0xff]
          %v4033 = vld [vmem:[#allocation8 + $0x50] sm:$0xff]
          %v4034 = vld [vmem:[#allocation8 + $0x58] sm:$0xff]
          %v4035 = vld [vmem:[#allocation8 + $0x60] sm:$0xff]
          %v4036 = vld [vmem:[#allocation8 + $0x68] sm:$0xff]
          %v4037 = vld [vmem:[#allocation8 + $0x70] sm:$0xff]
          %v4038 = vld [vmem:[#allocation8 + $0x78] sm:$0xff]
          %v4039 = vld [vmem:[#allocation8 + $0x80] sm:$0xff]
          %v4040 = vld [vmem:[#allocation8 + $0x88] sm:$0xff]
          %v4041 = vld [vmem:[#allocation8 + $0x90] sm:$0xff]
          %v4042 = vld [vmem:[#allocation8 + $0x98] sm:$0xff]
          %v4043 = vld [vmem:[#allocation8 + $0xa0] sm:$0xff]
          %v4044 = vld [vmem:[#allocation8 + $0xa8] sm:$0xff]
          %v4045 = vld [vmem:[#allocation8 + $0xb0] sm:$0xff]
          %v4046 = vld [vmem:[#allocation8 + $0xb8] sm:$0xff]
          %v4047 = vld [vmem:[#allocation4] sm:$0xff]
          %v4048 = vld [vmem:[#allocation10] sm:$0xff]
          %v4049 = vld [vmem:[#allocation10 + $0x8] sm:$0xff]
          %v4050 = vld [vmem:[#allocation10 + $0x10] sm:$0xff]
          %v4051 = vld [vmem:[#allocation10 + $0x18] sm:$0xff]
          %v4052 = vld [vmem:[#allocation10 + $0x20] sm:$0xff]
          %v4053 = vld [vmem:[#allocation10 + $0x28] sm:$0xff]
          %v4054 = vld [vmem:[#allocation10 + $0x30] sm:$0xff]
          %v4055 = vld [vmem:[#allocation10 + $0x38] sm:$0xff]
          %v4056 = vld [vmem:[#allocation10 + $0x40] sm:$0xff]
          %v4057 = vld [vmem:[#allocation10 + $0x48] sm:$0xff]
          %v4058 = vld [vmem:[#allocation10 + $0x50] sm:$0xff]
          %v4059 = vld [vmem:[#allocation10 + $0x58] sm:$0xff]
          %v4060 = vld [vmem:[#allocation10 + $0x60] sm:$0xff]
          %v4061 = vld [vmem:[#allocation10 + $0x68] sm:$0xff]
          %v4062 = vld [vmem:[#allocation10 + $0x70] sm:$0xff]
          %v4063 = vld [vmem:[#allocation10 + $0x78] sm:$0xff]
          %v4064 = vld [vmem:[#allocation10 + $0x80] sm:$0xff]
          %v4065 = vld [vmem:[#allocation10 + $0x88] sm:$0xff]
          %v4066 = vld [vmem:[#allocation10 + $0x90] sm:$0xff]
          %v4067 = vld [vmem:[#allocation10 + $0x98] sm:$0xff]
          %v4068 = vld [vmem:[#allocation10 + $0xa0] sm:$0xff]
          %v4069 = vld [vmem:[#allocation10 + $0xa8] sm:$0xff]
          %v4070 = vld [vmem:[#allocation10 + $0xb0] sm:$0xff]
          %v4071 = vld [vmem:[#allocation10 + $0xb8] sm:$0xff]
          %v4072 = vld [vmem:[#allocation10 + $0xc0] sm:$0xff]
          %v4073 = vld [vmem:[#allocation10 + $0xc8] sm:$0xff]
          %v4074 = vld [vmem:[#allocation10 + $0xd0] sm:$0xff]
          %v4075 = vld [vmem:[#allocation10 + $0xd8] sm:$0xff]
          %v4076 = vld [vmem:[#allocation10 + $0xe0] sm:$0xff]
          %v4077 = vld [vmem:[#allocation10 + $0xe8] sm:$0xff]
          %v4078 = vld [vmem:[#allocation10 + $0xf0] sm:$0xff]
          %v4079 = vld [vmem:[#allocation10 + $0xf8] sm:$0xff]
          %v4080 = vld [vmem:[#allocation10 + $0x100] sm:$0xff]
          %v4081 = vld [vmem:[#allocation10 + $0x108] sm:$0xff]
          %v4082 = vld [vmem:[#allocation10 + $0x110] sm:$0xff]
          %v4083 = vld [vmem:[#allocation10 + $0x118] sm:$0xff]
          %v4084 = vld [vmem:[#allocation10 + $0x120] sm:$0xff]
          %v4085 = vld [vmem:[#allocation10 + $0x128] sm:$0xff]
          %v4086 = vld [vmem:[#allocation10 + $0x130] sm:$0xff]
          %v4087 = vld [vmem:[#allocation10 + $0x138] sm:$0xff]
          %v4088 = vld [vmem:[#allocation10 + $0x140] sm:$0xff]
          %v4089 = vld [vmem:[#allocation10 + $0x148] sm:$0xff]
          %v4090 = vld [vmem:[#allocation10 + $0x150] sm:$0xff]
          %v4091 = vld [vmem:[#allocation10 + $0x158] sm:$0xff]
          %v4092 = vld [vmem:[#allocation10 + $0x160] sm:$0xff]
          %v4093 = vld [vmem:[#allocation10 + $0x168] sm:$0xff]
          %v4094 = vld [vmem:[#allocation10 + $0x170] sm:$0xff]
          %v4095 = vld [vmem:[#allocation10 + $0x178] sm:$0xff]
          %v4096 = vld [vmem:[#allocation10 + $0x180] sm:$0xff]
          %v4097 = vld [vmem:[#allocation10 + $0x188] sm:$0xff]
          %v4098 = vld [vmem:[#allocation10 + $0x190] sm:$0xff]
          %v4099 = vld [vmem:[#allocation10 + $0x198] sm:$0xff]
          %v4100 = vld [vmem:[#allocation10 + $0x1a0] sm:$0xff]
          %v4101 = vld [vmem:[#allocation10 + $0x1a8] sm:$0xff]
          %v4102 = vld [vmem:[#allocation10 + $0x1b0] sm:$0xff]
          %v4103 = vld [vmem:[#allocation10 + $0x1b8] sm:$0xff]
          %v4104 = vld [vmem:[#allocation10 + $0x1c0] sm:$0xff]
          %v4105 = vld [vmem:[#allocation10 + $0x1c8] sm:$0xff]
          %v4106 = vld [vmem:[#allocation10 + $0x1d0] sm:$0xff]
          %v4107 = vld [vmem:[#allocation10 + $0x1d8] sm:$0xff]
          %v4108 = vld [vmem:[#allocation10 + $0x1e0] sm:$0xff]
          %v4109 = vld [vmem:[#allocation10 + $0x1e8] sm:$0xff]
          %v4110 = vld [vmem:[#allocation10 + $0x1f0] sm:$0xff]
          %v4111 = vld [vmem:[#allocation10 + $0x1f8] sm:$0xff]
          %v4112 = vld [vmem:[#allocation10 + $0x200] sm:$0xff]
          %v4113 = vld [vmem:[#allocation10 + $0x208] sm:$0xff]
          %v4114 = vld [vmem:[#allocation10 + $0x210] sm:$0xff]
          %v4115 = vld [vmem:[#allocation10 + $0x218] sm:$0xff]
          %v4116 = vld [vmem:[#allocation10 + $0x220] sm:$0xff]
          %v4117 = vld [vmem:[#allocation10 + $0x228] sm:$0xff]
          %v4118 = vld [vmem:[#allocation10 + $0x230] sm:$0xff]
          %v4119 = vld [vmem:[#allocation10 + $0x238] sm:$0xff]
          %v4120 = vld [vmem:[#allocation10 + $0x240] sm:$0xff]
          %v4121 = vld [vmem:[#allocation10 + $0x248] sm:$0xff]
          %v4122 = vld [vmem:[#allocation10 + $0x250] sm:$0xff]
          %v4123 = vld [vmem:[#allocation10 + $0x258] sm:$0xff]
          %v4124 = vld [vmem:[#allocation10 + $0x260] sm:$0xff]
          %v4125 = vld [vmem:[#allocation10 + $0x268] sm:$0xff]
          %v4126 = vld [vmem:[#allocation10 + $0x270] sm:$0xff]
          %v4127 = vld [vmem:[#allocation10 + $0x278] sm:$0xff]
          %v4128 = vld [vmem:[#allocation10 + $0x280] sm:$0xff]
          %v4129 = vld [vmem:[#allocation10 + $0x288] sm:$0xff]
          %v4130 = vld [vmem:[#allocation10 + $0x290] sm:$0xff]
          %v4131 = vld [vmem:[#allocation10 + $0x298] sm:$0xff]
          %v4132 = vld [vmem:[#allocation10 + $0x2a0] sm:$0xff]
          %v4133 = vld [vmem:[#allocation10 + $0x2a8] sm:$0xff]
          %v4134 = vld [vmem:[#allocation10 + $0x2b0] sm:$0xff]
          %v4135 = vld [vmem:[#allocation10 + $0x2b8] sm:$0xff]
          %v4136 = vld [vmem:[#allocation10 + $0x2c0] sm:$0xff]
          %v4137 = vld [vmem:[#allocation10 + $0x2c8] sm:$0xff]
          %v4138 = vld [vmem:[#allocation10 + $0x2d0] sm:$0xff]
          %v4139 = vld [vmem:[#allocation10 + $0x2d8] sm:$0xff]
          %v4140 = vld [vmem:[#allocation10 + $0x2e0] sm:$0xff]
          %v4141 = vld [vmem:[#allocation10 + $0x2e8] sm:$0xff]
          %v4142 = vld [vmem:[#allocation10 + $0x2f0] sm:$0xff]
          %v4143 = vld [vmem:[#allocation10 + $0x2f8] sm:$0xff]
          %4144 = vmatprep.subr.mxu0 %v4139
          %4145 = vmatpush1.msra.mxu0 %v4138
          %4146 = vmatprep.subr.mxu0 %v4133
          %4147 = vmatpush1.msra.mxu0 %v4132
          %4148 = vmatprep.subr.mxu0 %v4127
          %4149 = vmatpush1.msra.mxu0 %v4126
          %4150 = vmatprep.subr.mxu0 %v4121
          %4151 = vmatpush1.msra.mxu0 %v4120
          %4152 = vmatprep.subr.mxu0 %v4115
          %4153 = vmatpush1.msra.mxu0 %v4114
          %4154 = vmatprep.subr.mxu0 %v4109
          %4155 = vmatpush1.msra.mxu0 %v4108
          %4156 = vmatprep.subr.mxu0 %v4103
          %4157 = vmatpush1.msra.mxu0 %v4102
          %4158 = vmatprep.subr.mxu0 %v4097
          %4159 = vmatpush1.msra.mxu0 %v4096
          %4160 = vmatprep.subr.mxu0 %v4091
          %4161 = vmatpush1.msra.mxu0 %v4090
          %4162 = vmatprep.subr.mxu0 %v4085
          %4163 = vmatpush1.msra.mxu0 %v4084
          %4164 = vmatprep.subr.mxu0 %v4079
          %4165 = vmatpush1.msra.mxu0 %v4078
          %4166 = vmatprep.subr.mxu0 %v4073
          %4167 = vmatpush1.msra.mxu0 %v4072
          %4168 = vmatprep.subr.mxu0 %v4067
          %4169 = vmatpush1.msra.mxu0 %v4066
          %4170 = vmatprep.subr.mxu0 %v4061
          %4171 = vmatpush1.msra.mxu0 %v4060
          %4172 = vmatprep.subr.mxu0 %v4055
          %4173 = vmatpush1.msra.mxu0 %v4054
          %4174 = vmatprep.subr.mxu0 %v4049
          %4175 = vmatpush1.msra.mxu0 %v4048
          %4176 = vmatprep.subr.mxu0 0.0
          %4177 = vmatpush2.msra.mxu0 0.0
          %4178 = vmatprep.subr.mxu0 0.0
          %4179 = vmatpush2.msra.mxu0 0.0
          %4180 = vmatprep.subr.mxu0 0.0
          %4181 = vmatpush2.msra.mxu0 0.0
          %4182 = vmatprep.subr.mxu0 0.0
          %4183 = vmatpush2.msra.mxu0 0.0
          %4184 = vmatprep.subr.mxu0 0.0
          %4185 = vmatpush2.msra.mxu0 0.0
          %4186 = vmatprep.subr.mxu0 0.0
          %4187 = vmatpush2.msra.mxu0 0.0
          %4188 = vmatprep.subr.mxu0 0.0
          %4189 = vmatpush2.msra.mxu0 0.0
          %4190 = vmatprep.subr.mxu0 0.0
          %4191 = vmatpush2.msra.mxu0 0.0
          %4192 = vmatprep.subr.mxu0 0.0
          %4193 = vmatpush2.msra.mxu0 0.0
          %4194 = vmatprep.subr.mxu0 0.0
          %4195 = vmatpush2.msra.mxu0 0.0
          %4196 = vmatprep.subr.mxu0 0.0
          %4197 = vmatpush2.msra.mxu0 0.0
          %4198 = vmatprep.subr.mxu0 0.0
          %4199 = vmatpush2.msra.mxu0 0.0
          %4200 = vmatprep.subr.mxu0 0.0
          %4201 = vmatpush2.msra.mxu0 0.0
          %4202 = vmatprep.subr.mxu0 0.0
          %4203 = vmatpush2.msra.mxu0 0.0
          %4204 = vmatprep.subr.mxu0 0.0
          %4205 = vmatpush2.msra.mxu0 0.0
          %4206 = vmatprep.subr.mxu0 0.0
          %4207 = vmatpush2.msra.mxu0 0.0
          %4208 = vmatprep.mubr.f32.mxu0 0.0
          %4209 = vmatmul.mubr.f32.gmra.mxu0 %v4047
          %v4210 = vpop.f32.mrf.mxu0
          %v4211 = vadd.f32 0.0, %v4210
          %v4212 = vpop.f32.mrf.mxu0
          %v4213 = vadd.f32 0.0, %v4212
          %4214 = vdwg.mxu0
          %4215 = vmatprep.subr.mxu0 %v4141
          %4216 = vmatpush1.msra.mxu0 %v4140
          %4217 = vmatprep.subr.mxu0 %v4135
          %4218 = vmatpush1.msra.mxu0 %v4134
          %4219 = vmatprep.subr.mxu0 %v4129
          %4220 = vmatpush1.msra.mxu0 %v4128
          %4221 = vmatprep.subr.mxu0 %v4123
          %4222 = vmatpush1.msra.mxu0 %v4122
          %4223 = vmatprep.subr.mxu0 %v4117
          %4224 = vmatpush1.msra.mxu0 %v4116
          %4225 = vmatprep.subr.mxu0 %v4111
          %4226 = vmatpush1.msra.mxu0 %v4110
          %4227 = vmatprep.subr.mxu0 %v4105
          %4228 = vmatpush1.msra.mxu0 %v4104
          %4229 = vmatprep.subr.mxu0 %v4099
          %4230 = vmatpush1.msra.mxu0 %v4098
          %4231 = vmatprep.subr.mxu0 %v4093
          %4232 = vmatpush1.msra.mxu0 %v4092
          %4233 = vmatprep.subr.mxu0 %v4087
          %4234 = vmatpush1.msra.mxu0 %v4086
          %4235 = vmatprep.subr.mxu0 %v4081
          %4236 = vmatpush1.msra.mxu0 %v4080
          %4237 = vmatprep.subr.mxu0 %v4075
          %4238 = vmatpush1.msra.mxu0 %v4074
          %4239 = vmatprep.subr.mxu0 %v4069
          %4240 = vmatpush1.msra.mxu0 %v4068
          %4241 = vmatprep.subr.mxu0 %v4063
          %4242 = vmatpush1.msra.mxu0 %v4062
          %4243 = vmatprep.subr.mxu0 %v4057
          %4244 = vmatpush1.msra.mxu0 %v4056
          %4245 = vmatprep.subr.mxu0 %v4051
          %4246 = vmatpush1.msra.mxu0 %v4050
          %4247 = vmatprep.subr.mxu0 0.0
          %4248 = vmatpush2.msra.mxu0 0.0
          %4249 = vmatprep.subr.mxu0 0.0
          %4250 = vmatpush2.msra.mxu0 0.0
          %4251 = vmatprep.subr.mxu0 0.0
          %4252 = vmatpush2.msra.mxu0 0.0
          %4253 = vmatprep.subr.mxu0 0.0
          %4254 = vmatpush2.msra.mxu0 0.0
          %4255 = vmatprep.subr.mxu0 0.0
          %4256 = vmatpush2.msra.mxu0 0.0
          %4257 = vmatprep.subr.mxu0 0.0
          %4258 = vmatpush2.msra.mxu0 0.0
          %4259 = vmatprep.subr.mxu0 0.0
          %4260 = vmatpush2.msra.mxu0 0.0
          %4261 = vmatprep.subr.mxu0 0.0
          %4262 = vmatpush2.msra.mxu0 0.0
          %4263 = vmatprep.subr.mxu0 0.0
          %4264 = vmatpush2.msra.mxu0 0.0
          %4265 = vmatprep.subr.mxu0 0.0
          %4266 = vmatpush2.msra.mxu0 0.0
          %4267 = vmatprep.subr.mxu0 0.0
          %4268 = vmatpush2.msra.mxu0 0.0
          %4269 = vmatprep.subr.mxu0 0.0
          %4270 = vmatpush2.msra.mxu0 0.0
          %4271 = vmatprep.subr.mxu0 0.0
          %4272 = vmatpush2.msra.mxu0 0.0
          %4273 = vmatprep.subr.mxu0 0.0
          %4274 = vmatpush2.msra.mxu0 0.0
          %4275 = vmatprep.subr.mxu0 0.0
          %4276 = vmatpush2.msra.mxu0 0.0
          %4277 = vmatprep.subr.mxu0 0.0
          %4278 = vmatpush2.msra.mxu0 0.0
          %4279 = vmatprep.mubr.f32.mxu0 0.0
          %4280 = vmatmul.mubr.f32.gmra.mxu0 %v4047
          %v4281 = vpop.f32.mrf.mxu0
          %v4282 = vadd.f32 0.0, %v4281
          %v4283 = vpop.f32.mrf.mxu0
          %v4284 = vadd.f32 0.0, %v4283
          %4285 = vdwg.mxu0
          %4286 = vmatprep.subr.mxu0 %v4143
          %4287 = vmatpush1.msra.mxu0 %v4142
          %4288 = vmatprep.subr.mxu0 %v4137
          %4289 = vmatpush1.msra.mxu0 %v4136
          %4290 = vmatprep.subr.mxu0 %v4131
          %4291 = vmatpush1.msra.mxu0 %v4130
          %4292 = vmatprep.subr.mxu0 %v4125
          %4293 = vmatpush1.msra.mxu0 %v4124
          %4294 = vmatprep.subr.mxu0 %v4119
          %4295 = vmatpush1.msra.mxu0 %v4118
          %4296 = vmatprep.subr.mxu0 %v4113
          %4297 = vmatpush1.msra.mxu0 %v4112
          %4298 = vmatprep.subr.mxu0 %v4107
          %4299 = vmatpush1.msra.mxu0 %v4106
          %4300 = vmatprep.subr.mxu0 %v4101
          %4301 = vmatpush1.msra.mxu0 %v4100
          %4302 = vmatprep.subr.mxu0 %v4095
          %4303 = vmatpush1.msra.mxu0 %v4094
          %4304 = vmatprep.subr.mxu0 %v4089
          %4305 = vmatpush1.msra.mxu0 %v4088
          %4306 = vmatprep.subr.mxu0 %v4083
          %4307 = vmatpush1.msra.mxu0 %v4082
          %4308 = vmatprep.subr.mxu0 %v4077
          %4309 = vmatpush1.msra.mxu0 %v4076
          %4310 = vmatprep.subr.mxu0 %v4071
          %4311 = vmatpush1.msra.mxu0 %v4070
          %4312 = vmatprep.subr.mxu0 %v4065
          %4313 = vmatpush1.msra.mxu0 %v4064
          %4314 = vmatprep.subr.mxu0 %v4059
          %4315 = vmatpush1.msra.mxu0 %v4058
          %4316 = vmatprep.subr.mxu0 %v4053
          %4317 = vmatpush1.msra.mxu0 %v4052
          %4318 = vmatprep.subr.mxu0 0.0
          %4319 = vmatpush2.msra.mxu0 0.0
          %4320 = vmatprep.subr.mxu0 0.0
          %4321 = vmatpush2.msra.mxu0 0.0
          %4322 = vmatprep.subr.mxu0 0.0
          %4323 = vmatpush2.msra.mxu0 0.0
          %4324 = vmatprep.subr.mxu0 0.0
          %4325 = vmatpush2.msra.mxu0 0.0
          %4326 = vmatprep.subr.mxu0 0.0
          %4327 = vmatpush2.msra.mxu0 0.0
          %4328 = vmatprep.subr.mxu0 0.0
          %4329 = vmatpush2.msra.mxu0 0.0
          %4330 = vmatprep.subr.mxu0 0.0
          %4331 = vmatpush2.msra.mxu0 0.0
          %4332 = vmatprep.subr.mxu0 0.0
          %4333 = vmatpush2.msra.mxu0 0.0
          %4334 = vmatprep.subr.mxu0 0.0
          %4335 = vmatpush2.msra.mxu0 0.0
          %4336 = vmatprep.subr.mxu0 0.0
          %4337 = vmatpush2.msra.mxu0 0.0
          %4338 = vmatprep.subr.mxu0 0.0
          %4339 = vmatpush2.msra.mxu0 0.0
          %4340 = vmatprep.subr.mxu0 0.0
          %4341 = vmatpush2.msra.mxu0 0.0
          %4342 = vmatprep.subr.mxu0 0.0
          %4343 = vmatpush2.msra.mxu0 0.0
          %4344 = vmatprep.subr.mxu0 0.0
          %4345 = vmatpush2.msra.mxu0 0.0
          %4346 = vmatprep.subr.mxu0 0.0
          %4347 = vmatpush2.msra.mxu0 0.0
          %4348 = vmatprep.subr.mxu0 0.0
          %4349 = vmatpush2.msra.mxu0 0.0
          %4350 = vmatprep.mubr.f32.mxu0 0.0
          %4351 = vmatmul.mubr.f32.gmra.mxu0 %v4047
          %v4352 = vpop.f32.mrf.mxu0
          %v4353 = vadd.f32 0.0, %v4352
          %v4354 = vpop.f32.mrf.mxu0
          %v4355 = vadd.f32 0.0, %v4354
          %4356 = vdwg.mxu0
          %vm4357 = vcmask 261120
          %v4359 = vsel %vm4357, %v4022, 0
          %4361 = vmatprep.subr.mxu0 0.0
          %4362 = vmatpush1.msra.mxu0 0.0
          %4363 = vmatprep.subr.mxu0 0.0
          %4364 = vmatpush1.msra.mxu0 0.0
          %4365 = vmatprep.subr.mxu0 0.0
          %4366 = vmatpush1.msra.mxu0 0.0
          %4367 = vmatprep.subr.mxu0 0.0
          %4368 = vmatpush1.msra.mxu0 0.0
          %4369 = vmatprep.subr.mxu0 0.0
          %4370 = vmatpush1.msra.mxu0 0.0
          %4371 = vmatprep.subr.mxu0 0.0
          %4372 = vmatpush1.msra.mxu0 0.0
          %4373 = vmatprep.subr.mxu0 0.0
          %4374 = vmatpush1.msra.mxu0 0.0
          %4375 = vmatprep.subr.mxu0 0.0
          %4376 = vmatpush1.msra.mxu0 0.0
          %4377 = vmatprep.subr.mxu0 0.0
          %4378 = vmatpush1.msra.mxu0 0.0
          %4379 = vmatprep.subr.mxu0 0.0
          %4380 = vmatpush1.msra.mxu0 0.0
          %4381 = vmatprep.subr.mxu0 0.0
          %4382 = vmatpush1.msra.mxu0 0.0
          %4383 = vmatprep.subr.mxu0 0.0
          %4384 = vmatpush1.msra.mxu0 0.0
          %4385 = vmatprep.subr.mxu0 %v4042
          %4386 = vmatpush1.msra.mxu0 %v4041
          %4387 = vmatprep.subr.mxu0 %v4036
          %4388 = vmatpush1.msra.mxu0 %v4035
          %4389 = vmatprep.subr.mxu0 %v4030
          %4390 = vmatpush1.msra.mxu0 %v4029
          %4391 = vmatprep.subr.mxu0 %v4024
          %4392 = vmatpush1.msra.mxu0 %v4023
          %4393 = vmatprep.subr.mxu0 0.0
          %4394 = vmatpush2.msra.mxu0 0.0
          %4395 = vmatprep.subr.mxu0 0.0
          %4396 = vmatpush2.msra.mxu0 0.0
          %4397 = vmatprep.subr.mxu0 0.0
          %4398 = vmatpush2.msra.mxu0 0.0
          %4399 = vmatprep.subr.mxu0 0.0
          %4400 = vmatpush2.msra.mxu0 0.0
          %4401 = vmatprep.subr.mxu0 0.0
          %4402 = vmatpush2.msra.mxu0 0.0
          %4403 = vmatprep.subr.mxu0 0.0
          %4404 = vmatpush2.msra.mxu0 0.0
          %4405 = vmatprep.subr.mxu0 0.0
          %4406 = vmatpush2.msra.mxu0 0.0
          %4407 = vmatprep.subr.mxu0 0.0
          %4408 = vmatpush2.msra.mxu0 0.0
          %4409 = vmatprep.subr.mxu0 0.0
          %4410 = vmatpush2.msra.mxu0 0.0
          %4411 = vmatprep.subr.mxu0 0.0
          %4412 = vmatpush2.msra.mxu0 0.0
          %4413 = vmatprep.subr.mxu0 0.0
          %4414 = vmatpush2.msra.mxu0 0.0
          %4415 = vmatprep.subr.mxu0 0.0
          %4416 = vmatpush2.msra.mxu0 0.0
          %4417 = vmatprep.subr.mxu0 0.0
          %4418 = vmatpush2.msra.mxu0 0.0
          %4419 = vmatprep.subr.mxu0 0.0
          %4420 = vmatpush2.msra.mxu0 0.0
          %4421 = vmatprep.subr.mxu0 0.0
          %4422 = vmatpush2.msra.mxu0 0.0
          %4423 = vmatprep.subr.mxu0 0.0
          %4424 = vmatpush2.msra.mxu0 0.0
          %4425 = vmatprep.mubr.f32.mxu0 0.0
          %4426 = vmatmul.mubr.f32.gmra.mxu0 %v4359
          %v4427 = vpop.f32.mrf.mxu0
          %v4428 = vadd.f32 %v4211, %v4427
          %v4429 = vpop.f32.mrf.mxu0
          %v4430 = vadd.f32 %v4213, %v4429
          %4431 = vdwg.mxu0
          %4432 = vmatprep.subr.mxu0 0.0
          %4433 = vmatpush1.msra.mxu0 0.0
          %4434 = vmatprep.subr.mxu0 0.0
          %4435 = vmatpush1.msra.mxu0 0.0
          %4436 = vmatprep.subr.mxu0 0.0
          %4437 = vmatpush1.msra.mxu0 0.0
          %4438 = vmatprep.subr.mxu0 0.0
          %4439 = vmatpush1.msra.mxu0 0.0
          %4440 = vmatprep.subr.mxu0 0.0
          %4441 = vmatpush1.msra.mxu0 0.0
          %4442 = vmatprep.subr.mxu0 0.0
          %4443 = vmatpush1.msra.mxu0 0.0
          %4444 = vmatprep.subr.mxu0 0.0
          %4445 = vmatpush1.msra.mxu0 0.0
          %4446 = vmatprep.subr.mxu0 0.0
          %4447 = vmatpush1.msra.mxu0 0.0
          %4448 = vmatprep.subr.mxu0 0.0
          %4449 = vmatpush1.msra.mxu0 0.0
          %4450 = vmatprep.subr.mxu0 0.0
          %4451 = vmatpush1.msra.mxu0 0.0
          %4452 = vmatprep.subr.mxu0 0.0
          %4453 = vmatpush1.msra.mxu0 0.0
          %4454 = vmatprep.subr.mxu0 0.0
          %4455 = vmatpush1.msra.mxu0 0.0
          %4456 = vmatprep.subr.mxu0 %v4044
          %4457 = vmatpush1.msra.mxu0 %v4043
          %4458 = vmatprep.subr.mxu0 %v4038
          %4459 = vmatpush1.msra.mxu0 %v4037
          %4460 = vmatprep.subr.mxu0 %v4032
          %4461 = vmatpush1.msra.mxu0 %v4031
          %4462 = vmatprep.subr.mxu0 %v4026
          %4463 = vmatpush1.msra.mxu0 %v4025
          %4464 = vmatprep.subr.mxu0 0.0
          %4465 = vmatpush2.msra.mxu0 0.0
          %4466 = vmatprep.subr.mxu0 0.0
          %4467 = vmatpush2.msra.mxu0 0.0
          %4468 = vmatprep.subr.mxu0 0.0
          %4469 = vmatpush2.msra.mxu0 0.0
          %4470 = vmatprep.subr.mxu0 0.0
          %4471 = vmatpush2.msra.mxu0 0.0
          %4472 = vmatprep.subr.mxu0 0.0
          %4473 = vmatpush2.msra.mxu0 0.0
          %4474 = vmatprep.subr.mxu0 0.0
          %4475 = vmatpush2.msra.mxu0 0.0
          %4476 = vmatprep.subr.mxu0 0.0
          %4477 = vmatpush2.msra.mxu0 0.0
          %4478 = vmatprep.subr.mxu0 0.0
          %4479 = vmatpush2.msra.mxu0 0.0
          %4480 = vmatprep.subr.mxu0 0.0
          %4481 = vmatpush2.msra.mxu0 0.0
          %4482 = vmatprep.subr.mxu0 0.0
          %4483 = vmatpush2.msra.mxu0 0.0
          %4484 = vmatprep.subr.mxu0 0.0
          %4485 = vmatpush2.msra.mxu0 0.0
          %4486 = vmatprep.subr.mxu0 0.0
          %4487 = vmatpush2.msra.mxu0 0.0
          %4488 = vmatprep.subr.mxu0 0.0
          %4489 = vmatpush2.msra.mxu0 0.0
          %4490 = vmatprep.subr.mxu0 0.0
          %4491 = vmatpush2.msra.mxu0 0.0
          %4492 = vmatprep.subr.mxu0 0.0
          %4493 = vmatpush2.msra.mxu0 0.0
          %4494 = vmatprep.subr.mxu0 0.0
          %4495 = vmatpush2.msra.mxu0 0.0
          %4496 = vmatprep.mubr.f32.mxu0 0.0
          %4497 = vmatmul.mubr.f32.gmra.mxu0 %v4359
          %v4498 = vpop.f32.mrf.mxu0
          %v4499 = vadd.f32 %v4282, %v4498
          %v4500 = vpop.f32.mrf.mxu0
          %v4501 = vadd.f32 %v4284, %v4500
          %4502 = vdwg.mxu0
          %4503 = vmatprep.subr.mxu0 0.0
          %4504 = vmatpush1.msra.mxu0 0.0
          %4505 = vmatprep.subr.mxu0 0.0
          %4506 = vmatpush1.msra.mxu0 0.0
          %4507 = vmatprep.subr.mxu0 0.0
          %4508 = vmatpush1.msra.mxu0 0.0
          %4509 = vmatprep.subr.mxu0 0.0
          %4510 = vmatpush1.msra.mxu0 0.0
          %4511 = vmatprep.subr.mxu0 0.0
          %4512 = vmatpush1.msra.mxu0 0.0
          %4513 = vmatprep.subr.mxu0 0.0
          %4514 = vmatpush1.msra.mxu0 0.0
          %4515 = vmatprep.subr.mxu0 0.0
          %4516 = vmatpush1.msra.mxu0 0.0
          %4517 = vmatprep.subr.mxu0 0.0
          %4518 = vmatpush1.msra.mxu0 0.0
          %4519 = vmatprep.subr.mxu0 0.0
          %4520 = vmatpush1.msra.mxu0 0.0
          %4521 = vmatprep.subr.mxu0 0.0
          %4522 = vmatpush1.msra.mxu0 0.0
          %4523 = vmatprep.subr.mxu0 0.0
          %4524 = vmatpush1.msra.mxu0 0.0
          %4525 = vmatprep.subr.mxu0 0.0
          %4526 = vmatpush1.msra.mxu0 0.0
          %4527 = vmatprep.subr.mxu0 %v4046
          %4528 = vmatpush1.msra.mxu0 %v4045
          %4529 = vmatprep.subr.mxu0 %v4040
          %4530 = vmatpush1.msra.mxu0 %v4039
          %4531 = vmatprep.subr.mxu0 %v4034
          %4532 = vmatpush1.msra.mxu0 %v4033
          %4533 = vmatprep.subr.mxu0 %v4028
          %4534 = vmatpush1.msra.mxu0 %v4027
          %4535 = vmatprep.subr.mxu0 0.0
          %4536 = vmatpush2.msra.mxu0 0.0
          %4537 = vmatprep.subr.mxu0 0.0
          %4538 = vmatpush2.msra.mxu0 0.0
          %4539 = vmatprep.subr.mxu0 0.0
          %4540 = vmatpush2.msra.mxu0 0.0
          %4541 = vmatprep.subr.mxu0 0.0
          %4542 = vmatpush2.msra.mxu0 0.0
          %4543 = vmatprep.subr.mxu0 0.0
          %4544 = vmatpush2.msra.mxu0 0.0
          %4545 = vmatprep.subr.mxu0 0.0
          %4546 = vmatpush2.msra.mxu0 0.0
          %4547 = vmatprep.subr.mxu0 0.0
          %4548 = vmatpush2.msra.mxu0 0.0
          %4549 = vmatprep.subr.mxu0 0.0
          %4550 = vmatpush2.msra.mxu0 0.0
          %4551 = vmatprep.subr.mxu0 0.0
          %4552 = vmatpush2.msra.mxu0 0.0
          %4553 = vmatprep.subr.mxu0 0.0
          %4554 = vmatpush2.msra.mxu0 0.0
          %4555 = vmatprep.subr.mxu0 0.0
          %4556 = vmatpush2.msra.mxu0 0.0
          %4557 = vmatprep.subr.mxu0 0.0
          %4558 = vmatpush2.msra.mxu0 0.0
          %4559 = vmatprep.subr.mxu0 0.0
          %4560 = vmatpush2.msra.mxu0 0.0
          %4561 = vmatprep.subr.mxu0 0.0
          %4562 = vmatpush2.msra.mxu0 0.0
          %4563 = vmatprep.subr.mxu0 0.0
          %4564 = vmatpush2.msra.mxu0 0.0
          %4565 = vmatprep.subr.mxu0 0.0
          %4566 = vmatpush2.msra.mxu0 0.0
          %4567 = vmatprep.mubr.f32.mxu0 0.0
          %4568 = vmatmul.mubr.f32.gmra.mxu0 %v4359
          %v4569 = vpop.f32.mrf.mxu0
          %v4570 = vadd.f32 %v4353, %v4569
          %v4571 = vpop.f32.mrf.mxu0
          %v4572 = vadd.f32 %v4355, %v4571
          %4573 = vdwg.mxu0
          %v4574 = vld [vmem:[%s5] sm:$0x3f]
          %v4576 = vlaneseq
          %v4577 = vshrl.u32 %v4576, 7
          %v4578 = vsub.s32 0, %v4577
          %v4579 = vrot.slane %v4574, %v4578
          %v4580 = vlaneseq
          %v4581 = vshrl.u32 %v4580, 7
          %v4582 = vsub.s32 1, %v4581
          %v4583 = vrot.slane %v4574, %v4582
          %v4584 = vlaneseq
          %v4585 = vshrl.u32 %v4584, 7
          %v4586 = vsub.s32 2, %v4585
          %v4587 = vrot.slane %v4574, %v4586
          %v4588 = vlaneseq
          %v4589 = vshrl.u32 %v4588, 7
          %v4590 = vsub.s32 3, %v4589
          %v4591 = vrot.slane %v4574, %v4590
          %v4592 = vlaneseq
          %v4593 = vshrl.u32 %v4592, 7
          %v4594 = vsub.s32 4, %v4593
          %v4595 = vrot.slane %v4574, %v4594
          %v4596 = vlaneseq
          %v4597 = vshrl.u32 %v4596, 7
          %v4598 = vsub.s32 5, %v4597
          %v4599 = vrot.slane %v4574, %v4598
          %v4606 = vadd.f32 %v4428, %v4579
          %v4607 = vadd.f32 %v4430, %v4583
          %v4608 = vadd.f32 %v4499, %v4587
          %v4609 = vadd.f32 %v4501, %v4591
          %v4610 = vadd.f32 %v4570, %v4595
          %v4611 = vadd.f32 %v4572, %v4599
          %v4612 = vld [vmem:[#allocation2] sm:$0xff]
          %v4613 = vld [vmem:[#allocation11] sm:$0xff]
          %v4614 = vld [vmem:[#allocation11 + $0x8] sm:$0xff]
          %v4615 = vld [vmem:[#allocation11 + $0x10] sm:$0xff]
          %v4616 = vld [vmem:[#allocation11 + $0x18] sm:$0xff]
          %v4617 = vld [vmem:[#allocation11 + $0x20] sm:$0xff]
          %v4618 = vld [vmem:[#allocation11 + $0x28] sm:$0xff]
          %v4619 = vld [vmem:[#allocation11 + $0x30] sm:$0xff]
          %v4620 = vld [vmem:[#allocation11 + $0x38] sm:$0xff]
          %v4621 = vld [vmem:[#allocation11 + $0x40] sm:$0xff]
          %v4622 = vld [vmem:[#allocation11 + $0x48] sm:$0xff]
          %v4623 = vld [vmem:[#allocation11 + $0x50] sm:$0xff]
          %v4624 = vld [vmem:[#allocation11 + $0x58] sm:$0xff]
          %v4625 = vld [vmem:[#allocation11 + $0x60] sm:$0xff]
          %v4626 = vld [vmem:[#allocation11 + $0x68] sm:$0xff]
          %v4627 = vld [vmem:[#allocation11 + $0x70] sm:$0xff]
          %v4628 = vld [vmem:[#allocation11 + $0x78] sm:$0xff]
          %v4629 = vld [vmem:[#allocation11 + $0x80] sm:$0xff]
          %v4630 = vld [vmem:[#allocation11 + $0x88] sm:$0xff]
          %v4631 = vld [vmem:[#allocation11 + $0x90] sm:$0xff]
          %v4632 = vld [vmem:[#allocation11 + $0x98] sm:$0xff]
          %v4633 = vld [vmem:[#allocation11 + $0xa0] sm:$0xff]
          %v4634 = vld [vmem:[#allocation11 + $0xa8] sm:$0xff]
          %v4635 = vld [vmem:[#allocation11 + $0xb0] sm:$0xff]
          %v4636 = vld [vmem:[#allocation11 + $0xb8] sm:$0xff]
          %v4637 = vld [vmem:[#allocation11 + $0xc0] sm:$0xff]
          %v4638 = vld [vmem:[#allocation11 + $0xc8] sm:$0xff]
          %v4639 = vld [vmem:[#allocation11 + $0xd0] sm:$0xff]
          %v4640 = vld [vmem:[#allocation11 + $0xd8] sm:$0xff]
          %v4641 = vld [vmem:[#allocation11 + $0xe0] sm:$0xff]
          %v4642 = vld [vmem:[#allocation11 + $0xe8] sm:$0xff]
          %v4643 = vld [vmem:[#allocation11 + $0xf0] sm:$0xff]
          %v4644 = vld [vmem:[#allocation11 + $0xf8] sm:$0xff]
          %v4645 = vld [vmem:[#allocation11 + $0x100] sm:$0xff]
          %v4646 = vld [vmem:[#allocation11 + $0x108] sm:$0xff]
          %v4647 = vld [vmem:[#allocation11 + $0x110] sm:$0xff]
          %v4648 = vld [vmem:[#allocation11 + $0x118] sm:$0xff]
          %v4649 = vld [vmem:[#allocation11 + $0x120] sm:$0xff]
          %v4650 = vld [vmem:[#allocation11 + $0x128] sm:$0xff]
          %v4651 = vld [vmem:[#allocation11 + $0x130] sm:$0xff]
          %v4652 = vld [vmem:[#allocation11 + $0x138] sm:$0xff]
          %v4653 = vld [vmem:[#allocation11 + $0x140] sm:$0xff]
          %v4654 = vld [vmem:[#allocation11 + $0x148] sm:$0xff]
          %v4655 = vld [vmem:[#allocation11 + $0x150] sm:$0xff]
          %v4656 = vld [vmem:[#allocation11 + $0x158] sm:$0xff]
          %v4657 = vld [vmem:[#allocation11 + $0x160] sm:$0xff]
          %v4658 = vld [vmem:[#allocation11 + $0x168] sm:$0xff]
          %v4659 = vld [vmem:[#allocation11 + $0x170] sm:$0xff]
          %v4660 = vld [vmem:[#allocation11 + $0x178] sm:$0xff]
          %v4661 = vld [vmem:[#allocation11 + $0x180] sm:$0xff]
          %v4662 = vld [vmem:[#allocation11 + $0x188] sm:$0xff]
          %v4663 = vld [vmem:[#allocation11 + $0x190] sm:$0xff]
          %v4664 = vld [vmem:[#allocation11 + $0x198] sm:$0xff]
          %v4665 = vld [vmem:[#allocation11 + $0x1a0] sm:$0xff]
          %v4666 = vld [vmem:[#allocation11 + $0x1a8] sm:$0xff]
          %v4667 = vld [vmem:[#allocation11 + $0x1b0] sm:$0xff]
          %v4668 = vld [vmem:[#allocation11 + $0x1b8] sm:$0xff]
          %v4669 = vld [vmem:[#allocation11 + $0x1c0] sm:$0xff]
          %v4670 = vld [vmem:[#allocation11 + $0x1c8] sm:$0xff]
          %v4671 = vld [vmem:[#allocation11 + $0x1d0] sm:$0xff]
          %v4672 = vld [vmem:[#allocation11 + $0x1d8] sm:$0xff]
          %v4673 = vld [vmem:[#allocation11 + $0x1e0] sm:$0xff]
          %v4674 = vld [vmem:[#allocation11 + $0x1e8] sm:$0xff]
          %v4675 = vld [vmem:[#allocation11 + $0x1f0] sm:$0xff]
          %v4676 = vld [vmem:[#allocation11 + $0x1f8] sm:$0xff]
          %v4677 = vld [vmem:[#allocation11 + $0x200] sm:$0xff]
          %v4678 = vld [vmem:[#allocation11 + $0x208] sm:$0xff]
          %v4679 = vld [vmem:[#allocation11 + $0x210] sm:$0xff]
          %v4680 = vld [vmem:[#allocation11 + $0x218] sm:$0xff]
          %v4681 = vld [vmem:[#allocation11 + $0x220] sm:$0xff]
          %v4682 = vld [vmem:[#allocation11 + $0x228] sm:$0xff]
          %v4683 = vld [vmem:[#allocation11 + $0x230] sm:$0xff]
          %v4684 = vld [vmem:[#allocation11 + $0x238] sm:$0xff]
          %v4685 = vld [vmem:[#allocation11 + $0x240] sm:$0xff]
          %v4686 = vld [vmem:[#allocation11 + $0x248] sm:$0xff]
          %v4687 = vld [vmem:[#allocation11 + $0x250] sm:$0xff]
          %v4688 = vld [vmem:[#allocation11 + $0x258] sm:$0xff]
          %v4689 = vld [vmem:[#allocation11 + $0x260] sm:$0xff]
          %v4690 = vld [vmem:[#allocation11 + $0x268] sm:$0xff]
          %v4691 = vld [vmem:[#allocation11 + $0x270] sm:$0xff]
          %v4692 = vld [vmem:[#allocation11 + $0x278] sm:$0xff]
          %v4693 = vld [vmem:[%s7] sm:$0x1f]
          %v4695 = vlaneseq
          %v4696 = vshrl.u32 %v4695, 7
          %v4697 = vsub.s32 0, %v4696
          %v4698 = vrot.slane %v4693, %v4697
          %v4699 = vlaneseq
          %v4700 = vshrl.u32 %v4699, 7
          %v4701 = vsub.s32 1, %v4700
          %v4702 = vrot.slane %v4693, %v4701
          %v4703 = vlaneseq
          %v4704 = vshrl.u32 %v4703, 7
          %v4705 = vsub.s32 2, %v4704
          %v4706 = vrot.slane %v4693, %v4705
          %v4707 = vlaneseq
          %v4708 = vshrl.u32 %v4707, 7
          %v4709 = vsub.s32 3, %v4708
          %v4710 = vrot.slane %v4693, %v4709
          %v4711 = vlaneseq
          %v4712 = vshrl.u32 %v4711, 7
          %v4713 = vsub.s32 4, %v4712
          %v4714 = vrot.slane %v4693, %v4713
          %4720 = vmatprep.subr.mxu0 %v4689
          %4721 = vmatpush1.msra.mxu0 %v4688
          %4722 = vmatprep.subr.mxu0 %v4684
          %4723 = vmatpush1.msra.mxu0 %v4683
          %4724 = vmatprep.subr.mxu0 %v4679
          %4725 = vmatpush1.msra.mxu0 %v4678
          %4726 = vmatprep.subr.mxu0 %v4674
          %4727 = vmatpush1.msra.mxu0 %v4673
          %4728 = vmatprep.subr.mxu0 %v4669
          %4729 = vmatpush1.msra.mxu0 %v4668
          %4730 = vmatprep.subr.mxu0 %v4664
          %4731 = vmatpush1.msra.mxu0 %v4663
          %4732 = vmatprep.subr.mxu0 %v4659
          %4733 = vmatpush1.msra.mxu0 %v4658
          %4734 = vmatprep.subr.mxu0 %v4654
          %4735 = vmatpush1.msra.mxu0 %v4653
          %4736 = vmatprep.subr.mxu0 %v4649
          %4737 = vmatpush1.msra.mxu0 %v4648
          %4738 = vmatprep.subr.mxu0 %v4644
          %4739 = vmatpush1.msra.mxu0 %v4643
          %4740 = vmatprep.subr.mxu0 %v4639
          %4741 = vmatpush1.msra.mxu0 %v4638
          %4742 = vmatprep.subr.mxu0 %v4634
          %4743 = vmatpush1.msra.mxu0 %v4633
          %4744 = vmatprep.subr.mxu0 %v4629
          %4745 = vmatpush1.msra.mxu0 %v4628
          %4746 = vmatprep.subr.mxu0 %v4624
          %4747 = vmatpush1.msra.mxu0 %v4623
          %4748 = vmatprep.subr.mxu0 %v4619
          %4749 = vmatpush1.msra.mxu0 %v4618
          %4750 = vmatprep.subr.mxu0 %v4614
          %4751 = vmatpush1.msra.mxu0 %v4613
          %4752 = vmatprep.subr.mxu0 0.0
          %4753 = vmatpush2.msra.mxu0 0.0
          %4754 = vmatprep.subr.mxu0 0.0
          %4755 = vmatpush2.msra.mxu0 0.0
          %4756 = vmatprep.subr.mxu0 0.0
          %4757 = vmatpush2.msra.mxu0 0.0
          %4758 = vmatprep.subr.mxu0 0.0
          %4759 = vmatpush2.msra.mxu0 0.0
          %4760 = vmatprep.subr.mxu0 0.0
          %4761 = vmatpush2.msra.mxu0 0.0
          %4762 = vmatprep.subr.mxu0 0.0
          %4763 = vmatpush2.msra.mxu0 0.0
          %4764 = vmatprep.subr.mxu0 0.0
          %4765 = vmatpush2.msra.mxu0 0.0
          %4766 = vmatprep.subr.mxu0 0.0
          %4767 = vmatpush2.msra.mxu0 0.0
          %4768 = vmatprep.subr.mxu0 0.0
          %4769 = vmatpush2.msra.mxu0 0.0
          %4770 = vmatprep.subr.mxu0 0.0
          %4771 = vmatpush2.msra.mxu0 0.0
          %4772 = vmatprep.subr.mxu0 0.0
          %4773 = vmatpush2.msra.mxu0 0.0
          %4774 = vmatprep.subr.mxu0 0.0
          %4775 = vmatpush2.msra.mxu0 0.0
          %4776 = vmatprep.subr.mxu0 0.0
          %4777 = vmatpush2.msra.mxu0 0.0
          %4778 = vmatprep.subr.mxu0 0.0
          %4779 = vmatpush2.msra.mxu0 0.0
          %4780 = vmatprep.subr.mxu0 0.0
          %4781 = vmatpush2.msra.mxu0 0.0
          %4782 = vmatprep.subr.mxu0 0.0
          %4783 = vmatpush2.msra.mxu0 0.0
          %4784 = vmatprep.mubr.f32.mxu0 0.0
          %4785 = vmatmul.mubr.f32.gmra.mxu0 %v4612
          %v4786 = vpop.f32.mrf.mxu0
          %v4787 = vadd.f32 %v4698, %v4786
          %v4788 = vpop.f32.mrf.mxu0
          %v4789 = vadd.f32 %v4702, %v4788
          %4790 = vdwg.mxu0
          %4791 = vmatprep.subr.mxu0 %v4691
          %4792 = vmatpush1.msra.mxu0 %v4690
          %4793 = vmatprep.subr.mxu0 %v4686
          %4794 = vmatpush1.msra.mxu0 %v4685
          %4795 = vmatprep.subr.mxu0 %v4681
          %4796 = vmatpush1.msra.mxu0 %v4680
          %4797 = vmatprep.subr.mxu0 %v4676
          %4798 = vmatpush1.msra.mxu0 %v4675
          %4799 = vmatprep.subr.mxu0 %v4671
          %4800 = vmatpush1.msra.mxu0 %v4670
          %4801 = vmatprep.subr.mxu0 %v4666
          %4802 = vmatpush1.msra.mxu0 %v4665
          %4803 = vmatprep.subr.mxu0 %v4661
          %4804 = vmatpush1.msra.mxu0 %v4660
          %4805 = vmatprep.subr.mxu0 %v4656
          %4806 = vmatpush1.msra.mxu0 %v4655
          %4807 = vmatprep.subr.mxu0 %v4651
          %4808 = vmatpush1.msra.mxu0 %v4650
          %4809 = vmatprep.subr.mxu0 %v4646
          %4810 = vmatpush1.msra.mxu0 %v4645
          %4811 = vmatprep.subr.mxu0 %v4641
          %4812 = vmatpush1.msra.mxu0 %v4640
          %4813 = vmatprep.subr.mxu0 %v4636
          %4814 = vmatpush1.msra.mxu0 %v4635
          %4815 = vmatprep.subr.mxu0 %v4631
          %4816 = vmatpush1.msra.mxu0 %v4630
          %4817 = vmatprep.subr.mxu0 %v4626
          %4818 = vmatpush1.msra.mxu0 %v4625
          %4819 = vmatprep.subr.mxu0 %v4621
          %4820 = vmatpush1.msra.mxu0 %v4620
          %4821 = vmatprep.subr.mxu0 %v4616
          %4822 = vmatpush1.msra.mxu0 %v4615
          %4823 = vmatprep.subr.mxu0 0.0
          %4824 = vmatpush2.msra.mxu0 0.0
          %4825 = vmatprep.subr.mxu0 0.0
          %4826 = vmatpush2.msra.mxu0 0.0
          %4827 = vmatprep.subr.mxu0 0.0
          %4828 = vmatpush2.msra.mxu0 0.0
          %4829 = vmatprep.subr.mxu0 0.0
          %4830 = vmatpush2.msra.mxu0 0.0
          %4831 = vmatprep.subr.mxu0 0.0
          %4832 = vmatpush2.msra.mxu0 0.0
          %4833 = vmatprep.subr.mxu0 0.0
          %4834 = vmatpush2.msra.mxu0 0.0
          %4835 = vmatprep.subr.mxu0 0.0
          %4836 = vmatpush2.msra.mxu0 0.0
          %4837 = vmatprep.subr.mxu0 0.0
          %4838 = vmatpush2.msra.mxu0 0.0
          %4839 = vmatprep.subr.mxu0 0.0
          %4840 = vmatpush2.msra.mxu0 0.0
          %4841 = vmatprep.subr.mxu0 0.0
          %4842 = vmatpush2.msra.mxu0 0.0
          %4843 = vmatprep.subr.mxu0 0.0
          %4844 = vmatpush2.msra.mxu0 0.0
          %4845 = vmatprep.subr.mxu0 0.0
          %4846 = vmatpush2.msra.mxu0 0.0
          %4847 = vmatprep.subr.mxu0 0.0
          %4848 = vmatpush2.msra.mxu0 0.0
          %4849 = vmatprep.subr.mxu0 0.0
          %4850 = vmatpush2.msra.mxu0 0.0
          %4851 = vmatprep.subr.mxu0 0.0
          %4852 = vmatpush2.msra.mxu0 0.0
          %4853 = vmatprep.subr.mxu0 0.0
          %4854 = vmatpush2.msra.mxu0 0.0
          %4855 = vmatprep.mubr.f32.mxu0 0.0
          %4856 = vmatmul.mubr.f32.gmra.mxu0 %v4612
          %v4857 = vpop.f32.mrf.mxu0
          %v4858 = vadd.f32 %v4706, %v4857
          %v4859 = vpop.f32.mrf.mxu0
          %v4860 = vadd.f32 %v4710, %v4859
          %4861 = vdwg.mxu0
          %4862 = vmatprep.subr.mxu0 0.0
          %4863 = vmatpush1.msra.mxu0 %v4692
          %4864 = vmatprep.subr.mxu0 0.0
          %4865 = vmatpush1.msra.mxu0 %v4687
          %4866 = vmatprep.subr.mxu0 0.0
          %4867 = vmatpush1.msra.mxu0 %v4682
          %4868 = vmatprep.subr.mxu0 0.0
          %4869 = vmatpush1.msra.mxu0 %v4677
          %4870 = vmatprep.subr.mxu0 0.0
          %4871 = vmatpush1.msra.mxu0 %v4672
          %4872 = vmatprep.subr.mxu0 0.0
          %4873 = vmatpush1.msra.mxu0 %v4667
          %4874 = vmatprep.subr.mxu0 0.0
          %4875 = vmatpush1.msra.mxu0 %v4662
          %4876 = vmatprep.subr.mxu0 0.0
          %4877 = vmatpush1.msra.mxu0 %v4657
          %4878 = vmatprep.subr.mxu0 0.0
          %4879 = vmatpush1.msra.mxu0 %v4652
          %4880 = vmatprep.subr.mxu0 0.0
          %4881 = vmatpush1.msra.mxu0 %v4647
          %4882 = vmatprep.subr.mxu0 0.0
          %4883 = vmatpush1.msra.mxu0 %v4642
          %4884 = vmatprep.subr.mxu0 0.0
          %4885 = vmatpush1.msra.mxu0 %v4637
          %4886 = vmatprep.subr.mxu0 0.0
          %4887 = vmatpush1.msra.mxu0 %v4632
          %4888 = vmatprep.subr.mxu0 0.0
          %4889 = vmatpush1.msra.mxu0 %v4627
          %4890 = vmatprep.subr.mxu0 0.0
          %4891 = vmatpush1.msra.mxu0 %v4622
          %4892 = vmatprep.subr.mxu0 0.0
          %4893 = vmatpush1.msra.mxu0 %v4617
          %4894 = vmatprep.subr.mxu0 0.0
          %4895 = vmatpush2.msra.mxu0 0.0
          %4896 = vmatprep.subr.mxu0 0.0
          %4897 = vmatpush2.msra.mxu0 0.0
          %4898 = vmatprep.subr.mxu0 0.0
          %4899 = vmatpush2.msra.mxu0 0.0
          %4900 = vmatprep.subr.mxu0 0.0
          %4901 = vmatpush2.msra.mxu0 0.0
          %4902 = vmatprep.subr.mxu0 0.0
          %4903 = vmatpush2.msra.mxu0 0.0
          %4904 = vmatprep.subr.mxu0 0.0
          %4905 = vmatpush2.msra.mxu0 0.0
          %4906 = vmatprep.subr.mxu0 0.0
          %4907 = vmatpush2.msra.mxu0 0.0
          %4908 = vmatprep.subr.mxu0 0.0
          %4909 = vmatpush2.msra.mxu0 0.0
          %4910 = vmatprep.subr.mxu0 0.0
          %4911 = vmatpush2.msra.mxu0 0.0
          %4912 = vmatprep.subr.mxu0 0.0
          %4913 = vmatpush2.msra.mxu0 0.0
          %4914 = vmatprep.subr.mxu0 0.0
          %4915 = vmatpush2.msra.mxu0 0.0
          %4916 = vmatprep.subr.mxu0 0.0
          %4917 = vmatpush2.msra.mxu0 0.0
          %4918 = vmatprep.subr.mxu0 0.0
          %4919 = vmatpush2.msra.mxu0 0.0
          %4920 = vmatprep.subr.mxu0 0.0
          %4921 = vmatpush2.msra.mxu0 0.0
          %4922 = vmatprep.subr.mxu0 0.0
          %4923 = vmatpush2.msra.mxu0 0.0
          %4924 = vmatprep.subr.mxu0 0.0
          %4925 = vmatpush2.msra.mxu0 0.0
          %4926 = vmatprep.mubr.f32.mxu0 0.0
          %4927 = vmatmul.mubr.f32.gmra.mxu0 %v4612
          %v4928 = vpop.f32.mrf.mxu0
          %v4929 = vadd.f32 %v4714, %v4928
          %v4930 = vpop.f32.mrf.mxu0
          %4931 = vdwg.mxu0
          %v4932 = vadd.f32 %v4606, %v4787
          %v4933 = vxor.u32 %v4932, 2147483648
          %v4934 = vmul.f32 %v4933, 1.442695
          %v4935 = vpow.pop %v4934
          %v4936 = vadd.f32 %v4935, 1.0
          %v4937 = vrcp.pop %v4936
          %v4938 = vmul.f32 1.0, %v4937
          %v4939 = vadd.f32 %v4607, %v4789
          %v4940 = vxor.u32 %v4939, 2147483648
          %v4941 = vmul.f32 %v4940, 1.442695
          %v4942 = vpow.pop %v4941
          %v4943 = vadd.f32 %v4942, 1.0
          %v4944 = vrcp.pop %v4943
          %v4945 = vmul.f32 1.0, %v4944
          %v4946 = vadd.f32 %v4608, %v4858
          %v4947 = vtanh.pop %v4946
          %v4948 = vadd.f32 %v4609, %v4860
          %v4949 = vxor.u32 %v4948, 2147483648
          %v4950 = vmul.f32 %v4949, 1.442695
          %v4951 = vpow.pop %v4950
          %v4952 = vadd.f32 %v4951, 1.0
          %v4953 = vrcp.pop %v4952
          %v4954 = vmul.f32 1.0, %v4953
          %v4955 = vmul.f32 %v4938, %v4947
          %v4956 = vld [vmem:[#allocation3] sm:$0xff]
          %v4957 = vmul.f32 %v4945, %v4956
          %v4958 = vadd.f32 %v4955, %v4957
          %v4959 = vtanh.pop %v4958
          %v4960 = vmul.f32 %v4954, %v4959
          %v4961 = vadd.f32 %v4610, %v4929
          %v4962 = vxor.u32 %v4961, 2147483648
          %v4963 = vmul.f32 %v4962, 1.442695
          %v4964 = vpow.pop %v4963
          %v4965 = vadd.f32 %v4964, 1.0
          %v4966 = vrcp.pop %v4965
          %v4967 = vmul.f32 1.0, %v4966
          %v4968 = vmul.f32 %v4967, %v4960
          %v4969 = vsub.f32 1.0, %v4967
          %v4970 = vmul.f32 %v4969, %v4611
          %v4971 = vadd.f32 %v4968, %v4970
          %v4972 = vld [vmem:[#allocation13] sm:$0xff]
          %v4973 = vld [vmem:[#allocation13 + $0x8] sm:$0xff]
          %v4974 = vld [vmem:[#allocation13 + $0x10] sm:$0xff]
          %v4975 = vld [vmem:[#allocation13 + $0x18] sm:$0xff]
          %v4976 = vld [vmem:[#allocation13 + $0x20] sm:$0xff]
          %v4977 = vld [vmem:[#allocation13 + $0x28] sm:$0xff]
          %v4978 = vld [vmem:[#allocation13 + $0x30] sm:$0xff]
          %v4979 = vld [vmem:[#allocation13 + $0x38] sm:$0xff]
          %v4980 = vld [vmem:[#allocation13 + $0x40] sm:$0xff]
          %v4981 = vld [vmem:[#allocation13 + $0x48] sm:$0xff]
          %v4982 = vld [vmem:[#allocation13 + $0x50] sm:$0xff]
          %v4983 = vld [vmem:[#allocation13 + $0x58] sm:$0xff]
          %v4984 = vld [vmem:[#allocation13 + $0x60] sm:$0xff]
          %v4985 = vld [vmem:[#allocation13 + $0x68] sm:$0xff]
          %v4986 = vld [vmem:[#allocation13 + $0x70] sm:$0xff]
          %v4987 = vld [vmem:[#allocation13 + $0x78] sm:$0xff]
          %v4988 = vld [vmem:[%s9] sm:$0x1]
          %v4990 = vlaneseq
          %v4991 = vshrl.u32 %v4990, 7
          %v4992 = vsub.s32 0, %v4991
          %v4993 = vrot.slane %v4988, %v4992
          %4995 = vmatprep.subr.mxu0 0.0
          %4996 = vmatpush1.msra.mxu0 %v4987
          %4997 = vmatprep.subr.mxu0 0.0
          %4998 = vmatpush1.msra.mxu0 %v4986
          %4999 = vmatprep.subr.mxu0 0.0
          %5000 = vmatpush1.msra.mxu0 %v4985
          %5001 = vmatprep.subr.mxu0 0.0
          %5002 = vmatpush1.msra.mxu0 %v4984
          %5003 = vmatprep.subr.mxu0 0.0
          %5004 = vmatpush1.msra.mxu0 %v4983
          %5005 = vmatprep.subr.mxu0 0.0
          %5006 = vmatpush1.msra.mxu0 %v4982
          %5007 = vmatprep.subr.mxu0 0.0
          %5008 = vmatpush1.msra.mxu0 %v4981
          %5009 = vmatprep.subr.mxu0 0.0
          %5010 = vmatpush1.msra.mxu0 %v4980
          %5011 = vmatprep.subr.mxu0 0.0
          %5012 = vmatpush1.msra.mxu0 %v4979
          %5013 = vmatprep.subr.mxu0 0.0
          %5014 = vmatpush1.msra.mxu0 %v4978
          %5015 = vmatprep.subr.mxu0 0.0
          %5016 = vmatpush1.msra.mxu0 %v4977
          %5017 = vmatprep.subr.mxu0 0.0
          %5018 = vmatpush1.msra.mxu0 %v4976
          %5019 = vmatprep.subr.mxu0 0.0
          %5020 = vmatpush1.msra.mxu0 %v4975
          %5021 = vmatprep.subr.mxu0 0.0
          %5022 = vmatpush1.msra.mxu0 %v4974
          %5023 = vmatprep.subr.mxu0 0.0
          %5024 = vmatpush1.msra.mxu0 %v4973
          %5025 = vmatprep.subr.mxu0 0.0
          %5026 = vmatpush1.msra.mxu0 %v4972
          %5027 = vmatprep.subr.mxu0 0.0
          %5028 = vmatpush2.msra.mxu0 0.0
          %5029 = vmatprep.subr.mxu0 0.0
          %5030 = vmatpush2.msra.mxu0 0.0
          %5031 = vmatprep.subr.mxu0 0.0
          %5032 = vmatpush2.msra.mxu0 0.0
          %5033 = vmatprep.subr.mxu0 0.0
          %5034 = vmatpush2.msra.mxu0 0.0
          %5035 = vmatprep.subr.mxu0 0.0
          %5036 = vmatpush2.msra.mxu0 0.0
          %5037 = vmatprep.subr.mxu0 0.0
          %5038 = vmatpush2.msra.mxu0 0.0
          %5039 = vmatprep.subr.mxu0 0.0
          %5040 = vmatpush2.msra.mxu0 0.0
          %5041 = vmatprep.subr.mxu0 0.0
          %5042 = vmatpush2.msra.mxu0 0.0
          %5043 = vmatprep.subr.mxu0 0.0
          %5044 = vmatpush2.msra.mxu0 0.0
          %5045 = vmatprep.subr.mxu0 0.0
          %5046 = vmatpush2.msra.mxu0 0.0
          %5047 = vmatprep.subr.mxu0 0.0
          %5048 = vmatpush2.msra.mxu0 0.0
          %5049 = vmatprep.subr.mxu0 0.0
          %5050 = vmatpush2.msra.mxu0 0.0
          %5051 = vmatprep.subr.mxu0 0.0
          %5052 = vmatpush2.msra.mxu0 0.0
          %5053 = vmatprep.subr.mxu0 0.0
          %5054 = vmatpush2.msra.mxu0 0.0
          %5055 = vmatprep.subr.mxu0 0.0
          %5056 = vmatpush2.msra.mxu0 0.0
          %5057 = vmatprep.subr.mxu0 0.0
          %5058 = vmatpush2.msra.mxu0 0.0
          %5059 = vmatprep.mubr.f32.mxu0 0.0
          %5060 = vmatmul.mubr.f32.gmra.mxu0 %v4971
          %v5061 = vpop.f32.mrf.mxu0
          %v5062 = vadd.f32 %v4993, %v5061
          %v5063 = vpop.f32.mrf.mxu0
          %5064 = vdwg.mxu0
          %vm5065 = vcmp.ge.s32.totalorder %v505, 1
          %vm5066 = vcmp.lt.s32.totalorder %v505, 8
          %vm5067 = vmand %vm5065, %vm5066
          %v5068 = vsel %vm5067, %v5062, -inf
          %5069 = vmax.xlane.f32.xlu0 %v5068
          %v5070 = vpop.xlane.xlu0 %5069
          %vm5071 = vcmp.eq.f32.partialorder %v5068, %v5070
          %v5072 = vsel %vm5071, %v505, 128
          %v5073 = vand.u32 %v5072, 65535
          %v5074 = vshra.s32 %v5072, 16
          %v5075 = vcvt.s32.f32 %v5073
          %v5076 = vcvt.s32.f32 %v5074
          %5077 = vmin.xlane.f32.xlu0 %v5076
          %v5078 = vpop.xlane.xlu0 %5077
          %vm5079 = vcmp.eq.f32.partialorder %v5076, %v5078
          %v5080 = vsel %vm5079, %v5075, inf
          %5081 = vmin.xlane.f32.xlu0 %v5080
          %v5082 = vpop.xlane.xlu0 %5081
          %v5083 = vcvt.f32.s32 %v5082
          %v5084 = vcvt.f32.s32 %v5078
          %v5085 = vshll.u32 %v5084, 16
          %v5086 = vadd.s32 %v5085, %v5083
          %s5087 = scalar_lea.vmem %s489, 24
          %v5088 = vld [vmem:[%s5087] sm:$0xff]
          %vm5089 = vcmp.eq.s32.totalorder %v5088, 0
          %v5090 = vsel %vm5089, %v5086, %v5088
          %v5091 = vadd.s32 %v5090, 1
          %5092 = vset.pattern.permute.xlu0 0
          %5093 = vperm.xlu0 %5092, %v5091
          %v5094 = vpop.permute.xlu0 %5093
          %vm5095 = vcmp.eq.s32.totalorder %v505, %v5094
          %v5096 = vsel %vm5095, 1, 0
          %v5097 = vcvt.s32.f32 %v5096
          %v5098 = vld [vmem:[#allocation5] sm:$0xff]
          %v5099 = vld [vmem:[#allocation5 + $0x8] sm:$0xff]
          %vm5100 = vcmask 130048
          %v5102 = vsel %vm5100, %v5097, 0
          %5104 = vmatprep.subr.mxu0 0.0
          %5105 = vmatpush1.msra.mxu0 0.0
          %5106 = vmatprep.subr.mxu0 0.0
          %5107 = vmatpush1.msra.mxu0 0.0
          %5108 = vmatprep.subr.mxu0 0.0
          %5109 = vmatpush1.msra.mxu0 0.0
          %5110 = vmatprep.subr.mxu0 0.0
          %5111 = vmatpush1.msra.mxu0 0.0
          %5112 = vmatprep.subr.mxu0 0.0
          %5113 = vmatpush1.msra.mxu0 0.0
          %5114 = vmatprep.subr.mxu0 0.0
          %5115 = vmatpush1.msra.mxu0 0.0
          %5116 = vmatprep.subr.mxu0 0.0
          %5117 = vmatpush1.msra.mxu0 0.0
          %5118 = vmatprep.subr.mxu0 0.0
          %5119 = vmatpush1.msra.mxu0 0.0
          %5120 = vmatprep.subr.mxu0 0.0
          %5121 = vmatpush1.msra.mxu0 0.0
          %5122 = vmatprep.subr.mxu0 0.0
          %5123 = vmatpush1.msra.mxu0 0.0
          %5124 = vmatprep.subr.mxu0 0.0
          %5125 = vmatpush1.msra.mxu0 0.0
          %5126 = vmatprep.subr.mxu0 0.0
          %5127 = vmatpush1.msra.mxu0 0.0
          %5128 = vmatprep.subr.mxu0 0.0
          %5129 = vmatpush1.msra.mxu0 0.0
          %5130 = vmatprep.subr.mxu0 0.0
          %5131 = vmatpush1.msra.mxu0 0.0
          %5132 = vmatprep.subr.mxu0 0.0
          %5133 = vmatpush1.msra.mxu0 %v5099
          %5134 = vmatprep.subr.mxu0 0.0
          %5135 = vmatpush1.msra.mxu0 %v5098
          %5136 = vmatprep.subr.mxu0 0.0
          %5137 = vmatpush2.msra.mxu0 0.0
          %5138 = vmatprep.subr.mxu0 0.0
          %5139 = vmatpush2.msra.mxu0 0.0
          %5140 = vmatprep.subr.mxu0 0.0
          %5141 = vmatpush2.msra.mxu0 0.0
          %5142 = vmatprep.subr.mxu0 0.0
          %5143 = vmatpush2.msra.mxu0 0.0
          %5144 = vmatprep.subr.mxu0 0.0
          %5145 = vmatpush2.msra.mxu0 0.0
          %5146 = vmatprep.subr.mxu0 0.0
          %5147 = vmatpush2.msra.mxu0 0.0
          %5148 = vmatprep.subr.mxu0 0.0
          %5149 = vmatpush2.msra.mxu0 0.0
          %5150 = vmatprep.subr.mxu0 0.0
          %5151 = vmatpush2.msra.mxu0 0.0
          %5152 = vmatprep.subr.mxu0 0.0
          %5153 = vmatpush2.msra.mxu0 0.0
          %5154 = vmatprep.subr.mxu0 0.0
          %5155 = vmatpush2.msra.mxu0 0.0
          %5156 = vmatprep.subr.mxu0 0.0
          %5157 = vmatpush2.msra.mxu0 0.0
          %5158 = vmatprep.subr.mxu0 0.0
          %5159 = vmatpush2.msra.mxu0 0.0
          %5160 = vmatprep.subr.mxu0 0.0
          %5161 = vmatpush2.msra.mxu0 0.0
          %5162 = vmatprep.subr.mxu0 0.0
          %5163 = vmatpush2.msra.mxu0 0.0
          %5164 = vmatprep.subr.mxu0 0.0
          %5165 = vmatpush2.msra.mxu0 0.0
          %5166 = vmatprep.subr.mxu0 0.0
          %5167 = vmatpush2.msra.mxu0 0.0
          %5168 = vmatprep.mubr.f32.mxu0 0.0
          %5169 = vmatmul.mubr.f32.gmra.mxu0 %v5102
          %v5170 = vpop.f32.mrf.mxu0
          %v5171 = vadd.f32 0.0, %v5170
          %v5172 = vpop.f32.mrf.mxu0
          %5173 = vdwg.mxu0
          %5174 = vst [vmem:[#allocation4] sm:$0xff] %v5171
          %5175 = vst [vmem:[#allocation2] sm:$0xff] %v4971
          %5176 = vst [vmem:[#allocation3] sm:$0xff] %v4958
          %vm5177 = vcmp.eq.s32.totalorder %v505, 14
          %v5178 = vcvt.s32.f32 %v5090
          %5180 = vset.pattern.permute.xlu0 0
          %5181 = vperm.xlu0 %5180, %v5178
          %v5182 = vpop.permute.xlu0 %5181
          %v5184 = vsel %vm5177, %v5182, %v5062
          %s5185 = scalar_lea.vmem %s472, 24 [#allocation14]
          %5186 = vst [vmem:[%s5185] sm:$0xff] %v5184
        $region100: #{tpu_custom_call.1} parent=59 // pred_fallthru
          _
        %s5187 = sand.u32 %s273, 1
        %s5188 = scalar_lea.sflag [#allocation7], %s5187
        %s5189 = sand.u32 %s273, 1
        %s5190 = smul.addr %s5189, 32
        %s5191 = scalar_lea.vmem [#allocation14], %s5190
        // Predicated region
        $region101: #{tpu_custom_call.1} parent=59 // pred_check
          %p5192 = pneg %p283
        $region102: #{tpu_custom_call.1} parent=59 // pred_check_branch
          %5194 = sbr.rel (%p5192) target = $region104
        $region103: #{tpu_custom_call.1} parent=59 // pred_region
          %s5195 = smul.u32 4, %s32
          %s5197 = ssub.s32 512, 512
          %5198 = vsyncadd %s5188, %s5197
          %s5199 = sadd.s32 %s31, %s5195
          %s5200 = smul.addr %s5199, 128
          %s5201 = scalar_lea.hbm %s10, %s5200
          %s5202 = sshll.u32 %s5191, 4
          %s5203 = int_to_ptr.vmem [resolvable:$true] %s5202
          %5208 = dma.vmem_to_hbm [thread:$0]  %s5203, 512, %s5201, %s5188, 128, 128, 8
        $region104: #{tpu_custom_call.1} parent=59 // pred_fallthru
          _
      $region60: #{tpu_custom_call.1} parent=5 // pred_fallthru
        _
      %p5209 = scmp.le.s32.totalorder 2, %s22
      // Predicated region
      $region105: #{tpu_custom_call.1} parent=5 // pred_check
        %p5210 = pneg %p5209
      $region106: #{tpu_custom_call.1} parent=5 // pred_check_branch
        %5212 = sbr.rel (%p5210) target = $region108
      $region107: #{tpu_custom_call.1} parent=5 // pred_region
        %s5213 = ssub.s32 %s22, 2
        // Predicated region
        $region109: #{tpu_custom_call.1} parent=107 // pred_check
          %p5214 = pneg %p289
        $region110: #{tpu_custom_call.1} parent=107 // pred_check_branch
          %5216 = sbr.rel (%p5214) target = $region112
        $region111: #{tpu_custom_call.1} parent=107 // pred_region
          %s5217 = sand.u32 %s274, 1
          %s5218 = scalar_lea.sflag [#allocation7], %s5217
          %s5219 = sand.u32 %s274, 1
          %s5220 = smul.addr %s5219, 32
          %s5221 = scalar_lea.vmem [#allocation14], %s5220
          %5222 = dma.done %s5218, 512
        $region112: #{tpu_custom_call.1} parent=107 // pred_fallthru
          _
      $region108: #{tpu_custom_call.1} parent=5 // pred_fallthru
        _
    $region6: #{tpu_custom_call.1} parent=1 // loop_footer
      %s26 = sadd.s32 1, %s22
    $region7: #{tpu_custom_call.1} parent=1 // loop_footer_branch
      %21 = sbr.rel target = $region3
    $region8: #{tpu_custom_call.1} parent=1 // loop_exit
      _
    %5223 = vsyncpa [#allocation6], 1
    %s5224 = scalar_lea.sflag [#allocation6], 1
    %5225 = vsyncpa %s5224, 1
    %5226 = vsyncpa [#allocation9], 1
    %5227 = vsyncpa [#allocation12], 1
    %5228 = vsyncpa [#allocation7], 1
    %s5229 = scalar_lea.sflag [#allocation7], 1
    %5230 = vsyncpa %s5229, 1

</llo_original>
